<compile_context>
chip_gen: v7x
topology: tpu7x:2x2x1
jax: 0.10.0
libtpu: 0.0.40
codegen_flags: <defaults>
</compile_context>

<pallas_src>
import functools
import math

import jax
import jax.numpy as jnp
from jax import lax
from jax.experimental import pallas as pl
from jax.experimental.pallas import tpu as pltpu

# ----------------------------- model hyper-params -----------------------------
B, T, S, D, H, DFF = 2, 8, 8, 32, 4, 64
DK = D // H
EPS = 1e-6


# ------------------------------ fused Pallas kernel ----------------------------
def _decoder_layer_kernel(
    x_ref, mem_ref, tgt_mask_ref, src_mask_ref,
    ln_a_ref, ln_b_ref,
    sa_wq_ref, sa_wk_ref, sa_wv_ref, sa_bqkv_ref, sa_wo_ref, sa_bo_ref,
    ca_wq_ref, ca_wk_ref, ca_wv_ref, ca_bqkv_ref, ca_wo_ref, ca_bo_ref,
    w1_ref, b1_ref, w2_ref, b2_ref,
    o_ref, *, b, h, eps,
):
    x = x_ref[...]                      # [B*T, D]  (whole batch, single grid step)
    mem = mem_ref[...]                  # [B*S, D]
    bt, d = x.shape
    t = bt // b
    s = mem.shape[0] // b
    dk = d // h
    scale = 1.0 / math.sqrt(dk)

    ln_a = ln_a_ref[...]                # [3, D]
    ln_b = ln_b_ref[...]                # [3, D]
    sa_b = sa_bqkv_ref[...]             # [3, D]
    ca_b = ca_bqkv_ref[...]             # [3, D]

    def layer_norm(v, i):
        # Quirky LayerNorm from the PyTorch spec: subtract SUM (not mean),
        # divide by unbiased std.  One row-sum; per-row reciprocal.
        a = ln_a[i:i + 1, :]                                    # [1, D]
        bet = ln_b[i:i + 1, :]                                  # [1, D]
        v_sum = jnp.sum(v, axis=-1, keepdims=True)              # x.sum(-1)
        v_mean = v_sum * (1.0 / d)
        var = jnp.sum((v - v_mean) ** 2, axis=-1, keepdims=True) * (1.0 / (d - 1))
        inv = 1.0 / (jnp.sqrt(var) + eps)                       # [rows, 1] reciprocal
        return a * ((v - v_sum) * inv) + bet

    def mh_attention(q, k, v, bias_per_batch, wo_ref, bo, tq, tk):
        # q: [B*tq, D]; k, v: [B*tk, D]; bias_per_batch[bi] broadcastable to [tq, tk].
        outs = []
        for bi in range(b):                                     # unrolled (B=2)
            qb = q[bi * tq:(bi + 1) * tq, :]                    # sublane-aligned row slice
            kb = k[bi * tk:(bi + 1) * tk, :]
            vb = v[bi * tk:(bi + 1) * tk, :]
            bias = bias_per_batch[bi]                           # hoisted additive mask
            acc = jnp.zeros((tq, d), jnp.float32)
            for hi in range(h):                                 # unrolled (H=4)
                qh = qb[:, hi * dk:(hi + 1) * dk]               # [tq, dk]
                kh = kb[:, hi * dk:(hi + 1) * dk]               # [tk, dk]
                vh = vb[:, hi * dk:(hi + 1) * dk]               # [tk, dk]
                # scores: contract last dims directly (no materialized K^T)
                sc = lax.dot_general(qh, kh, (((1,), (1,)), ((), ())),
                                     preferred_element_type=jnp.float32)
                sc = sc * scale + bias
                sc = sc - jnp.max(sc, axis=-1, keepdims=True)
                p = jnp.exp(sc)
                p = p * pl.reciprocal(jnp.sum(p, axis=-1, keepdims=True), approx=True)
                oh = jnp.dot(p, vh, preferred_element_type=jnp.float32)   # [tq, dk]
                # per-head output projection through a sublane-aligned row block of
                # W_O; removes the lane-concatenate over heads.
                acc = acc + jnp.dot(oh, wo_ref[hi * dk:(hi + 1) * dk, :],
                                    preferred_element_type=jnp.float32)
            outs.append(acc)
        return jnp.concatenate(outs, axis=0) + bo               # [B*tq, D]

    # Additive mask biases, computed once (hoisted out of batch & head loops).
    neg = jnp.float32(-1e9)
    tgt_bias = jnp.where(tgt_mask_ref[...] == 0.0, neg, 0.0)    # [T, T]
    src_bias = jnp.where(src_mask_ref[...] == 0.0, neg, 0.0)    # [B, S]

    # ---- sublayer 0: x + self_attn(LN0(x))  (dropout = identity, eval mode) ----
    x0 = layer_norm(x, 0)
    q = jnp.dot(x0, sa_wq_ref[...], preferred_element_type=jnp.float32) + sa_b[0:1, :]
    k = jnp.dot(x0, sa_wk_ref[...], preferred_element_type=jnp.float32) + sa_b[1:2, :]
    v = jnp.dot(x0, sa_wv_ref[...], preferred_element_type=jnp.float32) + sa_b[2:3, :]
    x = x + mh_attention(q, k, v, [tgt_bias] * b, sa_wo_ref, sa_bo_ref[...], t, t)

    # ---- sublayer 1: x + src_attn(LN1(x), memory, memory) ----
    x1 = layer_norm(x, 1)
    q = jnp.dot(x1, ca_wq_ref[...], preferred_element_type=jnp.float32) + ca_b[0:1, :]
    k = jnp.dot(mem, ca_wk_ref[...], preferred_element_type=jnp.float32) + ca_b[1:2, :]
    v = jnp.dot(mem, ca_wv_ref[...], preferred_element_type=jnp.float32) + ca_b[2:3, :]
    x = x + mh_attention(q, k, v,
                         [src_bias[bi:bi + 1, :] for bi in range(b)],
                         ca_wo_ref, ca_bo_ref[...], t, s)

    # ---- sublayer 2: x + FFN(LN2(x)) ----
    x2 = layer_norm(x, 2)
    hdn = jnp.dot(x2, w1_ref[...], preferred_element_type=jnp.float32) + b1_ref[...]
    hdn = jnp.maximum(hdn, 0.0)
    x = x + jnp.dot(hdn, w2_ref[...], preferred_element_type=jnp.float32) + b2_ref[...]

    o_ref[...] = x


def decoder_layer(params, x, memory, src_mask, tgt_mask):
    b, t, d = x.shape
    s = memory.shape[1]
    sa, ca, f = params["self_attn"], params["src_attn"], params["ffn"]

    args = (
        x.reshape(b * t, d),            # stacked rows: single grid step handles all of B
        memory.reshape(b * s, d),
        tgt_mask[0],                    # [T, T] (shared across batch)
        src_mask[:, 0, :],              # [B, S]
        params["ln_a"], params["ln_b"],
        sa["wq"], sa["wk"], sa["wv"], sa["bqkv"], sa["wo"], sa["bo"],
        ca["wq"], ca["wk"], ca["wv"], ca["bqkv"], ca["wo"], ca["bo"],
        f["w1"], f["b1"], f["w2"], f["b2"],
    )

    # Everything is VMEM-resident for the single step; guard against a future
    # scale-up silently blowing the 64 MiB (v7x) / 128 MiB (v5e/v6e) VMEM budget.
    resident = sum(int(a.size) * a.dtype.itemsize for a in args) + b * t * d * 4
    assert resident < 8 * 1024 * 1024, \
        "decoder_layer: VMEM-resident footprint grew; re-check tiling before scaling up."

    full = lambda shape: pl.BlockSpec(shape, lambda i: (0,) * len(shape))
    out2 = pl.pallas_call(
        functools.partial(_decoder_layer_kernel, b=b, h=H, eps=EPS),
        out_shape=jax.ShapeDtypeStruct((b * t, d), jnp.float32),
        grid=(1,),                      # single step: whole layer, one launch
        in_specs=[full(a.shape) for a in args],
        out_specs=full((b * t, d)),
        compiler_params=pltpu.CompilerParams(dimension_semantics=("arbitrary",)),
    )(*args)
    return out2.reshape(b, t, d)


# --------------------------- pure-JAX reference check ---------------------------
def _ref_layernorm(x, a, bta, eps=EPS):
    s = jnp.sum(x, -1, keepdims=True)
    m = jnp.mean(x, -1, keepdims=True)
    std = jnp.sqrt(jnp.sum((x - m) ** 2, -1, keepdims=True) / (x.shape[-1] - 1))
    return a * (x - s) / (std + eps) + bta


def _ref_mha(q, k, v, mask, wo, bo, h):
    b, tq, d = q.shape
    tk = k.shape[1]
    dk = d // h
    Q = q.reshape(b, tq, h, dk).transpose(0, 2, 1, 3)
    K = k.reshape(b, tk, h, dk).transpose(0, 2, 1, 3)
    V = v.reshape(b, tk, h, dk).transpose(0, 2, 1, 3)
    scores = Q @ K.transpose(0, 1, 3, 2) / math.sqrt(dk)
    scores = jnp.where(mask[:, None] == 0, -1e9, scores)
    attn = jax.nn.softmax(scores, -1)
    out = (attn @ V).transpose(0, 2, 1, 3).reshape(b, tq, d)
    return out @ wo + bo


def _ref_decoder(params, x, memory, src_mask, tgt_mask):
    ln_a, ln_b = params["ln_a"], params["ln_b"]
    sa, ca, f = params["self_attn"], params["src_attn"], params["ffn"]
    # sublayer 0
    ln0 = _ref_layernorm(x, ln_a[0], ln_b[0])
    q = ln0 @ sa["wq"] + sa["bqkv"][0]
    k = ln0 @ sa["wk"] + sa["bqkv"][1]
    v = ln0 @ sa["wv"] + sa["bqkv"][2]
    x = x + _ref_mha(q, k, v, tgt_mask, sa["wo"], sa["bo"][0], H)
    # sublayer 1
    ln1 = _ref_layernorm(x, ln_a[1], ln_b[1])
    q = ln1 @ ca["wq"] + ca["bqkv"][0]
    k = memory @ ca["wk"] + ca["bqkv"][1]
    v = memory @ ca["wv"] + ca["bqkv"][2]
    x = x + _ref_mha(q, k, v, src_mask, ca["wo"], ca["bo"][0], H)
    # sublayer 2
    ln2 = _ref_layernorm(x, ln_a[2], ln_b[2])
    hdn = jnp.maximum(ln2 @ f["w1"] + f["b1"][0], 0.0)
    return x + hdn @ f["w2"] + f["b2"][0]


# ----------------------------------- main -----------------------------------
def _init_attn(key, d):
    ks = jax.random.split(key, 4)
    mk = lambda k, shp: jax.random.normal(k, shp, jnp.float32) * 0.05
    return {
        "wq": mk(ks[0], (d, d)), "wk": mk(ks[1], (d, d)), "wv": mk(ks[2], (d, d)),
        "bqkv": jnp.zeros((3, d), jnp.float32),
        "wo": mk(ks[3], (d, d)), "bo": jnp.zeros((1, d), jnp.float32),
    }


if __name__ == "__main__":
    key = jax.random.PRNGKey(0)
    k_x, k_mem, k_sa, k_ca, k_ff1, k_ff2 = jax.random.split(key, 6)

    x = jax.random.normal(k_x, (B, T, D), jnp.float32)
    memory = jax.random.normal(k_mem, (B, S, D), jnp.float32)
    tgt_mask = jnp.tril(jnp.ones((1, T, T), jnp.float32))      # causal
    src_mask = jnp.ones((B, 1, S), jnp.float32)                # no source padding

    params = {
        "self_attn": _init_attn(k_sa, D),
        "src_attn": _init_attn(k_ca, D),
        "ffn": {
            "w1": jax.random.normal(k_ff1, (D, DFF), jnp.float32) * 0.05,
            "b1": jnp.zeros((1, DFF), jnp.float32),
            "w2": jax.random.normal(k_ff2, (DFF, D), jnp.float32) * 0.05,
            "b2": jnp.zeros((1, D), jnp.float32),
        },
        "ln_a": jnp.ones((3, D), jnp.float32),
        "ln_b": jnp.zeros((3, D), jnp.float32),
    }

    out = decoder_layer(params, x, memory, src_mask, tgt_mask)
    out = jax.block_until_ready(out)

    ref = _ref_decoder(params, x, memory, src_mask, tgt_mask)
    assert out.shape == (B, T, D)
    assert jnp.allclose(out, ref, atol=2e-2, rtol=2e-2), "mismatch vs pure-JAX reference"

    print("KERNEL_OK")
</pallas_src>

<mosaic_0001>
module attributes {stable_mosaic.version = 11 : i64} {
  func.func @_decoder_layer_kernel(%arg0: i32, %arg1: memref<16x32xf32, #tpu.memory_space<vmem>>, %arg2: memref<16x32xf32, #tpu.memory_space<vmem>>, %arg3: memref<8x8xf32, #tpu.memory_space<vmem>>, %arg4: memref<2x8xf32, #tpu.memory_space<vmem>>, %arg5: memref<3x32xf32, #tpu.memory_space<vmem>>, %arg6: memref<3x32xf32, #tpu.memory_space<vmem>>, %arg7: memref<32x32xf32, #tpu.memory_space<vmem>>, %arg8: memref<32x32xf32, #tpu.memory_space<vmem>>, %arg9: memref<32x32xf32, #tpu.memory_space<vmem>>, %arg10: memref<3x32xf32, #tpu.memory_space<vmem>>, %arg11: memref<32x32xf32, #tpu.memory_space<vmem>>, %arg12: memref<1x32xf32, #tpu.memory_space<vmem>>, %arg13: memref<32x32xf32, #tpu.memory_space<vmem>>, %arg14: memref<32x32xf32, #tpu.memory_space<vmem>>, %arg15: memref<32x32xf32, #tpu.memory_space<vmem>>, %arg16: memref<3x32xf32, #tpu.memory_space<vmem>>, %arg17: memref<32x32xf32, #tpu.memory_space<vmem>>, %arg18: memref<1x32xf32, #tpu.memory_space<vmem>>, %arg19: memref<32x64xf32, #tpu.memory_space<vmem>>, %arg20: memref<1x64xf32, #tpu.memory_space<vmem>>, %arg21: memref<64x32xf32, #tpu.memory_space<vmem>>, %arg22: memref<1x32xf32, #tpu.memory_space<vmem>>, %arg23: memref<16x32xf32, #tpu.memory_space<vmem>>) attributes {dimension_semantics = [#tpu.dimension_semantics<arbitrary>], iteration_bounds = array<i64: 1>, scalar_prefetch = 0 : i64, scratch_operands = 0 : i64, tpu.core_type = #tpu.core_type<tc>, window_params = [{pipeline_mode = #tpu.pipeline_mode<synchronous>, transform_indices = @transform_0, window_bounds = array<i64: 16, 32>}, {pipeline_mode = #tpu.pipeline_mode<synchronous>, transform_indices = @transform_1, window_bounds = array<i64: 16, 32>}, {pipeline_mode = #tpu.pipeline_mode<synchronous>, transform_indices = @transform_2, window_bounds = array<i64: 8, 8>}, {pipeline_mode = #tpu.pipeline_mode<synchronous>, transform_indices = @transform_3, window_bounds = array<i64: 2, 8>}, {pipeline_mode = #tpu.pipeline_mode<synchronous>, transform_indices = @transform_4, window_bounds = array<i64: 3, 32>}, {pipeline_mode = #tpu.pipeline_mode<synchronous>, transform_indices = @transform_5, window_bounds = array<i64: 3, 32>}, {pipeline_mode = #tpu.pipeline_mode<synchronous>, transform_indices = @transform_6, window_bounds = array<i64: 32, 32>}, {pipeline_mode = #tpu.pipeline_mode<synchronous>, transform_indices = @transform_7, window_bounds = array<i64: 32, 32>}, {pipeline_mode = #tpu.pipeline_mode<synchronous>, transform_indices = @transform_8, window_bounds = array<i64: 32, 32>}, {pipeline_mode = #tpu.pipeline_mode<synchronous>, transform_indices = @transform_9, window_bounds = array<i64: 3, 32>}, {pipeline_mode = #tpu.pipeline_mode<synchronous>, transform_indices = @transform_10, window_bounds = array<i64: 32, 32>}, {pipeline_mode = #tpu.pipeline_mode<synchronous>, transform_indices = @transform_11, window_bounds = array<i64: 1, 32>}, {pipeline_mode = #tpu.pipeline_mode<synchronous>, transform_indices = @transform_12, window_bounds = array<i64: 32, 32>}, {pipeline_mode = #tpu.pipeline_mode<synchronous>, transform_indices = @transform_13, window_bounds = array<i64: 32, 32>}, {pipeline_mode = #tpu.pipeline_mode<synchronous>, transform_indices = @transform_14, window_bounds = array<i64: 32, 32>}, {pipeline_mode = #tpu.pipeline_mode<synchronous>, transform_indices = @transform_15, window_bounds = array<i64: 3, 32>}, {pipeline_mode = #tpu.pipeline_mode<synchronous>, transform_indices = @transform_16, window_bounds = array<i64: 32, 32>}, {pipeline_mode = #tpu.pipeline_mode<synchronous>, transform_indices = @transform_17, window_bounds = array<i64: 1, 32>}, {pipeline_mode = #tpu.pipeline_mode<synchronous>, transform_indices = @transform_18, window_bounds = array<i64: 32, 64>}, {pipeline_mode = #tpu.pipeline_mode<synchronous>, transform_indices = @transform_19, window_bounds = array<i64: 1, 64>}, {pipeline_mode = #tpu.pipeline_mode<synchronous>, transform_indices = @transform_20, window_bounds = array<i64: 64, 32>}, {pipeline_mode = #tpu.pipeline_mode<synchronous>, transform_indices = @transform_21, window_bounds = array<i64: 1, 32>}, {pipeline_mode = #tpu.pipeline_mode<synchronous>, transform_indices = @transform_22, window_bounds = array<i64: 16, 32>}]} {
    %c0 = arith.constant 0 : index
    %c0_0 = arith.constant 0 : index
    %0 = vector.load %arg1[%c0, %c0_0] : memref<16x32xf32, #tpu.memory_space<vmem>>, vector<16x32xf32>
    %c0_1 = arith.constant 0 : index
    %c0_2 = arith.constant 0 : index
    %1 = vector.load %arg2[%c0_1, %c0_2] : memref<16x32xf32, #tpu.memory_space<vmem>>, vector<16x32xf32>
    %c0_3 = arith.constant 0 : index
    %c0_4 = arith.constant 0 : index
    %2 = vector.load %arg5[%c0_3, %c0_4] : memref<3x32xf32, #tpu.memory_space<vmem>>, vector<3x32xf32>
    %c0_5 = arith.constant 0 : index
    %c0_6 = arith.constant 0 : index
    %3 = vector.load %arg6[%c0_5, %c0_6] : memref<3x32xf32, #tpu.memory_space<vmem>>, vector<3x32xf32>
    %c0_7 = arith.constant 0 : index
    %c0_8 = arith.constant 0 : index
    %4 = vector.load %arg10[%c0_7, %c0_8] : memref<3x32xf32, #tpu.memory_space<vmem>>, vector<3x32xf32>
    %c0_9 = arith.constant 0 : index
    %c0_10 = arith.constant 0 : index
    %5 = vector.load %arg16[%c0_9, %c0_10] : memref<3x32xf32, #tpu.memory_space<vmem>>, vector<3x32xf32>
    %c0_11 = arith.constant 0 : index
    %c0_12 = arith.constant 0 : index
    %6 = vector.load %arg3[%c0_11, %c0_12] : memref<8x8xf32, #tpu.memory_space<vmem>>, vector<8x8xf32>
    %cst = arith.constant 0.000000e+00 : f32
    %7 = vector.broadcast %cst : f32 to vector<8x8xf32>
    %8 = arith.cmpf oeq, %6, %7 : vector<8x8xf32>
    %cst_13 = arith.constant -1.000000e+09 : f32
    %cst_14 = arith.constant 0.000000e+00 : f32
    %9 = vector.broadcast %cst_13 : f32 to vector<8x8xf32>
    %10 = vector.broadcast %cst_14 : f32 to vector<8x8xf32>
    %11 = arith.select %8, %9, %10 : vector<8x8xi1>, vector<8x8xf32>
    %c0_15 = arith.constant 0 : index
    %c0_16 = arith.constant 0 : index
    %12 = vector.load %arg4[%c0_15, %c0_16] : memref<2x8xf32, #tpu.memory_space<vmem>>, vector<2x8xf32>
    %cst_17 = arith.constant 0.000000e+00 : f32
    %13 = vector.broadcast %cst_17 : f32 to vector<2x8xf32>
    %14 = arith.cmpf oeq, %12, %13 : vector<2x8xf32>
    %cst_18 = arith.constant -1.000000e+09 : f32
    %cst_19 = arith.constant 0.000000e+00 : f32
    %15 = vector.broadcast %cst_18 : f32 to vector<2x8xf32>
    %16 = vector.broadcast %cst_19 : f32 to vector<2x8xf32>
    %17 = arith.select %14, %15, %16 : vector<2x8xi1>, vector<2x8xf32>
    %18 = vector.extract_strided_slice %2 {offsets = [0, 0], sizes = [1, 32], strides = [1, 1]} : vector<3x32xf32> to vector<1x32xf32>
    %19 = vector.extract_strided_slice %3 {offsets = [0, 0], sizes = [1, 32], strides = [1, 1]} : vector<3x32xf32> to vector<1x32xf32>
    %cst_20 = arith.constant dense<0.000000e+00> : vector<16xf32>
    %20 = vector.multi_reduction <add>, %0, %cst_20 [1] : vector<16x32xf32> to vector<16xf32>
    %21 = vector.shape_cast %20 : vector<16xf32> to vector<16x1xf32>
    %cst_21 = arith.constant 3.125000e-02 : f32
    %22 = vector.broadcast %cst_21 : f32 to vector<16x1xf32>
    %23 = arith.mulf %21, %22 : vector<16x1xf32>
    %24 = vector.broadcast %23 : vector<16x1xf32> to vector<16x32xf32>
    %25 = arith.subf %0, %24 : vector<16x32xf32>
    %26 = arith.mulf %25, %25 : vector<16x32xf32>
    %cst_22 = arith.constant dense<0.000000e+00> : vector<16xf32>
    %27 = vector.multi_reduction <add>, %26, %cst_22 [1] : vector<16x32xf32> to vector<16xf32>
    %28 = vector.shape_cast %27 : vector<16xf32> to vector<16x1xf32>
    %cst_23 = arith.constant 0.0322580636 : f32
    %29 = vector.broadcast %cst_23 : f32 to vector<16x1xf32>
    %30 = arith.mulf %28, %29 : vector<16x1xf32>
    %31 = math.sqrt %30 : vector<16x1xf32>
    %cst_24 = arith.constant 9.99999997E-7 : f32
    %32 = vector.broadcast %cst_24 : f32 to vector<16x1xf32>
    %33 = arith.addf %31, %32 : vector<16x1xf32>
    %cst_25 = arith.constant 1.000000e+00 : f32
    %34 = vector.broadcast %cst_25 : f32 to vector<16x1xf32>
    %35 = arith.divf %34, %33 : vector<16x1xf32>
    %36 = vector.broadcast %21 : vector<16x1xf32> to vector<16x32xf32>
    %37 = arith.subf %0, %36 : vector<16x32xf32>
    %38 = vector.broadcast %35 : vector<16x1xf32> to vector<16x32xf32>
    %39 = arith.mulf %37, %38 : vector<16x32xf32>
    %40 = vector.broadcast %18 : vector<1x32xf32> to vector<16x32xf32>
    %41 = arith.mulf %40, %39 : vector<16x32xf32>
    %42 = vector.broadcast %19 : vector<1x32xf32> to vector<16x32xf32>
    %43 = arith.addf %41, %42 : vector<16x32xf32>
    %c0_26 = arith.constant 0 : index
    %c0_27 = arith.constant 0 : index
    %44 = vector.load %arg7[%c0_26, %c0_27] : memref<32x32xf32, #tpu.memory_space<vmem>>, vector<32x32xf32>
    %cst_28 = arith.constant dense<0.000000e+00> : vector<16x32xf32>
    %45 = tpu.matmul %43, %44, %cst_28 {dimension_numbers = #tpu.dot_dimension_numbers<[1], [0], [0], [1], [0, 0, 1, 1], [], []>} : vector<16x32xf32>, vector<32x32xf32>, vector<16x32xf32> -> vector<16x32xf32>
    %46 = vector.extract_strided_slice %4 {offsets = [0, 0], sizes = [1, 32], strides = [1, 1]} : vector<3x32xf32> to vector<1x32xf32>
    %47 = vector.broadcast %46 : vector<1x32xf32> to vector<16x32xf32>
    %48 = arith.addf %45, %47 : vector<16x32xf32>
    %c0_29 = arith.constant 0 : index
    %c0_30 = arith.constant 0 : index
    %49 = vector.load %arg8[%c0_29, %c0_30] : memref<32x32xf32, #tpu.memory_space<vmem>>, vector<32x32xf32>
    %cst_31 = arith.constant dense<0.000000e+00> : vector<16x32xf32>
    %50 = tpu.matmul %43, %49, %cst_31 {dimension_numbers = #tpu.dot_dimension_numbers<[1], [0], [0], [1], [0, 0, 1, 1], [], []>} : vector<16x32xf32>, vector<32x32xf32>, vector<16x32xf32> -> vector<16x32xf32>
    %51 = vector.extract_strided_slice %4 {offsets = [1, 0], sizes = [1, 32], strides = [1, 1]} : vector<3x32xf32> to vector<1x32xf32>
    %52 = vector.broadcast %51 : vector<1x32xf32> to vector<16x32xf32>
    %53 = arith.addf %50, %52 : vector<16x32xf32>
    %c0_32 = arith.constant 0 : index
    %c0_33 = arith.constant 0 : index
    %54 = vector.load %arg9[%c0_32, %c0_33] : memref<32x32xf32, #tpu.memory_space<vmem>>, vector<32x32xf32>
    %cst_34 = arith.constant dense<0.000000e+00> : vector<16x32xf32>
    %55 = tpu.matmul %43, %54, %cst_34 {dimension_numbers = #tpu.dot_dimension_numbers<[1], [0], [0], [1], [0, 0, 1, 1], [], []>} : vector<16x32xf32>, vector<32x32xf32>, vector<16x32xf32> -> vector<16x32xf32>
    %56 = vector.extract_strided_slice %4 {offsets = [2, 0], sizes = [1, 32], strides = [1, 1]} : vector<3x32xf32> to vector<1x32xf32>
    %57 = vector.broadcast %56 : vector<1x32xf32> to vector<16x32xf32>
    %58 = arith.addf %55, %57 : vector<16x32xf32>
    %c0_35 = arith.constant 0 : index
    %c0_36 = arith.constant 0 : index
    %59 = vector.load %arg12[%c0_35, %c0_36] : memref<1x32xf32, #tpu.memory_space<vmem>>, vector<1x32xf32>
    %60 = vector.extract_strided_slice %48 {offsets = [0, 0], sizes = [8, 32], strides = [1, 1]} : vector<16x32xf32> to vector<8x32xf32>
    %61 = vector.extract_strided_slice %53 {offsets = [0, 0], sizes = [8, 32], strides = [1, 1]} : vector<16x32xf32> to vector<8x32xf32>
    %62 = vector.extract_strided_slice %58 {offsets = [0, 0], sizes = [8, 32], strides = [1, 1]} : vector<16x32xf32> to vector<8x32xf32>
    %cst_37 = arith.constant 0.000000e+00 : f32
    %63 = vector.broadcast %cst_37 : f32 to vector<8x32xf32>
    %64 = vector.extract_strided_slice %60 {offsets = [0, 0], sizes = [8, 8], strides = [1, 1]} : vector<8x32xf32> to vector<8x8xf32>
    %65 = vector.extract_strided_slice %61 {offsets = [0, 0], sizes = [8, 8], strides = [1, 1]} : vector<8x32xf32> to vector<8x8xf32>
    %66 = vector.extract_strided_slice %62 {offsets = [0, 0], sizes = [8, 8], strides = [1, 1]} : vector<8x32xf32> to vector<8x8xf32>
    %cst_38 = arith.constant dense<0.000000e+00> : vector<8x8xf32>
    %67 = tpu.matmul %64, %65, %cst_38 {dimension_numbers = #tpu.dot_dimension_numbers<[1], [1], [0], [0], [0, 0, 1, 0], [], []>} : vector<8x8xf32>, vector<8x8xf32>, vector<8x8xf32> -> vector<8x8xf32>
    %cst_39 = arith.constant 0.353553385 : f32
    %68 = vector.broadcast %cst_39 : f32 to vector<8x8xf32>
    %69 = arith.mulf %67, %68 : vector<8x8xf32>
    %70 = arith.addf %69, %11 : vector<8x8xf32>
    %cst_40 = arith.constant dense<0xFF800000> : vector<8xf32>
    %71 = vector.multi_reduction <maximumf>, %70, %cst_40 [1] : vector<8x8xf32> to vector<8xf32>
    %72 = vector.shape_cast %71 : vector<8xf32> to vector<8x1xf32>
    %73 = vector.broadcast %72 : vector<8x1xf32> to vector<8x8xf32>
    %74 = arith.subf %70, %73 : vector<8x8xf32>
    %75 = math.exp %74 : vector<8x8xf32>
    %cst_41 = arith.constant dense<0.000000e+00> : vector<8xf32>
    %76 = vector.multi_reduction <add>, %75, %cst_41 [1] : vector<8x8xf32> to vector<8xf32>
    %77 = vector.shape_cast %76 : vector<8xf32> to vector<8x1xf32>
    %78 = tpu.reciprocal %77 {approx = true} : vector<8x1xf32> -> vector<8x1xf32>
    %79 = vector.broadcast %78 : vector<8x1xf32> to vector<8x8xf32>
    %80 = arith.mulf %75, %79 : vector<8x8xf32>
    %cst_42 = arith.constant dense<0.000000e+00> : vector<8x8xf32>
    %81 = tpu.matmul %80, %66, %cst_42 {dimension_numbers = #tpu.dot_dimension_numbers<[1], [0], [0], [1], [0, 0, 1, 1], [], []>} : vector<8x8xf32>, vector<8x8xf32>, vector<8x8xf32> -> vector<8x8xf32>
    %c0_43 = arith.constant 0 : index
    %c0_44 = arith.constant 0 : index
    %82 = vector.load %arg11[%c0_43, %c0_44] : memref<32x32xf32, #tpu.memory_space<vmem>>, vector<8x32xf32>
    %cst_45 = arith.constant dense<0.000000e+00> : vector<8x32xf32>
    %83 = tpu.matmul %81, %82, %cst_45 {dimension_numbers = #tpu.dot_dimension_numbers<[1], [0], [0], [1], [0, 0, 1, 1], [], []>} : vector<8x8xf32>, vector<8x32xf32>, vector<8x32xf32> -> vector<8x32xf32>
    %84 = arith.addf %63, %83 : vector<8x32xf32>
    %85 = vector.extract_strided_slice %60 {offsets = [0, 8], sizes = [8, 8], strides = [1, 1]} : vector<8x32xf32> to vector<8x8xf32>
    %86 = vector.extract_strided_slice %61 {offsets = [0, 8], sizes = [8, 8], strides = [1, 1]} : vector<8x32xf32> to vector<8x8xf32>
    %87 = vector.extract_strided_slice %62 {offsets = [0, 8], sizes = [8, 8], strides = [1, 1]} : vector<8x32xf32> to vector<8x8xf32>
    %cst_46 = arith.constant dense<0.000000e+00> : vector<8x8xf32>
    %88 = tpu.matmul %85, %86, %cst_46 {dimension_numbers = #tpu.dot_dimension_numbers<[1], [1], [0], [0], [0, 0, 1, 0], [], []>} : vector<8x8xf32>, vector<8x8xf32>, vector<8x8xf32> -> vector<8x8xf32>
    %cst_47 = arith.constant 0.353553385 : f32
    %89 = vector.broadcast %cst_47 : f32 to vector<8x8xf32>
    %90 = arith.mulf %88, %89 : vector<8x8xf32>
    %91 = arith.addf %90, %11 : vector<8x8xf32>
    %cst_48 = arith.constant dense<0xFF800000> : vector<8xf32>
    %92 = vector.multi_reduction <maximumf>, %91, %cst_48 [1] : vector<8x8xf32> to vector<8xf32>
    %93 = vector.shape_cast %92 : vector<8xf32> to vector<8x1xf32>
    %94 = vector.broadcast %93 : vector<8x1xf32> to vector<8x8xf32>
    %95 = arith.subf %91, %94 : vector<8x8xf32>
    %96 = math.exp %95 : vector<8x8xf32>
    %cst_49 = arith.constant dense<0.000000e+00> : vector<8xf32>
    %97 = vector.multi_reduction <add>, %96, %cst_49 [1] : vector<8x8xf32> to vector<8xf32>
    %98 = vector.shape_cast %97 : vector<8xf32> to vector<8x1xf32>
    %99 = tpu.reciprocal %98 {approx = true} : vector<8x1xf32> -> vector<8x1xf32>
    %100 = vector.broadcast %99 : vector<8x1xf32> to vector<8x8xf32>
    %101 = arith.mulf %96, %100 : vector<8x8xf32>
    %cst_50 = arith.constant dense<0.000000e+00> : vector<8x8xf32>
    %102 = tpu.matmul %101, %87, %cst_50 {dimension_numbers = #tpu.dot_dimension_numbers<[1], [0], [0], [1], [0, 0, 1, 1], [], []>} : vector<8x8xf32>, vector<8x8xf32>, vector<8x8xf32> -> vector<8x8xf32>
    %c8 = arith.constant 8 : index
    %c0_51 = arith.constant 0 : index
    %103 = vector.load %arg11[%c8, %c0_51] : memref<32x32xf32, #tpu.memory_space<vmem>>, vector<8x32xf32>
    %cst_52 = arith.constant dense<0.000000e+00> : vector<8x32xf32>
    %104 = tpu.matmul %102, %103, %cst_52 {dimension_numbers = #tpu.dot_dimension_numbers<[1], [0], [0], [1], [0, 0, 1, 1], [], []>} : vector<8x8xf32>, vector<8x32xf32>, vector<8x32xf32> -> vector<8x32xf32>
    %105 = arith.addf %84, %104 : vector<8x32xf32>
    %106 = vector.extract_strided_slice %60 {offsets = [0, 16], sizes = [8, 8], strides = [1, 1]} : vector<8x32xf32> to vector<8x8xf32>
    %107 = vector.extract_strided_slice %61 {offsets = [0, 16], sizes = [8, 8], strides = [1, 1]} : vector<8x32xf32> to vector<8x8xf32>
    %108 = vector.extract_strided_slice %62 {offsets = [0, 16], sizes = [8, 8], strides = [1, 1]} : vector<8x32xf32> to vector<8x8xf32>
    %cst_53 = arith.constant dense<0.000000e+00> : vector<8x8xf32>
    %109 = tpu.matmul %106, %107, %cst_53 {dimension_numbers = #tpu.dot_dimension_numbers<[1], [1], [0], [0], [0, 0, 1, 0], [], []>} : vector<8x8xf32>, vector<8x8xf32>, vector<8x8xf32> -> vector<8x8xf32>
    %cst_54 = arith.constant 0.353553385 : f32
    %110 = vector.broadcast %cst_54 : f32 to vector<8x8xf32>
    %111 = arith.mulf %109, %110 : vector<8x8xf32>
    %112 = arith.addf %111, %11 : vector<8x8xf32>
    %cst_55 = arith.constant dense<0xFF800000> : vector<8xf32>
    %113 = vector.multi_reduction <maximumf>, %112, %cst_55 [1] : vector<8x8xf32> to vector<8xf32>
    %114 = vector.shape_cast %113 : vector<8xf32> to vector<8x1xf32>
    %115 = vector.broadcast %114 : vector<8x1xf32> to vector<8x8xf32>
    %116 = arith.subf %112, %115 : vector<8x8xf32>
    %117 = math.exp %116 : vector<8x8xf32>
    %cst_56 = arith.constant dense<0.000000e+00> : vector<8xf32>
    %118 = vector.multi_reduction <add>, %117, %cst_56 [1] : vector<8x8xf32> to vector<8xf32>
    %119 = vector.shape_cast %118 : vector<8xf32> to vector<8x1xf32>
    %120 = tpu.reciprocal %119 {approx = true} : vector<8x1xf32> -> vector<8x1xf32>
    %121 = vector.broadcast %120 : vector<8x1xf32> to vector<8x8xf32>
    %122 = arith.mulf %117, %121 : vector<8x8xf32>
    %cst_57 = arith.constant dense<0.000000e+00> : vector<8x8xf32>
    %123 = tpu.matmul %122, %108, %cst_57 {dimension_numbers = #tpu.dot_dimension_numbers<[1], [0], [0], [1], [0, 0, 1, 1], [], []>} : vector<8x8xf32>, vector<8x8xf32>, vector<8x8xf32> -> vector<8x8xf32>
    %c16 = arith.constant 16 : index
    %c0_58 = arith.constant 0 : index
    %124 = vector.load %arg11[%c16, %c0_58] : memref<32x32xf32, #tpu.memory_space<vmem>>, vector<8x32xf32>
    %cst_59 = arith.constant dense<0.000000e+00> : vector<8x32xf32>
    %125 = tpu.matmul %123, %124, %cst_59 {dimension_numbers = #tpu.dot_dimension_numbers<[1], [0], [0], [1], [0, 0, 1, 1], [], []>} : vector<8x8xf32>, vector<8x32xf32>, vector<8x32xf32> -> vector<8x32xf32>
    %126 = arith.addf %105, %125 : vector<8x32xf32>
    %127 = vector.extract_strided_slice %60 {offsets = [0, 24], sizes = [8, 8], strides = [1, 1]} : vector<8x32xf32> to vector<8x8xf32>
    %128 = vector.extract_strided_slice %61 {offsets = [0, 24], sizes = [8, 8], strides = [1, 1]} : vector<8x32xf32> to vector<8x8xf32>
    %129 = vector.extract_strided_slice %62 {offsets = [0, 24], sizes = [8, 8], strides = [1, 1]} : vector<8x32xf32> to vector<8x8xf32>
    %cst_60 = arith.constant dense<0.000000e+00> : vector<8x8xf32>
    %130 = tpu.matmul %127, %128, %cst_60 {dimension_numbers = #tpu.dot_dimension_numbers<[1], [1], [0], [0], [0, 0, 1, 0], [], []>} : vector<8x8xf32>, vector<8x8xf32>, vector<8x8xf32> -> vector<8x8xf32>
    %cst_61 = arith.constant 0.353553385 : f32
    %131 = vector.broadcast %cst_61 : f32 to vector<8x8xf32>
    %132 = arith.mulf %130, %131 : vector<8x8xf32>
    %133 = arith.addf %132, %11 : vector<8x8xf32>
    %cst_62 = arith.constant dense<0xFF800000> : vector<8xf32>
    %134 = vector.multi_reduction <maximumf>, %133, %cst_62 [1] : vector<8x8xf32> to vector<8xf32>
    %135 = vector.shape_cast %134 : vector<8xf32> to vector<8x1xf32>
    %136 = vector.broadcast %135 : vector<8x1xf32> to vector<8x8xf32>
    %137 = arith.subf %133, %136 : vector<8x8xf32>
    %138 = math.exp %137 : vector<8x8xf32>
    %cst_63 = arith.constant dense<0.000000e+00> : vector<8xf32>
    %139 = vector.multi_reduction <add>, %138, %cst_63 [1] : vector<8x8xf32> to vector<8xf32>
    %140 = vector.shape_cast %139 : vector<8xf32> to vector<8x1xf32>
    %141 = tpu.reciprocal %140 {approx = true} : vector<8x1xf32> -> vector<8x1xf32>
    %142 = vector.broadcast %141 : vector<8x1xf32> to vector<8x8xf32>
    %143 = arith.mulf %138, %142 : vector<8x8xf32>
    %cst_64 = arith.constant dense<0.000000e+00> : vector<8x8xf32>
    %144 = tpu.matmul %143, %129, %cst_64 {dimension_numbers = #tpu.dot_dimension_numbers<[1], [0], [0], [1], [0, 0, 1, 1], [], []>} : vector<8x8xf32>, vector<8x8xf32>, vector<8x8xf32> -> vector<8x8xf32>
    %c24 = arith.constant 24 : index
    %c0_65 = arith.constant 0 : index
    %145 = vector.load %arg11[%c24, %c0_65] : memref<32x32xf32, #tpu.memory_space<vmem>>, vector<8x32xf32>
    %cst_66 = arith.constant dense<0.000000e+00> : vector<8x32xf32>
    %146 = tpu.matmul %144, %145, %cst_66 {dimension_numbers = #tpu.dot_dimension_numbers<[1], [0], [0], [1], [0, 0, 1, 1], [], []>} : vector<8x8xf32>, vector<8x32xf32>, vector<8x32xf32> -> vector<8x32xf32>
    %147 = arith.addf %126, %146 : vector<8x32xf32>
    %148 = vector.extract_strided_slice %48 {offsets = [8, 0], sizes = [8, 32], strides = [1, 1]} : vector<16x32xf32> to vector<8x32xf32>
    %149 = vector.extract_strided_slice %53 {offsets = [8, 0], sizes = [8, 32], strides = [1, 1]} : vector<16x32xf32> to vector<8x32xf32>
    %150 = vector.extract_strided_slice %58 {offsets = [8, 0], sizes = [8, 32], strides = [1, 1]} : vector<16x32xf32> to vector<8x32xf32>
    %cst_67 = arith.constant 0.000000e+00 : f32
    %151 = vector.broadcast %cst_67 : f32 to vector<8x32xf32>
    %152 = vector.extract_strided_slice %148 {offsets = [0, 0], sizes = [8, 8], strides = [1, 1]} : vector<8x32xf32> to vector<8x8xf32>
    %153 = vector.extract_strided_slice %149 {offsets = [0, 0], sizes = [8, 8], strides = [1, 1]} : vector<8x32xf32> to vector<8x8xf32>
    %154 = vector.extract_strided_slice %150 {offsets = [0, 0], sizes = [8, 8], strides = [1, 1]} : vector<8x32xf32> to vector<8x8xf32>
    %cst_68 = arith.constant dense<0.000000e+00> : vector<8x8xf32>
    %155 = tpu.matmul %152, %153, %cst_68 {dimension_numbers = #tpu.dot_dimension_numbers<[1], [1], [0], [0], [0, 0, 1, 0], [], []>} : vector<8x8xf32>, vector<8x8xf32>, vector<8x8xf32> -> vector<8x8xf32>
    %cst_69 = arith.constant 0.353553385 : f32
    %156 = vector.broadcast %cst_69 : f32 to vector<8x8xf32>
    %157 = arith.mulf %155, %156 : vector<8x8xf32>
    %158 = arith.addf %157, %11 : vector<8x8xf32>
    %cst_70 = arith.constant dense<0xFF800000> : vector<8xf32>
    %159 = vector.multi_reduction <maximumf>, %158, %cst_70 [1] : vector<8x8xf32> to vector<8xf32>
    %160 = vector.shape_cast %159 : vector<8xf32> to vector<8x1xf32>
    %161 = vector.broadcast %160 : vector<8x1xf32> to vector<8x8xf32>
    %162 = arith.subf %158, %161 : vector<8x8xf32>
    %163 = math.exp %162 : vector<8x8xf32>
    %cst_71 = arith.constant dense<0.000000e+00> : vector<8xf32>
    %164 = vector.multi_reduction <add>, %163, %cst_71 [1] : vector<8x8xf32> to vector<8xf32>
    %165 = vector.shape_cast %164 : vector<8xf32> to vector<8x1xf32>
    %166 = tpu.reciprocal %165 {approx = true} : vector<8x1xf32> -> vector<8x1xf32>
    %167 = vector.broadcast %166 : vector<8x1xf32> to vector<8x8xf32>
    %168 = arith.mulf %163, %167 : vector<8x8xf32>
    %cst_72 = arith.constant dense<0.000000e+00> : vector<8x8xf32>
    %169 = tpu.matmul %168, %154, %cst_72 {dimension_numbers = #tpu.dot_dimension_numbers<[1], [0], [0], [1], [0, 0, 1, 1], [], []>} : vector<8x8xf32>, vector<8x8xf32>, vector<8x8xf32> -> vector<8x8xf32>
    %c0_73 = arith.constant 0 : index
    %c0_74 = arith.constant 0 : index
    %170 = vector.load %arg11[%c0_73, %c0_74] : memref<32x32xf32, #tpu.memory_space<vmem>>, vector<8x32xf32>
    %cst_75 = arith.constant dense<0.000000e+00> : vector<8x32xf32>
    %171 = tpu.matmul %169, %170, %cst_75 {dimension_numbers = #tpu.dot_dimension_numbers<[1], [0], [0], [1], [0, 0, 1, 1], [], []>} : vector<8x8xf32>, vector<8x32xf32>, vector<8x32xf32> -> vector<8x32xf32>
    %172 = arith.addf %151, %171 : vector<8x32xf32>
    %173 = vector.extract_strided_slice %148 {offsets = [0, 8], sizes = [8, 8], strides = [1, 1]} : vector<8x32xf32> to vector<8x8xf32>
    %174 = vector.extract_strided_slice %149 {offsets = [0, 8], sizes = [8, 8], strides = [1, 1]} : vector<8x32xf32> to vector<8x8xf32>
    %175 = vector.extract_strided_slice %150 {offsets = [0, 8], sizes = [8, 8], strides = [1, 1]} : vector<8x32xf32> to vector<8x8xf32>
    %cst_76 = arith.constant dense<0.000000e+00> : vector<8x8xf32>
    %176 = tpu.matmul %173, %174, %cst_76 {dimension_numbers = #tpu.dot_dimension_numbers<[1], [1], [0], [0], [0, 0, 1, 0], [], []>} : vector<8x8xf32>, vector<8x8xf32>, vector<8x8xf32> -> vector<8x8xf32>
    %cst_77 = arith.constant 0.353553385 : f32
    %177 = vector.broadcast %cst_77 : f32 to vector<8x8xf32>
    %178 = arith.mulf %176, %177 : vector<8x8xf32>
    %179 = arith.addf %178, %11 : vector<8x8xf32>
    %cst_78 = arith.constant dense<0xFF800000> : vector<8xf32>
    %180 = vector.multi_reduction <maximumf>, %179, %cst_78 [1] : vector<8x8xf32> to vector<8xf32>
    %181 = vector.shape_cast %180 : vector<8xf32> to vector<8x1xf32>
    %182 = vector.broadcast %181 : vector<8x1xf32> to vector<8x8xf32>
    %183 = arith.subf %179, %182 : vector<8x8xf32>
    %184 = math.exp %183 : vector<8x8xf32>
    %cst_79 = arith.constant dense<0.000000e+00> : vector<8xf32>
    %185 = vector.multi_reduction <add>, %184, %cst_79 [1] : vector<8x8xf32> to vector<8xf32>
    %186 = vector.shape_cast %185 : vector<8xf32> to vector<8x1xf32>
    %187 = tpu.reciprocal %186 {approx = true} : vector<8x1xf32> -> vector<8x1xf32>
    %188 = vector.broadcast %187 : vector<8x1xf32> to vector<8x8xf32>
    %189 = arith.mulf %184, %188 : vector<8x8xf32>
    %cst_80 = arith.constant dense<0.000000e+00> : vector<8x8xf32>
    %190 = tpu.matmul %189, %175, %cst_80 {dimension_numbers = #tpu.dot_dimension_numbers<[1], [0], [0], [1], [0, 0, 1, 1], [], []>} : vector<8x8xf32>, vector<8x8xf32>, vector<8x8xf32> -> vector<8x8xf32>
    %c8_81 = arith.constant 8 : index
    %c0_82 = arith.constant 0 : index
    %191 = vector.load %arg11[%c8_81, %c0_82] : memref<32x32xf32, #tpu.memory_space<vmem>>, vector<8x32xf32>
    %cst_83 = arith.constant dense<0.000000e+00> : vector<8x32xf32>
    %192 = tpu.matmul %190, %191, %cst_83 {dimension_numbers = #tpu.dot_dimension_numbers<[1], [0], [0], [1], [0, 0, 1, 1], [], []>} : vector<8x8xf32>, vector<8x32xf32>, vector<8x32xf32> -> vector<8x32xf32>
    %193 = arith.addf %172, %192 : vector<8x32xf32>
    %194 = vector.extract_strided_slice %148 {offsets = [0, 16], sizes = [8, 8], strides = [1, 1]} : vector<8x32xf32> to vector<8x8xf32>
    %195 = vector.extract_strided_slice %149 {offsets = [0, 16], sizes = [8, 8], strides = [1, 1]} : vector<8x32xf32> to vector<8x8xf32>
    %196 = vector.extract_strided_slice %150 {offsets = [0, 16], sizes = [8, 8], strides = [1, 1]} : vector<8x32xf32> to vector<8x8xf32>
    %cst_84 = arith.constant dense<0.000000e+00> : vector<8x8xf32>
    %197 = tpu.matmul %194, %195, %cst_84 {dimension_numbers = #tpu.dot_dimension_numbers<[1], [1], [0], [0], [0, 0, 1, 0], [], []>} : vector<8x8xf32>, vector<8x8xf32>, vector<8x8xf32> -> vector<8x8xf32>
    %cst_85 = arith.constant 0.353553385 : f32
    %198 = vector.broadcast %cst_85 : f32 to vector<8x8xf32>
    %199 = arith.mulf %197, %198 : vector<8x8xf32>
    %200 = arith.addf %199, %11 : vector<8x8xf32>
    %cst_86 = arith.constant dense<0xFF800000> : vector<8xf32>
    %201 = vector.multi_reduction <maximumf>, %200, %cst_86 [1] : vector<8x8xf32> to vector<8xf32>
    %202 = vector.shape_cast %201 : vector<8xf32> to vector<8x1xf32>
    %203 = vector.broadcast %202 : vector<8x1xf32> to vector<8x8xf32>
    %204 = arith.subf %200, %203 : vector<8x8xf32>
    %205 = math.exp %204 : vector<8x8xf32>
    %cst_87 = arith.constant dense<0.000000e+00> : vector<8xf32>
    %206 = vector.multi_reduction <add>, %205, %cst_87 [1] : vector<8x8xf32> to vector<8xf32>
    %207 = vector.shape_cast %206 : vector<8xf32> to vector<8x1xf32>
    %208 = tpu.reciprocal %207 {approx = true} : vector<8x1xf32> -> vector<8x1xf32>
    %209 = vector.broadcast %208 : vector<8x1xf32> to vector<8x8xf32>
    %210 = arith.mulf %205, %209 : vector<8x8xf32>
    %cst_88 = arith.constant dense<0.000000e+00> : vector<8x8xf32>
    %211 = tpu.matmul %210, %196, %cst_88 {dimension_numbers = #tpu.dot_dimension_numbers<[1], [0], [0], [1], [0, 0, 1, 1], [], []>} : vector<8x8xf32>, vector<8x8xf32>, vector<8x8xf32> -> vector<8x8xf32>
    %c16_89 = arith.constant 16 : index
    %c0_90 = arith.constant 0 : index
    %212 = vector.load %arg11[%c16_89, %c0_90] : memref<32x32xf32, #tpu.memory_space<vmem>>, vector<8x32xf32>
    %cst_91 = arith.constant dense<0.000000e+00> : vector<8x32xf32>
    %213 = tpu.matmul %211, %212, %cst_91 {dimension_numbers = #tpu.dot_dimension_numbers<[1], [0], [0], [1], [0, 0, 1, 1], [], []>} : vector<8x8xf32>, vector<8x32xf32>, vector<8x32xf32> -> vector<8x32xf32>
    %214 = arith.addf %193, %213 : vector<8x32xf32>
    %215 = vector.extract_strided_slice %148 {offsets = [0, 24], sizes = [8, 8], strides = [1, 1]} : vector<8x32xf32> to vector<8x8xf32>
    %216 = vector.extract_strided_slice %149 {offsets = [0, 24], sizes = [8, 8], strides = [1, 1]} : vector<8x32xf32> to vector<8x8xf32>
    %217 = vector.extract_strided_slice %150 {offsets = [0, 24], sizes = [8, 8], strides = [1, 1]} : vector<8x32xf32> to vector<8x8xf32>
    %cst_92 = arith.constant dense<0.000000e+00> : vector<8x8xf32>
    %218 = tpu.matmul %215, %216, %cst_92 {dimension_numbers = #tpu.dot_dimension_numbers<[1], [1], [0], [0], [0, 0, 1, 0], [], []>} : vector<8x8xf32>, vector<8x8xf32>, vector<8x8xf32> -> vector<8x8xf32>
    %cst_93 = arith.constant 0.353553385 : f32
    %219 = vector.broadcast %cst_93 : f32 to vector<8x8xf32>
    %220 = arith.mulf %218, %219 : vector<8x8xf32>
    %221 = arith.addf %220, %11 : vector<8x8xf32>
    %cst_94 = arith.constant dense<0xFF800000> : vector<8xf32>
    %222 = vector.multi_reduction <maximumf>, %221, %cst_94 [1] : vector<8x8xf32> to vector<8xf32>
    %223 = vector.shape_cast %222 : vector<8xf32> to vector<8x1xf32>
    %224 = vector.broadcast %223 : vector<8x1xf32> to vector<8x8xf32>
    %225 = arith.subf %221, %224 : vector<8x8xf32>
    %226 = math.exp %225 : vector<8x8xf32>
    %cst_95 = arith.constant dense<0.000000e+00> : vector<8xf32>
    %227 = vector.multi_reduction <add>, %226, %cst_95 [1] : vector<8x8xf32> to vector<8xf32>
    %228 = vector.shape_cast %227 : vector<8xf32> to vector<8x1xf32>
    %229 = tpu.reciprocal %228 {approx = true} : vector<8x1xf32> -> vector<8x1xf32>
    %230 = vector.broadcast %229 : vector<8x1xf32> to vector<8x8xf32>
    %231 = arith.mulf %226, %230 : vector<8x8xf32>
    %cst_96 = arith.constant dense<0.000000e+00> : vector<8x8xf32>
    %232 = tpu.matmul %231, %217, %cst_96 {dimension_numbers = #tpu.dot_dimension_numbers<[1], [0], [0], [1], [0, 0, 1, 1], [], []>} : vector<8x8xf32>, vector<8x8xf32>, vector<8x8xf32> -> vector<8x8xf32>
    %c24_97 = arith.constant 24 : index
    %c0_98 = arith.constant 0 : index
    %233 = vector.load %arg11[%c24_97, %c0_98] : memref<32x32xf32, #tpu.memory_space<vmem>>, vector<8x32xf32>
    %cst_99 = arith.constant dense<0.000000e+00> : vector<8x32xf32>
    %234 = tpu.matmul %232, %233, %cst_99 {dimension_numbers = #tpu.dot_dimension_numbers<[1], [0], [0], [1], [0, 0, 1, 1], [], []>} : vector<8x8xf32>, vector<8x32xf32>, vector<8x32xf32> -> vector<8x32xf32>
    %235 = arith.addf %214, %234 : vector<8x32xf32>
    %236 = tpu.concatenate %147, %235 in 0 : vector<8x32xf32>, vector<8x32xf32> -> vector<16x32xf32>
    %237 = vector.broadcast %59 : vector<1x32xf32> to vector<16x32xf32>
    %238 = arith.addf %236, %237 : vector<16x32xf32>
    %239 = arith.addf %0, %238 : vector<16x32xf32>
    %240 = vector.extract_strided_slice %2 {offsets = [1, 0], sizes = [1, 32], strides = [1, 1]} : vector<3x32xf32> to vector<1x32xf32>
    %241 = vector.extract_strided_slice %3 {offsets = [1, 0], sizes = [1, 32], strides = [1, 1]} : vector<3x32xf32> to vector<1x32xf32>
    %cst_100 = arith.constant dense<0.000000e+00> : vector<16xf32>
    %242 = vector.multi_reduction <add>, %239, %cst_100 [1] : vector<16x32xf32> to vector<16xf32>
    %243 = vector.shape_cast %242 : vector<16xf32> to vector<16x1xf32>
    %cst_101 = arith.constant 3.125000e-02 : f32
    %244 = vector.broadcast %cst_101 : f32 to vector<16x1xf32>
    %245 = arith.mulf %243, %244 : vector<16x1xf32>
    %246 = vector.broadcast %245 : vector<16x1xf32> to vector<16x32xf32>
    %247 = arith.subf %239, %246 : vector<16x32xf32>
    %248 = arith.mulf %247, %247 : vector<16x32xf32>
    %cst_102 = arith.constant dense<0.000000e+00> : vector<16xf32>
    %249 = vector.multi_reduction <add>, %248, %cst_102 [1] : vector<16x32xf32> to vector<16xf32>
    %250 = vector.shape_cast %249 : vector<16xf32> to vector<16x1xf32>
    %cst_103 = arith.constant 0.0322580636 : f32
    %251 = vector.broadcast %cst_103 : f32 to vector<16x1xf32>
    %252 = arith.mulf %250, %251 : vector<16x1xf32>
    %253 = math.sqrt %252 : vector<16x1xf32>
    %cst_104 = arith.constant 9.99999997E-7 : f32
    %254 = vector.broadcast %cst_104 : f32 to vector<16x1xf32>
    %255 = arith.addf %253, %254 : vector<16x1xf32>
    %cst_105 = arith.constant 1.000000e+00 : f32
    %256 = vector.broadcast %cst_105 : f32 to vector<16x1xf32>
    %257 = arith.divf %256, %255 : vector<16x1xf32>
    %258 = vector.broadcast %243 : vector<16x1xf32> to vector<16x32xf32>
    %259 = arith.subf %239, %258 : vector<16x32xf32>
    %260 = vector.broadcast %257 : vector<16x1xf32> to vector<16x32xf32>
    %261 = arith.mulf %259, %260 : vector<16x32xf32>
    %262 = vector.broadcast %240 : vector<1x32xf32> to vector<16x32xf32>
    %263 = arith.mulf %262, %261 : vector<16x32xf32>
    %264 = vector.broadcast %241 : vector<1x32xf32> to vector<16x32xf32>
    %265 = arith.addf %263, %264 : vector<16x32xf32>
    %c0_106 = arith.constant 0 : index
    %c0_107 = arith.constant 0 : index
    %266 = vector.load %arg13[%c0_106, %c0_107] : memref<32x32xf32, #tpu.memory_space<vmem>>, vector<32x32xf32>
    %cst_108 = arith.constant dense<0.000000e+00> : vector<16x32xf32>
    %267 = tpu.matmul %265, %266, %cst_108 {dimension_numbers = #tpu.dot_dimension_numbers<[1], [0], [0], [1], [0, 0, 1, 1], [], []>} : vector<16x32xf32>, vector<32x32xf32>, vector<16x32xf32> -> vector<16x32xf32>
    %268 = vector.extract_strided_slice %5 {offsets = [0, 0], sizes = [1, 32], strides = [1, 1]} : vector<3x32xf32> to vector<1x32xf32>
    %269 = vector.broadcast %268 : vector<1x32xf32> to vector<16x32xf32>
    %270 = arith.addf %267, %269 : vector<16x32xf32>
    %c0_109 = arith.constant 0 : index
    %c0_110 = arith.constant 0 : index
    %271 = vector.load %arg14[%c0_109, %c0_110] : memref<32x32xf32, #tpu.memory_space<vmem>>, vector<32x32xf32>
    %cst_111 = arith.constant dense<0.000000e+00> : vector<16x32xf32>
    %272 = tpu.matmul %1, %271, %cst_111 {dimension_numbers = #tpu.dot_dimension_numbers<[1], [0], [0], [1], [0, 0, 1, 1], [], []>} : vector<16x32xf32>, vector<32x32xf32>, vector<16x32xf32> -> vector<16x32xf32>
    %273 = vector.extract_strided_slice %5 {offsets = [1, 0], sizes = [1, 32], strides = [1, 1]} : vector<3x32xf32> to vector<1x32xf32>
    %274 = vector.broadcast %273 : vector<1x32xf32> to vector<16x32xf32>
    %275 = arith.addf %272, %274 : vector<16x32xf32>
    %c0_112 = arith.constant 0 : index
    %c0_113 = arith.constant 0 : index
    %276 = vector.load %arg15[%c0_112, %c0_113] : memref<32x32xf32, #tpu.memory_space<vmem>>, vector<32x32xf32>
    %cst_114 = arith.constant dense<0.000000e+00> : vector<16x32xf32>
    %277 = tpu.matmul %1, %276, %cst_114 {dimension_numbers = #tpu.dot_dimension_numbers<[1], [0], [0], [1], [0, 0, 1, 1], [], []>} : vector<16x32xf32>, vector<32x32xf32>, vector<16x32xf32> -> vector<16x32xf32>
    %278 = vector.extract_strided_slice %5 {offsets = [2, 0], sizes = [1, 32], strides = [1, 1]} : vector<3x32xf32> to vector<1x32xf32>
    %279 = vector.broadcast %278 : vector<1x32xf32> to vector<16x32xf32>
    %280 = arith.addf %277, %279 : vector<16x32xf32>
    %281 = vector.extract_strided_slice %17 {offsets = [0, 0], sizes = [1, 8], strides = [1, 1]} : vector<2x8xf32> to vector<1x8xf32>
    %282 = vector.extract_strided_slice %17 {offsets = [1, 0], sizes = [1, 8], strides = [1, 1]} : vector<2x8xf32> to vector<1x8xf32>
    %c0_115 = arith.constant 0 : index
    %c0_116 = arith.constant 0 : index
    %283 = vector.load %arg18[%c0_115, %c0_116] : memref<1x32xf32, #tpu.memory_space<vmem>>, vector<1x32xf32>
    %284 = vector.extract_strided_slice %270 {offsets = [0, 0], sizes = [8, 32], strides = [1, 1]} : vector<16x32xf32> to vector<8x32xf32>
    %285 = vector.extract_strided_slice %275 {offsets = [0, 0], sizes = [8, 32], strides = [1, 1]} : vector<16x32xf32> to vector<8x32xf32>
    %286 = vector.extract_strided_slice %280 {offsets = [0, 0], sizes = [8, 32], strides = [1, 1]} : vector<16x32xf32> to vector<8x32xf32>
    %cst_117 = arith.constant 0.000000e+00 : f32
    %287 = vector.broadcast %cst_117 : f32 to vector<8x32xf32>
    %288 = vector.extract_strided_slice %284 {offsets = [0, 0], sizes = [8, 8], strides = [1, 1]} : vector<8x32xf32> to vector<8x8xf32>
    %289 = vector.extract_strided_slice %285 {offsets = [0, 0], sizes = [8, 8], strides = [1, 1]} : vector<8x32xf32> to vector<8x8xf32>
    %290 = vector.extract_strided_slice %286 {offsets = [0, 0], sizes = [8, 8], strides = [1, 1]} : vector<8x32xf32> to vector<8x8xf32>
    %cst_118 = arith.constant dense<0.000000e+00> : vector<8x8xf32>
    %291 = tpu.matmul %288, %289, %cst_118 {dimension_numbers = #tpu.dot_dimension_numbers<[1], [1], [0], [0], [0, 0, 1, 0], [], []>} : vector<8x8xf32>, vector<8x8xf32>, vector<8x8xf32> -> vector<8x8xf32>
    %cst_119 = arith.constant 0.353553385 : f32
    %292 = vector.broadcast %cst_119 : f32 to vector<8x8xf32>
    %293 = arith.mulf %291, %292 : vector<8x8xf32>
    %294 = vector.broadcast %281 : vector<1x8xf32> to vector<8x8xf32>
    %295 = arith.addf %293, %294 : vector<8x8xf32>
    %cst_120 = arith.constant dense<0xFF800000> : vector<8xf32>
    %296 = vector.multi_reduction <maximumf>, %295, %cst_120 [1] : vector<8x8xf32> to vector<8xf32>
    %297 = vector.shape_cast %296 : vector<8xf32> to vector<8x1xf32>
    %298 = vector.broadcast %297 : vector<8x1xf32> to vector<8x8xf32>
    %299 = arith.subf %295, %298 : vector<8x8xf32>
    %300 = math.exp %299 : vector<8x8xf32>
    %cst_121 = arith.constant dense<0.000000e+00> : vector<8xf32>
    %301 = vector.multi_reduction <add>, %300, %cst_121 [1] : vector<8x8xf32> to vector<8xf32>
    %302 = vector.shape_cast %301 : vector<8xf32> to vector<8x1xf32>
    %303 = tpu.reciprocal %302 {approx = true} : vector<8x1xf32> -> vector<8x1xf32>
    %304 = vector.broadcast %303 : vector<8x1xf32> to vector<8x8xf32>
    %305 = arith.mulf %300, %304 : vector<8x8xf32>
    %cst_122 = arith.constant dense<0.000000e+00> : vector<8x8xf32>
    %306 = tpu.matmul %305, %290, %cst_122 {dimension_numbers = #tpu.dot_dimension_numbers<[1], [0], [0], [1], [0, 0, 1, 1], [], []>} : vector<8x8xf32>, vector<8x8xf32>, vector<8x8xf32> -> vector<8x8xf32>
    %c0_123 = arith.constant 0 : index
    %c0_124 = arith.constant 0 : index
    %307 = vector.load %arg17[%c0_123, %c0_124] : memref<32x32xf32, #tpu.memory_space<vmem>>, vector<8x32xf32>
    %cst_125 = arith.constant dense<0.000000e+00> : vector<8x32xf32>
    %308 = tpu.matmul %306, %307, %cst_125 {dimension_numbers = #tpu.dot_dimension_numbers<[1], [0], [0], [1], [0, 0, 1, 1], [], []>} : vector<8x8xf32>, vector<8x32xf32>, vector<8x32xf32> -> vector<8x32xf32>
    %309 = arith.addf %287, %308 : vector<8x32xf32>
    %310 = vector.extract_strided_slice %284 {offsets = [0, 8], sizes = [8, 8], strides = [1, 1]} : vector<8x32xf32> to vector<8x8xf32>
    %311 = vector.extract_strided_slice %285 {offsets = [0, 8], sizes = [8, 8], strides = [1, 1]} : vector<8x32xf32> to vector<8x8xf32>
    %312 = vector.extract_strided_slice %286 {offsets = [0, 8], sizes = [8, 8], strides = [1, 1]} : vector<8x32xf32> to vector<8x8xf32>
    %cst_126 = arith.constant dense<0.000000e+00> : vector<8x8xf32>
    %313 = tpu.matmul %310, %311, %cst_126 {dimension_numbers = #tpu.dot_dimension_numbers<[1], [1], [0], [0], [0, 0, 1, 0], [], []>} : vector<8x8xf32>, vector<8x8xf32>, vector<8x8xf32> -> vector<8x8xf32>
    %cst_127 = arith.constant 0.353553385 : f32
    %314 = vector.broadcast %cst_127 : f32 to vector<8x8xf32>
    %315 = arith.mulf %313, %314 : vector<8x8xf32>
    %316 = vector.broadcast %281 : vector<1x8xf32> to vector<8x8xf32>
    %317 = arith.addf %315, %316 : vector<8x8xf32>
    %cst_128 = arith.constant dense<0xFF800000> : vector<8xf32>
    %318 = vector.multi_reduction <maximumf>, %317, %cst_128 [1] : vector<8x8xf32> to vector<8xf32>
    %319 = vector.shape_cast %318 : vector<8xf32> to vector<8x1xf32>
    %320 = vector.broadcast %319 : vector<8x1xf32> to vector<8x8xf32>
    %321 = arith.subf %317, %320 : vector<8x8xf32>
    %322 = math.exp %321 : vector<8x8xf32>
    %cst_129 = arith.constant dense<0.000000e+00> : vector<8xf32>
    %323 = vector.multi_reduction <add>, %322, %cst_129 [1] : vector<8x8xf32> to vector<8xf32>
    %324 = vector.shape_cast %323 : vector<8xf32> to vector<8x1xf32>
    %325 = tpu.reciprocal %324 {approx = true} : vector<8x1xf32> -> vector<8x1xf32>
    %326 = vector.broadcast %325 : vector<8x1xf32> to vector<8x8xf32>
    %327 = arith.mulf %322, %326 : vector<8x8xf32>
    %cst_130 = arith.constant dense<0.000000e+00> : vector<8x8xf32>
    %328 = tpu.matmul %327, %312, %cst_130 {dimension_numbers = #tpu.dot_dimension_numbers<[1], [0], [0], [1], [0, 0, 1, 1], [], []>} : vector<8x8xf32>, vector<8x8xf32>, vector<8x8xf32> -> vector<8x8xf32>
    %c8_131 = arith.constant 8 : index
    %c0_132 = arith.constant 0 : index
    %329 = vector.load %arg17[%c8_131, %c0_132] : memref<32x32xf32, #tpu.memory_space<vmem>>, vector<8x32xf32>
    %cst_133 = arith.constant dense<0.000000e+00> : vector<8x32xf32>
    %330 = tpu.matmul %328, %329, %cst_133 {dimension_numbers = #tpu.dot_dimension_numbers<[1], [0], [0], [1], [0, 0, 1, 1], [], []>} : vector<8x8xf32>, vector<8x32xf32>, vector<8x32xf32> -> vector<8x32xf32>
    %331 = arith.addf %309, %330 : vector<8x32xf32>
    %332 = vector.extract_strided_slice %284 {offsets = [0, 16], sizes = [8, 8], strides = [1, 1]} : vector<8x32xf32> to vector<8x8xf32>
    %333 = vector.extract_strided_slice %285 {offsets = [0, 16], sizes = [8, 8], strides = [1, 1]} : vector<8x32xf32> to vector<8x8xf32>
    %334 = vector.extract_strided_slice %286 {offsets = [0, 16], sizes = [8, 8], strides = [1, 1]} : vector<8x32xf32> to vector<8x8xf32>
    %cst_134 = arith.constant dense<0.000000e+00> : vector<8x8xf32>
    %335 = tpu.matmul %332, %333, %cst_134 {dimension_numbers = #tpu.dot_dimension_numbers<[1], [1], [0], [0], [0, 0, 1, 0], [], []>} : vector<8x8xf32>, vector<8x8xf32>, vector<8x8xf32> -> vector<8x8xf32>
    %cst_135 = arith.constant 0.353553385 : f32
    %336 = vector.broadcast %cst_135 : f32 to vector<8x8xf32>
    %337 = arith.mulf %335, %336 : vector<8x8xf32>
    %338 = vector.broadcast %281 : vector<1x8xf32> to vector<8x8xf32>
    %339 = arith.addf %337, %338 : vector<8x8xf32>
    %cst_136 = arith.constant dense<0xFF800000> : vector<8xf32>
    %340 = vector.multi_reduction <maximumf>, %339, %cst_136 [1] : vector<8x8xf32> to vector<8xf32>
    %341 = vector.shape_cast %340 : vector<8xf32> to vector<8x1xf32>
    %342 = vector.broadcast %341 : vector<8x1xf32> to vector<8x8xf32>
    %343 = arith.subf %339, %342 : vector<8x8xf32>
    %344 = math.exp %343 : vector<8x8xf32>
    %cst_137 = arith.constant dense<0.000000e+00> : vector<8xf32>
    %345 = vector.multi_reduction <add>, %344, %cst_137 [1] : vector<8x8xf32> to vector<8xf32>
    %346 = vector.shape_cast %345 : vector<8xf32> to vector<8x1xf32>
    %347 = tpu.reciprocal %346 {approx = true} : vector<8x1xf32> -> vector<8x1xf32>
    %348 = vector.broadcast %347 : vector<8x1xf32> to vector<8x8xf32>
    %349 = arith.mulf %344, %348 : vector<8x8xf32>
    %cst_138 = arith.constant dense<0.000000e+00> : vector<8x8xf32>
    %350 = tpu.matmul %349, %334, %cst_138 {dimension_numbers = #tpu.dot_dimension_numbers<[1], [0], [0], [1], [0, 0, 1, 1], [], []>} : vector<8x8xf32>, vector<8x8xf32>, vector<8x8xf32> -> vector<8x8xf32>
    %c16_139 = arith.constant 16 : index
    %c0_140 = arith.constant 0 : index
    %351 = vector.load %arg17[%c16_139, %c0_140] : memref<32x32xf32, #tpu.memory_space<vmem>>, vector<8x32xf32>
    %cst_141 = arith.constant dense<0.000000e+00> : vector<8x32xf32>
    %352 = tpu.matmul %350, %351, %cst_141 {dimension_numbers = #tpu.dot_dimension_numbers<[1], [0], [0], [1], [0, 0, 1, 1], [], []>} : vector<8x8xf32>, vector<8x32xf32>, vector<8x32xf32> -> vector<8x32xf32>
    %353 = arith.addf %331, %352 : vector<8x32xf32>
    %354 = vector.extract_strided_slice %284 {offsets = [0, 24], sizes = [8, 8], strides = [1, 1]} : vector<8x32xf32> to vector<8x8xf32>
    %355 = vector.extract_strided_slice %285 {offsets = [0, 24], sizes = [8, 8], strides = [1, 1]} : vector<8x32xf32> to vector<8x8xf32>
    %356 = vector.extract_strided_slice %286 {offsets = [0, 24], sizes = [8, 8], strides = [1, 1]} : vector<8x32xf32> to vector<8x8xf32>
    %cst_142 = arith.constant dense<0.000000e+00> : vector<8x8xf32>
    %357 = tpu.matmul %354, %355, %cst_142 {dimension_numbers = #tpu.dot_dimension_numbers<[1], [1], [0], [0], [0, 0, 1, 0], [], []>} : vector<8x8xf32>, vector<8x8xf32>, vector<8x8xf32> -> vector<8x8xf32>
    %cst_143 = arith.constant 0.353553385 : f32
    %358 = vector.broadcast %cst_143 : f32 to vector<8x8xf32>
    %359 = arith.mulf %357, %358 : vector<8x8xf32>
    %360 = vector.broadcast %281 : vector<1x8xf32> to vector<8x8xf32>
    %361 = arith.addf %359, %360 : vector<8x8xf32>
    %cst_144 = arith.constant dense<0xFF800000> : vector<8xf32>
    %362 = vector.multi_reduction <maximumf>, %361, %cst_144 [1] : vector<8x8xf32> to vector<8xf32>
    %363 = vector.shape_cast %362 : vector<8xf32> to vector<8x1xf32>
    %364 = vector.broadcast %363 : vector<8x1xf32> to vector<8x8xf32>
    %365 = arith.subf %361, %364 : vector<8x8xf32>
    %366 = math.exp %365 : vector<8x8xf32>
    %cst_145 = arith.constant dense<0.000000e+00> : vector<8xf32>
    %367 = vector.multi_reduction <add>, %366, %cst_145 [1] : vector<8x8xf32> to vector<8xf32>
    %368 = vector.shape_cast %367 : vector<8xf32> to vector<8x1xf32>
    %369 = tpu.reciprocal %368 {approx = true} : vector<8x1xf32> -> vector<8x1xf32>
    %370 = vector.broadcast %369 : vector<8x1xf32> to vector<8x8xf32>
    %371 = arith.mulf %366, %370 : vector<8x8xf32>
    %cst_146 = arith.constant dense<0.000000e+00> : vector<8x8xf32>
    %372 = tpu.matmul %371, %356, %cst_146 {dimension_numbers = #tpu.dot_dimension_numbers<[1], [0], [0], [1], [0, 0, 1, 1], [], []>} : vector<8x8xf32>, vector<8x8xf32>, vector<8x8xf32> -> vector<8x8xf32>
    %c24_147 = arith.constant 24 : index
    %c0_148 = arith.constant 0 : index
    %373 = vector.load %arg17[%c24_147, %c0_148] : memref<32x32xf32, #tpu.memory_space<vmem>>, vector<8x32xf32>
    %cst_149 = arith.constant dense<0.000000e+00> : vector<8x32xf32>
    %374 = tpu.matmul %372, %373, %cst_149 {dimension_numbers = #tpu.dot_dimension_numbers<[1], [0], [0], [1], [0, 0, 1, 1], [], []>} : vector<8x8xf32>, vector<8x32xf32>, vector<8x32xf32> -> vector<8x32xf32>
    %375 = arith.addf %353, %374 : vector<8x32xf32>
    %376 = vector.extract_strided_slice %270 {offsets = [8, 0], sizes = [8, 32], strides = [1, 1]} : vector<16x32xf32> to vector<8x32xf32>
    %377 = vector.extract_strided_slice %275 {offsets = [8, 0], sizes = [8, 32], strides = [1, 1]} : vector<16x32xf32> to vector<8x32xf32>
    %378 = vector.extract_strided_slice %280 {offsets = [8, 0], sizes = [8, 32], strides = [1, 1]} : vector<16x32xf32> to vector<8x32xf32>
    %cst_150 = arith.constant 0.000000e+00 : f32
    %379 = vector.broadcast %cst_150 : f32 to vector<8x32xf32>
    %380 = vector.extract_strided_slice %376 {offsets = [0, 0], sizes = [8, 8], strides = [1, 1]} : vector<8x32xf32> to vector<8x8xf32>
    %381 = vector.extract_strided_slice %377 {offsets = [0, 0], sizes = [8, 8], strides = [1, 1]} : vector<8x32xf32> to vector<8x8xf32>
    %382 = vector.extract_strided_slice %378 {offsets = [0, 0], sizes = [8, 8], strides = [1, 1]} : vector<8x32xf32> to vector<8x8xf32>
    %cst_151 = arith.constant dense<0.000000e+00> : vector<8x8xf32>
    %383 = tpu.matmul %380, %381, %cst_151 {dimension_numbers = #tpu.dot_dimension_numbers<[1], [1], [0], [0], [0, 0, 1, 0], [], []>} : vector<8x8xf32>, vector<8x8xf32>, vector<8x8xf32> -> vector<8x8xf32>
    %cst_152 = arith.constant 0.353553385 : f32
    %384 = vector.broadcast %cst_152 : f32 to vector<8x8xf32>
    %385 = arith.mulf %383, %384 : vector<8x8xf32>
    %386 = vector.broadcast %282 : vector<1x8xf32> to vector<8x8xf32>
    %387 = arith.addf %385, %386 : vector<8x8xf32>
    %cst_153 = arith.constant dense<0xFF800000> : vector<8xf32>
    %388 = vector.multi_reduction <maximumf>, %387, %cst_153 [1] : vector<8x8xf32> to vector<8xf32>
    %389 = vector.shape_cast %388 : vector<8xf32> to vector<8x1xf32>
    %390 = vector.broadcast %389 : vector<8x1xf32> to vector<8x8xf32>
    %391 = arith.subf %387, %390 : vector<8x8xf32>
    %392 = math.exp %391 : vector<8x8xf32>
    %cst_154 = arith.constant dense<0.000000e+00> : vector<8xf32>
    %393 = vector.multi_reduction <add>, %392, %cst_154 [1] : vector<8x8xf32> to vector<8xf32>
    %394 = vector.shape_cast %393 : vector<8xf32> to vector<8x1xf32>
    %395 = tpu.reciprocal %394 {approx = true} : vector<8x1xf32> -> vector<8x1xf32>
    %396 = vector.broadcast %395 : vector<8x1xf32> to vector<8x8xf32>
    %397 = arith.mulf %392, %396 : vector<8x8xf32>
    %cst_155 = arith.constant dense<0.000000e+00> : vector<8x8xf32>
    %398 = tpu.matmul %397, %382, %cst_155 {dimension_numbers = #tpu.dot_dimension_numbers<[1], [0], [0], [1], [0, 0, 1, 1], [], []>} : vector<8x8xf32>, vector<8x8xf32>, vector<8x8xf32> -> vector<8x8xf32>
    %c0_156 = arith.constant 0 : index
    %c0_157 = arith.constant 0 : index
    %399 = vector.load %arg17[%c0_156, %c0_157] : memref<32x32xf32, #tpu.memory_space<vmem>>, vector<8x32xf32>
    %cst_158 = arith.constant dense<0.000000e+00> : vector<8x32xf32>
    %400 = tpu.matmul %398, %399, %cst_158 {dimension_numbers = #tpu.dot_dimension_numbers<[1], [0], [0], [1], [0, 0, 1, 1], [], []>} : vector<8x8xf32>, vector<8x32xf32>, vector<8x32xf32> -> vector<8x32xf32>
    %401 = arith.addf %379, %400 : vector<8x32xf32>
    %402 = vector.extract_strided_slice %376 {offsets = [0, 8], sizes = [8, 8], strides = [1, 1]} : vector<8x32xf32> to vector<8x8xf32>
    %403 = vector.extract_strided_slice %377 {offsets = [0, 8], sizes = [8, 8], strides = [1, 1]} : vector<8x32xf32> to vector<8x8xf32>
    %404 = vector.extract_strided_slice %378 {offsets = [0, 8], sizes = [8, 8], strides = [1, 1]} : vector<8x32xf32> to vector<8x8xf32>
    %cst_159 = arith.constant dense<0.000000e+00> : vector<8x8xf32>
    %405 = tpu.matmul %402, %403, %cst_159 {dimension_numbers = #tpu.dot_dimension_numbers<[1], [1], [0], [0], [0, 0, 1, 0], [], []>} : vector<8x8xf32>, vector<8x8xf32>, vector<8x8xf32> -> vector<8x8xf32>
    %cst_160 = arith.constant 0.353553385 : f32
    %406 = vector.broadcast %cst_160 : f32 to vector<8x8xf32>
    %407 = arith.mulf %405, %406 : vector<8x8xf32>
    %408 = vector.broadcast %282 : vector<1x8xf32> to vector<8x8xf32>
    %409 = arith.addf %407, %408 : vector<8x8xf32>
    %cst_161 = arith.constant dense<0xFF800000> : vector<8xf32>
    %410 = vector.multi_reduction <maximumf>, %409, %cst_161 [1] : vector<8x8xf32> to vector<8xf32>
    %411 = vector.shape_cast %410 : vector<8xf32> to vector<8x1xf32>
    %412 = vector.broadcast %411 : vector<8x1xf32> to vector<8x8xf32>
    %413 = arith.subf %409, %412 : vector<8x8xf32>
    %414 = math.exp %413 : vector<8x8xf32>
    %cst_162 = arith.constant dense<0.000000e+00> : vector<8xf32>
    %415 = vector.multi_reduction <add>, %414, %cst_162 [1] : vector<8x8xf32> to vector<8xf32>
    %416 = vector.shape_cast %415 : vector<8xf32> to vector<8x1xf32>
    %417 = tpu.reciprocal %416 {approx = true} : vector<8x1xf32> -> vector<8x1xf32>
    %418 = vector.broadcast %417 : vector<8x1xf32> to vector<8x8xf32>
    %419 = arith.mulf %414, %418 : vector<8x8xf32>
    %cst_163 = arith.constant dense<0.000000e+00> : vector<8x8xf32>
    %420 = tpu.matmul %419, %404, %cst_163 {dimension_numbers = #tpu.dot_dimension_numbers<[1], [0], [0], [1], [0, 0, 1, 1], [], []>} : vector<8x8xf32>, vector<8x8xf32>, vector<8x8xf32> -> vector<8x8xf32>
    %c8_164 = arith.constant 8 : index
    %c0_165 = arith.constant 0 : index
    %421 = vector.load %arg17[%c8_164, %c0_165] : memref<32x32xf32, #tpu.memory_space<vmem>>, vector<8x32xf32>
    %cst_166 = arith.constant dense<0.000000e+00> : vector<8x32xf32>
    %422 = tpu.matmul %420, %421, %cst_166 {dimension_numbers = #tpu.dot_dimension_numbers<[1], [0], [0], [1], [0, 0, 1, 1], [], []>} : vector<8x8xf32>, vector<8x32xf32>, vector<8x32xf32> -> vector<8x32xf32>
    %423 = arith.addf %401, %422 : vector<8x32xf32>
    %424 = vector.extract_strided_slice %376 {offsets = [0, 16], sizes = [8, 8], strides = [1, 1]} : vector<8x32xf32> to vector<8x8xf32>
    %425 = vector.extract_strided_slice %377 {offsets = [0, 16], sizes = [8, 8], strides = [1, 1]} : vector<8x32xf32> to vector<8x8xf32>
    %426 = vector.extract_strided_slice %378 {offsets = [0, 16], sizes = [8, 8], strides = [1, 1]} : vector<8x32xf32> to vector<8x8xf32>
    %cst_167 = arith.constant dense<0.000000e+00> : vector<8x8xf32>
    %427 = tpu.matmul %424, %425, %cst_167 {dimension_numbers = #tpu.dot_dimension_numbers<[1], [1], [0], [0], [0, 0, 1, 0], [], []>} : vector<8x8xf32>, vector<8x8xf32>, vector<8x8xf32> -> vector<8x8xf32>
    %cst_168 = arith.constant 0.353553385 : f32
    %428 = vector.broadcast %cst_168 : f32 to vector<8x8xf32>
    %429 = arith.mulf %427, %428 : vector<8x8xf32>
    %430 = vector.broadcast %282 : vector<1x8xf32> to vector<8x8xf32>
    %431 = arith.addf %429, %430 : vector<8x8xf32>
    %cst_169 = arith.constant dense<0xFF800000> : vector<8xf32>
    %432 = vector.multi_reduction <maximumf>, %431, %cst_169 [1] : vector<8x8xf32> to vector<8xf32>
    %433 = vector.shape_cast %432 : vector<8xf32> to vector<8x1xf32>
    %434 = vector.broadcast %433 : vector<8x1xf32> to vector<8x8xf32>
    %435 = arith.subf %431, %434 : vector<8x8xf32>
    %436 = math.exp %435 : vector<8x8xf32>
    %cst_170 = arith.constant dense<0.000000e+00> : vector<8xf32>
    %437 = vector.multi_reduction <add>, %436, %cst_170 [1] : vector<8x8xf32> to vector<8xf32>
    %438 = vector.shape_cast %437 : vector<8xf32> to vector<8x1xf32>
    %439 = tpu.reciprocal %438 {approx = true} : vector<8x1xf32> -> vector<8x1xf32>
    %440 = vector.broadcast %439 : vector<8x1xf32> to vector<8x8xf32>
    %441 = arith.mulf %436, %440 : vector<8x8xf32>
    %cst_171 = arith.constant dense<0.000000e+00> : vector<8x8xf32>
    %442 = tpu.matmul %441, %426, %cst_171 {dimension_numbers = #tpu.dot_dimension_numbers<[1], [0], [0], [1], [0, 0, 1, 1], [], []>} : vector<8x8xf32>, vector<8x8xf32>, vector<8x8xf32> -> vector<8x8xf32>
    %c16_172 = arith.constant 16 : index
    %c0_173 = arith.constant 0 : index
    %443 = vector.load %arg17[%c16_172, %c0_173] : memref<32x32xf32, #tpu.memory_space<vmem>>, vector<8x32xf32>
    %cst_174 = arith.constant dense<0.000000e+00> : vector<8x32xf32>
    %444 = tpu.matmul %442, %443, %cst_174 {dimension_numbers = #tpu.dot_dimension_numbers<[1], [0], [0], [1], [0, 0, 1, 1], [], []>} : vector<8x8xf32>, vector<8x32xf32>, vector<8x32xf32> -> vector<8x32xf32>
    %445 = arith.addf %423, %444 : vector<8x32xf32>
    %446 = vector.extract_strided_slice %376 {offsets = [0, 24], sizes = [8, 8], strides = [1, 1]} : vector<8x32xf32> to vector<8x8xf32>
    %447 = vector.extract_strided_slice %377 {offsets = [0, 24], sizes = [8, 8], strides = [1, 1]} : vector<8x32xf32> to vector<8x8xf32>
    %448 = vector.extract_strided_slice %378 {offsets = [0, 24], sizes = [8, 8], strides = [1, 1]} : vector<8x32xf32> to vector<8x8xf32>
    %cst_175 = arith.constant dense<0.000000e+00> : vector<8x8xf32>
    %449 = tpu.matmul %446, %447, %cst_175 {dimension_numbers = #tpu.dot_dimension_numbers<[1], [1], [0], [0], [0, 0, 1, 0], [], []>} : vector<8x8xf32>, vector<8x8xf32>, vector<8x8xf32> -> vector<8x8xf32>
    %cst_176 = arith.constant 0.353553385 : f32
    %450 = vector.broadcast %cst_176 : f32 to vector<8x8xf32>
    %451 = arith.mulf %449, %450 : vector<8x8xf32>
    %452 = vector.broadcast %282 : vector<1x8xf32> to vector<8x8xf32>
    %453 = arith.addf %451, %452 : vector<8x8xf32>
    %cst_177 = arith.constant dense<0xFF800000> : vector<8xf32>
    %454 = vector.multi_reduction <maximumf>, %453, %cst_177 [1] : vector<8x8xf32> to vector<8xf32>
    %455 = vector.shape_cast %454 : vector<8xf32> to vector<8x1xf32>
    %456 = vector.broadcast %455 : vector<8x1xf32> to vector<8x8xf32>
    %457 = arith.subf %453, %456 : vector<8x8xf32>
    %458 = math.exp %457 : vector<8x8xf32>
    %cst_178 = arith.constant dense<0.000000e+00> : vector<8xf32>
    %459 = vector.multi_reduction <add>, %458, %cst_178 [1] : vector<8x8xf32> to vector<8xf32>
    %460 = vector.shape_cast %459 : vector<8xf32> to vector<8x1xf32>
    %461 = tpu.reciprocal %460 {approx = true} : vector<8x1xf32> -> vector<8x1xf32>
    %462 = vector.broadcast %461 : vector<8x1xf32> to vector<8x8xf32>
    %463 = arith.mulf %458, %462 : vector<8x8xf32>
    %cst_179 = arith.constant dense<0.000000e+00> : vector<8x8xf32>
    %464 = tpu.matmul %463, %448, %cst_179 {dimension_numbers = #tpu.dot_dimension_numbers<[1], [0], [0], [1], [0, 0, 1, 1], [], []>} : vector<8x8xf32>, vector<8x8xf32>, vector<8x8xf32> -> vector<8x8xf32>
    %c24_180 = arith.constant 24 : index
    %c0_181 = arith.constant 0 : index
    %465 = vector.load %arg17[%c24_180, %c0_181] : memref<32x32xf32, #tpu.memory_space<vmem>>, vector<8x32xf32>
    %cst_182 = arith.constant dense<0.000000e+00> : vector<8x32xf32>
    %466 = tpu.matmul %464, %465, %cst_182 {dimension_numbers = #tpu.dot_dimension_numbers<[1], [0], [0], [1], [0, 0, 1, 1], [], []>} : vector<8x8xf32>, vector<8x32xf32>, vector<8x32xf32> -> vector<8x32xf32>
    %467 = arith.addf %445, %466 : vector<8x32xf32>
    %468 = tpu.concatenate %375, %467 in 0 : vector<8x32xf32>, vector<8x32xf32> -> vector<16x32xf32>
    %469 = vector.broadcast %283 : vector<1x32xf32> to vector<16x32xf32>
    %470 = arith.addf %468, %469 : vector<16x32xf32>
    %471 = arith.addf %239, %470 : vector<16x32xf32>
    %472 = vector.extract_strided_slice %2 {offsets = [2, 0], sizes = [1, 32], strides = [1, 1]} : vector<3x32xf32> to vector<1x32xf32>
    %473 = vector.extract_strided_slice %3 {offsets = [2, 0], sizes = [1, 32], strides = [1, 1]} : vector<3x32xf32> to vector<1x32xf32>
    %cst_183 = arith.constant dense<0.000000e+00> : vector<16xf32>
    %474 = vector.multi_reduction <add>, %471, %cst_183 [1] : vector<16x32xf32> to vector<16xf32>
    %475 = vector.shape_cast %474 : vector<16xf32> to vector<16x1xf32>
    %cst_184 = arith.constant 3.125000e-02 : f32
    %476 = vector.broadcast %cst_184 : f32 to vector<16x1xf32>
    %477 = arith.mulf %475, %476 : vector<16x1xf32>
    %478 = vector.broadcast %477 : vector<16x1xf32> to vector<16x32xf32>
    %479 = arith.subf %471, %478 : vector<16x32xf32>
    %480 = arith.mulf %479, %479 : vector<16x32xf32>
    %cst_185 = arith.constant dense<0.000000e+00> : vector<16xf32>
    %481 = vector.multi_reduction <add>, %480, %cst_185 [1] : vector<16x32xf32> to vector<16xf32>
    %482 = vector.shape_cast %481 : vector<16xf32> to vector<16x1xf32>
    %cst_186 = arith.constant 0.0322580636 : f32
    %483 = vector.broadcast %cst_186 : f32 to vector<16x1xf32>
    %484 = arith.mulf %482, %483 : vector<16x1xf32>
    %485 = math.sqrt %484 : vector<16x1xf32>
    %cst_187 = arith.constant 9.99999997E-7 : f32
    %486 = vector.broadcast %cst_187 : f32 to vector<16x1xf32>
    %487 = arith.addf %485, %486 : vector<16x1xf32>
    %cst_188 = arith.constant 1.000000e+00 : f32
    %488 = vector.broadcast %cst_188 : f32 to vector<16x1xf32>
    %489 = arith.divf %488, %487 : vector<16x1xf32>
    %490 = vector.broadcast %475 : vector<16x1xf32> to vector<16x32xf32>
    %491 = arith.subf %471, %490 : vector<16x32xf32>
    %492 = vector.broadcast %489 : vector<16x1xf32> to vector<16x32xf32>
    %493 = arith.mulf %491, %492 : vector<16x32xf32>
    %494 = vector.broadcast %472 : vector<1x32xf32> to vector<16x32xf32>
    %495 = arith.mulf %494, %493 : vector<16x32xf32>
    %496 = vector.broadcast %473 : vector<1x32xf32> to vector<16x32xf32>
    %497 = arith.addf %495, %496 : vector<16x32xf32>
    %c0_189 = arith.constant 0 : index
    %c0_190 = arith.constant 0 : index
    %498 = vector.load %arg19[%c0_189, %c0_190] : memref<32x64xf32, #tpu.memory_space<vmem>>, vector<32x64xf32>
    %cst_191 = arith.constant dense<0.000000e+00> : vector<16x64xf32>
    %499 = tpu.matmul %497, %498, %cst_191 {dimension_numbers = #tpu.dot_dimension_numbers<[1], [0], [0], [1], [0, 0, 1, 1], [], []>} : vector<16x32xf32>, vector<32x64xf32>, vector<16x64xf32> -> vector<16x64xf32>
    %c0_192 = arith.constant 0 : index
    %c0_193 = arith.constant 0 : index
    %500 = vector.load %arg20[%c0_192, %c0_193] : memref<1x64xf32, #tpu.memory_space<vmem>>, vector<1x64xf32>
    %501 = vector.broadcast %500 : vector<1x64xf32> to vector<16x64xf32>
    %502 = arith.addf %499, %501 : vector<16x64xf32>
    %cst_194 = arith.constant 0.000000e+00 : f32
    %503 = vector.broadcast %cst_194 : f32 to vector<16x64xf32>
    %504 = arith.maximumf %502, %503 : vector<16x64xf32>
    %c0_195 = arith.constant 0 : index
    %c0_196 = arith.constant 0 : index
    %505 = vector.load %arg21[%c0_195, %c0_196] : memref<64x32xf32, #tpu.memory_space<vmem>>, vector<64x32xf32>
    %cst_197 = arith.constant dense<0.000000e+00> : vector<16x32xf32>
    %506 = tpu.matmul %504, %505, %cst_197 {dimension_numbers = #tpu.dot_dimension_numbers<[1], [0], [0], [1], [0, 0, 1, 1], [], []>} : vector<16x64xf32>, vector<64x32xf32>, vector<16x32xf32> -> vector<16x32xf32>
    %507 = arith.addf %471, %506 : vector<16x32xf32>
    %c0_198 = arith.constant 0 : index
    %c0_199 = arith.constant 0 : index
    %508 = vector.load %arg22[%c0_198, %c0_199] : memref<1x32xf32, #tpu.memory_space<vmem>>, vector<1x32xf32>
    %509 = vector.broadcast %508 : vector<1x32xf32> to vector<16x32xf32>
    %510 = arith.addf %507, %509 : vector<16x32xf32>
    %c0_200 = arith.constant 0 : index
    %c0_201 = arith.constant 0 : index
    %511 = vector.load %arg23[%c0_200, %c0_201] : memref<16x32xf32, #tpu.memory_space<vmem>>, vector<16x32xf32>
    tpu.vector_store %arg23[%c0_200, %c0_201], %510 {strides = array<i32>} : memref<16x32xf32, #tpu.memory_space<vmem>>, vector<16x32xf32>,
    return
  }
  func.func @transform_0(%arg0: i32) -> (i32, i32) {
    %c0_i32 = arith.constant 0 : i32
    %c0_i32_0 = arith.constant 0 : i32
    %c0_i32_1 = arith.constant 0 : i32
    return %c0_i32, %c0_i32_0 : i32, i32
  }
  func.func @transform_1(%arg0: i32) -> (i32, i32) {
    %c0_i32 = arith.constant 0 : i32
    %c0_i32_0 = arith.constant 0 : i32
    %c0_i32_1 = arith.constant 0 : i32
    return %c0_i32, %c0_i32_0 : i32, i32
  }
  func.func @transform_2(%arg0: i32) -> (i32, i32) {
    %c0_i32 = arith.constant 0 : i32
    %c0_i32_0 = arith.constant 0 : i32
    %c0_i32_1 = arith.constant 0 : i32
    return %c0_i32, %c0_i32_0 : i32, i32
  }
  func.func @transform_3(%arg0: i32) -> (i32, i32) {
    %c0_i32 = arith.constant 0 : i32
    %c0_i32_0 = arith.constant 0 : i32
    %c0_i32_1 = arith.constant 0 : i32
    return %c0_i32, %c0_i32_0 : i32, i32
  }
  func.func @transform_4(%arg0: i32) -> (i32, i32) {
    %c0_i32 = arith.constant 0 : i32
    %c0_i32_0 = arith.constant 0 : i32
    %c0_i32_1 = arith.constant 0 : i32
    return %c0_i32, %c0_i32_0 : i32, i32
  }
  func.func @transform_5(%arg0: i32) -> (i32, i32) {
    %c0_i32 = arith.constant 0 : i32
    %c0_i32_0 = arith.constant 0 : i32
    %c0_i32_1 = arith.constant 0 : i32
    return %c0_i32, %c0_i32_0 : i32, i32
  }
  func.func @transform_6(%arg0: i32) -> (i32, i32) {
    %c0_i32 = arith.constant 0 : i32
    %c0_i32_0 = arith.constant 0 : i32
    %c0_i32_1 = arith.constant 0 : i32
    return %c0_i32, %c0_i32_0 : i32, i32
  }
  func.func @transform_7(%arg0: i32) -> (i32, i32) {
    %c0_i32 = arith.constant 0 : i32
    %c0_i32_0 = arith.constant 0 : i32
    %c0_i32_1 = arith.constant 0 : i32
    return %c0_i32, %c0_i32_0 : i32, i32
  }
  func.func @transform_8(%arg0: i32) -> (i32, i32) {
    %c0_i32 = arith.constant 0 : i32
    %c0_i32_0 = arith.constant 0 : i32
    %c0_i32_1 = arith.constant 0 : i32
    return %c0_i32, %c0_i32_0 : i32, i32
  }
  func.func @transform_9(%arg0: i32) -> (i32, i32) {
    %c0_i32 = arith.constant 0 : i32
    %c0_i32_0 = arith.constant 0 : i32
    %c0_i32_1 = arith.constant 0 : i32
    return %c0_i32, %c0_i32_0 : i32, i32
  }
  func.func @transform_10(%arg0: i32) -> (i32, i32) {
    %c0_i32 = arith.constant 0 : i32
    %c0_i32_0 = arith.constant 0 : i32
    %c0_i32_1 = arith.constant 0 : i32
    return %c0_i32, %c0_i32_0 : i32, i32
  }
  func.func @transform_11(%arg0: i32) -> (i32, i32) {
    %c0_i32 = arith.constant 0 : i32
    %c0_i32_0 = arith.constant 0 : i32
    %c0_i32_1 = arith.constant 0 : i32
    return %c0_i32, %c0_i32_0 : i32, i32
  }
  func.func @transform_12(%arg0: i32) -> (i32, i32) {
    %c0_i32 = arith.constant 0 : i32
    %c0_i32_0 = arith.constant 0 : i32
    %c0_i32_1 = arith.constant 0 : i32
    return %c0_i32, %c0_i32_0 : i32, i32
  }
  func.func @transform_13(%arg0: i32) -> (i32, i32) {
    %c0_i32 = arith.constant 0 : i32
    %c0_i32_0 = arith.constant 0 : i32
    %c0_i32_1 = arith.constant 0 : i32
    return %c0_i32, %c0_i32_0 : i32, i32
  }
  func.func @transform_14(%arg0: i32) -> (i32, i32) {
    %c0_i32 = arith.constant 0 : i32
    %c0_i32_0 = arith.constant 0 : i32
    %c0_i32_1 = arith.constant 0 : i32
    return %c0_i32, %c0_i32_0 : i32, i32
  }
  func.func @transform_15(%arg0: i32) -> (i32, i32) {
    %c0_i32 = arith.constant 0 : i32
    %c0_i32_0 = arith.constant 0 : i32
    %c0_i32_1 = arith.constant 0 : i32
    return %c0_i32, %c0_i32_0 : i32, i32
  }
  func.func @transform_16(%arg0: i32) -> (i32, i32) {
    %c0_i32 = arith.constant 0 : i32
    %c0_i32_0 = arith.constant 0 : i32
    %c0_i32_1 = arith.constant 0 : i32
    return %c0_i32, %c0_i32_0 : i32, i32
  }
  func.func @transform_17(%arg0: i32) -> (i32, i32) {
    %c0_i32 = arith.constant 0 : i32
    %c0_i32_0 = arith.constant 0 : i32
    %c0_i32_1 = arith.constant 0 : i32
    return %c0_i32, %c0_i32_0 : i32, i32
  }
  func.func @transform_18(%arg0: i32) -> (i32, i32) {
    %c0_i32 = arith.constant 0 : i32
    %c0_i32_0 = arith.constant 0 : i32
    %c0_i32_1 = arith.constant 0 : i32
    return %c0_i32, %c0_i32_0 : i32, i32
  }
  func.func @transform_19(%arg0: i32) -> (i32, i32) {
    %c0_i32 = arith.constant 0 : i32
    %c0_i32_0 = arith.constant 0 : i32
    %c0_i32_1 = arith.constant 0 : i32
    return %c0_i32, %c0_i32_0 : i32, i32
  }
  func.func @transform_20(%arg0: i32) -> (i32, i32) {
    %c0_i32 = arith.constant 0 : i32
    %c0_i32_0 = arith.constant 0 : i32
    %c0_i32_1 = arith.constant 0 : i32
    return %c0_i32, %c0_i32_0 : i32, i32
  }
  func.func @transform_21(%arg0: i32) -> (i32, i32) {
    %c0_i32 = arith.constant 0 : i32
    %c0_i32_0 = arith.constant 0 : i32
    %c0_i32_1 = arith.constant 0 : i32
    return %c0_i32, %c0_i32_0 : i32, i32
  }
  func.func @transform_22(%arg0: i32) -> (i32, i32) {
    %c0_i32 = arith.constant 0 : i32
    %c0_i32_0 = arith.constant 0 : i32
    %c0_i32_1 = arith.constant 0 : i32
    return %c0_i32, %c0_i32_0 : i32, i32
  }
}

</mosaic_0001>

<llo_original>
// kernel: tpu_custom_call.1
$region0: #{tpu_custom_call.1}
  #allocation0 [shape = 'u32[]', space=smem, size = 0x4, offset = 0x4, fixed_abs, tag = 'smem constant byte address 0x4 - core index']
  #allocation1 [shape = 'u32[144,128]{1,0:T(1,128)}', space=vmem, size = 0x12000, scoped, tag = 'internal scratch']
  %s0 = inlined_call_operand.hbm [shape: f32[16,32], index: 0, kind: input, shape index: {}]
  %s1 = inlined_call_operand.hbm [shape: f32[16,32], index: 1, kind: input, shape index: {}]
  %s2 = inlined_call_operand.hbm [shape: f32[8,8], index: 2, kind: input, shape index: {}]
  %s3 = inlined_call_operand.hbm [shape: f32[2,8], index: 3, kind: input, shape index: {}]
  %s4 = inlined_call_operand.hbm [shape: f32[3,32], index: 4, kind: input, shape index: {}]
  %s5 = inlined_call_operand.hbm [shape: f32[3,32], index: 5, kind: input, shape index: {}]
  %s6 = inlined_call_operand.vmem [shape: f32[32,32], index: 6, kind: input, shape index: {}]
  %s7 = inlined_call_operand.vmem [shape: f32[32,32], index: 7, kind: input, shape index: {}]
  %s8 = inlined_call_operand.vmem [shape: f32[32,32], index: 8, kind: input, shape index: {}]
  %s9 = inlined_call_operand.hbm [shape: f32[3,32], index: 9, kind: input, shape index: {}]
  %s10 = inlined_call_operand.vmem [shape: f32[32,32], index: 10, kind: input, shape index: {}]
  %s11 = inlined_call_operand.hbm [shape: f32[1,32], index: 11, kind: input, shape index: {}]
  %s12 = inlined_call_operand.hbm [shape: f32[32,32], index: 12, kind: input, shape index: {}]
  %s13 = inlined_call_operand.hbm [shape: f32[32,32], index: 13, kind: input, shape index: {}]
  %s14 = inlined_call_operand.hbm [shape: f32[32,32], index: 14, kind: input, shape index: {}]
  %s15 = inlined_call_operand.hbm [shape: f32[3,32], index: 15, kind: input, shape index: {}]
  %s16 = inlined_call_operand.hbm [shape: f32[32,32], index: 16, kind: input, shape index: {}]
  %s17 = inlined_call_operand.hbm [shape: f32[1,32], index: 17, kind: input, shape index: {}]
  %s18 = inlined_call_operand.hbm [shape: f32[32,64], index: 18, kind: input, shape index: {}]
  %s19 = inlined_call_operand.vmem [shape: f32[1,64], index: 19, kind: input, shape index: {}]
  %s20 = inlined_call_operand.vmem [shape: f32[64,32], index: 20, kind: input, shape index: {}]
  %s21 = inlined_call_operand.vmem [shape: f32[1,32], index: 21, kind: input, shape index: {}]
  %s22 = inlined_call_operand.hbm [shape: f32[16,32], index: 22, kind: output, shape index: {}]
  %s23 = sld [smem:[#allocation0]]
  $region158: #{tpu_custom_call.1} parent=0
    _
  %s25 = ssub.s32 1, %s23
  %s26 = scalar_select 0, %s25, %s23
  $region1: #{tpu_custom_call.1} parent=0
    #allocation2 [shape = 'u8[8192]{0}', space=vmem, size = 0x2000, scoped, tag = 'input window, operand 0, single buffered']
    #allocation3 [shape = 's32[1]{0}', space=sflag, size = 0x4, scoped, tag = 'scoped memory for tpu_custom_call.1']
    #allocation4 [shape = 's32[1]{0}', space=sflag, size = 0x4, scoped, tag = 'scoped memory for tpu_custom_call.1']
    #allocation5 [shape = 'u8[8192]{0}', space=vmem, size = 0x2000, scoped, tag = 'input window, operand 1, single buffered']
    #allocation6 [shape = 's32[1]{0}', space=sflag, size = 0x4, scoped, tag = 'scoped memory for tpu_custom_call.1']
    #allocation7 [shape = 'u8[4096]{0}', space=vmem, size = 0x1000, scoped, tag = 'input window, operand 2, single buffered']
    #allocation8 [shape = 'u8[1024]{0}', space=vmem, size = 0x400, scoped, tag = 'input window, operand 3, single buffered']
    #allocation9 [shape = 's32[1]{0}', space=sflag, size = 0x4, scoped, tag = 'scoped memory for tpu_custom_call.1']
    #allocation10 [shape = 'u8[2048]{0}', space=vmem, size = 0x800, scoped, tag = 'input window, operand 4, single buffered']
    #allocation11 [shape = 'u8[2048]{0}', space=vmem, size = 0x800, scoped, tag = 'input window, operand 5, single buffered']
    #allocation12 [shape = 's32[1]{0}', space=sflag, size = 0x4, scoped, tag = 'scoped memory for tpu_custom_call.1']
    #allocation13 [shape = 'u8[2048]{0}', space=vmem, size = 0x800, scoped, tag = 'input window, operand 9, single buffered']
    #allocation14 [shape = 'u8[512]{0}', space=vmem, size = 0x400, scoped, tag = 'input window, operand 11, single buffered']
    #allocation15 [shape = 's32[1]{0}', space=sflag, size = 0x4, scoped, tag = 'scoped memory for tpu_custom_call.1']
    #allocation16 [shape = 'u8[16384]{0}', space=vmem, size = 0x4000, scoped, tag = 'input window, operand 12, single buffered']
    #allocation17 [shape = 'u8[16384]{0}', space=vmem, size = 0x4000, scoped, tag = 'input window, operand 13, single buffered']
    #allocation18 [shape = 's32[1]{0}', space=sflag, size = 0x4, scoped, tag = 'scoped memory for tpu_custom_call.1']
    #allocation19 [shape = 'u8[16384]{0}', space=vmem, size = 0x4000, scoped, tag = 'input window, operand 14, single buffered']
    #allocation20 [shape = 'u8[2048]{0}', space=vmem, size = 0x800, scoped, tag = 'input window, operand 15, single buffered']
    #allocation21 [shape = 's32[1]{0}', space=sflag, size = 0x4, scoped, tag = 'scoped memory for tpu_custom_call.1']
    #allocation22 [shape = 'u8[16384]{0}', space=vmem, size = 0x4000, scoped, tag = 'input window, operand 16, single buffered']
    #allocation23 [shape = 'u8[512]{0}', space=vmem, size = 0x400, scoped, tag = 'input window, operand 17, single buffered']
    #allocation24 [shape = 's32[1]{0}', space=sflag, size = 0x4, scoped, tag = 'scoped memory for tpu_custom_call.1']
    #allocation25 [shape = 'u8[16384]{0}', space=vmem, size = 0x4000, scoped, tag = 'input window, operand 18, single buffered']
    #allocation26 [shape = 'u8[8192]{0}', space=vmem, size = 0x2000, scoped, tag = 'output window, operand 0, single buffered']
    %27 = vsyncpa [#allocation3], 0
    %28 = vsyncpa [#allocation6], 0
    %29 = vsyncpa [#allocation9], 0
    %30 = vsyncpa [#allocation12], 0
    %31 = vsyncpa [#allocation15], 0
    %32 = vsyncpa [#allocation18], 0
    %33 = vsyncpa [#allocation21], 0
    %34 = vsyncpa [#allocation24], 0
    %35 = vsyncpa [#allocation4], 0
    // Predicated region
    $region2: #{tpu_custom_call.1} parent=1 // pred_check
      _
    $region3: #{tpu_custom_call.1} parent=1 // pred_check_branch
      %37 = sbr.rel (0) target = $region5
    $region4: #{tpu_custom_call.1} parent=1 // pred_region
      %s39 = ssub.s32 256, 256
      %40 = vsyncadd [#allocation3], %s39
      %s41 = sshll.u32 [#allocation2], 4
      %s42 = int_to_ptr.vmem [resolvable:$true] %s41
      %47 = dma.hbm_to_vmem [thread:$0]  %s0, 256, %s42, [#allocation3], 128, 128, 8
    $region5: #{tpu_custom_call.1} parent=1 // pred_fallthru
      _
    // Predicated region
    $region6: #{tpu_custom_call.1} parent=1 // pred_check
      _
    $region7: #{tpu_custom_call.1} parent=1 // pred_check_branch
      %49 = sbr.rel (0) target = $region9
    $region8: #{tpu_custom_call.1} parent=1 // pred_region
      %s51 = ssub.s32 256, 256
      %52 = vsyncadd [#allocation6], %s51
      %s53 = sshll.u32 [#allocation5], 4
      %s54 = int_to_ptr.vmem [resolvable:$true] %s53
      %59 = dma.hbm_to_vmem [thread:$0]  %s1, 256, %s54, [#allocation6], 128, 128, 8
    $region9: #{tpu_custom_call.1} parent=1 // pred_fallthru
      _
    // Predicated region
    $region10: #{tpu_custom_call.1} parent=1 // pred_check
      _
    $region11: #{tpu_custom_call.1} parent=1 // pred_check_branch
      %61 = sbr.rel (0) target = $region13
    $region12: #{tpu_custom_call.1} parent=1 // pred_region
      %s63 = ssub.s32 128, 128
      %64 = vsyncadd [#allocation6], %s63
      %s66 = sshll.u32 [#allocation7], 4
      %s67 = int_to_ptr.vmem [resolvable:$true] %s66
      %69 = dma.hbm_to_vmem [thread:$0]  %s2, 128, %s67, [#allocation6]
    $region13: #{tpu_custom_call.1} parent=1 // pred_fallthru
      _
    // Predicated region
    $region14: #{tpu_custom_call.1} parent=1 // pred_check
      _
    $region15: #{tpu_custom_call.1} parent=1 // pred_check_branch
      %71 = sbr.rel (0) target = $region17
    $region16: #{tpu_custom_call.1} parent=1 // pred_region
      %s73 = ssub.s32 32, 32
      %74 = vsyncadd [#allocation9], %s73
      %s76 = sshll.u32 [#allocation8], 4
      %s77 = int_to_ptr.vmem [resolvable:$true] %s76
      %79 = dma.hbm_to_vmem [thread:$0]  %s3, 32, %s77, [#allocation9]
    $region17: #{tpu_custom_call.1} parent=1 // pred_fallthru
      _
    // Predicated region
    $region18: #{tpu_custom_call.1} parent=1 // pred_check
      _
    $region19: #{tpu_custom_call.1} parent=1 // pred_check_branch
      %81 = sbr.rel (0) target = $region21
    $region20: #{tpu_custom_call.1} parent=1 // pred_region
      %s83 = ssub.s32 64, 64
      %84 = vsyncadd [#allocation9], %s83
      %s86 = sshll.u32 [#allocation10], 4
      %s87 = int_to_ptr.vmem [resolvable:$true] %s86
      %89 = dma.hbm_to_vmem [thread:$0]  %s4, 64, %s87, [#allocation9]
    $region21: #{tpu_custom_call.1} parent=1 // pred_fallthru
      _
    // Predicated region
    $region22: #{tpu_custom_call.1} parent=1 // pred_check
      _
    $region23: #{tpu_custom_call.1} parent=1 // pred_check_branch
      %91 = sbr.rel (0) target = $region25
    $region24: #{tpu_custom_call.1} parent=1 // pred_region
      %s93 = ssub.s32 64, 64
      %94 = vsyncadd [#allocation12], %s93
      %s96 = sshll.u32 [#allocation11], 4
      %s97 = int_to_ptr.vmem [resolvable:$true] %s96
      %99 = dma.hbm_to_vmem [thread:$0]  %s5, 64, %s97, [#allocation12]
    $region25: #{tpu_custom_call.1} parent=1 // pred_fallthru
      _
    // Predicated region
    $region26: #{tpu_custom_call.1} parent=1 // pred_check
      _
    $region27: #{tpu_custom_call.1} parent=1 // pred_check_branch
      %101 = sbr.rel (0) target = $region29
    $region28: #{tpu_custom_call.1} parent=1 // pred_region
      _
    $region29: #{tpu_custom_call.1} parent=1 // pred_fallthru
      _
    // Predicated region
    $region30: #{tpu_custom_call.1} parent=1 // pred_check
      _
    $region31: #{tpu_custom_call.1} parent=1 // pred_check_branch
      %103 = sbr.rel (0) target = $region33
    $region32: #{tpu_custom_call.1} parent=1 // pred_region
      _
    $region33: #{tpu_custom_call.1} parent=1 // pred_fallthru
      _
    // Predicated region
    $region34: #{tpu_custom_call.1} parent=1 // pred_check
      _
    $region35: #{tpu_custom_call.1} parent=1 // pred_check_branch
      %105 = sbr.rel (0) target = $region37
    $region36: #{tpu_custom_call.1} parent=1 // pred_region
      _
    $region37: #{tpu_custom_call.1} parent=1 // pred_fallthru
      _
    // Predicated region
    $region38: #{tpu_custom_call.1} parent=1 // pred_check
      _
    $region39: #{tpu_custom_call.1} parent=1 // pred_check_branch
      %107 = sbr.rel (0) target = $region41
    $region40: #{tpu_custom_call.1} parent=1 // pred_region
      %s109 = ssub.s32 64, 64
      %110 = vsyncadd [#allocation12], %s109
      %s112 = sshll.u32 [#allocation13], 4
      %s113 = int_to_ptr.vmem [resolvable:$true] %s112
      %115 = dma.hbm_to_vmem [thread:$0]  %s9, 64, %s113, [#allocation12]
    $region41: #{tpu_custom_call.1} parent=1 // pred_fallthru
      _
    // Predicated region
    $region42: #{tpu_custom_call.1} parent=1 // pred_check
      _
    $region43: #{tpu_custom_call.1} parent=1 // pred_check_branch
      %117 = sbr.rel (0) target = $region45
    $region44: #{tpu_custom_call.1} parent=1 // pred_region
      _
    $region45: #{tpu_custom_call.1} parent=1 // pred_fallthru
      _
    // Predicated region
    $region46: #{tpu_custom_call.1} parent=1 // pred_check
      _
    $region47: #{tpu_custom_call.1} parent=1 // pred_check_branch
      %119 = sbr.rel (0) target = $region49
    $region48: #{tpu_custom_call.1} parent=1 // pred_region
      %s121 = ssub.s32 16, 16
      %122 = vsyncadd [#allocation15], %s121
      %s124 = sshll.u32 [#allocation14], 4
      %s125 = int_to_ptr.vmem [resolvable:$true] %s124
      %127 = dma.hbm_to_vmem [thread:$0]  %s11, 16, %s125, [#allocation15]
    $region49: #{tpu_custom_call.1} parent=1 // pred_fallthru
      _
    // Predicated region
    $region50: #{tpu_custom_call.1} parent=1 // pred_check
      _
    $region51: #{tpu_custom_call.1} parent=1 // pred_check_branch
      %129 = sbr.rel (0) target = $region53
    $region52: #{tpu_custom_call.1} parent=1 // pred_region
      %s131 = ssub.s32 512, 512
      %132 = vsyncadd [#allocation15], %s131
      %s133 = sshll.u32 [#allocation16], 4
      %s134 = int_to_ptr.vmem [resolvable:$true] %s133
      %139 = dma.hbm_to_vmem [thread:$0]  %s12, 512, %s134, [#allocation15], 128, 128, 8
    $region53: #{tpu_custom_call.1} parent=1 // pred_fallthru
      _
    // Predicated region
    $region54: #{tpu_custom_call.1} parent=1 // pred_check
      _
    $region55: #{tpu_custom_call.1} parent=1 // pred_check_branch
      %141 = sbr.rel (0) target = $region57
    $region56: #{tpu_custom_call.1} parent=1 // pred_region
      %s143 = ssub.s32 512, 512
      %144 = vsyncadd [#allocation18], %s143
      %s145 = sshll.u32 [#allocation17], 4
      %s146 = int_to_ptr.vmem [resolvable:$true] %s145
      %151 = dma.hbm_to_vmem [thread:$0]  %s13, 512, %s146, [#allocation18], 128, 128, 8
    $region57: #{tpu_custom_call.1} parent=1 // pred_fallthru
      _
    // Predicated region
    $region58: #{tpu_custom_call.1} parent=1 // pred_check
      _
    $region59: #{tpu_custom_call.1} parent=1 // pred_check_branch
      %153 = sbr.rel (0) target = $region61
    $region60: #{tpu_custom_call.1} parent=1 // pred_region
      %s155 = ssub.s32 512, 512
      %156 = vsyncadd [#allocation18], %s155
      %s157 = sshll.u32 [#allocation19], 4
      %s158 = int_to_ptr.vmem [resolvable:$true] %s157
      %163 = dma.hbm_to_vmem [thread:$0]  %s14, 512, %s158, [#allocation18], 128, 128, 8
    $region61: #{tpu_custom_call.1} parent=1 // pred_fallthru
      _
    // Predicated region
    $region62: #{tpu_custom_call.1} parent=1 // pred_check
      _
    $region63: #{tpu_custom_call.1} parent=1 // pred_check_branch
      %165 = sbr.rel (0) target = $region65
    $region64: #{tpu_custom_call.1} parent=1 // pred_region
      %s167 = ssub.s32 64, 64
      %168 = vsyncadd [#allocation21], %s167
      %s170 = sshll.u32 [#allocation20], 4
      %s171 = int_to_ptr.vmem [resolvable:$true] %s170
      %173 = dma.hbm_to_vmem [thread:$0]  %s15, 64, %s171, [#allocation21]
    $region65: #{tpu_custom_call.1} parent=1 // pred_fallthru
      _
    // Predicated region
    $region66: #{tpu_custom_call.1} parent=1 // pred_check
      _
    $region67: #{tpu_custom_call.1} parent=1 // pred_check_branch
      %175 = sbr.rel (0) target = $region69
    $region68: #{tpu_custom_call.1} parent=1 // pred_region
      %s177 = ssub.s32 512, 512
      %178 = vsyncadd [#allocation21], %s177
      %s179 = sshll.u32 [#allocation22], 4
      %s180 = int_to_ptr.vmem [resolvable:$true] %s179
      %185 = dma.hbm_to_vmem [thread:$0]  %s16, 512, %s180, [#allocation21], 128, 128, 8
    $region69: #{tpu_custom_call.1} parent=1 // pred_fallthru
      _
    // Predicated region
    $region70: #{tpu_custom_call.1} parent=1 // pred_check
      _
    $region71: #{tpu_custom_call.1} parent=1 // pred_check_branch
      %187 = sbr.rel (0) target = $region73
    $region72: #{tpu_custom_call.1} parent=1 // pred_region
      %s189 = ssub.s32 16, 16
      %190 = vsyncadd [#allocation24], %s189
      %s192 = sshll.u32 [#allocation23], 4
      %s193 = int_to_ptr.vmem [resolvable:$true] %s192
      %195 = dma.hbm_to_vmem [thread:$0]  %s17, 16, %s193, [#allocation24]
    $region73: #{tpu_custom_call.1} parent=1 // pred_fallthru
      _
    // Predicated region
    $region74: #{tpu_custom_call.1} parent=1 // pred_check
      _
    $region75: #{tpu_custom_call.1} parent=1 // pred_check_branch
      %197 = sbr.rel (0) target = $region77
    $region76: #{tpu_custom_call.1} parent=1 // pred_region
      %s199 = ssub.s32 512, 512
      %200 = vsyncadd [#allocation24], %s199
      %s201 = sshll.u32 [#allocation25], 4
      %s202 = int_to_ptr.vmem [resolvable:$true] %s201
      %207 = dma.hbm_to_vmem [thread:$0]  %s18, 512, %s202, [#allocation24], 128, 128, 8
    $region77: #{tpu_custom_call.1} parent=1 // pred_fallthru
      _
    // Predicated region
    $region78: #{tpu_custom_call.1} parent=1 // pred_check
      _
    $region79: #{tpu_custom_call.1} parent=1 // pred_check_branch
      %209 = sbr.rel (0) target = $region81
    $region80: #{tpu_custom_call.1} parent=1 // pred_region
      _
    $region81: #{tpu_custom_call.1} parent=1 // pred_fallthru
      _
    // Predicated region
    $region82: #{tpu_custom_call.1} parent=1 // pred_check
      _
    $region83: #{tpu_custom_call.1} parent=1 // pred_check_branch
      %211 = sbr.rel (0) target = $region85
    $region84: #{tpu_custom_call.1} parent=1 // pred_region
      _
    $region85: #{tpu_custom_call.1} parent=1 // pred_fallthru
      _
    // Predicated region
    $region86: #{tpu_custom_call.1} parent=1 // pred_check
      _
    $region87: #{tpu_custom_call.1} parent=1 // pred_check_branch
      %213 = sbr.rel (0) target = $region89
    $region88: #{tpu_custom_call.1} parent=1 // pred_region
      _
    $region89: #{tpu_custom_call.1} parent=1 // pred_fallthru
      _
    // Predicated region
    $region90: #{tpu_custom_call.1} parent=1 // pred_check
      _
    $region91: #{tpu_custom_call.1} parent=1 // pred_check_branch
      %215 = sbr.rel (0) target = $region93
    $region92: #{tpu_custom_call.1} parent=1 // pred_region
      %216 = dma.done [#allocation3], 256
    $region93: #{tpu_custom_call.1} parent=1 // pred_fallthru
      _
    // Predicated region
    $region94: #{tpu_custom_call.1} parent=1 // pred_check
      _
    $region95: #{tpu_custom_call.1} parent=1 // pred_check_branch
      %218 = sbr.rel (0) target = $region97
    $region96: #{tpu_custom_call.1} parent=1 // pred_region
      %219 = dma.done [#allocation6], 256
    $region97: #{tpu_custom_call.1} parent=1 // pred_fallthru
      _
    // Predicated region
    $region98: #{tpu_custom_call.1} parent=1 // pred_check
      _
    $region99: #{tpu_custom_call.1} parent=1 // pred_check_branch
      %221 = sbr.rel (0) target = $region101
    $region100: #{tpu_custom_call.1} parent=1 // pred_region
      %222 = dma.done [#allocation6], 128
    $region101: #{tpu_custom_call.1} parent=1 // pred_fallthru
      _
    // Predicated region
    $region102: #{tpu_custom_call.1} parent=1 // pred_check
      _
    $region103: #{tpu_custom_call.1} parent=1 // pred_check_branch
      %224 = sbr.rel (0) target = $region105
    $region104: #{tpu_custom_call.1} parent=1 // pred_region
      %225 = dma.done [#allocation9], 32
    $region105: #{tpu_custom_call.1} parent=1 // pred_fallthru
      _
    // Predicated region
    $region106: #{tpu_custom_call.1} parent=1 // pred_check
      _
    $region107: #{tpu_custom_call.1} parent=1 // pred_check_branch
      %227 = sbr.rel (0) target = $region109
    $region108: #{tpu_custom_call.1} parent=1 // pred_region
      %228 = dma.done [#allocation9], 64
    $region109: #{tpu_custom_call.1} parent=1 // pred_fallthru
      _
    // Predicated region
    $region110: #{tpu_custom_call.1} parent=1 // pred_check
      _
    $region111: #{tpu_custom_call.1} parent=1 // pred_check_branch
      %230 = sbr.rel (0) target = $region113
    $region112: #{tpu_custom_call.1} parent=1 // pred_region
      %231 = dma.done [#allocation12], 64
    $region113: #{tpu_custom_call.1} parent=1 // pred_fallthru
      _
    // Predicated region
    $region114: #{tpu_custom_call.1} parent=1 // pred_check
      _
    $region115: #{tpu_custom_call.1} parent=1 // pred_check_branch
      %233 = sbr.rel (0) target = $region117
    $region116: #{tpu_custom_call.1} parent=1 // pred_region
      %234 = dma.done [#allocation12], 64
    $region117: #{tpu_custom_call.1} parent=1 // pred_fallthru
      _
    // Predicated region
    $region118: #{tpu_custom_call.1} parent=1 // pred_check
      _
    $region119: #{tpu_custom_call.1} parent=1 // pred_check_branch
      %236 = sbr.rel (0) target = $region121
    $region120: #{tpu_custom_call.1} parent=1 // pred_region
      %237 = dma.done [#allocation15], 16
    $region121: #{tpu_custom_call.1} parent=1 // pred_fallthru
      _
    // Predicated region
    $region122: #{tpu_custom_call.1} parent=1 // pred_check
      _
    $region123: #{tpu_custom_call.1} parent=1 // pred_check_branch
      %239 = sbr.rel (0) target = $region125
    $region124: #{tpu_custom_call.1} parent=1 // pred_region
      %240 = dma.done [#allocation15], 512
    $region125: #{tpu_custom_call.1} parent=1 // pred_fallthru
      _
    // Predicated region
    $region126: #{tpu_custom_call.1} parent=1 // pred_check
      _
    $region127: #{tpu_custom_call.1} parent=1 // pred_check_branch
      %242 = sbr.rel (0) target = $region129
    $region128: #{tpu_custom_call.1} parent=1 // pred_region
      %243 = dma.done [#allocation18], 512
    $region129: #{tpu_custom_call.1} parent=1 // pred_fallthru
      _
    // Predicated region
    $region130: #{tpu_custom_call.1} parent=1 // pred_check
      _
    $region131: #{tpu_custom_call.1} parent=1 // pred_check_branch
      %245 = sbr.rel (0) target = $region133
    $region132: #{tpu_custom_call.1} parent=1 // pred_region
      %246 = dma.done [#allocation18], 512
    $region133: #{tpu_custom_call.1} parent=1 // pred_fallthru
      _
    // Predicated region
    $region134: #{tpu_custom_call.1} parent=1 // pred_check
      _
    $region135: #{tpu_custom_call.1} parent=1 // pred_check_branch
      %248 = sbr.rel (0) target = $region137
    $region136: #{tpu_custom_call.1} parent=1 // pred_region
      %249 = dma.done [#allocation21], 64
    $region137: #{tpu_custom_call.1} parent=1 // pred_fallthru
      _
    // Predicated region
    $region138: #{tpu_custom_call.1} parent=1 // pred_check
      _
    $region139: #{tpu_custom_call.1} parent=1 // pred_check_branch
      %251 = sbr.rel (0) target = $region141
    $region140: #{tpu_custom_call.1} parent=1 // pred_region
      %252 = dma.done [#allocation21], 512
    $region141: #{tpu_custom_call.1} parent=1 // pred_fallthru
      _
    // Predicated region
    $region142: #{tpu_custom_call.1} parent=1 // pred_check
      _
    $region143: #{tpu_custom_call.1} parent=1 // pred_check_branch
      %254 = sbr.rel (0) target = $region145
    $region144: #{tpu_custom_call.1} parent=1 // pred_region
      %255 = dma.done [#allocation24], 16
    $region145: #{tpu_custom_call.1} parent=1 // pred_fallthru
      _
    // Predicated region
    $region146: #{tpu_custom_call.1} parent=1 // pred_check
      _
    $region147: #{tpu_custom_call.1} parent=1 // pred_check_branch
      %257 = sbr.rel (0) target = $region149
    $region148: #{tpu_custom_call.1} parent=1 // pred_region
      %258 = dma.done [#allocation24], 512
    $region149: #{tpu_custom_call.1} parent=1 // pred_fallthru
      _
    %v259 = vld [vmem:[#allocation2] sm:$0xff]
    %v260 = vld [vmem:[#allocation2 + $0x8] sm:$0xff]
    %v261 = vld [vmem:[#allocation5] sm:$0xff]
    %v262 = vld [vmem:[#allocation5 + $0x8] sm:$0xff]
    %v263 = vld [vmem:[#allocation10] sm:$0x7]
    %v264 = vld [vmem:[#allocation11] sm:$0x7]
    %v265 = vld [vmem:[#allocation13] sm:$0x7]
    %v266 = vld [vmem:[#allocation20] sm:$0x7]
    %v267 = vld [vmem:[#allocation7] sm:$0xff]
    %vm268 = vcmp.eq.f32.partialorder %v267, 0.0
    %v269 = vsel %vm268, -1e+09, 0.0
    %v270 = vld [vmem:[#allocation8] sm:$0x3]
    %vm271 = vcmp.eq.f32.partialorder %v270, 0.0
    %v272 = vsel %vm271, -1e+09, 0.0
    %vm273 = vcmask 261120
    %v274 = vsel %vm273, %v259, 0.0
    %275 = vadd.xlane.f32.xlu0 %v274
    %v276 = vpop.xlane.xlu0 %275
    %v277 = vsel %vm273, %v260, 0.0
    %278 = vadd.xlane.f32.xlu0 %v277
    %v279 = vpop.xlane.xlu0 %278
    %v280 = vmul.f32 %v276, 0.03125
    %v281 = vmul.f32 %v279, 0.03125
    %v282 = vsub.f32 %v259, %v280
    %v283 = vsub.f32 %v260, %v281
    %v284 = vmul.f32 %v282, %v282
    %v285 = vmul.f32 %v283, %v283
    %v286 = vsel %vm273, %v284, 0.0
    %287 = vadd.xlane.f32.xlu0 %v286
    %v288 = vpop.xlane.xlu0 %287
    %v289 = vsel %vm273, %v285, 0.0
    %290 = vadd.xlane.f32.xlu0 %v289
    %v291 = vpop.xlane.xlu0 %290
    %v292 = vmul.f32 %v288, 0.032258064
    %v293 = vmul.f32 %v291, 0.032258064
    %v294 = vrsqrt.pop %v292
    %v295 = vmul.f32 %v292, %v294
    %vm296 = vcmp.eq.f32.partialorder %v292, inf
    %v297 = vsel %vm296, %v292, %v295
    %vm298 = vcmp.eq.f32.partialorder %v292, 0.0
    %v299 = vand.u32 %v292, 2147483648
    %v300 = vsel %vm298, %v299, %v297
    %v301 = vrsqrt.pop %v293
    %v302 = vmul.f32 %v293, %v301
    %vm303 = vcmp.eq.f32.partialorder %v293, inf
    %v304 = vsel %vm303, %v293, %v302
    %vm305 = vcmp.eq.f32.partialorder %v293, 0.0
    %v306 = vand.u32 %v293, 2147483648
    %v307 = vsel %vm305, %v306, %v304
    %v308 = vadd.f32 %v300, 1e-06
    %v309 = vadd.f32 %v307, 1e-06
    %v310 = vrcp.pop %v308
    %v311 = vmul.f32 1.0, %v310
    %v312 = vrcp.pop %v309
    %v313 = vmul.f32 1.0, %v312
    %v314 = vsub.f32 %v259, %v276
    %v315 = vsub.f32 %v260, %v279
    %v316 = vmul.f32 %v314, %v311
    %v317 = vmul.f32 %v315, %v313
    %v318 = vlaneseq
    %v319 = vshrl.u32 %v318, 7
    %v320 = vsub.s32 0, %v319
    %v321 = vrot.slane %v263, %v320
    %v322 = vmul.f32 %v321, %v316
    %v323 = vmul.f32 %v321, %v317
    %v324 = vlaneseq
    %v325 = vshrl.u32 %v324, 7
    %v326 = vsub.s32 0, %v325
    %v327 = vrot.slane %v264, %v326
    %v328 = vadd.f32 %v322, %v327
    %v329 = vadd.f32 %v323, %v327
    %v330 = vld [vmem:[%s6] sm:$0xff]
    %v331 = vld [vmem:[%s6 + $0x8] sm:$0xff]
    %v332 = vld [vmem:[%s6 + $0x10] sm:$0xff]
    %v333 = vld [vmem:[%s6 + $0x18] sm:$0xff]
    %v334 = vlaneseq
    %v335 = vshrl.u32 %v334, 7
    %v336 = vsub.s32 0, %v335
    %v337 = vrot.slane %v265, %v336
    %v339 = vsel %vm273, %v328, 0
    %v342 = vsel %vm273, %v329, 0
    %344 = vmatprep.subr.mxu0 0.0
    %345 = vmatpush1.msra.mxu0 %v330
    %346 = vmatprep.subr.mxu0 0.0
    %347 = vmatpush1.msra.mxu0 %v331
    %348 = vmatprep.subr.mxu0 0.0
    %349 = vmatpush1.msra.mxu0 %v332
    %350 = vmatprep.subr.mxu0 0.0
    %351 = vmatpush1.msra.mxu0 %v333
    %352 = vmatprep.subr.mxu0 0.0
    %353 = vmatpush1.msra.mxu0 0.0
    %354 = vmatprep.subr.mxu0 0.0
    %355 = vmatpush1.msra.mxu0 0.0
    %356 = vmatprep.subr.mxu0 0.0
    %357 = vmatpush1.msra.mxu0 0.0
    %358 = vmatprep.subr.mxu0 0.0
    %359 = vmatpush1.msra.mxu0 0.0
    %360 = vmatprep.subr.mxu0 0.0
    %361 = vmatpush1.msra.mxu0 0.0
    %362 = vmatprep.subr.mxu0 0.0
    %363 = vmatpush1.msra.mxu0 0.0
    %364 = vmatprep.subr.mxu0 0.0
    %365 = vmatpush1.msra.mxu0 0.0
    %366 = vmatprep.subr.mxu0 0.0
    %367 = vmatpush1.msra.mxu0 0.0
    %368 = vmatprep.subr.mxu0 0.0
    %369 = vmatpush1.msra.mxu0 0.0
    %370 = vmatprep.subr.mxu0 0.0
    %371 = vmatpush1.msra.mxu0 0.0
    %372 = vmatprep.subr.mxu0 0.0
    %373 = vmatpush1.msra.mxu0 0.0
    %374 = vmatprep.subr.mxu0 0.0
    %375 = vmatpush1.msra.mxu0 0.0
    %376 = vmatprep.subr.mxu0 0.0
    %377 = vmatpush1.msra.mxu0 0.0
    %378 = vmatprep.subr.mxu0 0.0
    %379 = vmatpush1.msra.mxu0 0.0
    %380 = vmatprep.subr.mxu0 0.0
    %381 = vmatpush1.msra.mxu0 0.0
    %382 = vmatprep.subr.mxu0 0.0
    %383 = vmatpush1.msra.mxu0 0.0
    %384 = vmatprep.subr.mxu0 0.0
    %385 = vmatpush1.msra.mxu0 0.0
    %386 = vmatprep.subr.mxu0 0.0
    %387 = vmatpush1.msra.mxu0 0.0
    %388 = vmatprep.subr.mxu0 0.0
    %389 = vmatpush1.msra.mxu0 0.0
    %390 = vmatprep.subr.mxu0 0.0
    %391 = vmatpush1.msra.mxu0 0.0
    %392 = vmatprep.subr.mxu0 0.0
    %393 = vmatpush1.msra.mxu0 0.0
    %394 = vmatprep.subr.mxu0 0.0
    %395 = vmatpush1.msra.mxu0 0.0
    %396 = vmatprep.subr.mxu0 0.0
    %397 = vmatpush1.msra.mxu0 0.0
    %398 = vmatprep.subr.mxu0 0.0
    %399 = vmatpush1.msra.mxu0 0.0
    %400 = vmatprep.subr.mxu0 0.0
    %401 = vmatpush1.msra.mxu0 0.0
    %402 = vmatprep.subr.mxu0 0.0
    %403 = vmatpush1.msra.mxu0 0.0
    %404 = vmatprep.subr.mxu0 0.0
    %405 = vmatpush1.msra.mxu0 0.0
    %406 = vmatprep.subr.mxu0 0.0
    %407 = vmatpush1.msra.mxu0 0.0
    %408 = vmatprep.mubr.f32.mxu0 0.0
    %409 = vmatmul.mubr.f32.gmra.mrb[0].mxu0 %v339
    %v410 = vpop.f32.mrb[0].mxu0
    %v411 = vadd.f32 %v337, %v410
    %v412 = vpop.f32.mrb[0].mxu0
    %413 = vmatprep.mubr.f32.mxu0 0.0
    %414 = vmatmul.mubr.f32.gmra.mrb[0].mxu0 %v342
    %v415 = vpop.f32.mrb[0].mxu0
    %v416 = vadd.f32 %v337, %v415
    %v417 = vpop.f32.mrb[0].mxu0
    %418 = vdwg.mxu0
    %v419 = vld [vmem:[%s7] sm:$0xff]
    %v420 = vld [vmem:[%s7 + $0x8] sm:$0xff]
    %v421 = vld [vmem:[%s7 + $0x10] sm:$0xff]
    %v422 = vld [vmem:[%s7 + $0x18] sm:$0xff]
    %v423 = vlaneseq
    %v424 = vshrl.u32 %v423, 7
    %v425 = vsub.s32 1, %v424
    %v426 = vrot.slane %v265, %v425
    %427 = vmatprep.subr.mxu0 0.0
    %428 = vmatpush1.msra.mxu0 %v419
    %429 = vmatprep.subr.mxu0 0.0
    %430 = vmatpush1.msra.mxu0 %v420
    %431 = vmatprep.subr.mxu0 0.0
    %432 = vmatpush1.msra.mxu0 %v421
    %433 = vmatprep.subr.mxu0 0.0
    %434 = vmatpush1.msra.mxu0 %v422
    %435 = vmatprep.subr.mxu0 0.0
    %436 = vmatpush1.msra.mxu0 0.0
    %437 = vmatprep.subr.mxu0 0.0
    %438 = vmatpush1.msra.mxu0 0.0
    %439 = vmatprep.subr.mxu0 0.0
    %440 = vmatpush1.msra.mxu0 0.0
    %441 = vmatprep.subr.mxu0 0.0
    %442 = vmatpush1.msra.mxu0 0.0
    %443 = vmatprep.subr.mxu0 0.0
    %444 = vmatpush1.msra.mxu0 0.0
    %445 = vmatprep.subr.mxu0 0.0
    %446 = vmatpush1.msra.mxu0 0.0
    %447 = vmatprep.subr.mxu0 0.0
    %448 = vmatpush1.msra.mxu0 0.0
    %449 = vmatprep.subr.mxu0 0.0
    %450 = vmatpush1.msra.mxu0 0.0
    %451 = vmatprep.subr.mxu0 0.0
    %452 = vmatpush1.msra.mxu0 0.0
    %453 = vmatprep.subr.mxu0 0.0
    %454 = vmatpush1.msra.mxu0 0.0
    %455 = vmatprep.subr.mxu0 0.0
    %456 = vmatpush1.msra.mxu0 0.0
    %457 = vmatprep.subr.mxu0 0.0
    %458 = vmatpush1.msra.mxu0 0.0
    %459 = vmatprep.subr.mxu0 0.0
    %460 = vmatpush1.msra.mxu0 0.0
    %461 = vmatprep.subr.mxu0 0.0
    %462 = vmatpush1.msra.mxu0 0.0
    %463 = vmatprep.subr.mxu0 0.0
    %464 = vmatpush1.msra.mxu0 0.0
    %465 = vmatprep.subr.mxu0 0.0
    %466 = vmatpush1.msra.mxu0 0.0
    %467 = vmatprep.subr.mxu0 0.0
    %468 = vmatpush1.msra.mxu0 0.0
    %469 = vmatprep.subr.mxu0 0.0
    %470 = vmatpush1.msra.mxu0 0.0
    %471 = vmatprep.subr.mxu0 0.0
    %472 = vmatpush1.msra.mxu0 0.0
    %473 = vmatprep.subr.mxu0 0.0
    %474 = vmatpush1.msra.mxu0 0.0
    %475 = vmatprep.subr.mxu0 0.0
    %476 = vmatpush1.msra.mxu0 0.0
    %477 = vmatprep.subr.mxu0 0.0
    %478 = vmatpush1.msra.mxu0 0.0
    %479 = vmatprep.subr.mxu0 0.0
    %480 = vmatpush1.msra.mxu0 0.0
    %481 = vmatprep.subr.mxu0 0.0
    %482 = vmatpush1.msra.mxu0 0.0
    %483 = vmatprep.subr.mxu0 0.0
    %484 = vmatpush1.msra.mxu0 0.0
    %485 = vmatprep.subr.mxu0 0.0
    %486 = vmatpush1.msra.mxu0 0.0
    %487 = vmatprep.subr.mxu0 0.0
    %488 = vmatpush1.msra.mxu0 0.0
    %489 = vmatprep.subr.mxu0 0.0
    %490 = vmatpush1.msra.mxu0 0.0
    %491 = vmatprep.mubr.f32.mxu0 0.0
    %492 = vmatmul.mubr.f32.gmra.mrb[0].mxu0 %v339
    %v493 = vpop.f32.mrb[0].mxu0
    %v494 = vadd.f32 %v426, %v493
    %v495 = vpop.f32.mrb[0].mxu0
    %496 = vmatprep.mubr.f32.mxu0 0.0
    %497 = vmatmul.mubr.f32.gmra.mrb[0].mxu0 %v342
    %v498 = vpop.f32.mrb[0].mxu0
    %v499 = vadd.f32 %v426, %v498
    %v500 = vpop.f32.mrb[0].mxu0
    %501 = vdwg.mxu0
    %v502 = vld [vmem:[%s8] sm:$0xff]
    %v503 = vld [vmem:[%s8 + $0x8] sm:$0xff]
    %v504 = vld [vmem:[%s8 + $0x10] sm:$0xff]
    %v505 = vld [vmem:[%s8 + $0x18] sm:$0xff]
    %v506 = vlaneseq
    %v507 = vshrl.u32 %v506, 7
    %v508 = vsub.s32 2, %v507
    %v509 = vrot.slane %v265, %v508
    %510 = vmatprep.subr.mxu0 0.0
    %511 = vmatpush1.msra.mxu0 %v502
    %512 = vmatprep.subr.mxu0 0.0
    %513 = vmatpush1.msra.mxu0 %v503
    %514 = vmatprep.subr.mxu0 0.0
    %515 = vmatpush1.msra.mxu0 %v504
    %516 = vmatprep.subr.mxu0 0.0
    %517 = vmatpush1.msra.mxu0 %v505
    %518 = vmatprep.subr.mxu0 0.0
    %519 = vmatpush1.msra.mxu0 0.0
    %520 = vmatprep.subr.mxu0 0.0
    %521 = vmatpush1.msra.mxu0 0.0
    %522 = vmatprep.subr.mxu0 0.0
    %523 = vmatpush1.msra.mxu0 0.0
    %524 = vmatprep.subr.mxu0 0.0
    %525 = vmatpush1.msra.mxu0 0.0
    %526 = vmatprep.subr.mxu0 0.0
    %527 = vmatpush1.msra.mxu0 0.0
    %528 = vmatprep.subr.mxu0 0.0
    %529 = vmatpush1.msra.mxu0 0.0
    %530 = vmatprep.subr.mxu0 0.0
    %531 = vmatpush1.msra.mxu0 0.0
    %532 = vmatprep.subr.mxu0 0.0
    %533 = vmatpush1.msra.mxu0 0.0
    %534 = vmatprep.subr.mxu0 0.0
    %535 = vmatpush1.msra.mxu0 0.0
    %536 = vmatprep.subr.mxu0 0.0
    %537 = vmatpush1.msra.mxu0 0.0
    %538 = vmatprep.subr.mxu0 0.0
    %539 = vmatpush1.msra.mxu0 0.0
    %540 = vmatprep.subr.mxu0 0.0
    %541 = vmatpush1.msra.mxu0 0.0
    %542 = vmatprep.subr.mxu0 0.0
    %543 = vmatpush1.msra.mxu0 0.0
    %544 = vmatprep.subr.mxu0 0.0
    %545 = vmatpush1.msra.mxu0 0.0
    %546 = vmatprep.subr.mxu0 0.0
    %547 = vmatpush1.msra.mxu0 0.0
    %548 = vmatprep.subr.mxu0 0.0
    %549 = vmatpush1.msra.mxu0 0.0
    %550 = vmatprep.subr.mxu0 0.0
    %551 = vmatpush1.msra.mxu0 0.0
    %552 = vmatprep.subr.mxu0 0.0
    %553 = vmatpush1.msra.mxu0 0.0
    %554 = vmatprep.subr.mxu0 0.0
    %555 = vmatpush1.msra.mxu0 0.0
    %556 = vmatprep.subr.mxu0 0.0
    %557 = vmatpush1.msra.mxu0 0.0
    %558 = vmatprep.subr.mxu0 0.0
    %559 = vmatpush1.msra.mxu0 0.0
    %560 = vmatprep.subr.mxu0 0.0
    %561 = vmatpush1.msra.mxu0 0.0
    %562 = vmatprep.subr.mxu0 0.0
    %563 = vmatpush1.msra.mxu0 0.0
    %564 = vmatprep.subr.mxu0 0.0
    %565 = vmatpush1.msra.mxu0 0.0
    %566 = vmatprep.subr.mxu0 0.0
    %567 = vmatpush1.msra.mxu0 0.0
    %568 = vmatprep.subr.mxu0 0.0
    %569 = vmatpush1.msra.mxu0 0.0
    %570 = vmatprep.subr.mxu0 0.0
    %571 = vmatpush1.msra.mxu0 0.0
    %572 = vmatprep.subr.mxu0 0.0
    %573 = vmatpush1.msra.mxu0 0.0
    %574 = vmatprep.mubr.f32.mxu0 0.0
    %575 = vmatmul.mubr.f32.gmra.mrb[0].mxu0 %v339
    %v576 = vpop.f32.mrb[0].mxu0
    %v577 = vadd.f32 %v509, %v576
    %v578 = vpop.f32.mrb[0].mxu0
    %579 = vmatprep.mubr.f32.mxu0 0.0
    %580 = vmatmul.mubr.f32.gmra.mrb[0].mxu0 %v342
    %v581 = vpop.f32.mrb[0].mxu0
    %v582 = vadd.f32 %v509, %v581
    %v583 = vpop.f32.mrb[0].mxu0
    %584 = vdwg.mxu0
    %v585 = vld [vmem:[#allocation14] sm:$0x1]
    %vm586 = vcmask 64512
    %v588 = vsel %vm586, %v411, 0
    %v591 = vsel %vm586, %v494, 0
    %593 = vmatprep.subr.mxu0 0.0
    %594 = vmatpush1.xpose.msra.mxu0 %v591
    %595 = vmatprep.subr.mxu0 0.0
    %596 = vmatpush1.xpose.msra.mxu0 0.0
    %597 = vmatprep.subr.mxu0 0.0
    %598 = vmatpush1.xpose.msra.mxu0 0.0
    %599 = vmatprep.subr.mxu0 0.0
    %600 = vmatpush1.xpose.msra.mxu0 0.0
    %601 = vmatprep.subr.mxu0 0.0
    %602 = vmatpush1.xpose.msra.mxu0 0.0
    %603 = vmatprep.subr.mxu0 0.0
    %604 = vmatpush1.xpose.msra.mxu0 0.0
    %605 = vmatprep.subr.mxu0 0.0
    %606 = vmatpush1.xpose.msra.mxu0 0.0
    %607 = vmatprep.subr.mxu0 0.0
    %608 = vmatpush1.xpose.msra.mxu0 0.0
    %609 = vmatprep.subr.mxu0 0.0
    %610 = vmatpush1.xpose.msra.mxu0 0.0
    %611 = vmatprep.subr.mxu0 0.0
    %612 = vmatpush1.xpose.msra.mxu0 0.0
    %613 = vmatprep.subr.mxu0 0.0
    %614 = vmatpush1.xpose.msra.mxu0 0.0
    %615 = vmatprep.subr.mxu0 0.0
    %616 = vmatpush1.xpose.msra.mxu0 0.0
    %617 = vmatprep.subr.mxu0 0.0
    %618 = vmatpush1.xpose.msra.mxu0 0.0
    %619 = vmatprep.subr.mxu0 0.0
    %620 = vmatpush1.xpose.msra.mxu0 0.0
    %621 = vmatprep.subr.mxu0 0.0
    %622 = vmatpush1.xpose.msra.mxu0 0.0
    %623 = vmatprep.subr.mxu0 0.0
    %624 = vmatpush1.xpose.msra.mxu0 0.0
    %625 = vmatprep.subr.mxu0 0.0
    %626 = vmatpush1.xpose.msra.mxu0 0.0
    %627 = vmatprep.subr.mxu0 0.0
    %628 = vmatpush1.xpose.msra.mxu0 0.0
    %629 = vmatprep.subr.mxu0 0.0
    %630 = vmatpush1.xpose.msra.mxu0 0.0
    %631 = vmatprep.subr.mxu0 0.0
    %632 = vmatpush1.xpose.msra.mxu0 0.0
    %633 = vmatprep.subr.mxu0 0.0
    %634 = vmatpush1.xpose.msra.mxu0 0.0
    %635 = vmatprep.subr.mxu0 0.0
    %636 = vmatpush1.xpose.msra.mxu0 0.0
    %637 = vmatprep.subr.mxu0 0.0
    %638 = vmatpush1.xpose.msra.mxu0 0.0
    %639 = vmatprep.subr.mxu0 0.0
    %640 = vmatpush1.xpose.msra.mxu0 0.0
    %641 = vmatprep.subr.mxu0 0.0
    %642 = vmatpush1.xpose.msra.mxu0 0.0
    %643 = vmatprep.subr.mxu0 0.0
    %644 = vmatpush1.xpose.msra.mxu0 0.0
    %645 = vmatprep.subr.mxu0 0.0
    %646 = vmatpush1.xpose.msra.mxu0 0.0
    %647 = vmatprep.subr.mxu0 0.0
    %648 = vmatpush1.xpose.msra.mxu0 0.0
    %649 = vmatprep.subr.mxu0 0.0
    %650 = vmatpush1.xpose.msra.mxu0 0.0
    %651 = vmatprep.subr.mxu0 0.0
    %652 = vmatpush1.xpose.msra.mxu0 0.0
    %653 = vmatprep.subr.mxu0 0.0
    %654 = vmatpush1.xpose.msra.mxu0 0.0
    %655 = vmatprep.subr.mxu0 0.0
    %656 = vmatpush1.xpose.msra.mxu0 0.0
    %657 = vmatprep.mubr.f32.mxu0 0.0
    %658 = vmatmul.mubr.f32.gmra.mrb[0].mxu0 %v588
    %v659 = vpop.f32.mrb[0].mxu0
    %v660 = vadd.f32 0.0, %v659
    %v661 = vpop.f32.mrb[0].mxu0
    %662 = vdwg.mxu0
    %v663 = vmul.f32 %v660, 0.35355338
    %v664 = vadd.f32 %v663, %v269
    %v665 = vsel %vm586, %v664, -inf
    %666 = vmax.xlane.f32.xlu0 %v665
    %v667 = vpop.xlane.xlu0 %666
    %v668 = vsub.f32 %v664, %v667
    %v669 = vmul.f32 %v668, 1.442695
    %v670 = vpow.pop %v669
    %v671 = vsel %vm586, %v670, 0.0
    %672 = vadd.xlane.f32.xlu0 %v671
    %v673 = vpop.xlane.xlu0 %672
    %v674 = vrcp.pop %v673
    %v675 = vmul.f32 %v670, %v674
    %v677 = vsel %vm586, %v675, 0
    %679 = vmatprep.subr.mxu0 0.0
    %680 = vmatpush1.msra.mxu0 %v577
    %681 = vmatprep.subr.mxu0 0.0
    %682 = vmatpush1.msra.mxu0 0.0
    %683 = vmatprep.subr.mxu0 0.0
    %684 = vmatpush1.msra.mxu0 0.0
    %685 = vmatprep.subr.mxu0 0.0
    %686 = vmatpush1.msra.mxu0 0.0
    %687 = vmatprep.subr.mxu0 0.0
    %688 = vmatpush1.msra.mxu0 0.0
    %689 = vmatprep.subr.mxu0 0.0
    %690 = vmatpush1.msra.mxu0 0.0
    %691 = vmatprep.subr.mxu0 0.0
    %692 = vmatpush1.msra.mxu0 0.0
    %693 = vmatprep.subr.mxu0 0.0
    %694 = vmatpush1.msra.mxu0 0.0
    %695 = vmatprep.subr.mxu0 0.0
    %696 = vmatpush1.msra.mxu0 0.0
    %697 = vmatprep.subr.mxu0 0.0
    %698 = vmatpush1.msra.mxu0 0.0
    %699 = vmatprep.subr.mxu0 0.0
    %700 = vmatpush1.msra.mxu0 0.0
    %701 = vmatprep.subr.mxu0 0.0
    %702 = vmatpush1.msra.mxu0 0.0
    %703 = vmatprep.subr.mxu0 0.0
    %704 = vmatpush1.msra.mxu0 0.0
    %705 = vmatprep.subr.mxu0 0.0
    %706 = vmatpush1.msra.mxu0 0.0
    %707 = vmatprep.subr.mxu0 0.0
    %708 = vmatpush1.msra.mxu0 0.0
    %709 = vmatprep.subr.mxu0 0.0
    %710 = vmatpush1.msra.mxu0 0.0
    %711 = vmatprep.subr.mxu0 0.0
    %712 = vmatpush1.msra.mxu0 0.0
    %713 = vmatprep.subr.mxu0 0.0
    %714 = vmatpush1.msra.mxu0 0.0
    %715 = vmatprep.subr.mxu0 0.0
    %716 = vmatpush1.msra.mxu0 0.0
    %717 = vmatprep.subr.mxu0 0.0
    %718 = vmatpush1.msra.mxu0 0.0
    %719 = vmatprep.subr.mxu0 0.0
    %720 = vmatpush1.msra.mxu0 0.0
    %721 = vmatprep.subr.mxu0 0.0
    %722 = vmatpush1.msra.mxu0 0.0
    %723 = vmatprep.subr.mxu0 0.0
    %724 = vmatpush1.msra.mxu0 0.0
    %725 = vmatprep.subr.mxu0 0.0
    %726 = vmatpush1.msra.mxu0 0.0
    %727 = vmatprep.subr.mxu0 0.0
    %728 = vmatpush1.msra.mxu0 0.0
    %729 = vmatprep.subr.mxu0 0.0
    %730 = vmatpush1.msra.mxu0 0.0
    %731 = vmatprep.subr.mxu0 0.0
    %732 = vmatpush1.msra.mxu0 0.0
    %733 = vmatprep.subr.mxu0 0.0
    %734 = vmatpush1.msra.mxu0 0.0
    %735 = vmatprep.subr.mxu0 0.0
    %736 = vmatpush1.msra.mxu0 0.0
    %737 = vmatprep.subr.mxu0 0.0
    %738 = vmatpush1.msra.mxu0 0.0
    %739 = vmatprep.subr.mxu0 0.0
    %740 = vmatpush1.msra.mxu0 0.0
    %741 = vmatprep.subr.mxu0 0.0
    %742 = vmatpush1.msra.mxu0 0.0
    %743 = vmatprep.mubr.f32.mxu0 0.0
    %744 = vmatmul.mubr.f32.gmra.mrb[0].mxu0 %v677
    %v745 = vpop.f32.mrb[0].mxu0
    %v746 = vadd.f32 0.0, %v745
    %v747 = vpop.f32.mrb[0].mxu0
    %748 = vdwg.mxu0
    %v749 = vld [vmem:[%s10] sm:$0xff]
    %750 = vrot.lane.b32.xlu0 %v411, 120
    %v751 = vpop.permute.xlu0 %750
    %752 = vrot.lane.b32.xlu0 %v494, 120
    %v753 = vpop.permute.xlu0 %752
    %v754 = vsel %vm586, %v751, 0
    %v756 = vsel %vm586, %v753, 0
    %758 = vmatprep.subr.mxu0 0.0
    %759 = vmatpush1.xpose.msra.mxu0 %v756
    %760 = vmatprep.subr.mxu0 0.0
    %761 = vmatpush1.xpose.msra.mxu0 0.0
    %762 = vmatprep.subr.mxu0 0.0
    %763 = vmatpush1.xpose.msra.mxu0 0.0
    %764 = vmatprep.subr.mxu0 0.0
    %765 = vmatpush1.xpose.msra.mxu0 0.0
    %766 = vmatprep.subr.mxu0 0.0
    %767 = vmatpush1.xpose.msra.mxu0 0.0
    %768 = vmatprep.subr.mxu0 0.0
    %769 = vmatpush1.xpose.msra.mxu0 0.0
    %770 = vmatprep.subr.mxu0 0.0
    %771 = vmatpush1.xpose.msra.mxu0 0.0
    %772 = vmatprep.subr.mxu0 0.0
    %773 = vmatpush1.xpose.msra.mxu0 0.0
    %774 = vmatprep.subr.mxu0 0.0
    %775 = vmatpush1.xpose.msra.mxu0 0.0
    %776 = vmatprep.subr.mxu0 0.0
    %777 = vmatpush1.xpose.msra.mxu0 0.0
    %778 = vmatprep.subr.mxu0 0.0
    %779 = vmatpush1.xpose.msra.mxu0 0.0
    %780 = vmatprep.subr.mxu0 0.0
    %781 = vmatpush1.xpose.msra.mxu0 0.0
    %782 = vmatprep.subr.mxu0 0.0
    %783 = vmatpush1.xpose.msra.mxu0 0.0
    %784 = vmatprep.subr.mxu0 0.0
    %785 = vmatpush1.xpose.msra.mxu0 0.0
    %786 = vmatprep.subr.mxu0 0.0
    %787 = vmatpush1.xpose.msra.mxu0 0.0
    %788 = vmatprep.subr.mxu0 0.0
    %789 = vmatpush1.xpose.msra.mxu0 0.0
    %790 = vmatprep.subr.mxu0 0.0
    %791 = vmatpush1.xpose.msra.mxu0 0.0
    %792 = vmatprep.subr.mxu0 0.0
    %793 = vmatpush1.xpose.msra.mxu0 0.0
    %794 = vmatprep.subr.mxu0 0.0
    %795 = vmatpush1.xpose.msra.mxu0 0.0
    %796 = vmatprep.subr.mxu0 0.0
    %797 = vmatpush1.xpose.msra.mxu0 0.0
    %798 = vmatprep.subr.mxu0 0.0
    %799 = vmatpush1.xpose.msra.mxu0 0.0
    %800 = vmatprep.subr.mxu0 0.0
    %801 = vmatpush1.xpose.msra.mxu0 0.0
    %802 = vmatprep.subr.mxu0 0.0
    %803 = vmatpush1.xpose.msra.mxu0 0.0
    %804 = vmatprep.subr.mxu0 0.0
    %805 = vmatpush1.xpose.msra.mxu0 0.0
    %806 = vmatprep.subr.mxu0 0.0
    %807 = vmatpush1.xpose.msra.mxu0 0.0
    %808 = vmatprep.subr.mxu0 0.0
    %809 = vmatpush1.xpose.msra.mxu0 0.0
    %810 = vmatprep.subr.mxu0 0.0
    %811 = vmatpush1.xpose.msra.mxu0 0.0
    %812 = vmatprep.subr.mxu0 0.0
    %813 = vmatpush1.xpose.msra.mxu0 0.0
    %814 = vmatprep.subr.mxu0 0.0
    %815 = vmatpush1.xpose.msra.mxu0 0.0
    %816 = vmatprep.subr.mxu0 0.0
    %817 = vmatpush1.xpose.msra.mxu0 0.0
    %818 = vmatprep.subr.mxu0 0.0
    %819 = vmatpush1.xpose.msra.mxu0 0.0
    %820 = vmatprep.subr.mxu0 0.0
    %821 = vmatpush1.xpose.msra.mxu0 0.0
    %822 = vmatprep.mubr.f32.mxu0 0.0
    %823 = vmatmul.mubr.f32.gmra.mrb[0].mxu0 %v754
    %v824 = vpop.f32.mrb[0].mxu0
    %v825 = vadd.f32 0.0, %v824
    %v826 = vpop.f32.mrb[0].mxu0
    %827 = vdwg.mxu0
    %v828 = vmul.f32 %v825, 0.35355338
    %v829 = vadd.f32 %v828, %v269
    %v830 = vsel %vm586, %v829, -inf
    %831 = vmax.xlane.f32.xlu0 %v830
    %v832 = vpop.xlane.xlu0 %831
    %v833 = vsub.f32 %v829, %v832
    %v834 = vmul.f32 %v833, 1.442695
    %v835 = vpow.pop %v834
    %v836 = vsel %vm586, %v835, 0.0
    %837 = vadd.xlane.f32.xlu0 %v836
    %v838 = vpop.xlane.xlu0 %837
    %v839 = vrcp.pop %v838
    %v840 = vmul.f32 %v835, %v839
    %842 = vrot.lane.b32.xlu0 %v577, 120
    %v843 = vpop.permute.xlu0 %842
    %v846 = vsel %vm586, %v840, 0
    %848 = vmatprep.subr.mxu0 0.0
    %849 = vmatpush1.msra.mxu0 %v843
    %850 = vmatprep.subr.mxu0 0.0
    %851 = vmatpush1.msra.mxu0 0.0
    %852 = vmatprep.subr.mxu0 0.0
    %853 = vmatpush1.msra.mxu0 0.0
    %854 = vmatprep.subr.mxu0 0.0
    %855 = vmatpush1.msra.mxu0 0.0
    %856 = vmatprep.subr.mxu0 0.0
    %857 = vmatpush1.msra.mxu0 0.0
    %858 = vmatprep.subr.mxu0 0.0
    %859 = vmatpush1.msra.mxu0 0.0
    %860 = vmatprep.subr.mxu0 0.0
    %861 = vmatpush1.msra.mxu0 0.0
    %862 = vmatprep.subr.mxu0 0.0
    %863 = vmatpush1.msra.mxu0 0.0
    %864 = vmatprep.subr.mxu0 0.0
    %865 = vmatpush1.msra.mxu0 0.0
    %866 = vmatprep.subr.mxu0 0.0
    %867 = vmatpush1.msra.mxu0 0.0
    %868 = vmatprep.subr.mxu0 0.0
    %869 = vmatpush1.msra.mxu0 0.0
    %870 = vmatprep.subr.mxu0 0.0
    %871 = vmatpush1.msra.mxu0 0.0
    %872 = vmatprep.subr.mxu0 0.0
    %873 = vmatpush1.msra.mxu0 0.0
    %874 = vmatprep.subr.mxu0 0.0
    %875 = vmatpush1.msra.mxu0 0.0
    %876 = vmatprep.subr.mxu0 0.0
    %877 = vmatpush1.msra.mxu0 0.0
    %878 = vmatprep.subr.mxu0 0.0
    %879 = vmatpush1.msra.mxu0 0.0
    %880 = vmatprep.subr.mxu0 0.0
    %881 = vmatpush1.msra.mxu0 0.0
    %882 = vmatprep.subr.mxu0 0.0
    %883 = vmatpush1.msra.mxu0 0.0
    %884 = vmatprep.subr.mxu0 0.0
    %885 = vmatpush1.msra.mxu0 0.0
    %886 = vmatprep.subr.mxu0 0.0
    %887 = vmatpush1.msra.mxu0 0.0
    %888 = vmatprep.subr.mxu0 0.0
    %889 = vmatpush1.msra.mxu0 0.0
    %890 = vmatprep.subr.mxu0 0.0
    %891 = vmatpush1.msra.mxu0 0.0
    %892 = vmatprep.subr.mxu0 0.0
    %893 = vmatpush1.msra.mxu0 0.0
    %894 = vmatprep.subr.mxu0 0.0
    %895 = vmatpush1.msra.mxu0 0.0
    %896 = vmatprep.subr.mxu0 0.0
    %897 = vmatpush1.msra.mxu0 0.0
    %898 = vmatprep.subr.mxu0 0.0
    %899 = vmatpush1.msra.mxu0 0.0
    %900 = vmatprep.subr.mxu0 0.0
    %901 = vmatpush1.msra.mxu0 0.0
    %902 = vmatprep.subr.mxu0 0.0
    %903 = vmatpush1.msra.mxu0 0.0
    %904 = vmatprep.subr.mxu0 0.0
    %905 = vmatpush1.msra.mxu0 0.0
    %906 = vmatprep.subr.mxu0 0.0
    %907 = vmatpush1.msra.mxu0 0.0
    %908 = vmatprep.subr.mxu0 0.0
    %909 = vmatpush1.msra.mxu0 0.0
    %910 = vmatprep.subr.mxu0 0.0
    %911 = vmatpush1.msra.mxu0 0.0
    %912 = vmatprep.mubr.f32.mxu0 0.0
    %913 = vmatmul.mubr.f32.gmra.mrb[0].mxu0 %v846
    %v914 = vpop.f32.mrb[0].mxu0
    %v915 = vadd.f32 0.0, %v914
    %v916 = vpop.f32.mrb[0].mxu0
    %917 = vdwg.mxu0
    %v918 = vld [vmem:[%s10 + $0x8] sm:$0xff]
    %v920 = vsel %vm586, %v915, 0
    %922 = vmatprep.subr.mxu0 0.0
    %923 = vmatpush1.msra.mxu0 %v918
    %924 = vmatprep.subr.mxu0 0.0
    %925 = vmatpush1.msra.mxu0 0.0
    %926 = vmatprep.subr.mxu0 0.0
    %927 = vmatpush1.msra.mxu0 0.0
    %928 = vmatprep.subr.mxu0 0.0
    %929 = vmatpush1.msra.mxu0 0.0
    %930 = vmatprep.subr.mxu0 0.0
    %931 = vmatpush1.msra.mxu0 0.0
    %932 = vmatprep.subr.mxu0 0.0
    %933 = vmatpush1.msra.mxu0 0.0
    %934 = vmatprep.subr.mxu0 0.0
    %935 = vmatpush1.msra.mxu0 0.0
    %936 = vmatprep.subr.mxu0 0.0
    %937 = vmatpush1.msra.mxu0 0.0
    %938 = vmatprep.subr.mxu0 0.0
    %939 = vmatpush1.msra.mxu0 0.0
    %940 = vmatprep.subr.mxu0 0.0
    %941 = vmatpush1.msra.mxu0 0.0
    %942 = vmatprep.subr.mxu0 0.0
    %943 = vmatpush1.msra.mxu0 0.0
    %944 = vmatprep.subr.mxu0 0.0
    %945 = vmatpush1.msra.mxu0 0.0
    %946 = vmatprep.subr.mxu0 0.0
    %947 = vmatpush1.msra.mxu0 0.0
    %948 = vmatprep.subr.mxu0 0.0
    %949 = vmatpush1.msra.mxu0 0.0
    %950 = vmatprep.subr.mxu0 0.0
    %951 = vmatpush1.msra.mxu0 0.0
    %952 = vmatprep.subr.mxu0 0.0
    %953 = vmatpush1.msra.mxu0 0.0
    %954 = vmatprep.subr.mxu0 0.0
    %955 = vmatpush1.msra.mxu0 0.0
    %956 = vmatprep.subr.mxu0 0.0
    %957 = vmatpush1.msra.mxu0 0.0
    %958 = vmatprep.subr.mxu0 0.0
    %959 = vmatpush1.msra.mxu0 0.0
    %960 = vmatprep.subr.mxu0 0.0
    %961 = vmatpush1.msra.mxu0 0.0
    %962 = vmatprep.subr.mxu0 0.0
    %963 = vmatpush1.msra.mxu0 0.0
    %964 = vmatprep.subr.mxu0 0.0
    %965 = vmatpush1.msra.mxu0 0.0
    %966 = vmatprep.subr.mxu0 0.0
    %967 = vmatpush1.msra.mxu0 0.0
    %968 = vmatprep.subr.mxu0 0.0
    %969 = vmatpush1.msra.mxu0 0.0
    %970 = vmatprep.subr.mxu0 0.0
    %971 = vmatpush1.msra.mxu0 0.0
    %972 = vmatprep.subr.mxu0 0.0
    %973 = vmatpush1.msra.mxu0 0.0
    %974 = vmatprep.subr.mxu0 0.0
    %975 = vmatpush1.msra.mxu0 0.0
    %976 = vmatprep.subr.mxu0 0.0
    %977 = vmatpush1.msra.mxu0 0.0
    %978 = vmatprep.subr.mxu0 0.0
    %979 = vmatpush1.msra.mxu0 0.0
    %980 = vmatprep.subr.mxu0 0.0
    %981 = vmatpush1.msra.mxu0 0.0
    %982 = vmatprep.subr.mxu0 0.0
    %983 = vmatpush1.msra.mxu0 0.0
    %984 = vmatprep.subr.mxu0 0.0
    %985 = vmatpush1.msra.mxu0 0.0
    %986 = vmatprep.mubr.f32.mxu0 0.0
    %987 = vmatmul.mubr.f32.gmra.mrb[0].mxu0 %v920
    %v988 = vpop.f32.mrb[0].mxu0
    %v989 = vadd.f32 0.0, %v988
    %v990 = vpop.f32.mrb[0].mxu0
    %991 = vdwg.mxu0
    %v993 = vsel %vm586, %v746, 0
    %995 = vmatprep.subr.mxu0 0.0
    %996 = vmatpush1.msra.mxu0 %v749
    %997 = vmatprep.subr.mxu0 0.0
    %998 = vmatpush1.msra.mxu0 0.0
    %999 = vmatprep.subr.mxu0 0.0
    %1000 = vmatpush1.msra.mxu0 0.0
    %1001 = vmatprep.subr.mxu0 0.0
    %1002 = vmatpush1.msra.mxu0 0.0
    %1003 = vmatprep.subr.mxu0 0.0
    %1004 = vmatpush1.msra.mxu0 0.0
    %1005 = vmatprep.subr.mxu0 0.0
    %1006 = vmatpush1.msra.mxu0 0.0
    %1007 = vmatprep.subr.mxu0 0.0
    %1008 = vmatpush1.msra.mxu0 0.0
    %1009 = vmatprep.subr.mxu0 0.0
    %1010 = vmatpush1.msra.mxu0 0.0
    %1011 = vmatprep.subr.mxu0 0.0
    %1012 = vmatpush1.msra.mxu0 0.0
    %1013 = vmatprep.subr.mxu0 0.0
    %1014 = vmatpush1.msra.mxu0 0.0
    %1015 = vmatprep.subr.mxu0 0.0
    %1016 = vmatpush1.msra.mxu0 0.0
    %1017 = vmatprep.subr.mxu0 0.0
    %1018 = vmatpush1.msra.mxu0 0.0
    %1019 = vmatprep.subr.mxu0 0.0
    %1020 = vmatpush1.msra.mxu0 0.0
    %1021 = vmatprep.subr.mxu0 0.0
    %1022 = vmatpush1.msra.mxu0 0.0
    %1023 = vmatprep.subr.mxu0 0.0
    %1024 = vmatpush1.msra.mxu0 0.0
    %1025 = vmatprep.subr.mxu0 0.0
    %1026 = vmatpush1.msra.mxu0 0.0
    %1027 = vmatprep.subr.mxu0 0.0
    %1028 = vmatpush1.msra.mxu0 0.0
    %1029 = vmatprep.subr.mxu0 0.0
    %1030 = vmatpush1.msra.mxu0 0.0
    %1031 = vmatprep.subr.mxu0 0.0
    %1032 = vmatpush1.msra.mxu0 0.0
    %1033 = vmatprep.subr.mxu0 0.0
    %1034 = vmatpush1.msra.mxu0 0.0
    %1035 = vmatprep.subr.mxu0 0.0
    %1036 = vmatpush1.msra.mxu0 0.0
    %1037 = vmatprep.subr.mxu0 0.0
    %1038 = vmatpush1.msra.mxu0 0.0
    %1039 = vmatprep.subr.mxu0 0.0
    %1040 = vmatpush1.msra.mxu0 0.0
    %1041 = vmatprep.subr.mxu0 0.0
    %1042 = vmatpush1.msra.mxu0 0.0
    %1043 = vmatprep.subr.mxu0 0.0
    %1044 = vmatpush1.msra.mxu0 0.0
    %1045 = vmatprep.subr.mxu0 0.0
    %1046 = vmatpush1.msra.mxu0 0.0
    %1047 = vmatprep.subr.mxu0 0.0
    %1048 = vmatpush1.msra.mxu0 0.0
    %1049 = vmatprep.subr.mxu0 0.0
    %1050 = vmatpush1.msra.mxu0 0.0
    %1051 = vmatprep.subr.mxu0 0.0
    %1052 = vmatpush1.msra.mxu0 0.0
    %1053 = vmatprep.subr.mxu0 0.0
    %1054 = vmatpush1.msra.mxu0 0.0
    %1055 = vmatprep.subr.mxu0 0.0
    %1056 = vmatpush1.msra.mxu0 0.0
    %1057 = vmatprep.subr.mxu0 0.0
    %1058 = vmatpush1.msra.mxu0 0.0
    %1059 = vmatprep.mubr.f32.mxu0 0.0
    %1060 = vmatmul.mubr.f32.gmra.mrb[0].mxu0 %v993
    %v1061 = vpop.f32.mrb[0].mxu0
    %v1062 = vadd.f32 %v989, %v1061
    %v1063 = vpop.f32.mrb[0].mxu0
    %1064 = vdwg.mxu0
    %1065 = vrot.lane.b32.xlu0 %v411, 112
    %v1066 = vpop.permute.xlu0 %1065
    %1067 = vrot.lane.b32.xlu0 %v494, 112
    %v1068 = vpop.permute.xlu0 %1067
    %v1069 = vsel %vm586, %v1066, 0
    %v1071 = vsel %vm586, %v1068, 0
    %1073 = vmatprep.subr.mxu0 0.0
    %1074 = vmatpush1.xpose.msra.mxu0 %v1071
    %1075 = vmatprep.subr.mxu0 0.0
    %1076 = vmatpush1.xpose.msra.mxu0 0.0
    %1077 = vmatprep.subr.mxu0 0.0
    %1078 = vmatpush1.xpose.msra.mxu0 0.0
    %1079 = vmatprep.subr.mxu0 0.0
    %1080 = vmatpush1.xpose.msra.mxu0 0.0
    %1081 = vmatprep.subr.mxu0 0.0
    %1082 = vmatpush1.xpose.msra.mxu0 0.0
    %1083 = vmatprep.subr.mxu0 0.0
    %1084 = vmatpush1.xpose.msra.mxu0 0.0
    %1085 = vmatprep.subr.mxu0 0.0
    %1086 = vmatpush1.xpose.msra.mxu0 0.0
    %1087 = vmatprep.subr.mxu0 0.0
    %1088 = vmatpush1.xpose.msra.mxu0 0.0
    %1089 = vmatprep.subr.mxu0 0.0
    %1090 = vmatpush1.xpose.msra.mxu0 0.0
    %1091 = vmatprep.subr.mxu0 0.0
    %1092 = vmatpush1.xpose.msra.mxu0 0.0
    %1093 = vmatprep.subr.mxu0 0.0
    %1094 = vmatpush1.xpose.msra.mxu0 0.0
    %1095 = vmatprep.subr.mxu0 0.0
    %1096 = vmatpush1.xpose.msra.mxu0 0.0
    %1097 = vmatprep.subr.mxu0 0.0
    %1098 = vmatpush1.xpose.msra.mxu0 0.0
    %1099 = vmatprep.subr.mxu0 0.0
    %1100 = vmatpush1.xpose.msra.mxu0 0.0
    %1101 = vmatprep.subr.mxu0 0.0
    %1102 = vmatpush1.xpose.msra.mxu0 0.0
    %1103 = vmatprep.subr.mxu0 0.0
    %1104 = vmatpush1.xpose.msra.mxu0 0.0
    %1105 = vmatprep.subr.mxu0 0.0
    %1106 = vmatpush1.xpose.msra.mxu0 0.0
    %1107 = vmatprep.subr.mxu0 0.0
    %1108 = vmatpush1.xpose.msra.mxu0 0.0
    %1109 = vmatprep.subr.mxu0 0.0
    %1110 = vmatpush1.xpose.msra.mxu0 0.0
    %1111 = vmatprep.subr.mxu0 0.0
    %1112 = vmatpush1.xpose.msra.mxu0 0.0
    %1113 = vmatprep.subr.mxu0 0.0
    %1114 = vmatpush1.xpose.msra.mxu0 0.0
    %1115 = vmatprep.subr.mxu0 0.0
    %1116 = vmatpush1.xpose.msra.mxu0 0.0
    %1117 = vmatprep.subr.mxu0 0.0
    %1118 = vmatpush1.xpose.msra.mxu0 0.0
    %1119 = vmatprep.subr.mxu0 0.0
    %1120 = vmatpush1.xpose.msra.mxu0 0.0
    %1121 = vmatprep.subr.mxu0 0.0
    %1122 = vmatpush1.xpose.msra.mxu0 0.0
    %1123 = vmatprep.subr.mxu0 0.0
    %1124 = vmatpush1.xpose.msra.mxu0 0.0
    %1125 = vmatprep.subr.mxu0 0.0
    %1126 = vmatpush1.xpose.msra.mxu0 0.0
    %1127 = vmatprep.subr.mxu0 0.0
    %1128 = vmatpush1.xpose.msra.mxu0 0.0
    %1129 = vmatprep.subr.mxu0 0.0
    %1130 = vmatpush1.xpose.msra.mxu0 0.0
    %1131 = vmatprep.subr.mxu0 0.0
    %1132 = vmatpush1.xpose.msra.mxu0 0.0
    %1133 = vmatprep.subr.mxu0 0.0
    %1134 = vmatpush1.xpose.msra.mxu0 0.0
    %1135 = vmatprep.subr.mxu0 0.0
    %1136 = vmatpush1.xpose.msra.mxu0 0.0
    %1137 = vmatprep.mubr.f32.mxu0 0.0
    %1138 = vmatmul.mubr.f32.gmra.mrb[0].mxu0 %v1069
    %v1139 = vpop.f32.mrb[0].mxu0
    %v1140 = vadd.f32 0.0, %v1139
    %v1141 = vpop.f32.mrb[0].mxu0
    %1142 = vdwg.mxu0
    %v1143 = vmul.f32 %v1140, 0.35355338
    %v1144 = vadd.f32 %v1143, %v269
    %v1145 = vsel %vm586, %v1144, -inf
    %1146 = vmax.xlane.f32.xlu0 %v1145
    %v1147 = vpop.xlane.xlu0 %1146
    %v1148 = vsub.f32 %v1144, %v1147
    %v1149 = vmul.f32 %v1148, 1.442695
    %v1150 = vpow.pop %v1149
    %v1151 = vsel %vm586, %v1150, 0.0
    %1152 = vadd.xlane.f32.xlu0 %v1151
    %v1153 = vpop.xlane.xlu0 %1152
    %v1154 = vrcp.pop %v1153
    %v1155 = vmul.f32 %v1150, %v1154
    %1156 = vrot.lane.b32.xlu0 %v577, 112
    %v1157 = vpop.permute.xlu0 %1156
    %v1160 = vsel %vm586, %v1155, 0
    %1162 = vmatprep.subr.mxu0 0.0
    %1163 = vmatpush1.msra.mxu0 %v1157
    %1164 = vmatprep.subr.mxu0 0.0
    %1165 = vmatpush1.msra.mxu0 0.0
    %1166 = vmatprep.subr.mxu0 0.0
    %1167 = vmatpush1.msra.mxu0 0.0
    %1168 = vmatprep.subr.mxu0 0.0
    %1169 = vmatpush1.msra.mxu0 0.0
    %1170 = vmatprep.subr.mxu0 0.0
    %1171 = vmatpush1.msra.mxu0 0.0
    %1172 = vmatprep.subr.mxu0 0.0
    %1173 = vmatpush1.msra.mxu0 0.0
    %1174 = vmatprep.subr.mxu0 0.0
    %1175 = vmatpush1.msra.mxu0 0.0
    %1176 = vmatprep.subr.mxu0 0.0
    %1177 = vmatpush1.msra.mxu0 0.0
    %1178 = vmatprep.subr.mxu0 0.0
    %1179 = vmatpush1.msra.mxu0 0.0
    %1180 = vmatprep.subr.mxu0 0.0
    %1181 = vmatpush1.msra.mxu0 0.0
    %1182 = vmatprep.subr.mxu0 0.0
    %1183 = vmatpush1.msra.mxu0 0.0
    %1184 = vmatprep.subr.mxu0 0.0
    %1185 = vmatpush1.msra.mxu0 0.0
    %1186 = vmatprep.subr.mxu0 0.0
    %1187 = vmatpush1.msra.mxu0 0.0
    %1188 = vmatprep.subr.mxu0 0.0
    %1189 = vmatpush1.msra.mxu0 0.0
    %1190 = vmatprep.subr.mxu0 0.0
    %1191 = vmatpush1.msra.mxu0 0.0
    %1192 = vmatprep.subr.mxu0 0.0
    %1193 = vmatpush1.msra.mxu0 0.0
    %1194 = vmatprep.subr.mxu0 0.0
    %1195 = vmatpush1.msra.mxu0 0.0
    %1196 = vmatprep.subr.mxu0 0.0
    %1197 = vmatpush1.msra.mxu0 0.0
    %1198 = vmatprep.subr.mxu0 0.0
    %1199 = vmatpush1.msra.mxu0 0.0
    %1200 = vmatprep.subr.mxu0 0.0
    %1201 = vmatpush1.msra.mxu0 0.0
    %1202 = vmatprep.subr.mxu0 0.0
    %1203 = vmatpush1.msra.mxu0 0.0
    %1204 = vmatprep.subr.mxu0 0.0
    %1205 = vmatpush1.msra.mxu0 0.0
    %1206 = vmatprep.subr.mxu0 0.0
    %1207 = vmatpush1.msra.mxu0 0.0
    %1208 = vmatprep.subr.mxu0 0.0
    %1209 = vmatpush1.msra.mxu0 0.0
    %1210 = vmatprep.subr.mxu0 0.0
    %1211 = vmatpush1.msra.mxu0 0.0
    %1212 = vmatprep.subr.mxu0 0.0
    %1213 = vmatpush1.msra.mxu0 0.0
    %1214 = vmatprep.subr.mxu0 0.0
    %1215 = vmatpush1.msra.mxu0 0.0
    %1216 = vmatprep.subr.mxu0 0.0
    %1217 = vmatpush1.msra.mxu0 0.0
    %1218 = vmatprep.subr.mxu0 0.0
    %1219 = vmatpush1.msra.mxu0 0.0
    %1220 = vmatprep.subr.mxu0 0.0
    %1221 = vmatpush1.msra.mxu0 0.0
    %1222 = vmatprep.subr.mxu0 0.0
    %1223 = vmatpush1.msra.mxu0 0.0
    %1224 = vmatprep.subr.mxu0 0.0
    %1225 = vmatpush1.msra.mxu0 0.0
    %1226 = vmatprep.mubr.f32.mxu0 0.0
    %1227 = vmatmul.mubr.f32.gmra.mrb[0].mxu0 %v1160
    %v1228 = vpop.f32.mrb[0].mxu0
    %v1229 = vadd.f32 0.0, %v1228
    %v1230 = vpop.f32.mrb[0].mxu0
    %1231 = vdwg.mxu0
    %v1232 = vld [vmem:[%s10 + $0x10] sm:$0xff]
    %v1234 = vsel %vm586, %v1229, 0
    %1236 = vmatprep.subr.mxu0 0.0
    %1237 = vmatpush1.msra.mxu0 %v1232
    %1238 = vmatprep.subr.mxu0 0.0
    %1239 = vmatpush1.msra.mxu0 0.0
    %1240 = vmatprep.subr.mxu0 0.0
    %1241 = vmatpush1.msra.mxu0 0.0
    %1242 = vmatprep.subr.mxu0 0.0
    %1243 = vmatpush1.msra.mxu0 0.0
    %1244 = vmatprep.subr.mxu0 0.0
    %1245 = vmatpush1.msra.mxu0 0.0
    %1246 = vmatprep.subr.mxu0 0.0
    %1247 = vmatpush1.msra.mxu0 0.0
    %1248 = vmatprep.subr.mxu0 0.0
    %1249 = vmatpush1.msra.mxu0 0.0
    %1250 = vmatprep.subr.mxu0 0.0
    %1251 = vmatpush1.msra.mxu0 0.0
    %1252 = vmatprep.subr.mxu0 0.0
    %1253 = vmatpush1.msra.mxu0 0.0
    %1254 = vmatprep.subr.mxu0 0.0
    %1255 = vmatpush1.msra.mxu0 0.0
    %1256 = vmatprep.subr.mxu0 0.0
    %1257 = vmatpush1.msra.mxu0 0.0
    %1258 = vmatprep.subr.mxu0 0.0
    %1259 = vmatpush1.msra.mxu0 0.0
    %1260 = vmatprep.subr.mxu0 0.0
    %1261 = vmatpush1.msra.mxu0 0.0
    %1262 = vmatprep.subr.mxu0 0.0
    %1263 = vmatpush1.msra.mxu0 0.0
    %1264 = vmatprep.subr.mxu0 0.0
    %1265 = vmatpush1.msra.mxu0 0.0
    %1266 = vmatprep.subr.mxu0 0.0
    %1267 = vmatpush1.msra.mxu0 0.0
    %1268 = vmatprep.subr.mxu0 0.0
    %1269 = vmatpush1.msra.mxu0 0.0
    %1270 = vmatprep.subr.mxu0 0.0
    %1271 = vmatpush1.msra.mxu0 0.0
    %1272 = vmatprep.subr.mxu0 0.0
    %1273 = vmatpush1.msra.mxu0 0.0
    %1274 = vmatprep.subr.mxu0 0.0
    %1275 = vmatpush1.msra.mxu0 0.0
    %1276 = vmatprep.subr.mxu0 0.0
    %1277 = vmatpush1.msra.mxu0 0.0
    %1278 = vmatprep.subr.mxu0 0.0
    %1279 = vmatpush1.msra.mxu0 0.0
    %1280 = vmatprep.subr.mxu0 0.0
    %1281 = vmatpush1.msra.mxu0 0.0
    %1282 = vmatprep.subr.mxu0 0.0
    %1283 = vmatpush1.msra.mxu0 0.0
    %1284 = vmatprep.subr.mxu0 0.0
    %1285 = vmatpush1.msra.mxu0 0.0
    %1286 = vmatprep.subr.mxu0 0.0
    %1287 = vmatpush1.msra.mxu0 0.0
    %1288 = vmatprep.subr.mxu0 0.0
    %1289 = vmatpush1.msra.mxu0 0.0
    %1290 = vmatprep.subr.mxu0 0.0
    %1291 = vmatpush1.msra.mxu0 0.0
    %1292 = vmatprep.subr.mxu0 0.0
    %1293 = vmatpush1.msra.mxu0 0.0
    %1294 = vmatprep.subr.mxu0 0.0
    %1295 = vmatpush1.msra.mxu0 0.0
    %1296 = vmatprep.subr.mxu0 0.0
    %1297 = vmatpush1.msra.mxu0 0.0
    %1298 = vmatprep.subr.mxu0 0.0
    %1299 = vmatpush1.msra.mxu0 0.0
    %1300 = vmatprep.mubr.f32.mxu0 0.0
    %1301 = vmatmul.mubr.f32.gmra.mrb[0].mxu0 %v1234
    %v1302 = vpop.f32.mrb[0].mxu0
    %v1303 = vadd.f32 0.0, %v1302
    %v1304 = vpop.f32.mrb[0].mxu0
    %1305 = vdwg.mxu0
    %v1306 = vadd.f32 %v1062, %v1303
    %1307 = vrot.lane.b32.xlu0 %v411, 104
    %v1308 = vpop.permute.xlu0 %1307
    %1309 = vrot.lane.b32.xlu0 %v494, 104
    %v1310 = vpop.permute.xlu0 %1309
    %v1311 = vsel %vm586, %v1308, 0
    %v1313 = vsel %vm586, %v1310, 0
    %1315 = vmatprep.subr.mxu0 0.0
    %1316 = vmatpush1.xpose.msra.mxu0 %v1313
    %1317 = vmatprep.subr.mxu0 0.0
    %1318 = vmatpush1.xpose.msra.mxu0 0.0
    %1319 = vmatprep.subr.mxu0 0.0
    %1320 = vmatpush1.xpose.msra.mxu0 0.0
    %1321 = vmatprep.subr.mxu0 0.0
    %1322 = vmatpush1.xpose.msra.mxu0 0.0
    %1323 = vmatprep.subr.mxu0 0.0
    %1324 = vmatpush1.xpose.msra.mxu0 0.0
    %1325 = vmatprep.subr.mxu0 0.0
    %1326 = vmatpush1.xpose.msra.mxu0 0.0
    %1327 = vmatprep.subr.mxu0 0.0
    %1328 = vmatpush1.xpose.msra.mxu0 0.0
    %1329 = vmatprep.subr.mxu0 0.0
    %1330 = vmatpush1.xpose.msra.mxu0 0.0
    %1331 = vmatprep.subr.mxu0 0.0
    %1332 = vmatpush1.xpose.msra.mxu0 0.0
    %1333 = vmatprep.subr.mxu0 0.0
    %1334 = vmatpush1.xpose.msra.mxu0 0.0
    %1335 = vmatprep.subr.mxu0 0.0
    %1336 = vmatpush1.xpose.msra.mxu0 0.0
    %1337 = vmatprep.subr.mxu0 0.0
    %1338 = vmatpush1.xpose.msra.mxu0 0.0
    %1339 = vmatprep.subr.mxu0 0.0
    %1340 = vmatpush1.xpose.msra.mxu0 0.0
    %1341 = vmatprep.subr.mxu0 0.0
    %1342 = vmatpush1.xpose.msra.mxu0 0.0
    %1343 = vmatprep.subr.mxu0 0.0
    %1344 = vmatpush1.xpose.msra.mxu0 0.0
    %1345 = vmatprep.subr.mxu0 0.0
    %1346 = vmatpush1.xpose.msra.mxu0 0.0
    %1347 = vmatprep.subr.mxu0 0.0
    %1348 = vmatpush1.xpose.msra.mxu0 0.0
    %1349 = vmatprep.subr.mxu0 0.0
    %1350 = vmatpush1.xpose.msra.mxu0 0.0
    %1351 = vmatprep.subr.mxu0 0.0
    %1352 = vmatpush1.xpose.msra.mxu0 0.0
    %1353 = vmatprep.subr.mxu0 0.0
    %1354 = vmatpush1.xpose.msra.mxu0 0.0
    %1355 = vmatprep.subr.mxu0 0.0
    %1356 = vmatpush1.xpose.msra.mxu0 0.0
    %1357 = vmatprep.subr.mxu0 0.0
    %1358 = vmatpush1.xpose.msra.mxu0 0.0
    %1359 = vmatprep.subr.mxu0 0.0
    %1360 = vmatpush1.xpose.msra.mxu0 0.0
    %1361 = vmatprep.subr.mxu0 0.0
    %1362 = vmatpush1.xpose.msra.mxu0 0.0
    %1363 = vmatprep.subr.mxu0 0.0
    %1364 = vmatpush1.xpose.msra.mxu0 0.0
    %1365 = vmatprep.subr.mxu0 0.0
    %1366 = vmatpush1.xpose.msra.mxu0 0.0
    %1367 = vmatprep.subr.mxu0 0.0
    %1368 = vmatpush1.xpose.msra.mxu0 0.0
    %1369 = vmatprep.subr.mxu0 0.0
    %1370 = vmatpush1.xpose.msra.mxu0 0.0
    %1371 = vmatprep.subr.mxu0 0.0
    %1372 = vmatpush1.xpose.msra.mxu0 0.0
    %1373 = vmatprep.subr.mxu0 0.0
    %1374 = vmatpush1.xpose.msra.mxu0 0.0
    %1375 = vmatprep.subr.mxu0 0.0
    %1376 = vmatpush1.xpose.msra.mxu0 0.0
    %1377 = vmatprep.subr.mxu0 0.0
    %1378 = vmatpush1.xpose.msra.mxu0 0.0
    %1379 = vmatprep.mubr.f32.mxu0 0.0
    %1380 = vmatmul.mubr.f32.gmra.mrb[0].mxu0 %v1311
    %v1381 = vpop.f32.mrb[0].mxu0
    %v1382 = vadd.f32 0.0, %v1381
    %v1383 = vpop.f32.mrb[0].mxu0
    %1384 = vdwg.mxu0
    %v1385 = vmul.f32 %v1382, 0.35355338
    %v1386 = vadd.f32 %v1385, %v269
    %v1387 = vsel %vm586, %v1386, -inf
    %1388 = vmax.xlane.f32.xlu0 %v1387
    %v1389 = vpop.xlane.xlu0 %1388
    %v1390 = vsub.f32 %v1386, %v1389
    %v1391 = vmul.f32 %v1390, 1.442695
    %v1392 = vpow.pop %v1391
    %v1393 = vsel %vm586, %v1392, 0.0
    %1394 = vadd.xlane.f32.xlu0 %v1393
    %v1395 = vpop.xlane.xlu0 %1394
    %v1396 = vrcp.pop %v1395
    %v1397 = vmul.f32 %v1392, %v1396
    %1398 = vrot.lane.b32.xlu0 %v577, 104
    %v1399 = vpop.permute.xlu0 %1398
    %v1402 = vsel %vm586, %v1397, 0
    %1404 = vmatprep.subr.mxu0 0.0
    %1405 = vmatpush1.msra.mxu0 %v1399
    %1406 = vmatprep.subr.mxu0 0.0
    %1407 = vmatpush1.msra.mxu0 0.0
    %1408 = vmatprep.subr.mxu0 0.0
    %1409 = vmatpush1.msra.mxu0 0.0
    %1410 = vmatprep.subr.mxu0 0.0
    %1411 = vmatpush1.msra.mxu0 0.0
    %1412 = vmatprep.subr.mxu0 0.0
    %1413 = vmatpush1.msra.mxu0 0.0
    %1414 = vmatprep.subr.mxu0 0.0
    %1415 = vmatpush1.msra.mxu0 0.0
    %1416 = vmatprep.subr.mxu0 0.0
    %1417 = vmatpush1.msra.mxu0 0.0
    %1418 = vmatprep.subr.mxu0 0.0
    %1419 = vmatpush1.msra.mxu0 0.0
    %1420 = vmatprep.subr.mxu0 0.0
    %1421 = vmatpush1.msra.mxu0 0.0
    %1422 = vmatprep.subr.mxu0 0.0
    %1423 = vmatpush1.msra.mxu0 0.0
    %1424 = vmatprep.subr.mxu0 0.0
    %1425 = vmatpush1.msra.mxu0 0.0
    %1426 = vmatprep.subr.mxu0 0.0
    %1427 = vmatpush1.msra.mxu0 0.0
    %1428 = vmatprep.subr.mxu0 0.0
    %1429 = vmatpush1.msra.mxu0 0.0
    %1430 = vmatprep.subr.mxu0 0.0
    %1431 = vmatpush1.msra.mxu0 0.0
    %1432 = vmatprep.subr.mxu0 0.0
    %1433 = vmatpush1.msra.mxu0 0.0
    %1434 = vmatprep.subr.mxu0 0.0
    %1435 = vmatpush1.msra.mxu0 0.0
    %1436 = vmatprep.subr.mxu0 0.0
    %1437 = vmatpush1.msra.mxu0 0.0
    %1438 = vmatprep.subr.mxu0 0.0
    %1439 = vmatpush1.msra.mxu0 0.0
    %1440 = vmatprep.subr.mxu0 0.0
    %1441 = vmatpush1.msra.mxu0 0.0
    %1442 = vmatprep.subr.mxu0 0.0
    %1443 = vmatpush1.msra.mxu0 0.0
    %1444 = vmatprep.subr.mxu0 0.0
    %1445 = vmatpush1.msra.mxu0 0.0
    %1446 = vmatprep.subr.mxu0 0.0
    %1447 = vmatpush1.msra.mxu0 0.0
    %1448 = vmatprep.subr.mxu0 0.0
    %1449 = vmatpush1.msra.mxu0 0.0
    %1450 = vmatprep.subr.mxu0 0.0
    %1451 = vmatpush1.msra.mxu0 0.0
    %1452 = vmatprep.subr.mxu0 0.0
    %1453 = vmatpush1.msra.mxu0 0.0
    %1454 = vmatprep.subr.mxu0 0.0
    %1455 = vmatpush1.msra.mxu0 0.0
    %1456 = vmatprep.subr.mxu0 0.0
    %1457 = vmatpush1.msra.mxu0 0.0
    %1458 = vmatprep.subr.mxu0 0.0
    %1459 = vmatpush1.msra.mxu0 0.0
    %1460 = vmatprep.subr.mxu0 0.0
    %1461 = vmatpush1.msra.mxu0 0.0
    %1462 = vmatprep.subr.mxu0 0.0
    %1463 = vmatpush1.msra.mxu0 0.0
    %1464 = vmatprep.subr.mxu0 0.0
    %1465 = vmatpush1.msra.mxu0 0.0
    %1466 = vmatprep.subr.mxu0 0.0
    %1467 = vmatpush1.msra.mxu0 0.0
    %1468 = vmatprep.mubr.f32.mxu0 0.0
    %1469 = vmatmul.mubr.f32.gmra.mrb[0].mxu0 %v1402
    %v1470 = vpop.f32.mrb[0].mxu0
    %v1471 = vadd.f32 0.0, %v1470
    %v1472 = vpop.f32.mrb[0].mxu0
    %1473 = vdwg.mxu0
    %v1474 = vld [vmem:[%s10 + $0x18] sm:$0xff]
    %v1476 = vsel %vm586, %v1471, 0
    %1478 = vmatprep.subr.mxu0 0.0
    %1479 = vmatpush1.msra.mxu0 %v1474
    %1480 = vmatprep.subr.mxu0 0.0
    %1481 = vmatpush1.msra.mxu0 0.0
    %1482 = vmatprep.subr.mxu0 0.0
    %1483 = vmatpush1.msra.mxu0 0.0
    %1484 = vmatprep.subr.mxu0 0.0
    %1485 = vmatpush1.msra.mxu0 0.0
    %1486 = vmatprep.subr.mxu0 0.0
    %1487 = vmatpush1.msra.mxu0 0.0
    %1488 = vmatprep.subr.mxu0 0.0
    %1489 = vmatpush1.msra.mxu0 0.0
    %1490 = vmatprep.subr.mxu0 0.0
    %1491 = vmatpush1.msra.mxu0 0.0
    %1492 = vmatprep.subr.mxu0 0.0
    %1493 = vmatpush1.msra.mxu0 0.0
    %1494 = vmatprep.subr.mxu0 0.0
    %1495 = vmatpush1.msra.mxu0 0.0
    %1496 = vmatprep.subr.mxu0 0.0
    %1497 = vmatpush1.msra.mxu0 0.0
    %1498 = vmatprep.subr.mxu0 0.0
    %1499 = vmatpush1.msra.mxu0 0.0
    %1500 = vmatprep.subr.mxu0 0.0
    %1501 = vmatpush1.msra.mxu0 0.0
    %1502 = vmatprep.subr.mxu0 0.0
    %1503 = vmatpush1.msra.mxu0 0.0
    %1504 = vmatprep.subr.mxu0 0.0
    %1505 = vmatpush1.msra.mxu0 0.0
    %1506 = vmatprep.subr.mxu0 0.0
    %1507 = vmatpush1.msra.mxu0 0.0
    %1508 = vmatprep.subr.mxu0 0.0
    %1509 = vmatpush1.msra.mxu0 0.0
    %1510 = vmatprep.subr.mxu0 0.0
    %1511 = vmatpush1.msra.mxu0 0.0
    %1512 = vmatprep.subr.mxu0 0.0
    %1513 = vmatpush1.msra.mxu0 0.0
    %1514 = vmatprep.subr.mxu0 0.0
    %1515 = vmatpush1.msra.mxu0 0.0
    %1516 = vmatprep.subr.mxu0 0.0
    %1517 = vmatpush1.msra.mxu0 0.0
    %1518 = vmatprep.subr.mxu0 0.0
    %1519 = vmatpush1.msra.mxu0 0.0
    %1520 = vmatprep.subr.mxu0 0.0
    %1521 = vmatpush1.msra.mxu0 0.0
    %1522 = vmatprep.subr.mxu0 0.0
    %1523 = vmatpush1.msra.mxu0 0.0
    %1524 = vmatprep.subr.mxu0 0.0
    %1525 = vmatpush1.msra.mxu0 0.0
    %1526 = vmatprep.subr.mxu0 0.0
    %1527 = vmatpush1.msra.mxu0 0.0
    %1528 = vmatprep.subr.mxu0 0.0
    %1529 = vmatpush1.msra.mxu0 0.0
    %1530 = vmatprep.subr.mxu0 0.0
    %1531 = vmatpush1.msra.mxu0 0.0
    %1532 = vmatprep.subr.mxu0 0.0
    %1533 = vmatpush1.msra.mxu0 0.0
    %1534 = vmatprep.subr.mxu0 0.0
    %1535 = vmatpush1.msra.mxu0 0.0
    %1536 = vmatprep.subr.mxu0 0.0
    %1537 = vmatpush1.msra.mxu0 0.0
    %1538 = vmatprep.subr.mxu0 0.0
    %1539 = vmatpush1.msra.mxu0 0.0
    %1540 = vmatprep.subr.mxu0 0.0
    %1541 = vmatpush1.msra.mxu0 0.0
    %1542 = vmatprep.mubr.f32.mxu0 0.0
    %1543 = vmatmul.mubr.f32.gmra.mrb[0].mxu0 %v1476
    %v1544 = vpop.f32.mrb[0].mxu0
    %v1545 = vadd.f32 0.0, %v1544
    %v1546 = vpop.f32.mrb[0].mxu0
    %1547 = vdwg.mxu0
    %v1548 = vadd.f32 %v1306, %v1545
    %v1550 = vsel %vm586, %v416, 0
    %v1553 = vsel %vm586, %v499, 0
    %1555 = vmatprep.subr.mxu0 0.0
    %1556 = vmatpush1.xpose.msra.mxu0 %v1553
    %1557 = vmatprep.subr.mxu0 0.0
    %1558 = vmatpush1.xpose.msra.mxu0 0.0
    %1559 = vmatprep.subr.mxu0 0.0
    %1560 = vmatpush1.xpose.msra.mxu0 0.0
    %1561 = vmatprep.subr.mxu0 0.0
    %1562 = vmatpush1.xpose.msra.mxu0 0.0
    %1563 = vmatprep.subr.mxu0 0.0
    %1564 = vmatpush1.xpose.msra.mxu0 0.0
    %1565 = vmatprep.subr.mxu0 0.0
    %1566 = vmatpush1.xpose.msra.mxu0 0.0
    %1567 = vmatprep.subr.mxu0 0.0
    %1568 = vmatpush1.xpose.msra.mxu0 0.0
    %1569 = vmatprep.subr.mxu0 0.0
    %1570 = vmatpush1.xpose.msra.mxu0 0.0
    %1571 = vmatprep.subr.mxu0 0.0
    %1572 = vmatpush1.xpose.msra.mxu0 0.0
    %1573 = vmatprep.subr.mxu0 0.0
    %1574 = vmatpush1.xpose.msra.mxu0 0.0
    %1575 = vmatprep.subr.mxu0 0.0
    %1576 = vmatpush1.xpose.msra.mxu0 0.0
    %1577 = vmatprep.subr.mxu0 0.0
    %1578 = vmatpush1.xpose.msra.mxu0 0.0
    %1579 = vmatprep.subr.mxu0 0.0
    %1580 = vmatpush1.xpose.msra.mxu0 0.0
    %1581 = vmatprep.subr.mxu0 0.0
    %1582 = vmatpush1.xpose.msra.mxu0 0.0
    %1583 = vmatprep.subr.mxu0 0.0
    %1584 = vmatpush1.xpose.msra.mxu0 0.0
    %1585 = vmatprep.subr.mxu0 0.0
    %1586 = vmatpush1.xpose.msra.mxu0 0.0
    %1587 = vmatprep.subr.mxu0 0.0
    %1588 = vmatpush1.xpose.msra.mxu0 0.0
    %1589 = vmatprep.subr.mxu0 0.0
    %1590 = vmatpush1.xpose.msra.mxu0 0.0
    %1591 = vmatprep.subr.mxu0 0.0
    %1592 = vmatpush1.xpose.msra.mxu0 0.0
    %1593 = vmatprep.subr.mxu0 0.0
    %1594 = vmatpush1.xpose.msra.mxu0 0.0
    %1595 = vmatprep.subr.mxu0 0.0
    %1596 = vmatpush1.xpose.msra.mxu0 0.0
    %1597 = vmatprep.subr.mxu0 0.0
    %1598 = vmatpush1.xpose.msra.mxu0 0.0
    %1599 = vmatprep.subr.mxu0 0.0
    %1600 = vmatpush1.xpose.msra.mxu0 0.0
    %1601 = vmatprep.subr.mxu0 0.0
    %1602 = vmatpush1.xpose.msra.mxu0 0.0
    %1603 = vmatprep.subr.mxu0 0.0
    %1604 = vmatpush1.xpose.msra.mxu0 0.0
    %1605 = vmatprep.subr.mxu0 0.0
    %1606 = vmatpush1.xpose.msra.mxu0 0.0
    %1607 = vmatprep.subr.mxu0 0.0
    %1608 = vmatpush1.xpose.msra.mxu0 0.0
    %1609 = vmatprep.subr.mxu0 0.0
    %1610 = vmatpush1.xpose.msra.mxu0 0.0
    %1611 = vmatprep.subr.mxu0 0.0
    %1612 = vmatpush1.xpose.msra.mxu0 0.0
    %1613 = vmatprep.subr.mxu0 0.0
    %1614 = vmatpush1.xpose.msra.mxu0 0.0
    %1615 = vmatprep.subr.mxu0 0.0
    %1616 = vmatpush1.xpose.msra.mxu0 0.0
    %1617 = vmatprep.subr.mxu0 0.0
    %1618 = vmatpush1.xpose.msra.mxu0 0.0
    %1619 = vmatprep.mubr.f32.mxu0 0.0
    %1620 = vmatmul.mubr.f32.gmra.mrb[0].mxu0 %v1550
    %v1621 = vpop.f32.mrb[0].mxu0
    %v1622 = vadd.f32 0.0, %v1621
    %v1623 = vpop.f32.mrb[0].mxu0
    %1624 = vdwg.mxu0
    %v1625 = vmul.f32 %v1622, 0.35355338
    %v1626 = vadd.f32 %v1625, %v269
    %v1627 = vsel %vm586, %v1626, -inf
    %1628 = vmax.xlane.f32.xlu0 %v1627
    %v1629 = vpop.xlane.xlu0 %1628
    %v1630 = vsub.f32 %v1626, %v1629
    %v1631 = vmul.f32 %v1630, 1.442695
    %v1632 = vpow.pop %v1631
    %v1633 = vsel %vm586, %v1632, 0.0
    %1634 = vadd.xlane.f32.xlu0 %v1633
    %v1635 = vpop.xlane.xlu0 %1634
    %v1636 = vrcp.pop %v1635
    %v1637 = vmul.f32 %v1632, %v1636
    %v1639 = vsel %vm586, %v1637, 0
    %1641 = vmatprep.subr.mxu0 0.0
    %1642 = vmatpush1.msra.mxu0 %v582
    %1643 = vmatprep.subr.mxu0 0.0
    %1644 = vmatpush1.msra.mxu0 0.0
    %1645 = vmatprep.subr.mxu0 0.0
    %1646 = vmatpush1.msra.mxu0 0.0
    %1647 = vmatprep.subr.mxu0 0.0
    %1648 = vmatpush1.msra.mxu0 0.0
    %1649 = vmatprep.subr.mxu0 0.0
    %1650 = vmatpush1.msra.mxu0 0.0
    %1651 = vmatprep.subr.mxu0 0.0
    %1652 = vmatpush1.msra.mxu0 0.0
    %1653 = vmatprep.subr.mxu0 0.0
    %1654 = vmatpush1.msra.mxu0 0.0
    %1655 = vmatprep.subr.mxu0 0.0
    %1656 = vmatpush1.msra.mxu0 0.0
    %1657 = vmatprep.subr.mxu0 0.0
    %1658 = vmatpush1.msra.mxu0 0.0
    %1659 = vmatprep.subr.mxu0 0.0
    %1660 = vmatpush1.msra.mxu0 0.0
    %1661 = vmatprep.subr.mxu0 0.0
    %1662 = vmatpush1.msra.mxu0 0.0
    %1663 = vmatprep.subr.mxu0 0.0
    %1664 = vmatpush1.msra.mxu0 0.0
    %1665 = vmatprep.subr.mxu0 0.0
    %1666 = vmatpush1.msra.mxu0 0.0
    %1667 = vmatprep.subr.mxu0 0.0
    %1668 = vmatpush1.msra.mxu0 0.0
    %1669 = vmatprep.subr.mxu0 0.0
    %1670 = vmatpush1.msra.mxu0 0.0
    %1671 = vmatprep.subr.mxu0 0.0
    %1672 = vmatpush1.msra.mxu0 0.0
    %1673 = vmatprep.subr.mxu0 0.0
    %1674 = vmatpush1.msra.mxu0 0.0
    %1675 = vmatprep.subr.mxu0 0.0
    %1676 = vmatpush1.msra.mxu0 0.0
    %1677 = vmatprep.subr.mxu0 0.0
    %1678 = vmatpush1.msra.mxu0 0.0
    %1679 = vmatprep.subr.mxu0 0.0
    %1680 = vmatpush1.msra.mxu0 0.0
    %1681 = vmatprep.subr.mxu0 0.0
    %1682 = vmatpush1.msra.mxu0 0.0
    %1683 = vmatprep.subr.mxu0 0.0
    %1684 = vmatpush1.msra.mxu0 0.0
    %1685 = vmatprep.subr.mxu0 0.0
    %1686 = vmatpush1.msra.mxu0 0.0
    %1687 = vmatprep.subr.mxu0 0.0
    %1688 = vmatpush1.msra.mxu0 0.0
    %1689 = vmatprep.subr.mxu0 0.0
    %1690 = vmatpush1.msra.mxu0 0.0
    %1691 = vmatprep.subr.mxu0 0.0
    %1692 = vmatpush1.msra.mxu0 0.0
    %1693 = vmatprep.subr.mxu0 0.0
    %1694 = vmatpush1.msra.mxu0 0.0
    %1695 = vmatprep.subr.mxu0 0.0
    %1696 = vmatpush1.msra.mxu0 0.0
    %1697 = vmatprep.subr.mxu0 0.0
    %1698 = vmatpush1.msra.mxu0 0.0
    %1699 = vmatprep.subr.mxu0 0.0
    %1700 = vmatpush1.msra.mxu0 0.0
    %1701 = vmatprep.subr.mxu0 0.0
    %1702 = vmatpush1.msra.mxu0 0.0
    %1703 = vmatprep.subr.mxu0 0.0
    %1704 = vmatpush1.msra.mxu0 0.0
    %1705 = vmatprep.mubr.f32.mxu0 0.0
    %1706 = vmatmul.mubr.f32.gmra.mrb[0].mxu0 %v1639
    %v1707 = vpop.f32.mrb[0].mxu0
    %v1708 = vadd.f32 0.0, %v1707
    %v1709 = vpop.f32.mrb[0].mxu0
    %1710 = vdwg.mxu0
    %1711 = vrot.lane.b32.xlu0 %v416, 120
    %v1712 = vpop.permute.xlu0 %1711
    %1713 = vrot.lane.b32.xlu0 %v499, 120
    %v1714 = vpop.permute.xlu0 %1713
    %v1715 = vsel %vm586, %v1712, 0
    %v1717 = vsel %vm586, %v1714, 0
    %1719 = vmatprep.subr.mxu0 0.0
    %1720 = vmatpush1.xpose.msra.mxu0 %v1717
    %1721 = vmatprep.subr.mxu0 0.0
    %1722 = vmatpush1.xpose.msra.mxu0 0.0
    %1723 = vmatprep.subr.mxu0 0.0
    %1724 = vmatpush1.xpose.msra.mxu0 0.0
    %1725 = vmatprep.subr.mxu0 0.0
    %1726 = vmatpush1.xpose.msra.mxu0 0.0
    %1727 = vmatprep.subr.mxu0 0.0
    %1728 = vmatpush1.xpose.msra.mxu0 0.0
    %1729 = vmatprep.subr.mxu0 0.0
    %1730 = vmatpush1.xpose.msra.mxu0 0.0
    %1731 = vmatprep.subr.mxu0 0.0
    %1732 = vmatpush1.xpose.msra.mxu0 0.0
    %1733 = vmatprep.subr.mxu0 0.0
    %1734 = vmatpush1.xpose.msra.mxu0 0.0
    %1735 = vmatprep.subr.mxu0 0.0
    %1736 = vmatpush1.xpose.msra.mxu0 0.0
    %1737 = vmatprep.subr.mxu0 0.0
    %1738 = vmatpush1.xpose.msra.mxu0 0.0
    %1739 = vmatprep.subr.mxu0 0.0
    %1740 = vmatpush1.xpose.msra.mxu0 0.0
    %1741 = vmatprep.subr.mxu0 0.0
    %1742 = vmatpush1.xpose.msra.mxu0 0.0
    %1743 = vmatprep.subr.mxu0 0.0
    %1744 = vmatpush1.xpose.msra.mxu0 0.0
    %1745 = vmatprep.subr.mxu0 0.0
    %1746 = vmatpush1.xpose.msra.mxu0 0.0
    %1747 = vmatprep.subr.mxu0 0.0
    %1748 = vmatpush1.xpose.msra.mxu0 0.0
    %1749 = vmatprep.subr.mxu0 0.0
    %1750 = vmatpush1.xpose.msra.mxu0 0.0
    %1751 = vmatprep.subr.mxu0 0.0
    %1752 = vmatpush1.xpose.msra.mxu0 0.0
    %1753 = vmatprep.subr.mxu0 0.0
    %1754 = vmatpush1.xpose.msra.mxu0 0.0
    %1755 = vmatprep.subr.mxu0 0.0
    %1756 = vmatpush1.xpose.msra.mxu0 0.0
    %1757 = vmatprep.subr.mxu0 0.0
    %1758 = vmatpush1.xpose.msra.mxu0 0.0
    %1759 = vmatprep.subr.mxu0 0.0
    %1760 = vmatpush1.xpose.msra.mxu0 0.0
    %1761 = vmatprep.subr.mxu0 0.0
    %1762 = vmatpush1.xpose.msra.mxu0 0.0
    %1763 = vmatprep.subr.mxu0 0.0
    %1764 = vmatpush1.xpose.msra.mxu0 0.0
    %1765 = vmatprep.subr.mxu0 0.0
    %1766 = vmatpush1.xpose.msra.mxu0 0.0
    %1767 = vmatprep.subr.mxu0 0.0
    %1768 = vmatpush1.xpose.msra.mxu0 0.0
    %1769 = vmatprep.subr.mxu0 0.0
    %1770 = vmatpush1.xpose.msra.mxu0 0.0
    %1771 = vmatprep.subr.mxu0 0.0
    %1772 = vmatpush1.xpose.msra.mxu0 0.0
    %1773 = vmatprep.subr.mxu0 0.0
    %1774 = vmatpush1.xpose.msra.mxu0 0.0
    %1775 = vmatprep.subr.mxu0 0.0
    %1776 = vmatpush1.xpose.msra.mxu0 0.0
    %1777 = vmatprep.subr.mxu0 0.0
    %1778 = vmatpush1.xpose.msra.mxu0 0.0
    %1779 = vmatprep.subr.mxu0 0.0
    %1780 = vmatpush1.xpose.msra.mxu0 0.0
    %1781 = vmatprep.subr.mxu0 0.0
    %1782 = vmatpush1.xpose.msra.mxu0 0.0
    %1783 = vmatprep.mubr.f32.mxu0 0.0
    %1784 = vmatmul.mubr.f32.gmra.mrb[0].mxu0 %v1715
    %v1785 = vpop.f32.mrb[0].mxu0
    %v1786 = vadd.f32 0.0, %v1785
    %v1787 = vpop.f32.mrb[0].mxu0
    %1788 = vdwg.mxu0
    %v1789 = vmul.f32 %v1786, 0.35355338
    %v1790 = vadd.f32 %v1789, %v269
    %v1791 = vsel %vm586, %v1790, -inf
    %1792 = vmax.xlane.f32.xlu0 %v1791
    %v1793 = vpop.xlane.xlu0 %1792
    %v1794 = vsub.f32 %v1790, %v1793
    %v1795 = vmul.f32 %v1794, 1.442695
    %v1796 = vpow.pop %v1795
    %v1797 = vsel %vm586, %v1796, 0.0
    %1798 = vadd.xlane.f32.xlu0 %v1797
    %v1799 = vpop.xlane.xlu0 %1798
    %v1800 = vrcp.pop %v1799
    %v1801 = vmul.f32 %v1796, %v1800
    %1803 = vrot.lane.b32.xlu0 %v582, 120
    %v1804 = vpop.permute.xlu0 %1803
    %v1807 = vsel %vm586, %v1801, 0
    %1809 = vmatprep.subr.mxu0 0.0
    %1810 = vmatpush1.msra.mxu0 %v1804
    %1811 = vmatprep.subr.mxu0 0.0
    %1812 = vmatpush1.msra.mxu0 0.0
    %1813 = vmatprep.subr.mxu0 0.0
    %1814 = vmatpush1.msra.mxu0 0.0
    %1815 = vmatprep.subr.mxu0 0.0
    %1816 = vmatpush1.msra.mxu0 0.0
    %1817 = vmatprep.subr.mxu0 0.0
    %1818 = vmatpush1.msra.mxu0 0.0
    %1819 = vmatprep.subr.mxu0 0.0
    %1820 = vmatpush1.msra.mxu0 0.0
    %1821 = vmatprep.subr.mxu0 0.0
    %1822 = vmatpush1.msra.mxu0 0.0
    %1823 = vmatprep.subr.mxu0 0.0
    %1824 = vmatpush1.msra.mxu0 0.0
    %1825 = vmatprep.subr.mxu0 0.0
    %1826 = vmatpush1.msra.mxu0 0.0
    %1827 = vmatprep.subr.mxu0 0.0
    %1828 = vmatpush1.msra.mxu0 0.0
    %1829 = vmatprep.subr.mxu0 0.0
    %1830 = vmatpush1.msra.mxu0 0.0
    %1831 = vmatprep.subr.mxu0 0.0
    %1832 = vmatpush1.msra.mxu0 0.0
    %1833 = vmatprep.subr.mxu0 0.0
    %1834 = vmatpush1.msra.mxu0 0.0
    %1835 = vmatprep.subr.mxu0 0.0
    %1836 = vmatpush1.msra.mxu0 0.0
    %1837 = vmatprep.subr.mxu0 0.0
    %1838 = vmatpush1.msra.mxu0 0.0
    %1839 = vmatprep.subr.mxu0 0.0
    %1840 = vmatpush1.msra.mxu0 0.0
    %1841 = vmatprep.subr.mxu0 0.0
    %1842 = vmatpush1.msra.mxu0 0.0
    %1843 = vmatprep.subr.mxu0 0.0
    %1844 = vmatpush1.msra.mxu0 0.0
    %1845 = vmatprep.subr.mxu0 0.0
    %1846 = vmatpush1.msra.mxu0 0.0
    %1847 = vmatprep.subr.mxu0 0.0
    %1848 = vmatpush1.msra.mxu0 0.0
    %1849 = vmatprep.subr.mxu0 0.0
    %1850 = vmatpush1.msra.mxu0 0.0
    %1851 = vmatprep.subr.mxu0 0.0
    %1852 = vmatpush1.msra.mxu0 0.0
    %1853 = vmatprep.subr.mxu0 0.0
    %1854 = vmatpush1.msra.mxu0 0.0
    %1855 = vmatprep.subr.mxu0 0.0
    %1856 = vmatpush1.msra.mxu0 0.0
    %1857 = vmatprep.subr.mxu0 0.0
    %1858 = vmatpush1.msra.mxu0 0.0
    %1859 = vmatprep.subr.mxu0 0.0
    %1860 = vmatpush1.msra.mxu0 0.0
    %1861 = vmatprep.subr.mxu0 0.0
    %1862 = vmatpush1.msra.mxu0 0.0
    %1863 = vmatprep.subr.mxu0 0.0
    %1864 = vmatpush1.msra.mxu0 0.0
    %1865 = vmatprep.subr.mxu0 0.0
    %1866 = vmatpush1.msra.mxu0 0.0
    %1867 = vmatprep.subr.mxu0 0.0
    %1868 = vmatpush1.msra.mxu0 0.0
    %1869 = vmatprep.subr.mxu0 0.0
    %1870 = vmatpush1.msra.mxu0 0.0
    %1871 = vmatprep.subr.mxu0 0.0
    %1872 = vmatpush1.msra.mxu0 0.0
    %1873 = vmatprep.mubr.f32.mxu0 0.0
    %1874 = vmatmul.mubr.f32.gmra.mrb[0].mxu0 %v1807
    %v1875 = vpop.f32.mrb[0].mxu0
    %v1876 = vadd.f32 0.0, %v1875
    %v1877 = vpop.f32.mrb[0].mxu0
    %1878 = vdwg.mxu0
    %v1880 = vsel %vm586, %v1876, 0
    %1882 = vmatprep.subr.mxu0 0.0
    %1883 = vmatpush1.msra.mxu0 %v918
    %1884 = vmatprep.subr.mxu0 0.0
    %1885 = vmatpush1.msra.mxu0 0.0
    %1886 = vmatprep.subr.mxu0 0.0
    %1887 = vmatpush1.msra.mxu0 0.0
    %1888 = vmatprep.subr.mxu0 0.0
    %1889 = vmatpush1.msra.mxu0 0.0
    %1890 = vmatprep.subr.mxu0 0.0
    %1891 = vmatpush1.msra.mxu0 0.0
    %1892 = vmatprep.subr.mxu0 0.0
    %1893 = vmatpush1.msra.mxu0 0.0
    %1894 = vmatprep.subr.mxu0 0.0
    %1895 = vmatpush1.msra.mxu0 0.0
    %1896 = vmatprep.subr.mxu0 0.0
    %1897 = vmatpush1.msra.mxu0 0.0
    %1898 = vmatprep.subr.mxu0 0.0
    %1899 = vmatpush1.msra.mxu0 0.0
    %1900 = vmatprep.subr.mxu0 0.0
    %1901 = vmatpush1.msra.mxu0 0.0
    %1902 = vmatprep.subr.mxu0 0.0
    %1903 = vmatpush1.msra.mxu0 0.0
    %1904 = vmatprep.subr.mxu0 0.0
    %1905 = vmatpush1.msra.mxu0 0.0
    %1906 = vmatprep.subr.mxu0 0.0
    %1907 = vmatpush1.msra.mxu0 0.0
    %1908 = vmatprep.subr.mxu0 0.0
    %1909 = vmatpush1.msra.mxu0 0.0
    %1910 = vmatprep.subr.mxu0 0.0
    %1911 = vmatpush1.msra.mxu0 0.0
    %1912 = vmatprep.subr.mxu0 0.0
    %1913 = vmatpush1.msra.mxu0 0.0
    %1914 = vmatprep.subr.mxu0 0.0
    %1915 = vmatpush1.msra.mxu0 0.0
    %1916 = vmatprep.subr.mxu0 0.0
    %1917 = vmatpush1.msra.mxu0 0.0
    %1918 = vmatprep.subr.mxu0 0.0
    %1919 = vmatpush1.msra.mxu0 0.0
    %1920 = vmatprep.subr.mxu0 0.0
    %1921 = vmatpush1.msra.mxu0 0.0
    %1922 = vmatprep.subr.mxu0 0.0
    %1923 = vmatpush1.msra.mxu0 0.0
    %1924 = vmatprep.subr.mxu0 0.0
    %1925 = vmatpush1.msra.mxu0 0.0
    %1926 = vmatprep.subr.mxu0 0.0
    %1927 = vmatpush1.msra.mxu0 0.0
    %1928 = vmatprep.subr.mxu0 0.0
    %1929 = vmatpush1.msra.mxu0 0.0
    %1930 = vmatprep.subr.mxu0 0.0
    %1931 = vmatpush1.msra.mxu0 0.0
    %1932 = vmatprep.subr.mxu0 0.0
    %1933 = vmatpush1.msra.mxu0 0.0
    %1934 = vmatprep.subr.mxu0 0.0
    %1935 = vmatpush1.msra.mxu0 0.0
    %1936 = vmatprep.subr.mxu0 0.0
    %1937 = vmatpush1.msra.mxu0 0.0
    %1938 = vmatprep.subr.mxu0 0.0
    %1939 = vmatpush1.msra.mxu0 0.0
    %1940 = vmatprep.subr.mxu0 0.0
    %1941 = vmatpush1.msra.mxu0 0.0
    %1942 = vmatprep.subr.mxu0 0.0
    %1943 = vmatpush1.msra.mxu0 0.0
    %1944 = vmatprep.subr.mxu0 0.0
    %1945 = vmatpush1.msra.mxu0 0.0
    %1946 = vmatprep.mubr.f32.mxu0 0.0
    %1947 = vmatmul.mubr.f32.gmra.mrb[0].mxu0 %v1880
    %v1948 = vpop.f32.mrb[0].mxu0
    %v1949 = vadd.f32 0.0, %v1948
    %v1950 = vpop.f32.mrb[0].mxu0
    %1951 = vdwg.mxu0
    %v1953 = vsel %vm586, %v1708, 0
    %1955 = vmatprep.subr.mxu0 0.0
    %1956 = vmatpush1.msra.mxu0 %v749
    %1957 = vmatprep.subr.mxu0 0.0
    %1958 = vmatpush1.msra.mxu0 0.0
    %1959 = vmatprep.subr.mxu0 0.0
    %1960 = vmatpush1.msra.mxu0 0.0
    %1961 = vmatprep.subr.mxu0 0.0
    %1962 = vmatpush1.msra.mxu0 0.0
    %1963 = vmatprep.subr.mxu0 0.0
    %1964 = vmatpush1.msra.mxu0 0.0
    %1965 = vmatprep.subr.mxu0 0.0
    %1966 = vmatpush1.msra.mxu0 0.0
    %1967 = vmatprep.subr.mxu0 0.0
    %1968 = vmatpush1.msra.mxu0 0.0
    %1969 = vmatprep.subr.mxu0 0.0
    %1970 = vmatpush1.msra.mxu0 0.0
    %1971 = vmatprep.subr.mxu0 0.0
    %1972 = vmatpush1.msra.mxu0 0.0
    %1973 = vmatprep.subr.mxu0 0.0
    %1974 = vmatpush1.msra.mxu0 0.0
    %1975 = vmatprep.subr.mxu0 0.0
    %1976 = vmatpush1.msra.mxu0 0.0
    %1977 = vmatprep.subr.mxu0 0.0
    %1978 = vmatpush1.msra.mxu0 0.0
    %1979 = vmatprep.subr.mxu0 0.0
    %1980 = vmatpush1.msra.mxu0 0.0
    %1981 = vmatprep.subr.mxu0 0.0
    %1982 = vmatpush1.msra.mxu0 0.0
    %1983 = vmatprep.subr.mxu0 0.0
    %1984 = vmatpush1.msra.mxu0 0.0
    %1985 = vmatprep.subr.mxu0 0.0
    %1986 = vmatpush1.msra.mxu0 0.0
    %1987 = vmatprep.subr.mxu0 0.0
    %1988 = vmatpush1.msra.mxu0 0.0
    %1989 = vmatprep.subr.mxu0 0.0
    %1990 = vmatpush1.msra.mxu0 0.0
    %1991 = vmatprep.subr.mxu0 0.0
    %1992 = vmatpush1.msra.mxu0 0.0
    %1993 = vmatprep.subr.mxu0 0.0
    %1994 = vmatpush1.msra.mxu0 0.0
    %1995 = vmatprep.subr.mxu0 0.0
    %1996 = vmatpush1.msra.mxu0 0.0
    %1997 = vmatprep.subr.mxu0 0.0
    %1998 = vmatpush1.msra.mxu0 0.0
    %1999 = vmatprep.subr.mxu0 0.0
    %2000 = vmatpush1.msra.mxu0 0.0
    %2001 = vmatprep.subr.mxu0 0.0
    %2002 = vmatpush1.msra.mxu0 0.0
    %2003 = vmatprep.subr.mxu0 0.0
    %2004 = vmatpush1.msra.mxu0 0.0
    %2005 = vmatprep.subr.mxu0 0.0
    %2006 = vmatpush1.msra.mxu0 0.0
    %2007 = vmatprep.subr.mxu0 0.0
    %2008 = vmatpush1.msra.mxu0 0.0
    %2009 = vmatprep.subr.mxu0 0.0
    %2010 = vmatpush1.msra.mxu0 0.0
    %2011 = vmatprep.subr.mxu0 0.0
    %2012 = vmatpush1.msra.mxu0 0.0
    %2013 = vmatprep.subr.mxu0 0.0
    %2014 = vmatpush1.msra.mxu0 0.0
    %2015 = vmatprep.subr.mxu0 0.0
    %2016 = vmatpush1.msra.mxu0 0.0
    %2017 = vmatprep.subr.mxu0 0.0
    %2018 = vmatpush1.msra.mxu0 0.0
    %2019 = vmatprep.mubr.f32.mxu0 0.0
    %2020 = vmatmul.mubr.f32.gmra.mrb[0].mxu0 %v1953
    %v2021 = vpop.f32.mrb[0].mxu0
    %v2022 = vadd.f32 %v1949, %v2021
    %v2023 = vpop.f32.mrb[0].mxu0
    %2024 = vdwg.mxu0
    %2025 = vrot.lane.b32.xlu0 %v416, 112
    %v2026 = vpop.permute.xlu0 %2025
    %2027 = vrot.lane.b32.xlu0 %v499, 112
    %v2028 = vpop.permute.xlu0 %2027
    %v2029 = vsel %vm586, %v2026, 0
    %v2031 = vsel %vm586, %v2028, 0
    %2033 = vmatprep.subr.mxu0 0.0
    %2034 = vmatpush1.xpose.msra.mxu0 %v2031
    %2035 = vmatprep.subr.mxu0 0.0
    %2036 = vmatpush1.xpose.msra.mxu0 0.0
    %2037 = vmatprep.subr.mxu0 0.0
    %2038 = vmatpush1.xpose.msra.mxu0 0.0
    %2039 = vmatprep.subr.mxu0 0.0
    %2040 = vmatpush1.xpose.msra.mxu0 0.0
    %2041 = vmatprep.subr.mxu0 0.0
    %2042 = vmatpush1.xpose.msra.mxu0 0.0
    %2043 = vmatprep.subr.mxu0 0.0
    %2044 = vmatpush1.xpose.msra.mxu0 0.0
    %2045 = vmatprep.subr.mxu0 0.0
    %2046 = vmatpush1.xpose.msra.mxu0 0.0
    %2047 = vmatprep.subr.mxu0 0.0
    %2048 = vmatpush1.xpose.msra.mxu0 0.0
    %2049 = vmatprep.subr.mxu0 0.0
    %2050 = vmatpush1.xpose.msra.mxu0 0.0
    %2051 = vmatprep.subr.mxu0 0.0
    %2052 = vmatpush1.xpose.msra.mxu0 0.0
    %2053 = vmatprep.subr.mxu0 0.0
    %2054 = vmatpush1.xpose.msra.mxu0 0.0
    %2055 = vmatprep.subr.mxu0 0.0
    %2056 = vmatpush1.xpose.msra.mxu0 0.0
    %2057 = vmatprep.subr.mxu0 0.0
    %2058 = vmatpush1.xpose.msra.mxu0 0.0
    %2059 = vmatprep.subr.mxu0 0.0
    %2060 = vmatpush1.xpose.msra.mxu0 0.0
    %2061 = vmatprep.subr.mxu0 0.0
    %2062 = vmatpush1.xpose.msra.mxu0 0.0
    %2063 = vmatprep.subr.mxu0 0.0
    %2064 = vmatpush1.xpose.msra.mxu0 0.0
    %2065 = vmatprep.subr.mxu0 0.0
    %2066 = vmatpush1.xpose.msra.mxu0 0.0
    %2067 = vmatprep.subr.mxu0 0.0
    %2068 = vmatpush1.xpose.msra.mxu0 0.0
    %2069 = vmatprep.subr.mxu0 0.0
    %2070 = vmatpush1.xpose.msra.mxu0 0.0
    %2071 = vmatprep.subr.mxu0 0.0
    %2072 = vmatpush1.xpose.msra.mxu0 0.0
    %2073 = vmatprep.subr.mxu0 0.0
    %2074 = vmatpush1.xpose.msra.mxu0 0.0
    %2075 = vmatprep.subr.mxu0 0.0
    %2076 = vmatpush1.xpose.msra.mxu0 0.0
    %2077 = vmatprep.subr.mxu0 0.0
    %2078 = vmatpush1.xpose.msra.mxu0 0.0
    %2079 = vmatprep.subr.mxu0 0.0
    %2080 = vmatpush1.xpose.msra.mxu0 0.0
    %2081 = vmatprep.subr.mxu0 0.0
    %2082 = vmatpush1.xpose.msra.mxu0 0.0
    %2083 = vmatprep.subr.mxu0 0.0
    %2084 = vmatpush1.xpose.msra.mxu0 0.0
    %2085 = vmatprep.subr.mxu0 0.0
    %2086 = vmatpush1.xpose.msra.mxu0 0.0
    %2087 = vmatprep.subr.mxu0 0.0
    %2088 = vmatpush1.xpose.msra.mxu0 0.0
    %2089 = vmatprep.subr.mxu0 0.0
    %2090 = vmatpush1.xpose.msra.mxu0 0.0
    %2091 = vmatprep.subr.mxu0 0.0
    %2092 = vmatpush1.xpose.msra.mxu0 0.0
    %2093 = vmatprep.subr.mxu0 0.0
    %2094 = vmatpush1.xpose.msra.mxu0 0.0
    %2095 = vmatprep.subr.mxu0 0.0
    %2096 = vmatpush1.xpose.msra.mxu0 0.0
    %2097 = vmatprep.mubr.f32.mxu0 0.0
    %2098 = vmatmul.mubr.f32.gmra.mrb[0].mxu0 %v2029
    %v2099 = vpop.f32.mrb[0].mxu0
    %v2100 = vadd.f32 0.0, %v2099
    %v2101 = vpop.f32.mrb[0].mxu0
    %2102 = vdwg.mxu0
    %v2103 = vmul.f32 %v2100, 0.35355338
    %v2104 = vadd.f32 %v2103, %v269
    %v2105 = vsel %vm586, %v2104, -inf
    %2106 = vmax.xlane.f32.xlu0 %v2105
    %v2107 = vpop.xlane.xlu0 %2106
    %v2108 = vsub.f32 %v2104, %v2107
    %v2109 = vmul.f32 %v2108, 1.442695
    %v2110 = vpow.pop %v2109
    %v2111 = vsel %vm586, %v2110, 0.0
    %2112 = vadd.xlane.f32.xlu0 %v2111
    %v2113 = vpop.xlane.xlu0 %2112
    %v2114 = vrcp.pop %v2113
    %v2115 = vmul.f32 %v2110, %v2114
    %2116 = vrot.lane.b32.xlu0 %v582, 112
    %v2117 = vpop.permute.xlu0 %2116
    %v2120 = vsel %vm586, %v2115, 0
    %2122 = vmatprep.subr.mxu0 0.0
    %2123 = vmatpush1.msra.mxu0 %v2117
    %2124 = vmatprep.subr.mxu0 0.0
    %2125 = vmatpush1.msra.mxu0 0.0
    %2126 = vmatprep.subr.mxu0 0.0
    %2127 = vmatpush1.msra.mxu0 0.0
    %2128 = vmatprep.subr.mxu0 0.0
    %2129 = vmatpush1.msra.mxu0 0.0
    %2130 = vmatprep.subr.mxu0 0.0
    %2131 = vmatpush1.msra.mxu0 0.0
    %2132 = vmatprep.subr.mxu0 0.0
    %2133 = vmatpush1.msra.mxu0 0.0
    %2134 = vmatprep.subr.mxu0 0.0
    %2135 = vmatpush1.msra.mxu0 0.0
    %2136 = vmatprep.subr.mxu0 0.0
    %2137 = vmatpush1.msra.mxu0 0.0
    %2138 = vmatprep.subr.mxu0 0.0
    %2139 = vmatpush1.msra.mxu0 0.0
    %2140 = vmatprep.subr.mxu0 0.0
    %2141 = vmatpush1.msra.mxu0 0.0
    %2142 = vmatprep.subr.mxu0 0.0
    %2143 = vmatpush1.msra.mxu0 0.0
    %2144 = vmatprep.subr.mxu0 0.0
    %2145 = vmatpush1.msra.mxu0 0.0
    %2146 = vmatprep.subr.mxu0 0.0
    %2147 = vmatpush1.msra.mxu0 0.0
    %2148 = vmatprep.subr.mxu0 0.0
    %2149 = vmatpush1.msra.mxu0 0.0
    %2150 = vmatprep.subr.mxu0 0.0
    %2151 = vmatpush1.msra.mxu0 0.0
    %2152 = vmatprep.subr.mxu0 0.0
    %2153 = vmatpush1.msra.mxu0 0.0
    %2154 = vmatprep.subr.mxu0 0.0
    %2155 = vmatpush1.msra.mxu0 0.0
    %2156 = vmatprep.subr.mxu0 0.0
    %2157 = vmatpush1.msra.mxu0 0.0
    %2158 = vmatprep.subr.mxu0 0.0
    %2159 = vmatpush1.msra.mxu0 0.0
    %2160 = vmatprep.subr.mxu0 0.0
    %2161 = vmatpush1.msra.mxu0 0.0
    %2162 = vmatprep.subr.mxu0 0.0
    %2163 = vmatpush1.msra.mxu0 0.0
    %2164 = vmatprep.subr.mxu0 0.0
    %2165 = vmatpush1.msra.mxu0 0.0
    %2166 = vmatprep.subr.mxu0 0.0
    %2167 = vmatpush1.msra.mxu0 0.0
    %2168 = vmatprep.subr.mxu0 0.0
    %2169 = vmatpush1.msra.mxu0 0.0
    %2170 = vmatprep.subr.mxu0 0.0
    %2171 = vmatpush1.msra.mxu0 0.0
    %2172 = vmatprep.subr.mxu0 0.0
    %2173 = vmatpush1.msra.mxu0 0.0
    %2174 = vmatprep.subr.mxu0 0.0
    %2175 = vmatpush1.msra.mxu0 0.0
    %2176 = vmatprep.subr.mxu0 0.0
    %2177 = vmatpush1.msra.mxu0 0.0
    %2178 = vmatprep.subr.mxu0 0.0
    %2179 = vmatpush1.msra.mxu0 0.0
    %2180 = vmatprep.subr.mxu0 0.0
    %2181 = vmatpush1.msra.mxu0 0.0
    %2182 = vmatprep.subr.mxu0 0.0
    %2183 = vmatpush1.msra.mxu0 0.0
    %2184 = vmatprep.subr.mxu0 0.0
    %2185 = vmatpush1.msra.mxu0 0.0
    %2186 = vmatprep.mubr.f32.mxu0 0.0
    %2187 = vmatmul.mubr.f32.gmra.mrb[0].mxu0 %v2120
    %v2188 = vpop.f32.mrb[0].mxu0
    %v2189 = vadd.f32 0.0, %v2188
    %v2190 = vpop.f32.mrb[0].mxu0
    %2191 = vdwg.mxu0
    %v2193 = vsel %vm586, %v2189, 0
    %2195 = vmatprep.subr.mxu0 0.0
    %2196 = vmatpush1.msra.mxu0 %v1232
    %2197 = vmatprep.subr.mxu0 0.0
    %2198 = vmatpush1.msra.mxu0 0.0
    %2199 = vmatprep.subr.mxu0 0.0
    %2200 = vmatpush1.msra.mxu0 0.0
    %2201 = vmatprep.subr.mxu0 0.0
    %2202 = vmatpush1.msra.mxu0 0.0
    %2203 = vmatprep.subr.mxu0 0.0
    %2204 = vmatpush1.msra.mxu0 0.0
    %2205 = vmatprep.subr.mxu0 0.0
    %2206 = vmatpush1.msra.mxu0 0.0
    %2207 = vmatprep.subr.mxu0 0.0
    %2208 = vmatpush1.msra.mxu0 0.0
    %2209 = vmatprep.subr.mxu0 0.0
    %2210 = vmatpush1.msra.mxu0 0.0
    %2211 = vmatprep.subr.mxu0 0.0
    %2212 = vmatpush1.msra.mxu0 0.0
    %2213 = vmatprep.subr.mxu0 0.0
    %2214 = vmatpush1.msra.mxu0 0.0
    %2215 = vmatprep.subr.mxu0 0.0
    %2216 = vmatpush1.msra.mxu0 0.0
    %2217 = vmatprep.subr.mxu0 0.0
    %2218 = vmatpush1.msra.mxu0 0.0
    %2219 = vmatprep.subr.mxu0 0.0
    %2220 = vmatpush1.msra.mxu0 0.0
    %2221 = vmatprep.subr.mxu0 0.0
    %2222 = vmatpush1.msra.mxu0 0.0
    %2223 = vmatprep.subr.mxu0 0.0
    %2224 = vmatpush1.msra.mxu0 0.0
    %2225 = vmatprep.subr.mxu0 0.0
    %2226 = vmatpush1.msra.mxu0 0.0
    %2227 = vmatprep.subr.mxu0 0.0
    %2228 = vmatpush1.msra.mxu0 0.0
    %2229 = vmatprep.subr.mxu0 0.0
    %2230 = vmatpush1.msra.mxu0 0.0
    %2231 = vmatprep.subr.mxu0 0.0
    %2232 = vmatpush1.msra.mxu0 0.0
    %2233 = vmatprep.subr.mxu0 0.0
    %2234 = vmatpush1.msra.mxu0 0.0
    %2235 = vmatprep.subr.mxu0 0.0
    %2236 = vmatpush1.msra.mxu0 0.0
    %2237 = vmatprep.subr.mxu0 0.0
    %2238 = vmatpush1.msra.mxu0 0.0
    %2239 = vmatprep.subr.mxu0 0.0
    %2240 = vmatpush1.msra.mxu0 0.0
    %2241 = vmatprep.subr.mxu0 0.0
    %2242 = vmatpush1.msra.mxu0 0.0
    %2243 = vmatprep.subr.mxu0 0.0
    %2244 = vmatpush1.msra.mxu0 0.0
    %2245 = vmatprep.subr.mxu0 0.0
    %2246 = vmatpush1.msra.mxu0 0.0
    %2247 = vmatprep.subr.mxu0 0.0
    %2248 = vmatpush1.msra.mxu0 0.0
    %2249 = vmatprep.subr.mxu0 0.0
    %2250 = vmatpush1.msra.mxu0 0.0
    %2251 = vmatprep.subr.mxu0 0.0
    %2252 = vmatpush1.msra.mxu0 0.0
    %2253 = vmatprep.subr.mxu0 0.0
    %2254 = vmatpush1.msra.mxu0 0.0
    %2255 = vmatprep.subr.mxu0 0.0
    %2256 = vmatpush1.msra.mxu0 0.0
    %2257 = vmatprep.subr.mxu0 0.0
    %2258 = vmatpush1.msra.mxu0 0.0
    %2259 = vmatprep.mubr.f32.mxu0 0.0
    %2260 = vmatmul.mubr.f32.gmra.mrb[0].mxu0 %v2193
    %v2261 = vpop.f32.mrb[0].mxu0
    %v2262 = vadd.f32 0.0, %v2261
    %v2263 = vpop.f32.mrb[0].mxu0
    %2264 = vdwg.mxu0
    %v2265 = vadd.f32 %v2022, %v2262
    %2266 = vrot.lane.b32.xlu0 %v416, 104
    %v2267 = vpop.permute.xlu0 %2266
    %2268 = vrot.lane.b32.xlu0 %v499, 104
    %v2269 = vpop.permute.xlu0 %2268
    %v2270 = vsel %vm586, %v2267, 0
    %v2272 = vsel %vm586, %v2269, 0
    %2274 = vmatprep.subr.mxu0 0.0
    %2275 = vmatpush1.xpose.msra.mxu0 %v2272
    %2276 = vmatprep.subr.mxu0 0.0
    %2277 = vmatpush1.xpose.msra.mxu0 0.0
    %2278 = vmatprep.subr.mxu0 0.0
    %2279 = vmatpush1.xpose.msra.mxu0 0.0
    %2280 = vmatprep.subr.mxu0 0.0
    %2281 = vmatpush1.xpose.msra.mxu0 0.0
    %2282 = vmatprep.subr.mxu0 0.0
    %2283 = vmatpush1.xpose.msra.mxu0 0.0
    %2284 = vmatprep.subr.mxu0 0.0
    %2285 = vmatpush1.xpose.msra.mxu0 0.0
    %2286 = vmatprep.subr.mxu0 0.0
    %2287 = vmatpush1.xpose.msra.mxu0 0.0
    %2288 = vmatprep.subr.mxu0 0.0
    %2289 = vmatpush1.xpose.msra.mxu0 0.0
    %2290 = vmatprep.subr.mxu0 0.0
    %2291 = vmatpush1.xpose.msra.mxu0 0.0
    %2292 = vmatprep.subr.mxu0 0.0
    %2293 = vmatpush1.xpose.msra.mxu0 0.0
    %2294 = vmatprep.subr.mxu0 0.0
    %2295 = vmatpush1.xpose.msra.mxu0 0.0
    %2296 = vmatprep.subr.mxu0 0.0
    %2297 = vmatpush1.xpose.msra.mxu0 0.0
    %2298 = vmatprep.subr.mxu0 0.0
    %2299 = vmatpush1.xpose.msra.mxu0 0.0
    %2300 = vmatprep.subr.mxu0 0.0
    %2301 = vmatpush1.xpose.msra.mxu0 0.0
    %2302 = vmatprep.subr.mxu0 0.0
    %2303 = vmatpush1.xpose.msra.mxu0 0.0
    %2304 = vmatprep.subr.mxu0 0.0
    %2305 = vmatpush1.xpose.msra.mxu0 0.0
    %2306 = vmatprep.subr.mxu0 0.0
    %2307 = vmatpush1.xpose.msra.mxu0 0.0
    %2308 = vmatprep.subr.mxu0 0.0
    %2309 = vmatpush1.xpose.msra.mxu0 0.0
    %2310 = vmatprep.subr.mxu0 0.0
    %2311 = vmatpush1.xpose.msra.mxu0 0.0
    %2312 = vmatprep.subr.mxu0 0.0
    %2313 = vmatpush1.xpose.msra.mxu0 0.0
    %2314 = vmatprep.subr.mxu0 0.0
    %2315 = vmatpush1.xpose.msra.mxu0 0.0
    %2316 = vmatprep.subr.mxu0 0.0
    %2317 = vmatpush1.xpose.msra.mxu0 0.0
    %2318 = vmatprep.subr.mxu0 0.0
    %2319 = vmatpush1.xpose.msra.mxu0 0.0
    %2320 = vmatprep.subr.mxu0 0.0
    %2321 = vmatpush1.xpose.msra.mxu0 0.0
    %2322 = vmatprep.subr.mxu0 0.0
    %2323 = vmatpush1.xpose.msra.mxu0 0.0
    %2324 = vmatprep.subr.mxu0 0.0
    %2325 = vmatpush1.xpose.msra.mxu0 0.0
    %2326 = vmatprep.subr.mxu0 0.0
    %2327 = vmatpush1.xpose.msra.mxu0 0.0
    %2328 = vmatprep.subr.mxu0 0.0
    %2329 = vmatpush1.xpose.msra.mxu0 0.0
    %2330 = vmatprep.subr.mxu0 0.0
    %2331 = vmatpush1.xpose.msra.mxu0 0.0
    %2332 = vmatprep.subr.mxu0 0.0
    %2333 = vmatpush1.xpose.msra.mxu0 0.0
    %2334 = vmatprep.subr.mxu0 0.0
    %2335 = vmatpush1.xpose.msra.mxu0 0.0
    %2336 = vmatprep.subr.mxu0 0.0
    %2337 = vmatpush1.xpose.msra.mxu0 0.0
    %2338 = vmatprep.mubr.f32.mxu0 0.0
    %2339 = vmatmul.mubr.f32.gmra.mrb[0].mxu0 %v2270
    %v2340 = vpop.f32.mrb[0].mxu0
    %v2341 = vadd.f32 0.0, %v2340
    %v2342 = vpop.f32.mrb[0].mxu0
    %2343 = vdwg.mxu0
    %v2344 = vmul.f32 %v2341, 0.35355338
    %v2345 = vadd.f32 %v2344, %v269
    %v2346 = vsel %vm586, %v2345, -inf
    %2347 = vmax.xlane.f32.xlu0 %v2346
    %v2348 = vpop.xlane.xlu0 %2347
    %v2349 = vsub.f32 %v2345, %v2348
    %v2350 = vmul.f32 %v2349, 1.442695
    %v2351 = vpow.pop %v2350
    %v2352 = vsel %vm586, %v2351, 0.0
    %2353 = vadd.xlane.f32.xlu0 %v2352
    %v2354 = vpop.xlane.xlu0 %2353
    %v2355 = vrcp.pop %v2354
    %v2356 = vmul.f32 %v2351, %v2355
    %2357 = vrot.lane.b32.xlu0 %v582, 104
    %v2358 = vpop.permute.xlu0 %2357
    %v2361 = vsel %vm586, %v2356, 0
    %2363 = vmatprep.subr.mxu0 0.0
    %2364 = vmatpush1.msra.mxu0 %v2358
    %2365 = vmatprep.subr.mxu0 0.0
    %2366 = vmatpush1.msra.mxu0 0.0
    %2367 = vmatprep.subr.mxu0 0.0
    %2368 = vmatpush1.msra.mxu0 0.0
    %2369 = vmatprep.subr.mxu0 0.0
    %2370 = vmatpush1.msra.mxu0 0.0
    %2371 = vmatprep.subr.mxu0 0.0
    %2372 = vmatpush1.msra.mxu0 0.0
    %2373 = vmatprep.subr.mxu0 0.0
    %2374 = vmatpush1.msra.mxu0 0.0
    %2375 = vmatprep.subr.mxu0 0.0
    %2376 = vmatpush1.msra.mxu0 0.0
    %2377 = vmatprep.subr.mxu0 0.0
    %2378 = vmatpush1.msra.mxu0 0.0
    %2379 = vmatprep.subr.mxu0 0.0
    %2380 = vmatpush1.msra.mxu0 0.0
    %2381 = vmatprep.subr.mxu0 0.0
    %2382 = vmatpush1.msra.mxu0 0.0
    %2383 = vmatprep.subr.mxu0 0.0
    %2384 = vmatpush1.msra.mxu0 0.0
    %2385 = vmatprep.subr.mxu0 0.0
    %2386 = vmatpush1.msra.mxu0 0.0
    %2387 = vmatprep.subr.mxu0 0.0
    %2388 = vmatpush1.msra.mxu0 0.0
    %2389 = vmatprep.subr.mxu0 0.0
    %2390 = vmatpush1.msra.mxu0 0.0
    %2391 = vmatprep.subr.mxu0 0.0
    %2392 = vmatpush1.msra.mxu0 0.0
    %2393 = vmatprep.subr.mxu0 0.0
    %2394 = vmatpush1.msra.mxu0 0.0
    %2395 = vmatprep.subr.mxu0 0.0
    %2396 = vmatpush1.msra.mxu0 0.0
    %2397 = vmatprep.subr.mxu0 0.0
    %2398 = vmatpush1.msra.mxu0 0.0
    %2399 = vmatprep.subr.mxu0 0.0
    %2400 = vmatpush1.msra.mxu0 0.0
    %2401 = vmatprep.subr.mxu0 0.0
    %2402 = vmatpush1.msra.mxu0 0.0
    %2403 = vmatprep.subr.mxu0 0.0
    %2404 = vmatpush1.msra.mxu0 0.0
    %2405 = vmatprep.subr.mxu0 0.0
    %2406 = vmatpush1.msra.mxu0 0.0
    %2407 = vmatprep.subr.mxu0 0.0
    %2408 = vmatpush1.msra.mxu0 0.0
    %2409 = vmatprep.subr.mxu0 0.0
    %2410 = vmatpush1.msra.mxu0 0.0
    %2411 = vmatprep.subr.mxu0 0.0
    %2412 = vmatpush1.msra.mxu0 0.0
    %2413 = vmatprep.subr.mxu0 0.0
    %2414 = vmatpush1.msra.mxu0 0.0
    %2415 = vmatprep.subr.mxu0 0.0
    %2416 = vmatpush1.msra.mxu0 0.0
    %2417 = vmatprep.subr.mxu0 0.0
    %2418 = vmatpush1.msra.mxu0 0.0
    %2419 = vmatprep.subr.mxu0 0.0
    %2420 = vmatpush1.msra.mxu0 0.0
    %2421 = vmatprep.subr.mxu0 0.0
    %2422 = vmatpush1.msra.mxu0 0.0
    %2423 = vmatprep.subr.mxu0 0.0
    %2424 = vmatpush1.msra.mxu0 0.0
    %2425 = vmatprep.subr.mxu0 0.0
    %2426 = vmatpush1.msra.mxu0 0.0
    %2427 = vmatprep.mubr.f32.mxu0 0.0
    %2428 = vmatmul.mubr.f32.gmra.mrb[0].mxu0 %v2361
    %v2429 = vpop.f32.mrb[0].mxu0
    %v2430 = vadd.f32 0.0, %v2429
    %v2431 = vpop.f32.mrb[0].mxu0
    %2432 = vdwg.mxu0
    %v2434 = vsel %vm586, %v2430, 0
    %2436 = vmatprep.subr.mxu0 0.0
    %2437 = vmatpush1.msra.mxu0 %v1474
    %2438 = vmatprep.subr.mxu0 0.0
    %2439 = vmatpush1.msra.mxu0 0.0
    %2440 = vmatprep.subr.mxu0 0.0
    %2441 = vmatpush1.msra.mxu0 0.0
    %2442 = vmatprep.subr.mxu0 0.0
    %2443 = vmatpush1.msra.mxu0 0.0
    %2444 = vmatprep.subr.mxu0 0.0
    %2445 = vmatpush1.msra.mxu0 0.0
    %2446 = vmatprep.subr.mxu0 0.0
    %2447 = vmatpush1.msra.mxu0 0.0
    %2448 = vmatprep.subr.mxu0 0.0
    %2449 = vmatpush1.msra.mxu0 0.0
    %2450 = vmatprep.subr.mxu0 0.0
    %2451 = vmatpush1.msra.mxu0 0.0
    %2452 = vmatprep.subr.mxu0 0.0
    %2453 = vmatpush1.msra.mxu0 0.0
    %2454 = vmatprep.subr.mxu0 0.0
    %2455 = vmatpush1.msra.mxu0 0.0
    %2456 = vmatprep.subr.mxu0 0.0
    %2457 = vmatpush1.msra.mxu0 0.0
    %2458 = vmatprep.subr.mxu0 0.0
    %2459 = vmatpush1.msra.mxu0 0.0
    %2460 = vmatprep.subr.mxu0 0.0
    %2461 = vmatpush1.msra.mxu0 0.0
    %2462 = vmatprep.subr.mxu0 0.0
    %2463 = vmatpush1.msra.mxu0 0.0
    %2464 = vmatprep.subr.mxu0 0.0
    %2465 = vmatpush1.msra.mxu0 0.0
    %2466 = vmatprep.subr.mxu0 0.0
    %2467 = vmatpush1.msra.mxu0 0.0
    %2468 = vmatprep.subr.mxu0 0.0
    %2469 = vmatpush1.msra.mxu0 0.0
    %2470 = vmatprep.subr.mxu0 0.0
    %2471 = vmatpush1.msra.mxu0 0.0
    %2472 = vmatprep.subr.mxu0 0.0
    %2473 = vmatpush1.msra.mxu0 0.0
    %2474 = vmatprep.subr.mxu0 0.0
    %2475 = vmatpush1.msra.mxu0 0.0
    %2476 = vmatprep.subr.mxu0 0.0
    %2477 = vmatpush1.msra.mxu0 0.0
    %2478 = vmatprep.subr.mxu0 0.0
    %2479 = vmatpush1.msra.mxu0 0.0
    %2480 = vmatprep.subr.mxu0 0.0
    %2481 = vmatpush1.msra.mxu0 0.0
    %2482 = vmatprep.subr.mxu0 0.0
    %2483 = vmatpush1.msra.mxu0 0.0
    %2484 = vmatprep.subr.mxu0 0.0
    %2485 = vmatpush1.msra.mxu0 0.0
    %2486 = vmatprep.subr.mxu0 0.0
    %2487 = vmatpush1.msra.mxu0 0.0
    %2488 = vmatprep.subr.mxu0 0.0
    %2489 = vmatpush1.msra.mxu0 0.0
    %2490 = vmatprep.subr.mxu0 0.0
    %2491 = vmatpush1.msra.mxu0 0.0
    %2492 = vmatprep.subr.mxu0 0.0
    %2493 = vmatpush1.msra.mxu0 0.0
    %2494 = vmatprep.subr.mxu0 0.0
    %2495 = vmatpush1.msra.mxu0 0.0
    %2496 = vmatprep.subr.mxu0 0.0
    %2497 = vmatpush1.msra.mxu0 0.0
    %2498 = vmatprep.subr.mxu0 0.0
    %2499 = vmatpush1.msra.mxu0 0.0
    %2500 = vmatprep.mubr.f32.mxu0 0.0
    %2501 = vmatmul.mubr.f32.gmra.mrb[0].mxu0 %v2434
    %v2502 = vpop.f32.mrb[0].mxu0
    %v2503 = vadd.f32 0.0, %v2502
    %v2504 = vpop.f32.mrb[0].mxu0
    %2505 = vdwg.mxu0
    %v2506 = vadd.f32 %v2265, %v2503
    %v2508 = vlaneseq
    %v2509 = vshrl.u32 %v2508, 7
    %v2510 = vsub.s32 0, %v2509
    %v2511 = vrot.slane %v585, %v2510
    %v2513 = vadd.f32 %v1548, %v2511
    %v2514 = vadd.f32 %v2506, %v2511
    %v2515 = vadd.f32 %v259, %v2513
    %v2516 = vadd.f32 %v260, %v2514
    %v2517 = vsel %vm273, %v2515, 0.0
    %2518 = vadd.xlane.f32.xlu0 %v2517
    %v2519 = vpop.xlane.xlu0 %2518
    %v2520 = vsel %vm273, %v2516, 0.0
    %2521 = vadd.xlane.f32.xlu0 %v2520
    %v2522 = vpop.xlane.xlu0 %2521
    %v2523 = vmul.f32 %v2519, 0.03125
    %v2524 = vmul.f32 %v2522, 0.03125
    %v2525 = vsub.f32 %v2515, %v2523
    %v2526 = vsub.f32 %v2516, %v2524
    %v2527 = vmul.f32 %v2525, %v2525
    %v2528 = vmul.f32 %v2526, %v2526
    %v2529 = vsel %vm273, %v2527, 0.0
    %2530 = vadd.xlane.f32.xlu0 %v2529
    %v2531 = vpop.xlane.xlu0 %2530
    %v2532 = vsel %vm273, %v2528, 0.0
    %2533 = vadd.xlane.f32.xlu0 %v2532
    %v2534 = vpop.xlane.xlu0 %2533
    %v2535 = vmul.f32 %v2531, 0.032258064
    %v2536 = vmul.f32 %v2534, 0.032258064
    %v2537 = vrsqrt.pop %v2535
    %v2538 = vmul.f32 %v2535, %v2537
    %vm2539 = vcmp.eq.f32.partialorder %v2535, inf
    %v2540 = vsel %vm2539, %v2535, %v2538
    %vm2541 = vcmp.eq.f32.partialorder %v2535, 0.0
    %v2542 = vand.u32 %v2535, 2147483648
    %v2543 = vsel %vm2541, %v2542, %v2540
    %v2544 = vrsqrt.pop %v2536
    %v2545 = vmul.f32 %v2536, %v2544
    %vm2546 = vcmp.eq.f32.partialorder %v2536, inf
    %v2547 = vsel %vm2546, %v2536, %v2545
    %vm2548 = vcmp.eq.f32.partialorder %v2536, 0.0
    %v2549 = vand.u32 %v2536, 2147483648
    %v2550 = vsel %vm2548, %v2549, %v2547
    %v2551 = vadd.f32 %v2543, 1e-06
    %v2552 = vadd.f32 %v2550, 1e-06
    %v2553 = vrcp.pop %v2551
    %v2554 = vmul.f32 1.0, %v2553
    %v2555 = vrcp.pop %v2552
    %v2556 = vmul.f32 1.0, %v2555
    %v2557 = vsub.f32 %v2515, %v2519
    %v2558 = vsub.f32 %v2516, %v2522
    %v2559 = vmul.f32 %v2557, %v2554
    %v2560 = vmul.f32 %v2558, %v2556
    %v2561 = vlaneseq
    %v2562 = vshrl.u32 %v2561, 7
    %v2563 = vsub.s32 1, %v2562
    %v2564 = vrot.slane %v263, %v2563
    %v2565 = vmul.f32 %v2564, %v2559
    %v2566 = vmul.f32 %v2564, %v2560
    %v2567 = vlaneseq
    %v2568 = vshrl.u32 %v2567, 7
    %v2569 = vsub.s32 1, %v2568
    %v2570 = vrot.slane %v264, %v2569
    %v2571 = vadd.f32 %v2565, %v2570
    %v2572 = vadd.f32 %v2566, %v2570
    %v2573 = vld [vmem:[#allocation16] sm:$0xff]
    %v2574 = vld [vmem:[#allocation16 + $0x8] sm:$0xff]
    %v2575 = vld [vmem:[#allocation16 + $0x10] sm:$0xff]
    %v2576 = vld [vmem:[#allocation16 + $0x18] sm:$0xff]
    %v2577 = vlaneseq
    %v2578 = vshrl.u32 %v2577, 7
    %v2579 = vsub.s32 0, %v2578
    %v2580 = vrot.slane %v266, %v2579
    %v2582 = vsel %vm273, %v2571, 0
    %v2585 = vsel %vm273, %v2572, 0
    %2587 = vmatprep.subr.mxu0 0.0
    %2588 = vmatpush1.msra.mxu0 %v2573
    %2589 = vmatprep.subr.mxu0 0.0
    %2590 = vmatpush1.msra.mxu0 %v2574
    %2591 = vmatprep.subr.mxu0 0.0
    %2592 = vmatpush1.msra.mxu0 %v2575
    %2593 = vmatprep.subr.mxu0 0.0
    %2594 = vmatpush1.msra.mxu0 %v2576
    %2595 = vmatprep.subr.mxu0 0.0
    %2596 = vmatpush1.msra.mxu0 0.0
    %2597 = vmatprep.subr.mxu0 0.0
    %2598 = vmatpush1.msra.mxu0 0.0
    %2599 = vmatprep.subr.mxu0 0.0
    %2600 = vmatpush1.msra.mxu0 0.0
    %2601 = vmatprep.subr.mxu0 0.0
    %2602 = vmatpush1.msra.mxu0 0.0
    %2603 = vmatprep.subr.mxu0 0.0
    %2604 = vmatpush1.msra.mxu0 0.0
    %2605 = vmatprep.subr.mxu0 0.0
    %2606 = vmatpush1.msra.mxu0 0.0
    %2607 = vmatprep.subr.mxu0 0.0
    %2608 = vmatpush1.msra.mxu0 0.0
    %2609 = vmatprep.subr.mxu0 0.0
    %2610 = vmatpush1.msra.mxu0 0.0
    %2611 = vmatprep.subr.mxu0 0.0
    %2612 = vmatpush1.msra.mxu0 0.0
    %2613 = vmatprep.subr.mxu0 0.0
    %2614 = vmatpush1.msra.mxu0 0.0
    %2615 = vmatprep.subr.mxu0 0.0
    %2616 = vmatpush1.msra.mxu0 0.0
    %2617 = vmatprep.subr.mxu0 0.0
    %2618 = vmatpush1.msra.mxu0 0.0
    %2619 = vmatprep.subr.mxu0 0.0
    %2620 = vmatpush1.msra.mxu0 0.0
    %2621 = vmatprep.subr.mxu0 0.0
    %2622 = vmatpush1.msra.mxu0 0.0
    %2623 = vmatprep.subr.mxu0 0.0
    %2624 = vmatpush1.msra.mxu0 0.0
    %2625 = vmatprep.subr.mxu0 0.0
    %2626 = vmatpush1.msra.mxu0 0.0
    %2627 = vmatprep.subr.mxu0 0.0
    %2628 = vmatpush1.msra.mxu0 0.0
    %2629 = vmatprep.subr.mxu0 0.0
    %2630 = vmatpush1.msra.mxu0 0.0
    %2631 = vmatprep.subr.mxu0 0.0
    %2632 = vmatpush1.msra.mxu0 0.0
    %2633 = vmatprep.subr.mxu0 0.0
    %2634 = vmatpush1.msra.mxu0 0.0
    %2635 = vmatprep.subr.mxu0 0.0
    %2636 = vmatpush1.msra.mxu0 0.0
    %2637 = vmatprep.subr.mxu0 0.0
    %2638 = vmatpush1.msra.mxu0 0.0
    %2639 = vmatprep.subr.mxu0 0.0
    %2640 = vmatpush1.msra.mxu0 0.0
    %2641 = vmatprep.subr.mxu0 0.0
    %2642 = vmatpush1.msra.mxu0 0.0
    %2643 = vmatprep.subr.mxu0 0.0
    %2644 = vmatpush1.msra.mxu0 0.0
    %2645 = vmatprep.subr.mxu0 0.0
    %2646 = vmatpush1.msra.mxu0 0.0
    %2647 = vmatprep.subr.mxu0 0.0
    %2648 = vmatpush1.msra.mxu0 0.0
    %2649 = vmatprep.subr.mxu0 0.0
    %2650 = vmatpush1.msra.mxu0 0.0
    %2651 = vmatprep.mubr.f32.mxu0 0.0
    %2652 = vmatmul.mubr.f32.gmra.mrb[0].mxu0 %v2582
    %v2653 = vpop.f32.mrb[0].mxu0
    %v2654 = vadd.f32 %v2580, %v2653
    %v2655 = vpop.f32.mrb[0].mxu0
    %2656 = vmatprep.mubr.f32.mxu0 0.0
    %2657 = vmatmul.mubr.f32.gmra.mrb[0].mxu0 %v2585
    %v2658 = vpop.f32.mrb[0].mxu0
    %v2659 = vadd.f32 %v2580, %v2658
    %v2660 = vpop.f32.mrb[0].mxu0
    %2661 = vdwg.mxu0
    %v2662 = vld [vmem:[#allocation17] sm:$0xff]
    %v2663 = vld [vmem:[#allocation17 + $0x8] sm:$0xff]
    %v2664 = vld [vmem:[#allocation17 + $0x10] sm:$0xff]
    %v2665 = vld [vmem:[#allocation17 + $0x18] sm:$0xff]
    %v2666 = vlaneseq
    %v2667 = vshrl.u32 %v2666, 7
    %v2668 = vsub.s32 1, %v2667
    %v2669 = vrot.slane %v266, %v2668
    %v2671 = vsel %vm273, %v261, 0
    %v2674 = vsel %vm273, %v262, 0
    %2676 = vmatprep.subr.mxu0 0.0
    %2677 = vmatpush1.msra.mxu0 %v2662
    %2678 = vmatprep.subr.mxu0 0.0
    %2679 = vmatpush1.msra.mxu0 %v2663
    %2680 = vmatprep.subr.mxu0 0.0
    %2681 = vmatpush1.msra.mxu0 %v2664
    %2682 = vmatprep.subr.mxu0 0.0
    %2683 = vmatpush1.msra.mxu0 %v2665
    %2684 = vmatprep.subr.mxu0 0.0
    %2685 = vmatpush1.msra.mxu0 0.0
    %2686 = vmatprep.subr.mxu0 0.0
    %2687 = vmatpush1.msra.mxu0 0.0
    %2688 = vmatprep.subr.mxu0 0.0
    %2689 = vmatpush1.msra.mxu0 0.0
    %2690 = vmatprep.subr.mxu0 0.0
    %2691 = vmatpush1.msra.mxu0 0.0
    %2692 = vmatprep.subr.mxu0 0.0
    %2693 = vmatpush1.msra.mxu0 0.0
    %2694 = vmatprep.subr.mxu0 0.0
    %2695 = vmatpush1.msra.mxu0 0.0
    %2696 = vmatprep.subr.mxu0 0.0
    %2697 = vmatpush1.msra.mxu0 0.0
    %2698 = vmatprep.subr.mxu0 0.0
    %2699 = vmatpush1.msra.mxu0 0.0
    %2700 = vmatprep.subr.mxu0 0.0
    %2701 = vmatpush1.msra.mxu0 0.0
    %2702 = vmatprep.subr.mxu0 0.0
    %2703 = vmatpush1.msra.mxu0 0.0
    %2704 = vmatprep.subr.mxu0 0.0
    %2705 = vmatpush1.msra.mxu0 0.0
    %2706 = vmatprep.subr.mxu0 0.0
    %2707 = vmatpush1.msra.mxu0 0.0
    %2708 = vmatprep.subr.mxu0 0.0
    %2709 = vmatpush1.msra.mxu0 0.0
    %2710 = vmatprep.subr.mxu0 0.0
    %2711 = vmatpush1.msra.mxu0 0.0
    %2712 = vmatprep.subr.mxu0 0.0
    %2713 = vmatpush1.msra.mxu0 0.0
    %2714 = vmatprep.subr.mxu0 0.0
    %2715 = vmatpush1.msra.mxu0 0.0
    %2716 = vmatprep.subr.mxu0 0.0
    %2717 = vmatpush1.msra.mxu0 0.0
    %2718 = vmatprep.subr.mxu0 0.0
    %2719 = vmatpush1.msra.mxu0 0.0
    %2720 = vmatprep.subr.mxu0 0.0
    %2721 = vmatpush1.msra.mxu0 0.0
    %2722 = vmatprep.subr.mxu0 0.0
    %2723 = vmatpush1.msra.mxu0 0.0
    %2724 = vmatprep.subr.mxu0 0.0
    %2725 = vmatpush1.msra.mxu0 0.0
    %2726 = vmatprep.subr.mxu0 0.0
    %2727 = vmatpush1.msra.mxu0 0.0
    %2728 = vmatprep.subr.mxu0 0.0
    %2729 = vmatpush1.msra.mxu0 0.0
    %2730 = vmatprep.subr.mxu0 0.0
    %2731 = vmatpush1.msra.mxu0 0.0
    %2732 = vmatprep.subr.mxu0 0.0
    %2733 = vmatpush1.msra.mxu0 0.0
    %2734 = vmatprep.subr.mxu0 0.0
    %2735 = vmatpush1.msra.mxu0 0.0
    %2736 = vmatprep.subr.mxu0 0.0
    %2737 = vmatpush1.msra.mxu0 0.0
    %2738 = vmatprep.subr.mxu0 0.0
    %2739 = vmatpush1.msra.mxu0 0.0
    %2740 = vmatprep.mubr.f32.mxu0 0.0
    %2741 = vmatmul.mubr.f32.gmra.mrb[0].mxu0 %v2671
    %v2742 = vpop.f32.mrb[0].mxu0
    %v2743 = vadd.f32 %v2669, %v2742
    %v2744 = vpop.f32.mrb[0].mxu0
    %2745 = vmatprep.mubr.f32.mxu0 0.0
    %2746 = vmatmul.mubr.f32.gmra.mrb[0].mxu0 %v2674
    %v2747 = vpop.f32.mrb[0].mxu0
    %v2748 = vadd.f32 %v2669, %v2747
    %v2749 = vpop.f32.mrb[0].mxu0
    %2750 = vdwg.mxu0
    %v2751 = vld [vmem:[#allocation19] sm:$0xff]
    %v2752 = vld [vmem:[#allocation19 + $0x8] sm:$0xff]
    %v2753 = vld [vmem:[#allocation19 + $0x10] sm:$0xff]
    %v2754 = vld [vmem:[#allocation19 + $0x18] sm:$0xff]
    %v2755 = vlaneseq
    %v2756 = vshrl.u32 %v2755, 7
    %v2757 = vsub.s32 2, %v2756
    %v2758 = vrot.slane %v266, %v2757
    %2759 = vmatprep.subr.mxu0 0.0
    %2760 = vmatpush1.msra.mxu0 %v2751
    %2761 = vmatprep.subr.mxu0 0.0
    %2762 = vmatpush1.msra.mxu0 %v2752
    %2763 = vmatprep.subr.mxu0 0.0
    %2764 = vmatpush1.msra.mxu0 %v2753
    %2765 = vmatprep.subr.mxu0 0.0
    %2766 = vmatpush1.msra.mxu0 %v2754
    %2767 = vmatprep.subr.mxu0 0.0
    %2768 = vmatpush1.msra.mxu0 0.0
    %2769 = vmatprep.subr.mxu0 0.0
    %2770 = vmatpush1.msra.mxu0 0.0
    %2771 = vmatprep.subr.mxu0 0.0
    %2772 = vmatpush1.msra.mxu0 0.0
    %2773 = vmatprep.subr.mxu0 0.0
    %2774 = vmatpush1.msra.mxu0 0.0
    %2775 = vmatprep.subr.mxu0 0.0
    %2776 = vmatpush1.msra.mxu0 0.0
    %2777 = vmatprep.subr.mxu0 0.0
    %2778 = vmatpush1.msra.mxu0 0.0
    %2779 = vmatprep.subr.mxu0 0.0
    %2780 = vmatpush1.msra.mxu0 0.0
    %2781 = vmatprep.subr.mxu0 0.0
    %2782 = vmatpush1.msra.mxu0 0.0
    %2783 = vmatprep.subr.mxu0 0.0
    %2784 = vmatpush1.msra.mxu0 0.0
    %2785 = vmatprep.subr.mxu0 0.0
    %2786 = vmatpush1.msra.mxu0 0.0
    %2787 = vmatprep.subr.mxu0 0.0
    %2788 = vmatpush1.msra.mxu0 0.0
    %2789 = vmatprep.subr.mxu0 0.0
    %2790 = vmatpush1.msra.mxu0 0.0
    %2791 = vmatprep.subr.mxu0 0.0
    %2792 = vmatpush1.msra.mxu0 0.0
    %2793 = vmatprep.subr.mxu0 0.0
    %2794 = vmatpush1.msra.mxu0 0.0
    %2795 = vmatprep.subr.mxu0 0.0
    %2796 = vmatpush1.msra.mxu0 0.0
    %2797 = vmatprep.subr.mxu0 0.0
    %2798 = vmatpush1.msra.mxu0 0.0
    %2799 = vmatprep.subr.mxu0 0.0
    %2800 = vmatpush1.msra.mxu0 0.0
    %2801 = vmatprep.subr.mxu0 0.0
    %2802 = vmatpush1.msra.mxu0 0.0
    %2803 = vmatprep.subr.mxu0 0.0
    %2804 = vmatpush1.msra.mxu0 0.0
    %2805 = vmatprep.subr.mxu0 0.0
    %2806 = vmatpush1.msra.mxu0 0.0
    %2807 = vmatprep.subr.mxu0 0.0
    %2808 = vmatpush1.msra.mxu0 0.0
    %2809 = vmatprep.subr.mxu0 0.0
    %2810 = vmatpush1.msra.mxu0 0.0
    %2811 = vmatprep.subr.mxu0 0.0
    %2812 = vmatpush1.msra.mxu0 0.0
    %2813 = vmatprep.subr.mxu0 0.0
    %2814 = vmatpush1.msra.mxu0 0.0
    %2815 = vmatprep.subr.mxu0 0.0
    %2816 = vmatpush1.msra.mxu0 0.0
    %2817 = vmatprep.subr.mxu0 0.0
    %2818 = vmatpush1.msra.mxu0 0.0
    %2819 = vmatprep.subr.mxu0 0.0
    %2820 = vmatpush1.msra.mxu0 0.0
    %2821 = vmatprep.subr.mxu0 0.0
    %2822 = vmatpush1.msra.mxu0 0.0
    %2823 = vmatprep.mubr.f32.mxu0 0.0
    %2824 = vmatmul.mubr.f32.gmra.mrb[0].mxu0 %v2671
    %v2825 = vpop.f32.mrb[0].mxu0
    %v2826 = vadd.f32 %v2758, %v2825
    %v2827 = vpop.f32.mrb[0].mxu0
    %2828 = vmatprep.mubr.f32.mxu0 0.0
    %2829 = vmatmul.mubr.f32.gmra.mrb[0].mxu0 %v2674
    %v2830 = vpop.f32.mrb[0].mxu0
    %v2831 = vadd.f32 %v2758, %v2830
    %v2832 = vpop.f32.mrb[0].mxu0
    %2833 = vdwg.mxu0
    %v2834 = vld [vmem:[#allocation23] sm:$0x1]
    %v2836 = vsel %vm586, %v2654, 0
    %v2839 = vsel %vm586, %v2743, 0
    %2841 = vmatprep.subr.mxu0 0.0
    %2842 = vmatpush1.xpose.msra.mxu0 %v2839
    %2843 = vmatprep.subr.mxu0 0.0
    %2844 = vmatpush1.xpose.msra.mxu0 0.0
    %2845 = vmatprep.subr.mxu0 0.0
    %2846 = vmatpush1.xpose.msra.mxu0 0.0
    %2847 = vmatprep.subr.mxu0 0.0
    %2848 = vmatpush1.xpose.msra.mxu0 0.0
    %2849 = vmatprep.subr.mxu0 0.0
    %2850 = vmatpush1.xpose.msra.mxu0 0.0
    %2851 = vmatprep.subr.mxu0 0.0
    %2852 = vmatpush1.xpose.msra.mxu0 0.0
    %2853 = vmatprep.subr.mxu0 0.0
    %2854 = vmatpush1.xpose.msra.mxu0 0.0
    %2855 = vmatprep.subr.mxu0 0.0
    %2856 = vmatpush1.xpose.msra.mxu0 0.0
    %2857 = vmatprep.subr.mxu0 0.0
    %2858 = vmatpush1.xpose.msra.mxu0 0.0
    %2859 = vmatprep.subr.mxu0 0.0
    %2860 = vmatpush1.xpose.msra.mxu0 0.0
    %2861 = vmatprep.subr.mxu0 0.0
    %2862 = vmatpush1.xpose.msra.mxu0 0.0
    %2863 = vmatprep.subr.mxu0 0.0
    %2864 = vmatpush1.xpose.msra.mxu0 0.0
    %2865 = vmatprep.subr.mxu0 0.0
    %2866 = vmatpush1.xpose.msra.mxu0 0.0
    %2867 = vmatprep.subr.mxu0 0.0
    %2868 = vmatpush1.xpose.msra.mxu0 0.0
    %2869 = vmatprep.subr.mxu0 0.0
    %2870 = vmatpush1.xpose.msra.mxu0 0.0
    %2871 = vmatprep.subr.mxu0 0.0
    %2872 = vmatpush1.xpose.msra.mxu0 0.0
    %2873 = vmatprep.subr.mxu0 0.0
    %2874 = vmatpush1.xpose.msra.mxu0 0.0
    %2875 = vmatprep.subr.mxu0 0.0
    %2876 = vmatpush1.xpose.msra.mxu0 0.0
    %2877 = vmatprep.subr.mxu0 0.0
    %2878 = vmatpush1.xpose.msra.mxu0 0.0
    %2879 = vmatprep.subr.mxu0 0.0
    %2880 = vmatpush1.xpose.msra.mxu0 0.0
    %2881 = vmatprep.subr.mxu0 0.0
    %2882 = vmatpush1.xpose.msra.mxu0 0.0
    %2883 = vmatprep.subr.mxu0 0.0
    %2884 = vmatpush1.xpose.msra.mxu0 0.0
    %2885 = vmatprep.subr.mxu0 0.0
    %2886 = vmatpush1.xpose.msra.mxu0 0.0
    %2887 = vmatprep.subr.mxu0 0.0
    %2888 = vmatpush1.xpose.msra.mxu0 0.0
    %2889 = vmatprep.subr.mxu0 0.0
    %2890 = vmatpush1.xpose.msra.mxu0 0.0
    %2891 = vmatprep.subr.mxu0 0.0
    %2892 = vmatpush1.xpose.msra.mxu0 0.0
    %2893 = vmatprep.subr.mxu0 0.0
    %2894 = vmatpush1.xpose.msra.mxu0 0.0
    %2895 = vmatprep.subr.mxu0 0.0
    %2896 = vmatpush1.xpose.msra.mxu0 0.0
    %2897 = vmatprep.subr.mxu0 0.0
    %2898 = vmatpush1.xpose.msra.mxu0 0.0
    %2899 = vmatprep.subr.mxu0 0.0
    %2900 = vmatpush1.xpose.msra.mxu0 0.0
    %2901 = vmatprep.subr.mxu0 0.0
    %2902 = vmatpush1.xpose.msra.mxu0 0.0
    %2903 = vmatprep.subr.mxu0 0.0
    %2904 = vmatpush1.xpose.msra.mxu0 0.0
    %2905 = vmatprep.mubr.f32.mxu0 0.0
    %2906 = vmatmul.mubr.f32.gmra.mrb[0].mxu0 %v2836
    %v2907 = vpop.f32.mrb[0].mxu0
    %v2908 = vadd.f32 0.0, %v2907
    %v2909 = vpop.f32.mrb[0].mxu0
    %2910 = vdwg.mxu0
    %v2911 = vmul.f32 %v2908, 0.35355338
    %v2912 = vlaneseq
    %v2913 = vshrl.u32 %v2912, 7
    %v2914 = vsub.s32 0, %v2913
    %v2915 = vrot.slane %v272, %v2914
    %v2916 = vadd.f32 %v2911, %v2915
    %v2917 = vsel %vm586, %v2916, -inf
    %2918 = vmax.xlane.f32.xlu0 %v2917
    %v2919 = vpop.xlane.xlu0 %2918
    %v2920 = vsub.f32 %v2916, %v2919
    %v2921 = vmul.f32 %v2920, 1.442695
    %v2922 = vpow.pop %v2921
    %v2923 = vsel %vm586, %v2922, 0.0
    %2924 = vadd.xlane.f32.xlu0 %v2923
    %v2925 = vpop.xlane.xlu0 %2924
    %v2926 = vrcp.pop %v2925
    %v2927 = vmul.f32 %v2922, %v2926
    %v2929 = vsel %vm586, %v2927, 0
    %2931 = vmatprep.subr.mxu0 0.0
    %2932 = vmatpush1.msra.mxu0 %v2826
    %2933 = vmatprep.subr.mxu0 0.0
    %2934 = vmatpush1.msra.mxu0 0.0
    %2935 = vmatprep.subr.mxu0 0.0
    %2936 = vmatpush1.msra.mxu0 0.0
    %2937 = vmatprep.subr.mxu0 0.0
    %2938 = vmatpush1.msra.mxu0 0.0
    %2939 = vmatprep.subr.mxu0 0.0
    %2940 = vmatpush1.msra.mxu0 0.0
    %2941 = vmatprep.subr.mxu0 0.0
    %2942 = vmatpush1.msra.mxu0 0.0
    %2943 = vmatprep.subr.mxu0 0.0
    %2944 = vmatpush1.msra.mxu0 0.0
    %2945 = vmatprep.subr.mxu0 0.0
    %2946 = vmatpush1.msra.mxu0 0.0
    %2947 = vmatprep.subr.mxu0 0.0
    %2948 = vmatpush1.msra.mxu0 0.0
    %2949 = vmatprep.subr.mxu0 0.0
    %2950 = vmatpush1.msra.mxu0 0.0
    %2951 = vmatprep.subr.mxu0 0.0
    %2952 = vmatpush1.msra.mxu0 0.0
    %2953 = vmatprep.subr.mxu0 0.0
    %2954 = vmatpush1.msra.mxu0 0.0
    %2955 = vmatprep.subr.mxu0 0.0
    %2956 = vmatpush1.msra.mxu0 0.0
    %2957 = vmatprep.subr.mxu0 0.0
    %2958 = vmatpush1.msra.mxu0 0.0
    %2959 = vmatprep.subr.mxu0 0.0
    %2960 = vmatpush1.msra.mxu0 0.0
    %2961 = vmatprep.subr.mxu0 0.0
    %2962 = vmatpush1.msra.mxu0 0.0
    %2963 = vmatprep.subr.mxu0 0.0
    %2964 = vmatpush1.msra.mxu0 0.0
    %2965 = vmatprep.subr.mxu0 0.0
    %2966 = vmatpush1.msra.mxu0 0.0
    %2967 = vmatprep.subr.mxu0 0.0
    %2968 = vmatpush1.msra.mxu0 0.0
    %2969 = vmatprep.subr.mxu0 0.0
    %2970 = vmatpush1.msra.mxu0 0.0
    %2971 = vmatprep.subr.mxu0 0.0
    %2972 = vmatpush1.msra.mxu0 0.0
    %2973 = vmatprep.subr.mxu0 0.0
    %2974 = vmatpush1.msra.mxu0 0.0
    %2975 = vmatprep.subr.mxu0 0.0
    %2976 = vmatpush1.msra.mxu0 0.0
    %2977 = vmatprep.subr.mxu0 0.0
    %2978 = vmatpush1.msra.mxu0 0.0
    %2979 = vmatprep.subr.mxu0 0.0
    %2980 = vmatpush1.msra.mxu0 0.0
    %2981 = vmatprep.subr.mxu0 0.0
    %2982 = vmatpush1.msra.mxu0 0.0
    %2983 = vmatprep.subr.mxu0 0.0
    %2984 = vmatpush1.msra.mxu0 0.0
    %2985 = vmatprep.subr.mxu0 0.0
    %2986 = vmatpush1.msra.mxu0 0.0
    %2987 = vmatprep.subr.mxu0 0.0
    %2988 = vmatpush1.msra.mxu0 0.0
    %2989 = vmatprep.subr.mxu0 0.0
    %2990 = vmatpush1.msra.mxu0 0.0
    %2991 = vmatprep.subr.mxu0 0.0
    %2992 = vmatpush1.msra.mxu0 0.0
    %2993 = vmatprep.subr.mxu0 0.0
    %2994 = vmatpush1.msra.mxu0 0.0
    %2995 = vmatprep.mubr.f32.mxu0 0.0
    %2996 = vmatmul.mubr.f32.gmra.mrb[0].mxu0 %v2929
    %v2997 = vpop.f32.mrb[0].mxu0
    %v2998 = vadd.f32 0.0, %v2997
    %v2999 = vpop.f32.mrb[0].mxu0
    %3000 = vdwg.mxu0
    %v3001 = vld [vmem:[#allocation22] sm:$0xff]
    %3002 = vrot.lane.b32.xlu0 %v2654, 120
    %v3003 = vpop.permute.xlu0 %3002
    %3004 = vrot.lane.b32.xlu0 %v2743, 120
    %v3005 = vpop.permute.xlu0 %3004
    %v3006 = vsel %vm586, %v3003, 0
    %v3008 = vsel %vm586, %v3005, 0
    %3010 = vmatprep.subr.mxu0 0.0
    %3011 = vmatpush1.xpose.msra.mxu0 %v3008
    %3012 = vmatprep.subr.mxu0 0.0
    %3013 = vmatpush1.xpose.msra.mxu0 0.0
    %3014 = vmatprep.subr.mxu0 0.0
    %3015 = vmatpush1.xpose.msra.mxu0 0.0
    %3016 = vmatprep.subr.mxu0 0.0
    %3017 = vmatpush1.xpose.msra.mxu0 0.0
    %3018 = vmatprep.subr.mxu0 0.0
    %3019 = vmatpush1.xpose.msra.mxu0 0.0
    %3020 = vmatprep.subr.mxu0 0.0
    %3021 = vmatpush1.xpose.msra.mxu0 0.0
    %3022 = vmatprep.subr.mxu0 0.0
    %3023 = vmatpush1.xpose.msra.mxu0 0.0
    %3024 = vmatprep.subr.mxu0 0.0
    %3025 = vmatpush1.xpose.msra.mxu0 0.0
    %3026 = vmatprep.subr.mxu0 0.0
    %3027 = vmatpush1.xpose.msra.mxu0 0.0
    %3028 = vmatprep.subr.mxu0 0.0
    %3029 = vmatpush1.xpose.msra.mxu0 0.0
    %3030 = vmatprep.subr.mxu0 0.0
    %3031 = vmatpush1.xpose.msra.mxu0 0.0
    %3032 = vmatprep.subr.mxu0 0.0
    %3033 = vmatpush1.xpose.msra.mxu0 0.0
    %3034 = vmatprep.subr.mxu0 0.0
    %3035 = vmatpush1.xpose.msra.mxu0 0.0
    %3036 = vmatprep.subr.mxu0 0.0
    %3037 = vmatpush1.xpose.msra.mxu0 0.0
    %3038 = vmatprep.subr.mxu0 0.0
    %3039 = vmatpush1.xpose.msra.mxu0 0.0
    %3040 = vmatprep.subr.mxu0 0.0
    %3041 = vmatpush1.xpose.msra.mxu0 0.0
    %3042 = vmatprep.subr.mxu0 0.0
    %3043 = vmatpush1.xpose.msra.mxu0 0.0
    %3044 = vmatprep.subr.mxu0 0.0
    %3045 = vmatpush1.xpose.msra.mxu0 0.0
    %3046 = vmatprep.subr.mxu0 0.0
    %3047 = vmatpush1.xpose.msra.mxu0 0.0
    %3048 = vmatprep.subr.mxu0 0.0
    %3049 = vmatpush1.xpose.msra.mxu0 0.0
    %3050 = vmatprep.subr.mxu0 0.0
    %3051 = vmatpush1.xpose.msra.mxu0 0.0
    %3052 = vmatprep.subr.mxu0 0.0
    %3053 = vmatpush1.xpose.msra.mxu0 0.0
    %3054 = vmatprep.subr.mxu0 0.0
    %3055 = vmatpush1.xpose.msra.mxu0 0.0
    %3056 = vmatprep.subr.mxu0 0.0
    %3057 = vmatpush1.xpose.msra.mxu0 0.0
    %3058 = vmatprep.subr.mxu0 0.0
    %3059 = vmatpush1.xpose.msra.mxu0 0.0
    %3060 = vmatprep.subr.mxu0 0.0
    %3061 = vmatpush1.xpose.msra.mxu0 0.0
    %3062 = vmatprep.subr.mxu0 0.0
    %3063 = vmatpush1.xpose.msra.mxu0 0.0
    %3064 = vmatprep.subr.mxu0 0.0
    %3065 = vmatpush1.xpose.msra.mxu0 0.0
    %3066 = vmatprep.subr.mxu0 0.0
    %3067 = vmatpush1.xpose.msra.mxu0 0.0
    %3068 = vmatprep.subr.mxu0 0.0
    %3069 = vmatpush1.xpose.msra.mxu0 0.0
    %3070 = vmatprep.subr.mxu0 0.0
    %3071 = vmatpush1.xpose.msra.mxu0 0.0
    %3072 = vmatprep.subr.mxu0 0.0
    %3073 = vmatpush1.xpose.msra.mxu0 0.0
    %3074 = vmatprep.mubr.f32.mxu0 0.0
    %3075 = vmatmul.mubr.f32.gmra.mrb[0].mxu0 %v3006
    %v3076 = vpop.f32.mrb[0].mxu0
    %v3077 = vadd.f32 0.0, %v3076
    %v3078 = vpop.f32.mrb[0].mxu0
    %3079 = vdwg.mxu0
    %v3080 = vmul.f32 %v3077, 0.35355338
    %v3081 = vadd.f32 %v3080, %v2915
    %v3082 = vsel %vm586, %v3081, -inf
    %3083 = vmax.xlane.f32.xlu0 %v3082
    %v3084 = vpop.xlane.xlu0 %3083
    %v3085 = vsub.f32 %v3081, %v3084
    %v3086 = vmul.f32 %v3085, 1.442695
    %v3087 = vpow.pop %v3086
    %v3088 = vsel %vm586, %v3087, 0.0
    %3089 = vadd.xlane.f32.xlu0 %v3088
    %v3090 = vpop.xlane.xlu0 %3089
    %v3091 = vrcp.pop %v3090
    %v3092 = vmul.f32 %v3087, %v3091
    %3094 = vrot.lane.b32.xlu0 %v2826, 120
    %v3095 = vpop.permute.xlu0 %3094
    %v3098 = vsel %vm586, %v3092, 0
    %3100 = vmatprep.subr.mxu0 0.0
    %3101 = vmatpush1.msra.mxu0 %v3095
    %3102 = vmatprep.subr.mxu0 0.0
    %3103 = vmatpush1.msra.mxu0 0.0
    %3104 = vmatprep.subr.mxu0 0.0
    %3105 = vmatpush1.msra.mxu0 0.0
    %3106 = vmatprep.subr.mxu0 0.0
    %3107 = vmatpush1.msra.mxu0 0.0
    %3108 = vmatprep.subr.mxu0 0.0
    %3109 = vmatpush1.msra.mxu0 0.0
    %3110 = vmatprep.subr.mxu0 0.0
    %3111 = vmatpush1.msra.mxu0 0.0
    %3112 = vmatprep.subr.mxu0 0.0
    %3113 = vmatpush1.msra.mxu0 0.0
    %3114 = vmatprep.subr.mxu0 0.0
    %3115 = vmatpush1.msra.mxu0 0.0
    %3116 = vmatprep.subr.mxu0 0.0
    %3117 = vmatpush1.msra.mxu0 0.0
    %3118 = vmatprep.subr.mxu0 0.0
    %3119 = vmatpush1.msra.mxu0 0.0
    %3120 = vmatprep.subr.mxu0 0.0
    %3121 = vmatpush1.msra.mxu0 0.0
    %3122 = vmatprep.subr.mxu0 0.0
    %3123 = vmatpush1.msra.mxu0 0.0
    %3124 = vmatprep.subr.mxu0 0.0
    %3125 = vmatpush1.msra.mxu0 0.0
    %3126 = vmatprep.subr.mxu0 0.0
    %3127 = vmatpush1.msra.mxu0 0.0
    %3128 = vmatprep.subr.mxu0 0.0
    %3129 = vmatpush1.msra.mxu0 0.0
    %3130 = vmatprep.subr.mxu0 0.0
    %3131 = vmatpush1.msra.mxu0 0.0
    %3132 = vmatprep.subr.mxu0 0.0
    %3133 = vmatpush1.msra.mxu0 0.0
    %3134 = vmatprep.subr.mxu0 0.0
    %3135 = vmatpush1.msra.mxu0 0.0
    %3136 = vmatprep.subr.mxu0 0.0
    %3137 = vmatpush1.msra.mxu0 0.0
    %3138 = vmatprep.subr.mxu0 0.0
    %3139 = vmatpush1.msra.mxu0 0.0
    %3140 = vmatprep.subr.mxu0 0.0
    %3141 = vmatpush1.msra.mxu0 0.0
    %3142 = vmatprep.subr.mxu0 0.0
    %3143 = vmatpush1.msra.mxu0 0.0
    %3144 = vmatprep.subr.mxu0 0.0
    %3145 = vmatpush1.msra.mxu0 0.0
    %3146 = vmatprep.subr.mxu0 0.0
    %3147 = vmatpush1.msra.mxu0 0.0
    %3148 = vmatprep.subr.mxu0 0.0
    %3149 = vmatpush1.msra.mxu0 0.0
    %3150 = vmatprep.subr.mxu0 0.0
    %3151 = vmatpush1.msra.mxu0 0.0
    %3152 = vmatprep.subr.mxu0 0.0
    %3153 = vmatpush1.msra.mxu0 0.0
    %3154 = vmatprep.subr.mxu0 0.0
    %3155 = vmatpush1.msra.mxu0 0.0
    %3156 = vmatprep.subr.mxu0 0.0
    %3157 = vmatpush1.msra.mxu0 0.0
    %3158 = vmatprep.subr.mxu0 0.0
    %3159 = vmatpush1.msra.mxu0 0.0
    %3160 = vmatprep.subr.mxu0 0.0
    %3161 = vmatpush1.msra.mxu0 0.0
    %3162 = vmatprep.subr.mxu0 0.0
    %3163 = vmatpush1.msra.mxu0 0.0
    %3164 = vmatprep.mubr.f32.mxu0 0.0
    %3165 = vmatmul.mubr.f32.gmra.mrb[0].mxu0 %v3098
    %v3166 = vpop.f32.mrb[0].mxu0
    %v3167 = vadd.f32 0.0, %v3166
    %v3168 = vpop.f32.mrb[0].mxu0
    %3169 = vdwg.mxu0
    %v3170 = vld [vmem:[#allocation22 + $0x8] sm:$0xff]
    %v3172 = vsel %vm586, %v3167, 0
    %3174 = vmatprep.subr.mxu0 0.0
    %3175 = vmatpush1.msra.mxu0 %v3170
    %3176 = vmatprep.subr.mxu0 0.0
    %3177 = vmatpush1.msra.mxu0 0.0
    %3178 = vmatprep.subr.mxu0 0.0
    %3179 = vmatpush1.msra.mxu0 0.0
    %3180 = vmatprep.subr.mxu0 0.0
    %3181 = vmatpush1.msra.mxu0 0.0
    %3182 = vmatprep.subr.mxu0 0.0
    %3183 = vmatpush1.msra.mxu0 0.0
    %3184 = vmatprep.subr.mxu0 0.0
    %3185 = vmatpush1.msra.mxu0 0.0
    %3186 = vmatprep.subr.mxu0 0.0
    %3187 = vmatpush1.msra.mxu0 0.0
    %3188 = vmatprep.subr.mxu0 0.0
    %3189 = vmatpush1.msra.mxu0 0.0
    %3190 = vmatprep.subr.mxu0 0.0
    %3191 = vmatpush1.msra.mxu0 0.0
    %3192 = vmatprep.subr.mxu0 0.0
    %3193 = vmatpush1.msra.mxu0 0.0
    %3194 = vmatprep.subr.mxu0 0.0
    %3195 = vmatpush1.msra.mxu0 0.0
    %3196 = vmatprep.subr.mxu0 0.0
    %3197 = vmatpush1.msra.mxu0 0.0
    %3198 = vmatprep.subr.mxu0 0.0
    %3199 = vmatpush1.msra.mxu0 0.0
    %3200 = vmatprep.subr.mxu0 0.0
    %3201 = vmatpush1.msra.mxu0 0.0
    %3202 = vmatprep.subr.mxu0 0.0
    %3203 = vmatpush1.msra.mxu0 0.0
    %3204 = vmatprep.subr.mxu0 0.0
    %3205 = vmatpush1.msra.mxu0 0.0
    %3206 = vmatprep.subr.mxu0 0.0
    %3207 = vmatpush1.msra.mxu0 0.0
    %3208 = vmatprep.subr.mxu0 0.0
    %3209 = vmatpush1.msra.mxu0 0.0
    %3210 = vmatprep.subr.mxu0 0.0
    %3211 = vmatpush1.msra.mxu0 0.0
    %3212 = vmatprep.subr.mxu0 0.0
    %3213 = vmatpush1.msra.mxu0 0.0
    %3214 = vmatprep.subr.mxu0 0.0
    %3215 = vmatpush1.msra.mxu0 0.0
    %3216 = vmatprep.subr.mxu0 0.0
    %3217 = vmatpush1.msra.mxu0 0.0
    %3218 = vmatprep.subr.mxu0 0.0
    %3219 = vmatpush1.msra.mxu0 0.0
    %3220 = vmatprep.subr.mxu0 0.0
    %3221 = vmatpush1.msra.mxu0 0.0
    %3222 = vmatprep.subr.mxu0 0.0
    %3223 = vmatpush1.msra.mxu0 0.0
    %3224 = vmatprep.subr.mxu0 0.0
    %3225 = vmatpush1.msra.mxu0 0.0
    %3226 = vmatprep.subr.mxu0 0.0
    %3227 = vmatpush1.msra.mxu0 0.0
    %3228 = vmatprep.subr.mxu0 0.0
    %3229 = vmatpush1.msra.mxu0 0.0
    %3230 = vmatprep.subr.mxu0 0.0
    %3231 = vmatpush1.msra.mxu0 0.0
    %3232 = vmatprep.subr.mxu0 0.0
    %3233 = vmatpush1.msra.mxu0 0.0
    %3234 = vmatprep.subr.mxu0 0.0
    %3235 = vmatpush1.msra.mxu0 0.0
    %3236 = vmatprep.subr.mxu0 0.0
    %3237 = vmatpush1.msra.mxu0 0.0
    %3238 = vmatprep.mubr.f32.mxu0 0.0
    %3239 = vmatmul.mubr.f32.gmra.mrb[0].mxu0 %v3172
    %v3240 = vpop.f32.mrb[0].mxu0
    %v3241 = vadd.f32 0.0, %v3240
    %v3242 = vpop.f32.mrb[0].mxu0
    %3243 = vdwg.mxu0
    %v3245 = vsel %vm586, %v2998, 0
    %3247 = vmatprep.subr.mxu0 0.0
    %3248 = vmatpush1.msra.mxu0 %v3001
    %3249 = vmatprep.subr.mxu0 0.0
    %3250 = vmatpush1.msra.mxu0 0.0
    %3251 = vmatprep.subr.mxu0 0.0
    %3252 = vmatpush1.msra.mxu0 0.0
    %3253 = vmatprep.subr.mxu0 0.0
    %3254 = vmatpush1.msra.mxu0 0.0
    %3255 = vmatprep.subr.mxu0 0.0
    %3256 = vmatpush1.msra.mxu0 0.0
    %3257 = vmatprep.subr.mxu0 0.0
    %3258 = vmatpush1.msra.mxu0 0.0
    %3259 = vmatprep.subr.mxu0 0.0
    %3260 = vmatpush1.msra.mxu0 0.0
    %3261 = vmatprep.subr.mxu0 0.0
    %3262 = vmatpush1.msra.mxu0 0.0
    %3263 = vmatprep.subr.mxu0 0.0
    %3264 = vmatpush1.msra.mxu0 0.0
    %3265 = vmatprep.subr.mxu0 0.0
    %3266 = vmatpush1.msra.mxu0 0.0
    %3267 = vmatprep.subr.mxu0 0.0
    %3268 = vmatpush1.msra.mxu0 0.0
    %3269 = vmatprep.subr.mxu0 0.0
    %3270 = vmatpush1.msra.mxu0 0.0
    %3271 = vmatprep.subr.mxu0 0.0
    %3272 = vmatpush1.msra.mxu0 0.0
    %3273 = vmatprep.subr.mxu0 0.0
    %3274 = vmatpush1.msra.mxu0 0.0
    %3275 = vmatprep.subr.mxu0 0.0
    %3276 = vmatpush1.msra.mxu0 0.0
    %3277 = vmatprep.subr.mxu0 0.0
    %3278 = vmatpush1.msra.mxu0 0.0
    %3279 = vmatprep.subr.mxu0 0.0
    %3280 = vmatpush1.msra.mxu0 0.0
    %3281 = vmatprep.subr.mxu0 0.0
    %3282 = vmatpush1.msra.mxu0 0.0
    %3283 = vmatprep.subr.mxu0 0.0
    %3284 = vmatpush1.msra.mxu0 0.0
    %3285 = vmatprep.subr.mxu0 0.0
    %3286 = vmatpush1.msra.mxu0 0.0
    %3287 = vmatprep.subr.mxu0 0.0
    %3288 = vmatpush1.msra.mxu0 0.0
    %3289 = vmatprep.subr.mxu0 0.0
    %3290 = vmatpush1.msra.mxu0 0.0
    %3291 = vmatprep.subr.mxu0 0.0
    %3292 = vmatpush1.msra.mxu0 0.0
    %3293 = vmatprep.subr.mxu0 0.0
    %3294 = vmatpush1.msra.mxu0 0.0
    %3295 = vmatprep.subr.mxu0 0.0
    %3296 = vmatpush1.msra.mxu0 0.0
    %3297 = vmatprep.subr.mxu0 0.0
    %3298 = vmatpush1.msra.mxu0 0.0
    %3299 = vmatprep.subr.mxu0 0.0
    %3300 = vmatpush1.msra.mxu0 0.0
    %3301 = vmatprep.subr.mxu0 0.0
    %3302 = vmatpush1.msra.mxu0 0.0
    %3303 = vmatprep.subr.mxu0 0.0
    %3304 = vmatpush1.msra.mxu0 0.0
    %3305 = vmatprep.subr.mxu0 0.0
    %3306 = vmatpush1.msra.mxu0 0.0
    %3307 = vmatprep.subr.mxu0 0.0
    %3308 = vmatpush1.msra.mxu0 0.0
    %3309 = vmatprep.subr.mxu0 0.0
    %3310 = vmatpush1.msra.mxu0 0.0
    %3311 = vmatprep.mubr.f32.mxu0 0.0
    %3312 = vmatmul.mubr.f32.gmra.mrb[0].mxu0 %v3245
    %v3313 = vpop.f32.mrb[0].mxu0
    %v3314 = vadd.f32 %v3241, %v3313
    %v3315 = vpop.f32.mrb[0].mxu0
    %3316 = vdwg.mxu0
    %3317 = vrot.lane.b32.xlu0 %v2654, 112
    %v3318 = vpop.permute.xlu0 %3317
    %3319 = vrot.lane.b32.xlu0 %v2743, 112
    %v3320 = vpop.permute.xlu0 %3319
    %v3321 = vsel %vm586, %v3318, 0
    %v3323 = vsel %vm586, %v3320, 0
    %3325 = vmatprep.subr.mxu0 0.0
    %3326 = vmatpush1.xpose.msra.mxu0 %v3323
    %3327 = vmatprep.subr.mxu0 0.0
    %3328 = vmatpush1.xpose.msra.mxu0 0.0
    %3329 = vmatprep.subr.mxu0 0.0
    %3330 = vmatpush1.xpose.msra.mxu0 0.0
    %3331 = vmatprep.subr.mxu0 0.0
    %3332 = vmatpush1.xpose.msra.mxu0 0.0
    %3333 = vmatprep.subr.mxu0 0.0
    %3334 = vmatpush1.xpose.msra.mxu0 0.0
    %3335 = vmatprep.subr.mxu0 0.0
    %3336 = vmatpush1.xpose.msra.mxu0 0.0
    %3337 = vmatprep.subr.mxu0 0.0
    %3338 = vmatpush1.xpose.msra.mxu0 0.0
    %3339 = vmatprep.subr.mxu0 0.0
    %3340 = vmatpush1.xpose.msra.mxu0 0.0
    %3341 = vmatprep.subr.mxu0 0.0
    %3342 = vmatpush1.xpose.msra.mxu0 0.0
    %3343 = vmatprep.subr.mxu0 0.0
    %3344 = vmatpush1.xpose.msra.mxu0 0.0
    %3345 = vmatprep.subr.mxu0 0.0
    %3346 = vmatpush1.xpose.msra.mxu0 0.0
    %3347 = vmatprep.subr.mxu0 0.0
    %3348 = vmatpush1.xpose.msra.mxu0 0.0
    %3349 = vmatprep.subr.mxu0 0.0
    %3350 = vmatpush1.xpose.msra.mxu0 0.0
    %3351 = vmatprep.subr.mxu0 0.0
    %3352 = vmatpush1.xpose.msra.mxu0 0.0
    %3353 = vmatprep.subr.mxu0 0.0
    %3354 = vmatpush1.xpose.msra.mxu0 0.0
    %3355 = vmatprep.subr.mxu0 0.0
    %3356 = vmatpush1.xpose.msra.mxu0 0.0
    %3357 = vmatprep.subr.mxu0 0.0
    %3358 = vmatpush1.xpose.msra.mxu0 0.0
    %3359 = vmatprep.subr.mxu0 0.0
    %3360 = vmatpush1.xpose.msra.mxu0 0.0
    %3361 = vmatprep.subr.mxu0 0.0
    %3362 = vmatpush1.xpose.msra.mxu0 0.0
    %3363 = vmatprep.subr.mxu0 0.0
    %3364 = vmatpush1.xpose.msra.mxu0 0.0
    %3365 = vmatprep.subr.mxu0 0.0
    %3366 = vmatpush1.xpose.msra.mxu0 0.0
    %3367 = vmatprep.subr.mxu0 0.0
    %3368 = vmatpush1.xpose.msra.mxu0 0.0
    %3369 = vmatprep.subr.mxu0 0.0
    %3370 = vmatpush1.xpose.msra.mxu0 0.0
    %3371 = vmatprep.subr.mxu0 0.0
    %3372 = vmatpush1.xpose.msra.mxu0 0.0
    %3373 = vmatprep.subr.mxu0 0.0
    %3374 = vmatpush1.xpose.msra.mxu0 0.0
    %3375 = vmatprep.subr.mxu0 0.0
    %3376 = vmatpush1.xpose.msra.mxu0 0.0
    %3377 = vmatprep.subr.mxu0 0.0
    %3378 = vmatpush1.xpose.msra.mxu0 0.0
    %3379 = vmatprep.subr.mxu0 0.0
    %3380 = vmatpush1.xpose.msra.mxu0 0.0
    %3381 = vmatprep.subr.mxu0 0.0
    %3382 = vmatpush1.xpose.msra.mxu0 0.0
    %3383 = vmatprep.subr.mxu0 0.0
    %3384 = vmatpush1.xpose.msra.mxu0 0.0
    %3385 = vmatprep.subr.mxu0 0.0
    %3386 = vmatpush1.xpose.msra.mxu0 0.0
    %3387 = vmatprep.subr.mxu0 0.0
    %3388 = vmatpush1.xpose.msra.mxu0 0.0
    %3389 = vmatprep.mubr.f32.mxu0 0.0
    %3390 = vmatmul.mubr.f32.gmra.mrb[0].mxu0 %v3321
    %v3391 = vpop.f32.mrb[0].mxu0
    %v3392 = vadd.f32 0.0, %v3391
    %v3393 = vpop.f32.mrb[0].mxu0
    %3394 = vdwg.mxu0
    %v3395 = vmul.f32 %v3392, 0.35355338
    %v3396 = vadd.f32 %v3395, %v2915
    %v3397 = vsel %vm586, %v3396, -inf
    %3398 = vmax.xlane.f32.xlu0 %v3397
    %v3399 = vpop.xlane.xlu0 %3398
    %v3400 = vsub.f32 %v3396, %v3399
    %v3401 = vmul.f32 %v3400, 1.442695
    %v3402 = vpow.pop %v3401
    %v3403 = vsel %vm586, %v3402, 0.0
    %3404 = vadd.xlane.f32.xlu0 %v3403
    %v3405 = vpop.xlane.xlu0 %3404
    %v3406 = vrcp.pop %v3405
    %v3407 = vmul.f32 %v3402, %v3406
    %3408 = vrot.lane.b32.xlu0 %v2826, 112
    %v3409 = vpop.permute.xlu0 %3408
    %v3412 = vsel %vm586, %v3407, 0
    %3414 = vmatprep.subr.mxu0 0.0
    %3415 = vmatpush1.msra.mxu0 %v3409
    %3416 = vmatprep.subr.mxu0 0.0
    %3417 = vmatpush1.msra.mxu0 0.0
    %3418 = vmatprep.subr.mxu0 0.0
    %3419 = vmatpush1.msra.mxu0 0.0
    %3420 = vmatprep.subr.mxu0 0.0
    %3421 = vmatpush1.msra.mxu0 0.0
    %3422 = vmatprep.subr.mxu0 0.0
    %3423 = vmatpush1.msra.mxu0 0.0
    %3424 = vmatprep.subr.mxu0 0.0
    %3425 = vmatpush1.msra.mxu0 0.0
    %3426 = vmatprep.subr.mxu0 0.0
    %3427 = vmatpush1.msra.mxu0 0.0
    %3428 = vmatprep.subr.mxu0 0.0
    %3429 = vmatpush1.msra.mxu0 0.0
    %3430 = vmatprep.subr.mxu0 0.0
    %3431 = vmatpush1.msra.mxu0 0.0
    %3432 = vmatprep.subr.mxu0 0.0
    %3433 = vmatpush1.msra.mxu0 0.0
    %3434 = vmatprep.subr.mxu0 0.0
    %3435 = vmatpush1.msra.mxu0 0.0
    %3436 = vmatprep.subr.mxu0 0.0
    %3437 = vmatpush1.msra.mxu0 0.0
    %3438 = vmatprep.subr.mxu0 0.0
    %3439 = vmatpush1.msra.mxu0 0.0
    %3440 = vmatprep.subr.mxu0 0.0
    %3441 = vmatpush1.msra.mxu0 0.0
    %3442 = vmatprep.subr.mxu0 0.0
    %3443 = vmatpush1.msra.mxu0 0.0
    %3444 = vmatprep.subr.mxu0 0.0
    %3445 = vmatpush1.msra.mxu0 0.0
    %3446 = vmatprep.subr.mxu0 0.0
    %3447 = vmatpush1.msra.mxu0 0.0
    %3448 = vmatprep.subr.mxu0 0.0
    %3449 = vmatpush1.msra.mxu0 0.0
    %3450 = vmatprep.subr.mxu0 0.0
    %3451 = vmatpush1.msra.mxu0 0.0
    %3452 = vmatprep.subr.mxu0 0.0
    %3453 = vmatpush1.msra.mxu0 0.0
    %3454 = vmatprep.subr.mxu0 0.0
    %3455 = vmatpush1.msra.mxu0 0.0
    %3456 = vmatprep.subr.mxu0 0.0
    %3457 = vmatpush1.msra.mxu0 0.0
    %3458 = vmatprep.subr.mxu0 0.0
    %3459 = vmatpush1.msra.mxu0 0.0
    %3460 = vmatprep.subr.mxu0 0.0
    %3461 = vmatpush1.msra.mxu0 0.0
    %3462 = vmatprep.subr.mxu0 0.0
    %3463 = vmatpush1.msra.mxu0 0.0
    %3464 = vmatprep.subr.mxu0 0.0
    %3465 = vmatpush1.msra.mxu0 0.0
    %3466 = vmatprep.subr.mxu0 0.0
    %3467 = vmatpush1.msra.mxu0 0.0
    %3468 = vmatprep.subr.mxu0 0.0
    %3469 = vmatpush1.msra.mxu0 0.0
    %3470 = vmatprep.subr.mxu0 0.0
    %3471 = vmatpush1.msra.mxu0 0.0
    %3472 = vmatprep.subr.mxu0 0.0
    %3473 = vmatpush1.msra.mxu0 0.0
    %3474 = vmatprep.subr.mxu0 0.0
    %3475 = vmatpush1.msra.mxu0 0.0
    %3476 = vmatprep.subr.mxu0 0.0
    %3477 = vmatpush1.msra.mxu0 0.0
    %3478 = vmatprep.mubr.f32.mxu0 0.0
    %3479 = vmatmul.mubr.f32.gmra.mrb[0].mxu0 %v3412
    %v3480 = vpop.f32.mrb[0].mxu0
    %v3481 = vadd.f32 0.0, %v3480
    %v3482 = vpop.f32.mrb[0].mxu0
    %3483 = vdwg.mxu0
    %v3484 = vld [vmem:[#allocation22 + $0x10] sm:$0xff]
    %v3486 = vsel %vm586, %v3481, 0
    %3488 = vmatprep.subr.mxu0 0.0
    %3489 = vmatpush1.msra.mxu0 %v3484
    %3490 = vmatprep.subr.mxu0 0.0
    %3491 = vmatpush1.msra.mxu0 0.0
    %3492 = vmatprep.subr.mxu0 0.0
    %3493 = vmatpush1.msra.mxu0 0.0
    %3494 = vmatprep.subr.mxu0 0.0
    %3495 = vmatpush1.msra.mxu0 0.0
    %3496 = vmatprep.subr.mxu0 0.0
    %3497 = vmatpush1.msra.mxu0 0.0
    %3498 = vmatprep.subr.mxu0 0.0
    %3499 = vmatpush1.msra.mxu0 0.0
    %3500 = vmatprep.subr.mxu0 0.0
    %3501 = vmatpush1.msra.mxu0 0.0
    %3502 = vmatprep.subr.mxu0 0.0
    %3503 = vmatpush1.msra.mxu0 0.0
    %3504 = vmatprep.subr.mxu0 0.0
    %3505 = vmatpush1.msra.mxu0 0.0
    %3506 = vmatprep.subr.mxu0 0.0
    %3507 = vmatpush1.msra.mxu0 0.0
    %3508 = vmatprep.subr.mxu0 0.0
    %3509 = vmatpush1.msra.mxu0 0.0
    %3510 = vmatprep.subr.mxu0 0.0
    %3511 = vmatpush1.msra.mxu0 0.0
    %3512 = vmatprep.subr.mxu0 0.0
    %3513 = vmatpush1.msra.mxu0 0.0
    %3514 = vmatprep.subr.mxu0 0.0
    %3515 = vmatpush1.msra.mxu0 0.0
    %3516 = vmatprep.subr.mxu0 0.0
    %3517 = vmatpush1.msra.mxu0 0.0
    %3518 = vmatprep.subr.mxu0 0.0
    %3519 = vmatpush1.msra.mxu0 0.0
    %3520 = vmatprep.subr.mxu0 0.0
    %3521 = vmatpush1.msra.mxu0 0.0
    %3522 = vmatprep.subr.mxu0 0.0
    %3523 = vmatpush1.msra.mxu0 0.0
    %3524 = vmatprep.subr.mxu0 0.0
    %3525 = vmatpush1.msra.mxu0 0.0
    %3526 = vmatprep.subr.mxu0 0.0
    %3527 = vmatpush1.msra.mxu0 0.0
    %3528 = vmatprep.subr.mxu0 0.0
    %3529 = vmatpush1.msra.mxu0 0.0
    %3530 = vmatprep.subr.mxu0 0.0
    %3531 = vmatpush1.msra.mxu0 0.0
    %3532 = vmatprep.subr.mxu0 0.0
    %3533 = vmatpush1.msra.mxu0 0.0
    %3534 = vmatprep.subr.mxu0 0.0
    %3535 = vmatpush1.msra.mxu0 0.0
    %3536 = vmatprep.subr.mxu0 0.0
    %3537 = vmatpush1.msra.mxu0 0.0
    %3538 = vmatprep.subr.mxu0 0.0
    %3539 = vmatpush1.msra.mxu0 0.0
    %3540 = vmatprep.subr.mxu0 0.0
    %3541 = vmatpush1.msra.mxu0 0.0
    %3542 = vmatprep.subr.mxu0 0.0
    %3543 = vmatpush1.msra.mxu0 0.0
    %3544 = vmatprep.subr.mxu0 0.0
    %3545 = vmatpush1.msra.mxu0 0.0
    %3546 = vmatprep.subr.mxu0 0.0
    %3547 = vmatpush1.msra.mxu0 0.0
    %3548 = vmatprep.subr.mxu0 0.0
    %3549 = vmatpush1.msra.mxu0 0.0
    %3550 = vmatprep.subr.mxu0 0.0
    %3551 = vmatpush1.msra.mxu0 0.0
    %3552 = vmatprep.mubr.f32.mxu0 0.0
    %3553 = vmatmul.mubr.f32.gmra.mrb[0].mxu0 %v3486
    %v3554 = vpop.f32.mrb[0].mxu0
    %v3555 = vadd.f32 0.0, %v3554
    %v3556 = vpop.f32.mrb[0].mxu0
    %3557 = vdwg.mxu0
    %v3558 = vadd.f32 %v3314, %v3555
    %3559 = vrot.lane.b32.xlu0 %v2654, 104
    %v3560 = vpop.permute.xlu0 %3559
    %3561 = vrot.lane.b32.xlu0 %v2743, 104
    %v3562 = vpop.permute.xlu0 %3561
    %v3563 = vsel %vm586, %v3560, 0
    %v3565 = vsel %vm586, %v3562, 0
    %3567 = vmatprep.subr.mxu0 0.0
    %3568 = vmatpush1.xpose.msra.mxu0 %v3565
    %3569 = vmatprep.subr.mxu0 0.0
    %3570 = vmatpush1.xpose.msra.mxu0 0.0
    %3571 = vmatprep.subr.mxu0 0.0
    %3572 = vmatpush1.xpose.msra.mxu0 0.0
    %3573 = vmatprep.subr.mxu0 0.0
    %3574 = vmatpush1.xpose.msra.mxu0 0.0
    %3575 = vmatprep.subr.mxu0 0.0
    %3576 = vmatpush1.xpose.msra.mxu0 0.0
    %3577 = vmatprep.subr.mxu0 0.0
    %3578 = vmatpush1.xpose.msra.mxu0 0.0
    %3579 = vmatprep.subr.mxu0 0.0
    %3580 = vmatpush1.xpose.msra.mxu0 0.0
    %3581 = vmatprep.subr.mxu0 0.0
    %3582 = vmatpush1.xpose.msra.mxu0 0.0
    %3583 = vmatprep.subr.mxu0 0.0
    %3584 = vmatpush1.xpose.msra.mxu0 0.0
    %3585 = vmatprep.subr.mxu0 0.0
    %3586 = vmatpush1.xpose.msra.mxu0 0.0
    %3587 = vmatprep.subr.mxu0 0.0
    %3588 = vmatpush1.xpose.msra.mxu0 0.0
    %3589 = vmatprep.subr.mxu0 0.0
    %3590 = vmatpush1.xpose.msra.mxu0 0.0
    %3591 = vmatprep.subr.mxu0 0.0
    %3592 = vmatpush1.xpose.msra.mxu0 0.0
    %3593 = vmatprep.subr.mxu0 0.0
    %3594 = vmatpush1.xpose.msra.mxu0 0.0
    %3595 = vmatprep.subr.mxu0 0.0
    %3596 = vmatpush1.xpose.msra.mxu0 0.0
    %3597 = vmatprep.subr.mxu0 0.0
    %3598 = vmatpush1.xpose.msra.mxu0 0.0
    %3599 = vmatprep.subr.mxu0 0.0
    %3600 = vmatpush1.xpose.msra.mxu0 0.0
    %3601 = vmatprep.subr.mxu0 0.0
    %3602 = vmatpush1.xpose.msra.mxu0 0.0
    %3603 = vmatprep.subr.mxu0 0.0
    %3604 = vmatpush1.xpose.msra.mxu0 0.0
    %3605 = vmatprep.subr.mxu0 0.0
    %3606 = vmatpush1.xpose.msra.mxu0 0.0
    %3607 = vmatprep.subr.mxu0 0.0
    %3608 = vmatpush1.xpose.msra.mxu0 0.0
    %3609 = vmatprep.subr.mxu0 0.0
    %3610 = vmatpush1.xpose.msra.mxu0 0.0
    %3611 = vmatprep.subr.mxu0 0.0
    %3612 = vmatpush1.xpose.msra.mxu0 0.0
    %3613 = vmatprep.subr.mxu0 0.0
    %3614 = vmatpush1.xpose.msra.mxu0 0.0
    %3615 = vmatprep.subr.mxu0 0.0
    %3616 = vmatpush1.xpose.msra.mxu0 0.0
    %3617 = vmatprep.subr.mxu0 0.0
    %3618 = vmatpush1.xpose.msra.mxu0 0.0
    %3619 = vmatprep.subr.mxu0 0.0
    %3620 = vmatpush1.xpose.msra.mxu0 0.0
    %3621 = vmatprep.subr.mxu0 0.0
    %3622 = vmatpush1.xpose.msra.mxu0 0.0
    %3623 = vmatprep.subr.mxu0 0.0
    %3624 = vmatpush1.xpose.msra.mxu0 0.0
    %3625 = vmatprep.subr.mxu0 0.0
    %3626 = vmatpush1.xpose.msra.mxu0 0.0
    %3627 = vmatprep.subr.mxu0 0.0
    %3628 = vmatpush1.xpose.msra.mxu0 0.0
    %3629 = vmatprep.subr.mxu0 0.0
    %3630 = vmatpush1.xpose.msra.mxu0 0.0
    %3631 = vmatprep.mubr.f32.mxu0 0.0
    %3632 = vmatmul.mubr.f32.gmra.mrb[0].mxu0 %v3563
    %v3633 = vpop.f32.mrb[0].mxu0
    %v3634 = vadd.f32 0.0, %v3633
    %v3635 = vpop.f32.mrb[0].mxu0
    %3636 = vdwg.mxu0
    %v3637 = vmul.f32 %v3634, 0.35355338
    %v3638 = vadd.f32 %v3637, %v2915
    %v3639 = vsel %vm586, %v3638, -inf
    %3640 = vmax.xlane.f32.xlu0 %v3639
    %v3641 = vpop.xlane.xlu0 %3640
    %v3642 = vsub.f32 %v3638, %v3641
    %v3643 = vmul.f32 %v3642, 1.442695
    %v3644 = vpow.pop %v3643
    %v3645 = vsel %vm586, %v3644, 0.0
    %3646 = vadd.xlane.f32.xlu0 %v3645
    %v3647 = vpop.xlane.xlu0 %3646
    %v3648 = vrcp.pop %v3647
    %v3649 = vmul.f32 %v3644, %v3648
    %3650 = vrot.lane.b32.xlu0 %v2826, 104
    %v3651 = vpop.permute.xlu0 %3650
    %v3654 = vsel %vm586, %v3649, 0
    %3656 = vmatprep.subr.mxu0 0.0
    %3657 = vmatpush1.msra.mxu0 %v3651
    %3658 = vmatprep.subr.mxu0 0.0
    %3659 = vmatpush1.msra.mxu0 0.0
    %3660 = vmatprep.subr.mxu0 0.0
    %3661 = vmatpush1.msra.mxu0 0.0
    %3662 = vmatprep.subr.mxu0 0.0
    %3663 = vmatpush1.msra.mxu0 0.0
    %3664 = vmatprep.subr.mxu0 0.0
    %3665 = vmatpush1.msra.mxu0 0.0
    %3666 = vmatprep.subr.mxu0 0.0
    %3667 = vmatpush1.msra.mxu0 0.0
    %3668 = vmatprep.subr.mxu0 0.0
    %3669 = vmatpush1.msra.mxu0 0.0
    %3670 = vmatprep.subr.mxu0 0.0
    %3671 = vmatpush1.msra.mxu0 0.0
    %3672 = vmatprep.subr.mxu0 0.0
    %3673 = vmatpush1.msra.mxu0 0.0
    %3674 = vmatprep.subr.mxu0 0.0
    %3675 = vmatpush1.msra.mxu0 0.0
    %3676 = vmatprep.subr.mxu0 0.0
    %3677 = vmatpush1.msra.mxu0 0.0
    %3678 = vmatprep.subr.mxu0 0.0
    %3679 = vmatpush1.msra.mxu0 0.0
    %3680 = vmatprep.subr.mxu0 0.0
    %3681 = vmatpush1.msra.mxu0 0.0
    %3682 = vmatprep.subr.mxu0 0.0
    %3683 = vmatpush1.msra.mxu0 0.0
    %3684 = vmatprep.subr.mxu0 0.0
    %3685 = vmatpush1.msra.mxu0 0.0
    %3686 = vmatprep.subr.mxu0 0.0
    %3687 = vmatpush1.msra.mxu0 0.0
    %3688 = vmatprep.subr.mxu0 0.0
    %3689 = vmatpush1.msra.mxu0 0.0
    %3690 = vmatprep.subr.mxu0 0.0
    %3691 = vmatpush1.msra.mxu0 0.0
    %3692 = vmatprep.subr.mxu0 0.0
    %3693 = vmatpush1.msra.mxu0 0.0
    %3694 = vmatprep.subr.mxu0 0.0
    %3695 = vmatpush1.msra.mxu0 0.0
    %3696 = vmatprep.subr.mxu0 0.0
    %3697 = vmatpush1.msra.mxu0 0.0
    %3698 = vmatprep.subr.mxu0 0.0
    %3699 = vmatpush1.msra.mxu0 0.0
    %3700 = vmatprep.subr.mxu0 0.0
    %3701 = vmatpush1.msra.mxu0 0.0
    %3702 = vmatprep.subr.mxu0 0.0
    %3703 = vmatpush1.msra.mxu0 0.0
    %3704 = vmatprep.subr.mxu0 0.0
    %3705 = vmatpush1.msra.mxu0 0.0
    %3706 = vmatprep.subr.mxu0 0.0
    %3707 = vmatpush1.msra.mxu0 0.0
    %3708 = vmatprep.subr.mxu0 0.0
    %3709 = vmatpush1.msra.mxu0 0.0
    %3710 = vmatprep.subr.mxu0 0.0
    %3711 = vmatpush1.msra.mxu0 0.0
    %3712 = vmatprep.subr.mxu0 0.0
    %3713 = vmatpush1.msra.mxu0 0.0
    %3714 = vmatprep.subr.mxu0 0.0
    %3715 = vmatpush1.msra.mxu0 0.0
    %3716 = vmatprep.subr.mxu0 0.0
    %3717 = vmatpush1.msra.mxu0 0.0
    %3718 = vmatprep.subr.mxu0 0.0
    %3719 = vmatpush1.msra.mxu0 0.0
    %3720 = vmatprep.mubr.f32.mxu0 0.0
    %3721 = vmatmul.mubr.f32.gmra.mrb[0].mxu0 %v3654
    %v3722 = vpop.f32.mrb[0].mxu0
    %v3723 = vadd.f32 0.0, %v3722
    %v3724 = vpop.f32.mrb[0].mxu0
    %3725 = vdwg.mxu0
    %v3726 = vld [vmem:[#allocation22 + $0x18] sm:$0xff]
    %v3728 = vsel %vm586, %v3723, 0
    %3730 = vmatprep.subr.mxu0 0.0
    %3731 = vmatpush1.msra.mxu0 %v3726
    %3732 = vmatprep.subr.mxu0 0.0
    %3733 = vmatpush1.msra.mxu0 0.0
    %3734 = vmatprep.subr.mxu0 0.0
    %3735 = vmatpush1.msra.mxu0 0.0
    %3736 = vmatprep.subr.mxu0 0.0
    %3737 = vmatpush1.msra.mxu0 0.0
    %3738 = vmatprep.subr.mxu0 0.0
    %3739 = vmatpush1.msra.mxu0 0.0
    %3740 = vmatprep.subr.mxu0 0.0
    %3741 = vmatpush1.msra.mxu0 0.0
    %3742 = vmatprep.subr.mxu0 0.0
    %3743 = vmatpush1.msra.mxu0 0.0
    %3744 = vmatprep.subr.mxu0 0.0
    %3745 = vmatpush1.msra.mxu0 0.0
    %3746 = vmatprep.subr.mxu0 0.0
    %3747 = vmatpush1.msra.mxu0 0.0
    %3748 = vmatprep.subr.mxu0 0.0
    %3749 = vmatpush1.msra.mxu0 0.0
    %3750 = vmatprep.subr.mxu0 0.0
    %3751 = vmatpush1.msra.mxu0 0.0
    %3752 = vmatprep.subr.mxu0 0.0
    %3753 = vmatpush1.msra.mxu0 0.0
    %3754 = vmatprep.subr.mxu0 0.0
    %3755 = vmatpush1.msra.mxu0 0.0
    %3756 = vmatprep.subr.mxu0 0.0
    %3757 = vmatpush1.msra.mxu0 0.0
    %3758 = vmatprep.subr.mxu0 0.0
    %3759 = vmatpush1.msra.mxu0 0.0
    %3760 = vmatprep.subr.mxu0 0.0
    %3761 = vmatpush1.msra.mxu0 0.0
    %3762 = vmatprep.subr.mxu0 0.0
    %3763 = vmatpush1.msra.mxu0 0.0
    %3764 = vmatprep.subr.mxu0 0.0
    %3765 = vmatpush1.msra.mxu0 0.0
    %3766 = vmatprep.subr.mxu0 0.0
    %3767 = vmatpush1.msra.mxu0 0.0
    %3768 = vmatprep.subr.mxu0 0.0
    %3769 = vmatpush1.msra.mxu0 0.0
    %3770 = vmatprep.subr.mxu0 0.0
    %3771 = vmatpush1.msra.mxu0 0.0
    %3772 = vmatprep.subr.mxu0 0.0
    %3773 = vmatpush1.msra.mxu0 0.0
    %3774 = vmatprep.subr.mxu0 0.0
    %3775 = vmatpush1.msra.mxu0 0.0
    %3776 = vmatprep.subr.mxu0 0.0
    %3777 = vmatpush1.msra.mxu0 0.0
    %3778 = vmatprep.subr.mxu0 0.0
    %3779 = vmatpush1.msra.mxu0 0.0
    %3780 = vmatprep.subr.mxu0 0.0
    %3781 = vmatpush1.msra.mxu0 0.0
    %3782 = vmatprep.subr.mxu0 0.0
    %3783 = vmatpush1.msra.mxu0 0.0
    %3784 = vmatprep.subr.mxu0 0.0
    %3785 = vmatpush1.msra.mxu0 0.0
    %3786 = vmatprep.subr.mxu0 0.0
    %3787 = vmatpush1.msra.mxu0 0.0
    %3788 = vmatprep.subr.mxu0 0.0
    %3789 = vmatpush1.msra.mxu0 0.0
    %3790 = vmatprep.subr.mxu0 0.0
    %3791 = vmatpush1.msra.mxu0 0.0
    %3792 = vmatprep.subr.mxu0 0.0
    %3793 = vmatpush1.msra.mxu0 0.0
    %3794 = vmatprep.mubr.f32.mxu0 0.0
    %3795 = vmatmul.mubr.f32.gmra.mrb[0].mxu0 %v3728
    %v3796 = vpop.f32.mrb[0].mxu0
    %v3797 = vadd.f32 0.0, %v3796
    %v3798 = vpop.f32.mrb[0].mxu0
    %3799 = vdwg.mxu0
    %v3800 = vadd.f32 %v3558, %v3797
    %v3802 = vsel %vm586, %v2659, 0
    %v3805 = vsel %vm586, %v2748, 0
    %3807 = vmatprep.subr.mxu0 0.0
    %3808 = vmatpush1.xpose.msra.mxu0 %v3805
    %3809 = vmatprep.subr.mxu0 0.0
    %3810 = vmatpush1.xpose.msra.mxu0 0.0
    %3811 = vmatprep.subr.mxu0 0.0
    %3812 = vmatpush1.xpose.msra.mxu0 0.0
    %3813 = vmatprep.subr.mxu0 0.0
    %3814 = vmatpush1.xpose.msra.mxu0 0.0
    %3815 = vmatprep.subr.mxu0 0.0
    %3816 = vmatpush1.xpose.msra.mxu0 0.0
    %3817 = vmatprep.subr.mxu0 0.0
    %3818 = vmatpush1.xpose.msra.mxu0 0.0
    %3819 = vmatprep.subr.mxu0 0.0
    %3820 = vmatpush1.xpose.msra.mxu0 0.0
    %3821 = vmatprep.subr.mxu0 0.0
    %3822 = vmatpush1.xpose.msra.mxu0 0.0
    %3823 = vmatprep.subr.mxu0 0.0
    %3824 = vmatpush1.xpose.msra.mxu0 0.0
    %3825 = vmatprep.subr.mxu0 0.0
    %3826 = vmatpush1.xpose.msra.mxu0 0.0
    %3827 = vmatprep.subr.mxu0 0.0
    %3828 = vmatpush1.xpose.msra.mxu0 0.0
    %3829 = vmatprep.subr.mxu0 0.0
    %3830 = vmatpush1.xpose.msra.mxu0 0.0
    %3831 = vmatprep.subr.mxu0 0.0
    %3832 = vmatpush1.xpose.msra.mxu0 0.0
    %3833 = vmatprep.subr.mxu0 0.0
    %3834 = vmatpush1.xpose.msra.mxu0 0.0
    %3835 = vmatprep.subr.mxu0 0.0
    %3836 = vmatpush1.xpose.msra.mxu0 0.0
    %3837 = vmatprep.subr.mxu0 0.0
    %3838 = vmatpush1.xpose.msra.mxu0 0.0
    %3839 = vmatprep.subr.mxu0 0.0
    %3840 = vmatpush1.xpose.msra.mxu0 0.0
    %3841 = vmatprep.subr.mxu0 0.0
    %3842 = vmatpush1.xpose.msra.mxu0 0.0
    %3843 = vmatprep.subr.mxu0 0.0
    %3844 = vmatpush1.xpose.msra.mxu0 0.0
    %3845 = vmatprep.subr.mxu0 0.0
    %3846 = vmatpush1.xpose.msra.mxu0 0.0
    %3847 = vmatprep.subr.mxu0 0.0
    %3848 = vmatpush1.xpose.msra.mxu0 0.0
    %3849 = vmatprep.subr.mxu0 0.0
    %3850 = vmatpush1.xpose.msra.mxu0 0.0
    %3851 = vmatprep.subr.mxu0 0.0
    %3852 = vmatpush1.xpose.msra.mxu0 0.0
    %3853 = vmatprep.subr.mxu0 0.0
    %3854 = vmatpush1.xpose.msra.mxu0 0.0
    %3855 = vmatprep.subr.mxu0 0.0
    %3856 = vmatpush1.xpose.msra.mxu0 0.0
    %3857 = vmatprep.subr.mxu0 0.0
    %3858 = vmatpush1.xpose.msra.mxu0 0.0
    %3859 = vmatprep.subr.mxu0 0.0
    %3860 = vmatpush1.xpose.msra.mxu0 0.0
    %3861 = vmatprep.subr.mxu0 0.0
    %3862 = vmatpush1.xpose.msra.mxu0 0.0
    %3863 = vmatprep.subr.mxu0 0.0
    %3864 = vmatpush1.xpose.msra.mxu0 0.0
    %3865 = vmatprep.subr.mxu0 0.0
    %3866 = vmatpush1.xpose.msra.mxu0 0.0
    %3867 = vmatprep.subr.mxu0 0.0
    %3868 = vmatpush1.xpose.msra.mxu0 0.0
    %3869 = vmatprep.subr.mxu0 0.0
    %3870 = vmatpush1.xpose.msra.mxu0 0.0
    %3871 = vmatprep.mubr.f32.mxu0 0.0
    %3872 = vmatmul.mubr.f32.gmra.mrb[0].mxu0 %v3802
    %v3873 = vpop.f32.mrb[0].mxu0
    %v3874 = vadd.f32 0.0, %v3873
    %v3875 = vpop.f32.mrb[0].mxu0
    %3876 = vdwg.mxu0
    %v3877 = vmul.f32 %v3874, 0.35355338
    %v3878 = vlaneseq
    %v3879 = vshrl.u32 %v3878, 7
    %v3880 = vsub.s32 1, %v3879
    %v3881 = vrot.slane %v272, %v3880
    %v3882 = vadd.f32 %v3877, %v3881
    %v3883 = vsel %vm586, %v3882, -inf
    %3884 = vmax.xlane.f32.xlu0 %v3883
    %v3885 = vpop.xlane.xlu0 %3884
    %v3886 = vsub.f32 %v3882, %v3885
    %v3887 = vmul.f32 %v3886, 1.442695
    %v3888 = vpow.pop %v3887
    %v3889 = vsel %vm586, %v3888, 0.0
    %3890 = vadd.xlane.f32.xlu0 %v3889
    %v3891 = vpop.xlane.xlu0 %3890
    %v3892 = vrcp.pop %v3891
    %v3893 = vmul.f32 %v3888, %v3892
    %v3895 = vsel %vm586, %v3893, 0
    %3897 = vmatprep.subr.mxu0 0.0
    %3898 = vmatpush1.msra.mxu0 %v2831
    %3899 = vmatprep.subr.mxu0 0.0
    %3900 = vmatpush1.msra.mxu0 0.0
    %3901 = vmatprep.subr.mxu0 0.0
    %3902 = vmatpush1.msra.mxu0 0.0
    %3903 = vmatprep.subr.mxu0 0.0
    %3904 = vmatpush1.msra.mxu0 0.0
    %3905 = vmatprep.subr.mxu0 0.0
    %3906 = vmatpush1.msra.mxu0 0.0
    %3907 = vmatprep.subr.mxu0 0.0
    %3908 = vmatpush1.msra.mxu0 0.0
    %3909 = vmatprep.subr.mxu0 0.0
    %3910 = vmatpush1.msra.mxu0 0.0
    %3911 = vmatprep.subr.mxu0 0.0
    %3912 = vmatpush1.msra.mxu0 0.0
    %3913 = vmatprep.subr.mxu0 0.0
    %3914 = vmatpush1.msra.mxu0 0.0
    %3915 = vmatprep.subr.mxu0 0.0
    %3916 = vmatpush1.msra.mxu0 0.0
    %3917 = vmatprep.subr.mxu0 0.0
    %3918 = vmatpush1.msra.mxu0 0.0
    %3919 = vmatprep.subr.mxu0 0.0
    %3920 = vmatpush1.msra.mxu0 0.0
    %3921 = vmatprep.subr.mxu0 0.0
    %3922 = vmatpush1.msra.mxu0 0.0
    %3923 = vmatprep.subr.mxu0 0.0
    %3924 = vmatpush1.msra.mxu0 0.0
    %3925 = vmatprep.subr.mxu0 0.0
    %3926 = vmatpush1.msra.mxu0 0.0
    %3927 = vmatprep.subr.mxu0 0.0
    %3928 = vmatpush1.msra.mxu0 0.0
    %3929 = vmatprep.subr.mxu0 0.0
    %3930 = vmatpush1.msra.mxu0 0.0
    %3931 = vmatprep.subr.mxu0 0.0
    %3932 = vmatpush1.msra.mxu0 0.0
    %3933 = vmatprep.subr.mxu0 0.0
    %3934 = vmatpush1.msra.mxu0 0.0
    %3935 = vmatprep.subr.mxu0 0.0
    %3936 = vmatpush1.msra.mxu0 0.0
    %3937 = vmatprep.subr.mxu0 0.0
    %3938 = vmatpush1.msra.mxu0 0.0
    %3939 = vmatprep.subr.mxu0 0.0
    %3940 = vmatpush1.msra.mxu0 0.0
    %3941 = vmatprep.subr.mxu0 0.0
    %3942 = vmatpush1.msra.mxu0 0.0
    %3943 = vmatprep.subr.mxu0 0.0
    %3944 = vmatpush1.msra.mxu0 0.0
    %3945 = vmatprep.subr.mxu0 0.0
    %3946 = vmatpush1.msra.mxu0 0.0
    %3947 = vmatprep.subr.mxu0 0.0
    %3948 = vmatpush1.msra.mxu0 0.0
    %3949 = vmatprep.subr.mxu0 0.0
    %3950 = vmatpush1.msra.mxu0 0.0
    %3951 = vmatprep.subr.mxu0 0.0
    %3952 = vmatpush1.msra.mxu0 0.0
    %3953 = vmatprep.subr.mxu0 0.0
    %3954 = vmatpush1.msra.mxu0 0.0
    %3955 = vmatprep.subr.mxu0 0.0
    %3956 = vmatpush1.msra.mxu0 0.0
    %3957 = vmatprep.subr.mxu0 0.0
    %3958 = vmatpush1.msra.mxu0 0.0
    %3959 = vmatprep.subr.mxu0 0.0
    %3960 = vmatpush1.msra.mxu0 0.0
    %3961 = vmatprep.mubr.f32.mxu0 0.0
    %3962 = vmatmul.mubr.f32.gmra.mrb[0].mxu0 %v3895
    %v3963 = vpop.f32.mrb[0].mxu0
    %v3964 = vadd.f32 0.0, %v3963
    %v3965 = vpop.f32.mrb[0].mxu0
    %3966 = vdwg.mxu0
    %3967 = vrot.lane.b32.xlu0 %v2659, 120
    %v3968 = vpop.permute.xlu0 %3967
    %3969 = vrot.lane.b32.xlu0 %v2748, 120
    %v3970 = vpop.permute.xlu0 %3969
    %v3971 = vsel %vm586, %v3968, 0
    %v3973 = vsel %vm586, %v3970, 0
    %3975 = vmatprep.subr.mxu0 0.0
    %3976 = vmatpush1.xpose.msra.mxu0 %v3973
    %3977 = vmatprep.subr.mxu0 0.0
    %3978 = vmatpush1.xpose.msra.mxu0 0.0
    %3979 = vmatprep.subr.mxu0 0.0
    %3980 = vmatpush1.xpose.msra.mxu0 0.0
    %3981 = vmatprep.subr.mxu0 0.0
    %3982 = vmatpush1.xpose.msra.mxu0 0.0
    %3983 = vmatprep.subr.mxu0 0.0
    %3984 = vmatpush1.xpose.msra.mxu0 0.0
    %3985 = vmatprep.subr.mxu0 0.0
    %3986 = vmatpush1.xpose.msra.mxu0 0.0
    %3987 = vmatprep.subr.mxu0 0.0
    %3988 = vmatpush1.xpose.msra.mxu0 0.0
    %3989 = vmatprep.subr.mxu0 0.0
    %3990 = vmatpush1.xpose.msra.mxu0 0.0
    %3991 = vmatprep.subr.mxu0 0.0
    %3992 = vmatpush1.xpose.msra.mxu0 0.0
    %3993 = vmatprep.subr.mxu0 0.0
    %3994 = vmatpush1.xpose.msra.mxu0 0.0
    %3995 = vmatprep.subr.mxu0 0.0
    %3996 = vmatpush1.xpose.msra.mxu0 0.0
    %3997 = vmatprep.subr.mxu0 0.0
    %3998 = vmatpush1.xpose.msra.mxu0 0.0
    %3999 = vmatprep.subr.mxu0 0.0
    %4000 = vmatpush1.xpose.msra.mxu0 0.0
    %4001 = vmatprep.subr.mxu0 0.0
    %4002 = vmatpush1.xpose.msra.mxu0 0.0
    %4003 = vmatprep.subr.mxu0 0.0
    %4004 = vmatpush1.xpose.msra.mxu0 0.0
    %4005 = vmatprep.subr.mxu0 0.0
    %4006 = vmatpush1.xpose.msra.mxu0 0.0
    %4007 = vmatprep.subr.mxu0 0.0
    %4008 = vmatpush1.xpose.msra.mxu0 0.0
    %4009 = vmatprep.subr.mxu0 0.0
    %4010 = vmatpush1.xpose.msra.mxu0 0.0
    %4011 = vmatprep.subr.mxu0 0.0
    %4012 = vmatpush1.xpose.msra.mxu0 0.0
    %4013 = vmatprep.subr.mxu0 0.0
    %4014 = vmatpush1.xpose.msra.mxu0 0.0
    %4015 = vmatprep.subr.mxu0 0.0
    %4016 = vmatpush1.xpose.msra.mxu0 0.0
    %4017 = vmatprep.subr.mxu0 0.0
    %4018 = vmatpush1.xpose.msra.mxu0 0.0
    %4019 = vmatprep.subr.mxu0 0.0
    %4020 = vmatpush1.xpose.msra.mxu0 0.0
    %4021 = vmatprep.subr.mxu0 0.0
    %4022 = vmatpush1.xpose.msra.mxu0 0.0
    %4023 = vmatprep.subr.mxu0 0.0
    %4024 = vmatpush1.xpose.msra.mxu0 0.0
    %4025 = vmatprep.subr.mxu0 0.0
    %4026 = vmatpush1.xpose.msra.mxu0 0.0
    %4027 = vmatprep.subr.mxu0 0.0
    %4028 = vmatpush1.xpose.msra.mxu0 0.0
    %4029 = vmatprep.subr.mxu0 0.0
    %4030 = vmatpush1.xpose.msra.mxu0 0.0
    %4031 = vmatprep.subr.mxu0 0.0
    %4032 = vmatpush1.xpose.msra.mxu0 0.0
    %4033 = vmatprep.subr.mxu0 0.0
    %4034 = vmatpush1.xpose.msra.mxu0 0.0
    %4035 = vmatprep.subr.mxu0 0.0
    %4036 = vmatpush1.xpose.msra.mxu0 0.0
    %4037 = vmatprep.subr.mxu0 0.0
    %4038 = vmatpush1.xpose.msra.mxu0 0.0
    %4039 = vmatprep.mubr.f32.mxu0 0.0
    %4040 = vmatmul.mubr.f32.gmra.mrb[0].mxu0 %v3971
    %v4041 = vpop.f32.mrb[0].mxu0
    %v4042 = vadd.f32 0.0, %v4041
    %v4043 = vpop.f32.mrb[0].mxu0
    %4044 = vdwg.mxu0
    %v4045 = vmul.f32 %v4042, 0.35355338
    %v4046 = vadd.f32 %v4045, %v3881
    %v4047 = vsel %vm586, %v4046, -inf
    %4048 = vmax.xlane.f32.xlu0 %v4047
    %v4049 = vpop.xlane.xlu0 %4048
    %v4050 = vsub.f32 %v4046, %v4049
    %v4051 = vmul.f32 %v4050, 1.442695
    %v4052 = vpow.pop %v4051
    %v4053 = vsel %vm586, %v4052, 0.0
    %4054 = vadd.xlane.f32.xlu0 %v4053
    %v4055 = vpop.xlane.xlu0 %4054
    %v4056 = vrcp.pop %v4055
    %v4057 = vmul.f32 %v4052, %v4056
    %4059 = vrot.lane.b32.xlu0 %v2831, 120
    %v4060 = vpop.permute.xlu0 %4059
    %v4063 = vsel %vm586, %v4057, 0
    %4065 = vmatprep.subr.mxu0 0.0
    %4066 = vmatpush1.msra.mxu0 %v4060
    %4067 = vmatprep.subr.mxu0 0.0
    %4068 = vmatpush1.msra.mxu0 0.0
    %4069 = vmatprep.subr.mxu0 0.0
    %4070 = vmatpush1.msra.mxu0 0.0
    %4071 = vmatprep.subr.mxu0 0.0
    %4072 = vmatpush1.msra.mxu0 0.0
    %4073 = vmatprep.subr.mxu0 0.0
    %4074 = vmatpush1.msra.mxu0 0.0
    %4075 = vmatprep.subr.mxu0 0.0
    %4076 = vmatpush1.msra.mxu0 0.0
    %4077 = vmatprep.subr.mxu0 0.0
    %4078 = vmatpush1.msra.mxu0 0.0
    %4079 = vmatprep.subr.mxu0 0.0
    %4080 = vmatpush1.msra.mxu0 0.0
    %4081 = vmatprep.subr.mxu0 0.0
    %4082 = vmatpush1.msra.mxu0 0.0
    %4083 = vmatprep.subr.mxu0 0.0
    %4084 = vmatpush1.msra.mxu0 0.0
    %4085 = vmatprep.subr.mxu0 0.0
    %4086 = vmatpush1.msra.mxu0 0.0
    %4087 = vmatprep.subr.mxu0 0.0
    %4088 = vmatpush1.msra.mxu0 0.0
    %4089 = vmatprep.subr.mxu0 0.0
    %4090 = vmatpush1.msra.mxu0 0.0
    %4091 = vmatprep.subr.mxu0 0.0
    %4092 = vmatpush1.msra.mxu0 0.0
    %4093 = vmatprep.subr.mxu0 0.0
    %4094 = vmatpush1.msra.mxu0 0.0
    %4095 = vmatprep.subr.mxu0 0.0
    %4096 = vmatpush1.msra.mxu0 0.0
    %4097 = vmatprep.subr.mxu0 0.0
    %4098 = vmatpush1.msra.mxu0 0.0
    %4099 = vmatprep.subr.mxu0 0.0
    %4100 = vmatpush1.msra.mxu0 0.0
    %4101 = vmatprep.subr.mxu0 0.0
    %4102 = vmatpush1.msra.mxu0 0.0
    %4103 = vmatprep.subr.mxu0 0.0
    %4104 = vmatpush1.msra.mxu0 0.0
    %4105 = vmatprep.subr.mxu0 0.0
    %4106 = vmatpush1.msra.mxu0 0.0
    %4107 = vmatprep.subr.mxu0 0.0
    %4108 = vmatpush1.msra.mxu0 0.0
    %4109 = vmatprep.subr.mxu0 0.0
    %4110 = vmatpush1.msra.mxu0 0.0
    %4111 = vmatprep.subr.mxu0 0.0
    %4112 = vmatpush1.msra.mxu0 0.0
    %4113 = vmatprep.subr.mxu0 0.0
    %4114 = vmatpush1.msra.mxu0 0.0
    %4115 = vmatprep.subr.mxu0 0.0
    %4116 = vmatpush1.msra.mxu0 0.0
    %4117 = vmatprep.subr.mxu0 0.0
    %4118 = vmatpush1.msra.mxu0 0.0
    %4119 = vmatprep.subr.mxu0 0.0
    %4120 = vmatpush1.msra.mxu0 0.0
    %4121 = vmatprep.subr.mxu0 0.0
    %4122 = vmatpush1.msra.mxu0 0.0
    %4123 = vmatprep.subr.mxu0 0.0
    %4124 = vmatpush1.msra.mxu0 0.0
    %4125 = vmatprep.subr.mxu0 0.0
    %4126 = vmatpush1.msra.mxu0 0.0
    %4127 = vmatprep.subr.mxu0 0.0
    %4128 = vmatpush1.msra.mxu0 0.0
    %4129 = vmatprep.mubr.f32.mxu0 0.0
    %4130 = vmatmul.mubr.f32.gmra.mrb[0].mxu0 %v4063
    %v4131 = vpop.f32.mrb[0].mxu0
    %v4132 = vadd.f32 0.0, %v4131
    %v4133 = vpop.f32.mrb[0].mxu0
    %4134 = vdwg.mxu0
    %v4136 = vsel %vm586, %v4132, 0
    %4138 = vmatprep.subr.mxu0 0.0
    %4139 = vmatpush1.msra.mxu0 %v3170
    %4140 = vmatprep.subr.mxu0 0.0
    %4141 = vmatpush1.msra.mxu0 0.0
    %4142 = vmatprep.subr.mxu0 0.0
    %4143 = vmatpush1.msra.mxu0 0.0
    %4144 = vmatprep.subr.mxu0 0.0
    %4145 = vmatpush1.msra.mxu0 0.0
    %4146 = vmatprep.subr.mxu0 0.0
    %4147 = vmatpush1.msra.mxu0 0.0
    %4148 = vmatprep.subr.mxu0 0.0
    %4149 = vmatpush1.msra.mxu0 0.0
    %4150 = vmatprep.subr.mxu0 0.0
    %4151 = vmatpush1.msra.mxu0 0.0
    %4152 = vmatprep.subr.mxu0 0.0
    %4153 = vmatpush1.msra.mxu0 0.0
    %4154 = vmatprep.subr.mxu0 0.0
    %4155 = vmatpush1.msra.mxu0 0.0
    %4156 = vmatprep.subr.mxu0 0.0
    %4157 = vmatpush1.msra.mxu0 0.0
    %4158 = vmatprep.subr.mxu0 0.0
    %4159 = vmatpush1.msra.mxu0 0.0
    %4160 = vmatprep.subr.mxu0 0.0
    %4161 = vmatpush1.msra.mxu0 0.0
    %4162 = vmatprep.subr.mxu0 0.0
    %4163 = vmatpush1.msra.mxu0 0.0
    %4164 = vmatprep.subr.mxu0 0.0
    %4165 = vmatpush1.msra.mxu0 0.0
    %4166 = vmatprep.subr.mxu0 0.0
    %4167 = vmatpush1.msra.mxu0 0.0
    %4168 = vmatprep.subr.mxu0 0.0
    %4169 = vmatpush1.msra.mxu0 0.0
    %4170 = vmatprep.subr.mxu0 0.0
    %4171 = vmatpush1.msra.mxu0 0.0
    %4172 = vmatprep.subr.mxu0 0.0
    %4173 = vmatpush1.msra.mxu0 0.0
    %4174 = vmatprep.subr.mxu0 0.0
    %4175 = vmatpush1.msra.mxu0 0.0
    %4176 = vmatprep.subr.mxu0 0.0
    %4177 = vmatpush1.msra.mxu0 0.0
    %4178 = vmatprep.subr.mxu0 0.0
    %4179 = vmatpush1.msra.mxu0 0.0
    %4180 = vmatprep.subr.mxu0 0.0
    %4181 = vmatpush1.msra.mxu0 0.0
    %4182 = vmatprep.subr.mxu0 0.0
    %4183 = vmatpush1.msra.mxu0 0.0
    %4184 = vmatprep.subr.mxu0 0.0
    %4185 = vmatpush1.msra.mxu0 0.0
    %4186 = vmatprep.subr.mxu0 0.0
    %4187 = vmatpush1.msra.mxu0 0.0
    %4188 = vmatprep.subr.mxu0 0.0
    %4189 = vmatpush1.msra.mxu0 0.0
    %4190 = vmatprep.subr.mxu0 0.0
    %4191 = vmatpush1.msra.mxu0 0.0
    %4192 = vmatprep.subr.mxu0 0.0
    %4193 = vmatpush1.msra.mxu0 0.0
    %4194 = vmatprep.subr.mxu0 0.0
    %4195 = vmatpush1.msra.mxu0 0.0
    %4196 = vmatprep.subr.mxu0 0.0
    %4197 = vmatpush1.msra.mxu0 0.0
    %4198 = vmatprep.subr.mxu0 0.0
    %4199 = vmatpush1.msra.mxu0 0.0
    %4200 = vmatprep.subr.mxu0 0.0
    %4201 = vmatpush1.msra.mxu0 0.0
    %4202 = vmatprep.mubr.f32.mxu0 0.0
    %4203 = vmatmul.mubr.f32.gmra.mrb[0].mxu0 %v4136
    %v4204 = vpop.f32.mrb[0].mxu0
    %v4205 = vadd.f32 0.0, %v4204
    %v4206 = vpop.f32.mrb[0].mxu0
    %4207 = vdwg.mxu0
    %v4209 = vsel %vm586, %v3964, 0
    %4211 = vmatprep.subr.mxu0 0.0
    %4212 = vmatpush1.msra.mxu0 %v3001
    %4213 = vmatprep.subr.mxu0 0.0
    %4214 = vmatpush1.msra.mxu0 0.0
    %4215 = vmatprep.subr.mxu0 0.0
    %4216 = vmatpush1.msra.mxu0 0.0
    %4217 = vmatprep.subr.mxu0 0.0
    %4218 = vmatpush1.msra.mxu0 0.0
    %4219 = vmatprep.subr.mxu0 0.0
    %4220 = vmatpush1.msra.mxu0 0.0
    %4221 = vmatprep.subr.mxu0 0.0
    %4222 = vmatpush1.msra.mxu0 0.0
    %4223 = vmatprep.subr.mxu0 0.0
    %4224 = vmatpush1.msra.mxu0 0.0
    %4225 = vmatprep.subr.mxu0 0.0
    %4226 = vmatpush1.msra.mxu0 0.0
    %4227 = vmatprep.subr.mxu0 0.0
    %4228 = vmatpush1.msra.mxu0 0.0
    %4229 = vmatprep.subr.mxu0 0.0
    %4230 = vmatpush1.msra.mxu0 0.0
    %4231 = vmatprep.subr.mxu0 0.0
    %4232 = vmatpush1.msra.mxu0 0.0
    %4233 = vmatprep.subr.mxu0 0.0
    %4234 = vmatpush1.msra.mxu0 0.0
    %4235 = vmatprep.subr.mxu0 0.0
    %4236 = vmatpush1.msra.mxu0 0.0
    %4237 = vmatprep.subr.mxu0 0.0
    %4238 = vmatpush1.msra.mxu0 0.0
    %4239 = vmatprep.subr.mxu0 0.0
    %4240 = vmatpush1.msra.mxu0 0.0
    %4241 = vmatprep.subr.mxu0 0.0
    %4242 = vmatpush1.msra.mxu0 0.0
    %4243 = vmatprep.subr.mxu0 0.0
    %4244 = vmatpush1.msra.mxu0 0.0
    %4245 = vmatprep.subr.mxu0 0.0
    %4246 = vmatpush1.msra.mxu0 0.0
    %4247 = vmatprep.subr.mxu0 0.0
    %4248 = vmatpush1.msra.mxu0 0.0
    %4249 = vmatprep.subr.mxu0 0.0
    %4250 = vmatpush1.msra.mxu0 0.0
    %4251 = vmatprep.subr.mxu0 0.0
    %4252 = vmatpush1.msra.mxu0 0.0
    %4253 = vmatprep.subr.mxu0 0.0
    %4254 = vmatpush1.msra.mxu0 0.0
    %4255 = vmatprep.subr.mxu0 0.0
    %4256 = vmatpush1.msra.mxu0 0.0
    %4257 = vmatprep.subr.mxu0 0.0
    %4258 = vmatpush1.msra.mxu0 0.0
    %4259 = vmatprep.subr.mxu0 0.0
    %4260 = vmatpush1.msra.mxu0 0.0
    %4261 = vmatprep.subr.mxu0 0.0
    %4262 = vmatpush1.msra.mxu0 0.0
    %4263 = vmatprep.subr.mxu0 0.0
    %4264 = vmatpush1.msra.mxu0 0.0
    %4265 = vmatprep.subr.mxu0 0.0
    %4266 = vmatpush1.msra.mxu0 0.0
    %4267 = vmatprep.subr.mxu0 0.0
    %4268 = vmatpush1.msra.mxu0 0.0
    %4269 = vmatprep.subr.mxu0 0.0
    %4270 = vmatpush1.msra.mxu0 0.0
    %4271 = vmatprep.subr.mxu0 0.0
    %4272 = vmatpush1.msra.mxu0 0.0
    %4273 = vmatprep.subr.mxu0 0.0
    %4274 = vmatpush1.msra.mxu0 0.0
    %4275 = vmatprep.mubr.f32.mxu0 0.0
    %4276 = vmatmul.mubr.f32.gmra.mrb[0].mxu0 %v4209
    %v4277 = vpop.f32.mrb[0].mxu0
    %v4278 = vadd.f32 %v4205, %v4277
    %v4279 = vpop.f32.mrb[0].mxu0
    %4280 = vdwg.mxu0
    %4281 = vrot.lane.b32.xlu0 %v2659, 112
    %v4282 = vpop.permute.xlu0 %4281
    %4283 = vrot.lane.b32.xlu0 %v2748, 112
    %v4284 = vpop.permute.xlu0 %4283
    %v4285 = vsel %vm586, %v4282, 0
    %v4287 = vsel %vm586, %v4284, 0
    %4289 = vmatprep.subr.mxu0 0.0
    %4290 = vmatpush1.xpose.msra.mxu0 %v4287
    %4291 = vmatprep.subr.mxu0 0.0
    %4292 = vmatpush1.xpose.msra.mxu0 0.0
    %4293 = vmatprep.subr.mxu0 0.0
    %4294 = vmatpush1.xpose.msra.mxu0 0.0
    %4295 = vmatprep.subr.mxu0 0.0
    %4296 = vmatpush1.xpose.msra.mxu0 0.0
    %4297 = vmatprep.subr.mxu0 0.0
    %4298 = vmatpush1.xpose.msra.mxu0 0.0
    %4299 = vmatprep.subr.mxu0 0.0
    %4300 = vmatpush1.xpose.msra.mxu0 0.0
    %4301 = vmatprep.subr.mxu0 0.0
    %4302 = vmatpush1.xpose.msra.mxu0 0.0
    %4303 = vmatprep.subr.mxu0 0.0
    %4304 = vmatpush1.xpose.msra.mxu0 0.0
    %4305 = vmatprep.subr.mxu0 0.0
    %4306 = vmatpush1.xpose.msra.mxu0 0.0
    %4307 = vmatprep.subr.mxu0 0.0
    %4308 = vmatpush1.xpose.msra.mxu0 0.0
    %4309 = vmatprep.subr.mxu0 0.0
    %4310 = vmatpush1.xpose.msra.mxu0 0.0
    %4311 = vmatprep.subr.mxu0 0.0
    %4312 = vmatpush1.xpose.msra.mxu0 0.0
    %4313 = vmatprep.subr.mxu0 0.0
    %4314 = vmatpush1.xpose.msra.mxu0 0.0
    %4315 = vmatprep.subr.mxu0 0.0
    %4316 = vmatpush1.xpose.msra.mxu0 0.0
    %4317 = vmatprep.subr.mxu0 0.0
    %4318 = vmatpush1.xpose.msra.mxu0 0.0
    %4319 = vmatprep.subr.mxu0 0.0
    %4320 = vmatpush1.xpose.msra.mxu0 0.0
    %4321 = vmatprep.subr.mxu0 0.0
    %4322 = vmatpush1.xpose.msra.mxu0 0.0
    %4323 = vmatprep.subr.mxu0 0.0
    %4324 = vmatpush1.xpose.msra.mxu0 0.0
    %4325 = vmatprep.subr.mxu0 0.0
    %4326 = vmatpush1.xpose.msra.mxu0 0.0
    %4327 = vmatprep.subr.mxu0 0.0
    %4328 = vmatpush1.xpose.msra.mxu0 0.0
    %4329 = vmatprep.subr.mxu0 0.0
    %4330 = vmatpush1.xpose.msra.mxu0 0.0
    %4331 = vmatprep.subr.mxu0 0.0
    %4332 = vmatpush1.xpose.msra.mxu0 0.0
    %4333 = vmatprep.subr.mxu0 0.0
    %4334 = vmatpush1.xpose.msra.mxu0 0.0
    %4335 = vmatprep.subr.mxu0 0.0
    %4336 = vmatpush1.xpose.msra.mxu0 0.0
    %4337 = vmatprep.subr.mxu0 0.0
    %4338 = vmatpush1.xpose.msra.mxu0 0.0
    %4339 = vmatprep.subr.mxu0 0.0
    %4340 = vmatpush1.xpose.msra.mxu0 0.0
    %4341 = vmatprep.subr.mxu0 0.0
    %4342 = vmatpush1.xpose.msra.mxu0 0.0
    %4343 = vmatprep.subr.mxu0 0.0
    %4344 = vmatpush1.xpose.msra.mxu0 0.0
    %4345 = vmatprep.subr.mxu0 0.0
    %4346 = vmatpush1.xpose.msra.mxu0 0.0
    %4347 = vmatprep.subr.mxu0 0.0
    %4348 = vmatpush1.xpose.msra.mxu0 0.0
    %4349 = vmatprep.subr.mxu0 0.0
    %4350 = vmatpush1.xpose.msra.mxu0 0.0
    %4351 = vmatprep.subr.mxu0 0.0
    %4352 = vmatpush1.xpose.msra.mxu0 0.0
    %4353 = vmatprep.mubr.f32.mxu0 0.0
    %4354 = vmatmul.mubr.f32.gmra.mrb[0].mxu0 %v4285
    %v4355 = vpop.f32.mrb[0].mxu0
    %v4356 = vadd.f32 0.0, %v4355
    %v4357 = vpop.f32.mrb[0].mxu0
    %4358 = vdwg.mxu0
    %v4359 = vmul.f32 %v4356, 0.35355338
    %v4360 = vadd.f32 %v4359, %v3881
    %v4361 = vsel %vm586, %v4360, -inf
    %4362 = vmax.xlane.f32.xlu0 %v4361
    %v4363 = vpop.xlane.xlu0 %4362
    %v4364 = vsub.f32 %v4360, %v4363
    %v4365 = vmul.f32 %v4364, 1.442695
    %v4366 = vpow.pop %v4365
    %v4367 = vsel %vm586, %v4366, 0.0
    %4368 = vadd.xlane.f32.xlu0 %v4367
    %v4369 = vpop.xlane.xlu0 %4368
    %v4370 = vrcp.pop %v4369
    %v4371 = vmul.f32 %v4366, %v4370
    %4372 = vrot.lane.b32.xlu0 %v2831, 112
    %v4373 = vpop.permute.xlu0 %4372
    %v4376 = vsel %vm586, %v4371, 0
    %4378 = vmatprep.subr.mxu0 0.0
    %4379 = vmatpush1.msra.mxu0 %v4373
    %4380 = vmatprep.subr.mxu0 0.0
    %4381 = vmatpush1.msra.mxu0 0.0
    %4382 = vmatprep.subr.mxu0 0.0
    %4383 = vmatpush1.msra.mxu0 0.0
    %4384 = vmatprep.subr.mxu0 0.0
    %4385 = vmatpush1.msra.mxu0 0.0
    %4386 = vmatprep.subr.mxu0 0.0
    %4387 = vmatpush1.msra.mxu0 0.0
    %4388 = vmatprep.subr.mxu0 0.0
    %4389 = vmatpush1.msra.mxu0 0.0
    %4390 = vmatprep.subr.mxu0 0.0
    %4391 = vmatpush1.msra.mxu0 0.0
    %4392 = vmatprep.subr.mxu0 0.0
    %4393 = vmatpush1.msra.mxu0 0.0
    %4394 = vmatprep.subr.mxu0 0.0
    %4395 = vmatpush1.msra.mxu0 0.0
    %4396 = vmatprep.subr.mxu0 0.0
    %4397 = vmatpush1.msra.mxu0 0.0
    %4398 = vmatprep.subr.mxu0 0.0
    %4399 = vmatpush1.msra.mxu0 0.0
    %4400 = vmatprep.subr.mxu0 0.0
    %4401 = vmatpush1.msra.mxu0 0.0
    %4402 = vmatprep.subr.mxu0 0.0
    %4403 = vmatpush1.msra.mxu0 0.0
    %4404 = vmatprep.subr.mxu0 0.0
    %4405 = vmatpush1.msra.mxu0 0.0
    %4406 = vmatprep.subr.mxu0 0.0
    %4407 = vmatpush1.msra.mxu0 0.0
    %4408 = vmatprep.subr.mxu0 0.0
    %4409 = vmatpush1.msra.mxu0 0.0
    %4410 = vmatprep.subr.mxu0 0.0
    %4411 = vmatpush1.msra.mxu0 0.0
    %4412 = vmatprep.subr.mxu0 0.0
    %4413 = vmatpush1.msra.mxu0 0.0
    %4414 = vmatprep.subr.mxu0 0.0
    %4415 = vmatpush1.msra.mxu0 0.0
    %4416 = vmatprep.subr.mxu0 0.0
    %4417 = vmatpush1.msra.mxu0 0.0
    %4418 = vmatprep.subr.mxu0 0.0
    %4419 = vmatpush1.msra.mxu0 0.0
    %4420 = vmatprep.subr.mxu0 0.0
    %4421 = vmatpush1.msra.mxu0 0.0
    %4422 = vmatprep.subr.mxu0 0.0
    %4423 = vmatpush1.msra.mxu0 0.0
    %4424 = vmatprep.subr.mxu0 0.0
    %4425 = vmatpush1.msra.mxu0 0.0
    %4426 = vmatprep.subr.mxu0 0.0
    %4427 = vmatpush1.msra.mxu0 0.0
    %4428 = vmatprep.subr.mxu0 0.0
    %4429 = vmatpush1.msra.mxu0 0.0
    %4430 = vmatprep.subr.mxu0 0.0
    %4431 = vmatpush1.msra.mxu0 0.0
    %4432 = vmatprep.subr.mxu0 0.0
    %4433 = vmatpush1.msra.mxu0 0.0
    %4434 = vmatprep.subr.mxu0 0.0
    %4435 = vmatpush1.msra.mxu0 0.0
    %4436 = vmatprep.subr.mxu0 0.0
    %4437 = vmatpush1.msra.mxu0 0.0
    %4438 = vmatprep.subr.mxu0 0.0
    %4439 = vmatpush1.msra.mxu0 0.0
    %4440 = vmatprep.subr.mxu0 0.0
    %4441 = vmatpush1.msra.mxu0 0.0
    %4442 = vmatprep.mubr.f32.mxu0 0.0
    %4443 = vmatmul.mubr.f32.gmra.mrb[0].mxu0 %v4376
    %v4444 = vpop.f32.mrb[0].mxu0
    %v4445 = vadd.f32 0.0, %v4444
    %v4446 = vpop.f32.mrb[0].mxu0
    %4447 = vdwg.mxu0
    %v4449 = vsel %vm586, %v4445, 0
    %4451 = vmatprep.subr.mxu0 0.0
    %4452 = vmatpush1.msra.mxu0 %v3484
    %4453 = vmatprep.subr.mxu0 0.0
    %4454 = vmatpush1.msra.mxu0 0.0
    %4455 = vmatprep.subr.mxu0 0.0
    %4456 = vmatpush1.msra.mxu0 0.0
    %4457 = vmatprep.subr.mxu0 0.0
    %4458 = vmatpush1.msra.mxu0 0.0
    %4459 = vmatprep.subr.mxu0 0.0
    %4460 = vmatpush1.msra.mxu0 0.0
    %4461 = vmatprep.subr.mxu0 0.0
    %4462 = vmatpush1.msra.mxu0 0.0
    %4463 = vmatprep.subr.mxu0 0.0
    %4464 = vmatpush1.msra.mxu0 0.0
    %4465 = vmatprep.subr.mxu0 0.0
    %4466 = vmatpush1.msra.mxu0 0.0
    %4467 = vmatprep.subr.mxu0 0.0
    %4468 = vmatpush1.msra.mxu0 0.0
    %4469 = vmatprep.subr.mxu0 0.0
    %4470 = vmatpush1.msra.mxu0 0.0
    %4471 = vmatprep.subr.mxu0 0.0
    %4472 = vmatpush1.msra.mxu0 0.0
    %4473 = vmatprep.subr.mxu0 0.0
    %4474 = vmatpush1.msra.mxu0 0.0
    %4475 = vmatprep.subr.mxu0 0.0
    %4476 = vmatpush1.msra.mxu0 0.0
    %4477 = vmatprep.subr.mxu0 0.0
    %4478 = vmatpush1.msra.mxu0 0.0
    %4479 = vmatprep.subr.mxu0 0.0
    %4480 = vmatpush1.msra.mxu0 0.0
    %4481 = vmatprep.subr.mxu0 0.0
    %4482 = vmatpush1.msra.mxu0 0.0
    %4483 = vmatprep.subr.mxu0 0.0
    %4484 = vmatpush1.msra.mxu0 0.0
    %4485 = vmatprep.subr.mxu0 0.0
    %4486 = vmatpush1.msra.mxu0 0.0
    %4487 = vmatprep.subr.mxu0 0.0
    %4488 = vmatpush1.msra.mxu0 0.0
    %4489 = vmatprep.subr.mxu0 0.0
    %4490 = vmatpush1.msra.mxu0 0.0
    %4491 = vmatprep.subr.mxu0 0.0
    %4492 = vmatpush1.msra.mxu0 0.0
    %4493 = vmatprep.subr.mxu0 0.0
    %4494 = vmatpush1.msra.mxu0 0.0
    %4495 = vmatprep.subr.mxu0 0.0
    %4496 = vmatpush1.msra.mxu0 0.0
    %4497 = vmatprep.subr.mxu0 0.0
    %4498 = vmatpush1.msra.mxu0 0.0
    %4499 = vmatprep.subr.mxu0 0.0
    %4500 = vmatpush1.msra.mxu0 0.0
    %4501 = vmatprep.subr.mxu0 0.0
    %4502 = vmatpush1.msra.mxu0 0.0
    %4503 = vmatprep.subr.mxu0 0.0
    %4504 = vmatpush1.msra.mxu0 0.0
    %4505 = vmatprep.subr.mxu0 0.0
    %4506 = vmatpush1.msra.mxu0 0.0
    %4507 = vmatprep.subr.mxu0 0.0
    %4508 = vmatpush1.msra.mxu0 0.0
    %4509 = vmatprep.subr.mxu0 0.0
    %4510 = vmatpush1.msra.mxu0 0.0
    %4511 = vmatprep.subr.mxu0 0.0
    %4512 = vmatpush1.msra.mxu0 0.0
    %4513 = vmatprep.subr.mxu0 0.0
    %4514 = vmatpush1.msra.mxu0 0.0
    %4515 = vmatprep.mubr.f32.mxu0 0.0
    %4516 = vmatmul.mubr.f32.gmra.mrb[0].mxu0 %v4449
    %v4517 = vpop.f32.mrb[0].mxu0
    %v4518 = vadd.f32 0.0, %v4517
    %v4519 = vpop.f32.mrb[0].mxu0
    %4520 = vdwg.mxu0
    %v4521 = vadd.f32 %v4278, %v4518
    %4522 = vrot.lane.b32.xlu0 %v2659, 104
    %v4523 = vpop.permute.xlu0 %4522
    %4524 = vrot.lane.b32.xlu0 %v2748, 104
    %v4525 = vpop.permute.xlu0 %4524
    %v4526 = vsel %vm586, %v4523, 0
    %v4528 = vsel %vm586, %v4525, 0
    %4530 = vmatprep.subr.mxu0 0.0
    %4531 = vmatpush1.xpose.msra.mxu0 %v4528
    %4532 = vmatprep.subr.mxu0 0.0
    %4533 = vmatpush1.xpose.msra.mxu0 0.0
    %4534 = vmatprep.subr.mxu0 0.0
    %4535 = vmatpush1.xpose.msra.mxu0 0.0
    %4536 = vmatprep.subr.mxu0 0.0
    %4537 = vmatpush1.xpose.msra.mxu0 0.0
    %4538 = vmatprep.subr.mxu0 0.0
    %4539 = vmatpush1.xpose.msra.mxu0 0.0
    %4540 = vmatprep.subr.mxu0 0.0
    %4541 = vmatpush1.xpose.msra.mxu0 0.0
    %4542 = vmatprep.subr.mxu0 0.0
    %4543 = vmatpush1.xpose.msra.mxu0 0.0
    %4544 = vmatprep.subr.mxu0 0.0
    %4545 = vmatpush1.xpose.msra.mxu0 0.0
    %4546 = vmatprep.subr.mxu0 0.0
    %4547 = vmatpush1.xpose.msra.mxu0 0.0
    %4548 = vmatprep.subr.mxu0 0.0
    %4549 = vmatpush1.xpose.msra.mxu0 0.0
    %4550 = vmatprep.subr.mxu0 0.0
    %4551 = vmatpush1.xpose.msra.mxu0 0.0
    %4552 = vmatprep.subr.mxu0 0.0
    %4553 = vmatpush1.xpose.msra.mxu0 0.0
    %4554 = vmatprep.subr.mxu0 0.0
    %4555 = vmatpush1.xpose.msra.mxu0 0.0
    %4556 = vmatprep.subr.mxu0 0.0
    %4557 = vmatpush1.xpose.msra.mxu0 0.0
    %4558 = vmatprep.subr.mxu0 0.0
    %4559 = vmatpush1.xpose.msra.mxu0 0.0
    %4560 = vmatprep.subr.mxu0 0.0
    %4561 = vmatpush1.xpose.msra.mxu0 0.0
    %4562 = vmatprep.subr.mxu0 0.0
    %4563 = vmatpush1.xpose.msra.mxu0 0.0
    %4564 = vmatprep.subr.mxu0 0.0
    %4565 = vmatpush1.xpose.msra.mxu0 0.0
    %4566 = vmatprep.subr.mxu0 0.0
    %4567 = vmatpush1.xpose.msra.mxu0 0.0
    %4568 = vmatprep.subr.mxu0 0.0
    %4569 = vmatpush1.xpose.msra.mxu0 0.0
    %4570 = vmatprep.subr.mxu0 0.0
    %4571 = vmatpush1.xpose.msra.mxu0 0.0
    %4572 = vmatprep.subr.mxu0 0.0
    %4573 = vmatpush1.xpose.msra.mxu0 0.0
    %4574 = vmatprep.subr.mxu0 0.0
    %4575 = vmatpush1.xpose.msra.mxu0 0.0
    %4576 = vmatprep.subr.mxu0 0.0
    %4577 = vmatpush1.xpose.msra.mxu0 0.0
    %4578 = vmatprep.subr.mxu0 0.0
    %4579 = vmatpush1.xpose.msra.mxu0 0.0
    %4580 = vmatprep.subr.mxu0 0.0
    %4581 = vmatpush1.xpose.msra.mxu0 0.0
    %4582 = vmatprep.subr.mxu0 0.0
    %4583 = vmatpush1.xpose.msra.mxu0 0.0
    %4584 = vmatprep.subr.mxu0 0.0
    %4585 = vmatpush1.xpose.msra.mxu0 0.0
    %4586 = vmatprep.subr.mxu0 0.0
    %4587 = vmatpush1.xpose.msra.mxu0 0.0
    %4588 = vmatprep.subr.mxu0 0.0
    %4589 = vmatpush1.xpose.msra.mxu0 0.0
    %4590 = vmatprep.subr.mxu0 0.0
    %4591 = vmatpush1.xpose.msra.mxu0 0.0
    %4592 = vmatprep.subr.mxu0 0.0
    %4593 = vmatpush1.xpose.msra.mxu0 0.0
    %4594 = vmatprep.mubr.f32.mxu0 0.0
    %4595 = vmatmul.mubr.f32.gmra.mrb[0].mxu0 %v4526
    %v4596 = vpop.f32.mrb[0].mxu0
    %v4597 = vadd.f32 0.0, %v4596
    %v4598 = vpop.f32.mrb[0].mxu0
    %4599 = vdwg.mxu0
    %v4600 = vmul.f32 %v4597, 0.35355338
    %v4601 = vadd.f32 %v4600, %v3881
    %v4602 = vsel %vm586, %v4601, -inf
    %4603 = vmax.xlane.f32.xlu0 %v4602
    %v4604 = vpop.xlane.xlu0 %4603
    %v4605 = vsub.f32 %v4601, %v4604
    %v4606 = vmul.f32 %v4605, 1.442695
    %v4607 = vpow.pop %v4606
    %v4608 = vsel %vm586, %v4607, 0.0
    %4609 = vadd.xlane.f32.xlu0 %v4608
    %v4610 = vpop.xlane.xlu0 %4609
    %v4611 = vrcp.pop %v4610
    %v4612 = vmul.f32 %v4607, %v4611
    %4613 = vrot.lane.b32.xlu0 %v2831, 104
    %v4614 = vpop.permute.xlu0 %4613
    %v4617 = vsel %vm586, %v4612, 0
    %4619 = vmatprep.subr.mxu0 0.0
    %4620 = vmatpush1.msra.mxu0 %v4614
    %4621 = vmatprep.subr.mxu0 0.0
    %4622 = vmatpush1.msra.mxu0 0.0
    %4623 = vmatprep.subr.mxu0 0.0
    %4624 = vmatpush1.msra.mxu0 0.0
    %4625 = vmatprep.subr.mxu0 0.0
    %4626 = vmatpush1.msra.mxu0 0.0
    %4627 = vmatprep.subr.mxu0 0.0
    %4628 = vmatpush1.msra.mxu0 0.0
    %4629 = vmatprep.subr.mxu0 0.0
    %4630 = vmatpush1.msra.mxu0 0.0
    %4631 = vmatprep.subr.mxu0 0.0
    %4632 = vmatpush1.msra.mxu0 0.0
    %4633 = vmatprep.subr.mxu0 0.0
    %4634 = vmatpush1.msra.mxu0 0.0
    %4635 = vmatprep.subr.mxu0 0.0
    %4636 = vmatpush1.msra.mxu0 0.0
    %4637 = vmatprep.subr.mxu0 0.0
    %4638 = vmatpush1.msra.mxu0 0.0
    %4639 = vmatprep.subr.mxu0 0.0
    %4640 = vmatpush1.msra.mxu0 0.0
    %4641 = vmatprep.subr.mxu0 0.0
    %4642 = vmatpush1.msra.mxu0 0.0
    %4643 = vmatprep.subr.mxu0 0.0
    %4644 = vmatpush1.msra.mxu0 0.0
    %4645 = vmatprep.subr.mxu0 0.0
    %4646 = vmatpush1.msra.mxu0 0.0
    %4647 = vmatprep.subr.mxu0 0.0
    %4648 = vmatpush1.msra.mxu0 0.0
    %4649 = vmatprep.subr.mxu0 0.0
    %4650 = vmatpush1.msra.mxu0 0.0
    %4651 = vmatprep.subr.mxu0 0.0
    %4652 = vmatpush1.msra.mxu0 0.0
    %4653 = vmatprep.subr.mxu0 0.0
    %4654 = vmatpush1.msra.mxu0 0.0
    %4655 = vmatprep.subr.mxu0 0.0
    %4656 = vmatpush1.msra.mxu0 0.0
    %4657 = vmatprep.subr.mxu0 0.0
    %4658 = vmatpush1.msra.mxu0 0.0
    %4659 = vmatprep.subr.mxu0 0.0
    %4660 = vmatpush1.msra.mxu0 0.0
    %4661 = vmatprep.subr.mxu0 0.0
    %4662 = vmatpush1.msra.mxu0 0.0
    %4663 = vmatprep.subr.mxu0 0.0
    %4664 = vmatpush1.msra.mxu0 0.0
    %4665 = vmatprep.subr.mxu0 0.0
    %4666 = vmatpush1.msra.mxu0 0.0
    %4667 = vmatprep.subr.mxu0 0.0
    %4668 = vmatpush1.msra.mxu0 0.0
    %4669 = vmatprep.subr.mxu0 0.0
    %4670 = vmatpush1.msra.mxu0 0.0
    %4671 = vmatprep.subr.mxu0 0.0
    %4672 = vmatpush1.msra.mxu0 0.0
    %4673 = vmatprep.subr.mxu0 0.0
    %4674 = vmatpush1.msra.mxu0 0.0
    %4675 = vmatprep.subr.mxu0 0.0
    %4676 = vmatpush1.msra.mxu0 0.0
    %4677 = vmatprep.subr.mxu0 0.0
    %4678 = vmatpush1.msra.mxu0 0.0
    %4679 = vmatprep.subr.mxu0 0.0
    %4680 = vmatpush1.msra.mxu0 0.0
    %4681 = vmatprep.subr.mxu0 0.0
    %4682 = vmatpush1.msra.mxu0 0.0
    %4683 = vmatprep.mubr.f32.mxu0 0.0
    %4684 = vmatmul.mubr.f32.gmra.mrb[0].mxu0 %v4617
    %v4685 = vpop.f32.mrb[0].mxu0
    %v4686 = vadd.f32 0.0, %v4685
    %v4687 = vpop.f32.mrb[0].mxu0
    %4688 = vdwg.mxu0
    %v4690 = vsel %vm586, %v4686, 0
    %4692 = vmatprep.subr.mxu0 0.0
    %4693 = vmatpush1.msra.mxu0 %v3726
    %4694 = vmatprep.subr.mxu0 0.0
    %4695 = vmatpush1.msra.mxu0 0.0
    %4696 = vmatprep.subr.mxu0 0.0
    %4697 = vmatpush1.msra.mxu0 0.0
    %4698 = vmatprep.subr.mxu0 0.0
    %4699 = vmatpush1.msra.mxu0 0.0
    %4700 = vmatprep.subr.mxu0 0.0
    %4701 = vmatpush1.msra.mxu0 0.0
    %4702 = vmatprep.subr.mxu0 0.0
    %4703 = vmatpush1.msra.mxu0 0.0
    %4704 = vmatprep.subr.mxu0 0.0
    %4705 = vmatpush1.msra.mxu0 0.0
    %4706 = vmatprep.subr.mxu0 0.0
    %4707 = vmatpush1.msra.mxu0 0.0
    %4708 = vmatprep.subr.mxu0 0.0
    %4709 = vmatpush1.msra.mxu0 0.0
    %4710 = vmatprep.subr.mxu0 0.0
    %4711 = vmatpush1.msra.mxu0 0.0
    %4712 = vmatprep.subr.mxu0 0.0
    %4713 = vmatpush1.msra.mxu0 0.0
    %4714 = vmatprep.subr.mxu0 0.0
    %4715 = vmatpush1.msra.mxu0 0.0
    %4716 = vmatprep.subr.mxu0 0.0
    %4717 = vmatpush1.msra.mxu0 0.0
    %4718 = vmatprep.subr.mxu0 0.0
    %4719 = vmatpush1.msra.mxu0 0.0
    %4720 = vmatprep.subr.mxu0 0.0
    %4721 = vmatpush1.msra.mxu0 0.0
    %4722 = vmatprep.subr.mxu0 0.0
    %4723 = vmatpush1.msra.mxu0 0.0
    %4724 = vmatprep.subr.mxu0 0.0
    %4725 = vmatpush1.msra.mxu0 0.0
    %4726 = vmatprep.subr.mxu0 0.0
    %4727 = vmatpush1.msra.mxu0 0.0
    %4728 = vmatprep.subr.mxu0 0.0
    %4729 = vmatpush1.msra.mxu0 0.0
    %4730 = vmatprep.subr.mxu0 0.0
    %4731 = vmatpush1.msra.mxu0 0.0
    %4732 = vmatprep.subr.mxu0 0.0
    %4733 = vmatpush1.msra.mxu0 0.0
    %4734 = vmatprep.subr.mxu0 0.0
    %4735 = vmatpush1.msra.mxu0 0.0
    %4736 = vmatprep.subr.mxu0 0.0
    %4737 = vmatpush1.msra.mxu0 0.0
    %4738 = vmatprep.subr.mxu0 0.0
    %4739 = vmatpush1.msra.mxu0 0.0
    %4740 = vmatprep.subr.mxu0 0.0
    %4741 = vmatpush1.msra.mxu0 0.0
    %4742 = vmatprep.subr.mxu0 0.0
    %4743 = vmatpush1.msra.mxu0 0.0
    %4744 = vmatprep.subr.mxu0 0.0
    %4745 = vmatpush1.msra.mxu0 0.0
    %4746 = vmatprep.subr.mxu0 0.0
    %4747 = vmatpush1.msra.mxu0 0.0
    %4748 = vmatprep.subr.mxu0 0.0
    %4749 = vmatpush1.msra.mxu0 0.0
    %4750 = vmatprep.subr.mxu0 0.0
    %4751 = vmatpush1.msra.mxu0 0.0
    %4752 = vmatprep.subr.mxu0 0.0
    %4753 = vmatpush1.msra.mxu0 0.0
    %4754 = vmatprep.subr.mxu0 0.0
    %4755 = vmatpush1.msra.mxu0 0.0
    %4756 = vmatprep.mubr.f32.mxu0 0.0
    %4757 = vmatmul.mubr.f32.gmra.mrb[0].mxu0 %v4690
    %v4758 = vpop.f32.mrb[0].mxu0
    %v4759 = vadd.f32 0.0, %v4758
    %v4760 = vpop.f32.mrb[0].mxu0
    %4761 = vdwg.mxu0
    %v4762 = vadd.f32 %v4521, %v4759
    %v4764 = vlaneseq
    %v4765 = vshrl.u32 %v4764, 7
    %v4766 = vsub.s32 0, %v4765
    %v4767 = vrot.slane %v2834, %v4766
    %v4769 = vadd.f32 %v3800, %v4767
    %v4770 = vadd.f32 %v4762, %v4767
    %v4771 = vadd.f32 %v2515, %v4769
    %v4772 = vadd.f32 %v2516, %v4770
    %v4773 = vsel %vm273, %v4771, 0.0
    %4774 = vadd.xlane.f32.xlu0 %v4773
    %v4775 = vpop.xlane.xlu0 %4774
    %v4776 = vsel %vm273, %v4772, 0.0
    %4777 = vadd.xlane.f32.xlu0 %v4776
    %v4778 = vpop.xlane.xlu0 %4777
    %v4779 = vmul.f32 %v4775, 0.03125
    %v4780 = vmul.f32 %v4778, 0.03125
    %v4781 = vsub.f32 %v4771, %v4779
    %v4782 = vsub.f32 %v4772, %v4780
    %v4783 = vmul.f32 %v4781, %v4781
    %v4784 = vmul.f32 %v4782, %v4782
    %v4785 = vsel %vm273, %v4783, 0.0
    %4786 = vadd.xlane.f32.xlu0 %v4785
    %v4787 = vpop.xlane.xlu0 %4786
    %v4788 = vsel %vm273, %v4784, 0.0
    %4789 = vadd.xlane.f32.xlu0 %v4788
    %v4790 = vpop.xlane.xlu0 %4789
    %v4791 = vmul.f32 %v4787, 0.032258064
    %v4792 = vmul.f32 %v4790, 0.032258064
    %v4793 = vrsqrt.pop %v4791
    %v4794 = vmul.f32 %v4791, %v4793
    %vm4795 = vcmp.eq.f32.partialorder %v4791, inf
    %v4796 = vsel %vm4795, %v4791, %v4794
    %vm4797 = vcmp.eq.f32.partialorder %v4791, 0.0
    %v4798 = vand.u32 %v4791, 2147483648
    %v4799 = vsel %vm4797, %v4798, %v4796
    %v4800 = vrsqrt.pop %v4792
    %v4801 = vmul.f32 %v4792, %v4800
    %vm4802 = vcmp.eq.f32.partialorder %v4792, inf
    %v4803 = vsel %vm4802, %v4792, %v4801
    %vm4804 = vcmp.eq.f32.partialorder %v4792, 0.0
    %v4805 = vand.u32 %v4792, 2147483648
    %v4806 = vsel %vm4804, %v4805, %v4803
    %v4807 = vadd.f32 %v4799, 1e-06
    %v4808 = vadd.f32 %v4806, 1e-06
    %v4809 = vrcp.pop %v4807
    %v4810 = vmul.f32 1.0, %v4809
    %v4811 = vrcp.pop %v4808
    %v4812 = vmul.f32 1.0, %v4811
    %v4813 = vsub.f32 %v4771, %v4775
    %v4814 = vsub.f32 %v4772, %v4778
    %v4815 = vmul.f32 %v4813, %v4810
    %v4816 = vmul.f32 %v4814, %v4812
    %v4817 = vlaneseq
    %v4818 = vshrl.u32 %v4817, 7
    %v4819 = vsub.s32 2, %v4818
    %v4820 = vrot.slane %v263, %v4819
    %v4821 = vmul.f32 %v4820, %v4815
    %v4822 = vmul.f32 %v4820, %v4816
    %v4823 = vlaneseq
    %v4824 = vshrl.u32 %v4823, 7
    %v4825 = vsub.s32 2, %v4824
    %v4826 = vrot.slane %v264, %v4825
    %v4827 = vadd.f32 %v4821, %v4826
    %v4828 = vadd.f32 %v4822, %v4826
    %v4829 = vld [vmem:[#allocation25] sm:$0xff]
    %v4830 = vld [vmem:[#allocation25 + $0x8] sm:$0xff]
    %v4831 = vld [vmem:[#allocation25 + $0x10] sm:$0xff]
    %v4832 = vld [vmem:[#allocation25 + $0x18] sm:$0xff]
    %v4833 = vld [vmem:[%s19] sm:$0x1]
    %v4835 = vlaneseq
    %v4836 = vshrl.u32 %v4835, 7
    %v4837 = vsub.s32 0, %v4836
    %v4838 = vrot.slane %v4833, %v4837
    %v4841 = vsel %vm273, %v4827, 0
    %v4844 = vsel %vm273, %v4828, 0
    %4846 = vmatprep.subr.mxu0 0.0
    %4847 = vmatpush1.msra.mxu0 %v4829
    %4848 = vmatprep.subr.mxu0 0.0
    %4849 = vmatpush1.msra.mxu0 %v4830
    %4850 = vmatprep.subr.mxu0 0.0
    %4851 = vmatpush1.msra.mxu0 %v4831
    %4852 = vmatprep.subr.mxu0 0.0
    %4853 = vmatpush1.msra.mxu0 %v4832
    %4854 = vmatprep.subr.mxu0 0.0
    %4855 = vmatpush1.msra.mxu0 0.0
    %4856 = vmatprep.subr.mxu0 0.0
    %4857 = vmatpush1.msra.mxu0 0.0
    %4858 = vmatprep.subr.mxu0 0.0
    %4859 = vmatpush1.msra.mxu0 0.0
    %4860 = vmatprep.subr.mxu0 0.0
    %4861 = vmatpush1.msra.mxu0 0.0
    %4862 = vmatprep.subr.mxu0 0.0
    %4863 = vmatpush1.msra.mxu0 0.0
    %4864 = vmatprep.subr.mxu0 0.0
    %4865 = vmatpush1.msra.mxu0 0.0
    %4866 = vmatprep.subr.mxu0 0.0
    %4867 = vmatpush1.msra.mxu0 0.0
    %4868 = vmatprep.subr.mxu0 0.0
    %4869 = vmatpush1.msra.mxu0 0.0
    %4870 = vmatprep.subr.mxu0 0.0
    %4871 = vmatpush1.msra.mxu0 0.0
    %4872 = vmatprep.subr.mxu0 0.0
    %4873 = vmatpush1.msra.mxu0 0.0
    %4874 = vmatprep.subr.mxu0 0.0
    %4875 = vmatpush1.msra.mxu0 0.0
    %4876 = vmatprep.subr.mxu0 0.0
    %4877 = vmatpush1.msra.mxu0 0.0
    %4878 = vmatprep.subr.mxu0 0.0
    %4879 = vmatpush1.msra.mxu0 0.0
    %4880 = vmatprep.subr.mxu0 0.0
    %4881 = vmatpush1.msra.mxu0 0.0
    %4882 = vmatprep.subr.mxu0 0.0
    %4883 = vmatpush1.msra.mxu0 0.0
    %4884 = vmatprep.subr.mxu0 0.0
    %4885 = vmatpush1.msra.mxu0 0.0
    %4886 = vmatprep.subr.mxu0 0.0
    %4887 = vmatpush1.msra.mxu0 0.0
    %4888 = vmatprep.subr.mxu0 0.0
    %4889 = vmatpush1.msra.mxu0 0.0
    %4890 = vmatprep.subr.mxu0 0.0
    %4891 = vmatpush1.msra.mxu0 0.0
    %4892 = vmatprep.subr.mxu0 0.0
    %4893 = vmatpush1.msra.mxu0 0.0
    %4894 = vmatprep.subr.mxu0 0.0
    %4895 = vmatpush1.msra.mxu0 0.0
    %4896 = vmatprep.subr.mxu0 0.0
    %4897 = vmatpush1.msra.mxu0 0.0
    %4898 = vmatprep.subr.mxu0 0.0
    %4899 = vmatpush1.msra.mxu0 0.0
    %4900 = vmatprep.subr.mxu0 0.0
    %4901 = vmatpush1.msra.mxu0 0.0
    %4902 = vmatprep.subr.mxu0 0.0
    %4903 = vmatpush1.msra.mxu0 0.0
    %4904 = vmatprep.subr.mxu0 0.0
    %4905 = vmatpush1.msra.mxu0 0.0
    %4906 = vmatprep.subr.mxu0 0.0
    %4907 = vmatpush1.msra.mxu0 0.0
    %4908 = vmatprep.subr.mxu0 0.0
    %4909 = vmatpush1.msra.mxu0 0.0
    %4910 = vmatprep.mubr.f32.mxu0 0.0
    %4911 = vmatmul.mubr.f32.gmra.mrb[0].mxu0 %v4841
    %v4912 = vpop.f32.mrb[0].mxu0
    %v4913 = vadd.f32 %v4838, %v4912
    %v4914 = vpop.f32.mrb[0].mxu0
    %4915 = vmatprep.mubr.f32.mxu0 0.0
    %4916 = vmatmul.mubr.f32.gmra.mrb[0].mxu0 %v4844
    %v4917 = vpop.f32.mrb[0].mxu0
    %v4918 = vadd.f32 %v4838, %v4917
    %v4919 = vpop.f32.mrb[0].mxu0
    %4920 = vdwg.mxu0
    %v4921 = vmax.f32 %v4913, 0.0
    %v4922 = vmax.f32 %v4918, 0.0
    %v4923 = vld [vmem:[%s20] sm:$0xff]
    %v4924 = vld [vmem:[%s20 + $0x8] sm:$0xff]
    %v4925 = vld [vmem:[%s20 + $0x10] sm:$0xff]
    %v4926 = vld [vmem:[%s20 + $0x18] sm:$0xff]
    %v4927 = vld [vmem:[%s20 + $0x20] sm:$0xff]
    %v4928 = vld [vmem:[%s20 + $0x28] sm:$0xff]
    %v4929 = vld [vmem:[%s20 + $0x30] sm:$0xff]
    %v4930 = vld [vmem:[%s20 + $0x38] sm:$0xff]
    %vm4931 = vcmask 523264
    %v4933 = vsel %vm4931, %v4921, 0
    %v4936 = vsel %vm4931, %v4922, 0
    %4938 = vmatprep.subr.mxu0 0.0
    %4939 = vmatpush1.msra.mxu0 %v4923
    %4940 = vmatprep.subr.mxu0 0.0
    %4941 = vmatpush1.msra.mxu0 %v4924
    %4942 = vmatprep.subr.mxu0 0.0
    %4943 = vmatpush1.msra.mxu0 %v4925
    %4944 = vmatprep.subr.mxu0 0.0
    %4945 = vmatpush1.msra.mxu0 %v4926
    %4946 = vmatprep.subr.mxu0 0.0
    %4947 = vmatpush1.msra.mxu0 %v4927
    %4948 = vmatprep.subr.mxu0 0.0
    %4949 = vmatpush1.msra.mxu0 %v4928
    %4950 = vmatprep.subr.mxu0 0.0
    %4951 = vmatpush1.msra.mxu0 %v4929
    %4952 = vmatprep.subr.mxu0 0.0
    %4953 = vmatpush1.msra.mxu0 %v4930
    %4954 = vmatprep.subr.mxu0 0.0
    %4955 = vmatpush1.msra.mxu0 0.0
    %4956 = vmatprep.subr.mxu0 0.0
    %4957 = vmatpush1.msra.mxu0 0.0
    %4958 = vmatprep.subr.mxu0 0.0
    %4959 = vmatpush1.msra.mxu0 0.0
    %4960 = vmatprep.subr.mxu0 0.0
    %4961 = vmatpush1.msra.mxu0 0.0
    %4962 = vmatprep.subr.mxu0 0.0
    %4963 = vmatpush1.msra.mxu0 0.0
    %4964 = vmatprep.subr.mxu0 0.0
    %4965 = vmatpush1.msra.mxu0 0.0
    %4966 = vmatprep.subr.mxu0 0.0
    %4967 = vmatpush1.msra.mxu0 0.0
    %4968 = vmatprep.subr.mxu0 0.0
    %4969 = vmatpush1.msra.mxu0 0.0
    %4970 = vmatprep.subr.mxu0 0.0
    %4971 = vmatpush1.msra.mxu0 0.0
    %4972 = vmatprep.subr.mxu0 0.0
    %4973 = vmatpush1.msra.mxu0 0.0
    %4974 = vmatprep.subr.mxu0 0.0
    %4975 = vmatpush1.msra.mxu0 0.0
    %4976 = vmatprep.subr.mxu0 0.0
    %4977 = vmatpush1.msra.mxu0 0.0
    %4978 = vmatprep.subr.mxu0 0.0
    %4979 = vmatpush1.msra.mxu0 0.0
    %4980 = vmatprep.subr.mxu0 0.0
    %4981 = vmatpush1.msra.mxu0 0.0
    %4982 = vmatprep.subr.mxu0 0.0
    %4983 = vmatpush1.msra.mxu0 0.0
    %4984 = vmatprep.subr.mxu0 0.0
    %4985 = vmatpush1.msra.mxu0 0.0
    %4986 = vmatprep.subr.mxu0 0.0
    %4987 = vmatpush1.msra.mxu0 0.0
    %4988 = vmatprep.subr.mxu0 0.0
    %4989 = vmatpush1.msra.mxu0 0.0
    %4990 = vmatprep.subr.mxu0 0.0
    %4991 = vmatpush1.msra.mxu0 0.0
    %4992 = vmatprep.subr.mxu0 0.0
    %4993 = vmatpush1.msra.mxu0 0.0
    %4994 = vmatprep.subr.mxu0 0.0
    %4995 = vmatpush1.msra.mxu0 0.0
    %4996 = vmatprep.subr.mxu0 0.0
    %4997 = vmatpush1.msra.mxu0 0.0
    %4998 = vmatprep.subr.mxu0 0.0
    %4999 = vmatpush1.msra.mxu0 0.0
    %5000 = vmatprep.subr.mxu0 0.0
    %5001 = vmatpush1.msra.mxu0 0.0
    %5002 = vmatprep.mubr.f32.mxu0 0.0
    %5003 = vmatmul.mubr.f32.gmra.mrb[0].mxu0 %v4933
    %v5004 = vpop.f32.mrb[0].mxu0
    %v5005 = vadd.f32 0.0, %v5004
    %v5006 = vpop.f32.mrb[0].mxu0
    %5007 = vmatprep.mubr.f32.mxu0 0.0
    %5008 = vmatmul.mubr.f32.gmra.mrb[0].mxu0 %v4936
    %v5009 = vpop.f32.mrb[0].mxu0
    %v5010 = vadd.f32 0.0, %v5009
    %v5011 = vpop.f32.mrb[0].mxu0
    %5012 = vdwg.mxu0
    %v5013 = vadd.f32 %v4771, %v5005
    %v5014 = vadd.f32 %v4772, %v5010
    %v5015 = vld [vmem:[%s21] sm:$0x1]
    %v5017 = vlaneseq
    %v5018 = vshrl.u32 %v5017, 7
    %v5019 = vsub.s32 0, %v5018
    %v5020 = vrot.slane %v5015, %v5019
    %v5022 = vadd.f32 %v5013, %v5020
    %v5023 = vadd.f32 %v5014, %v5020
    %5024 = vst.msk [vmem:[#allocation26] sm:$0xff] %vm273, %v5022
    %5025 = vst.msk [vmem:[#allocation26 + $0x8] sm:$0xff] %vm273, %v5023
    // Predicated region
    $region150: #{tpu_custom_call.1} parent=1 // pred_check
      _
    $region151: #{tpu_custom_call.1} parent=1 // pred_check_branch
      %5027 = sbr.rel (0) target = $region153
    $region152: #{tpu_custom_call.1} parent=1 // pred_region
      %s5029 = ssub.s32 256, 256
      %5030 = vsyncadd [#allocation4], %s5029
      %s5031 = sshll.u32 [#allocation26], 4
      %s5032 = int_to_ptr.vmem [resolvable:$true] %s5031
      %5037 = dma.vmem_to_hbm [thread:$0]  %s5032, 256, %s22, [#allocation4], 128, 128, 8
    $region153: #{tpu_custom_call.1} parent=1 // pred_fallthru
      _
    // Predicated region
    $region154: #{tpu_custom_call.1} parent=1 // pred_check
      _
    $region155: #{tpu_custom_call.1} parent=1 // pred_check_branch
      %5039 = sbr.rel (0) target = $region157
    $region156: #{tpu_custom_call.1} parent=1 // pred_region
      %5040 = dma.done [#allocation4], 256
    $region157: #{tpu_custom_call.1} parent=1 // pred_fallthru
      _
    %5041 = vsyncpa [#allocation3], 1
    %5042 = vsyncpa [#allocation6], 1
    %5043 = vsyncpa [#allocation9], 1
    %5044 = vsyncpa [#allocation12], 1
    %5045 = vsyncpa [#allocation15], 1
    %5046 = vsyncpa [#allocation18], 1
    %5047 = vsyncpa [#allocation21], 1
    %5048 = vsyncpa [#allocation24], 1
    %5049 = vsyncpa [#allocation4], 1

</llo_original>
